<compile_context>
chip_gen: v7x
topology: tpu7x:2x2x1
jax: 0.10.0
libtpu: 0.0.40
codegen_flags: <defaults>
</compile_context>

<pallas_src>
import functools

import jax
import jax.numpy as jnp
import numpy as np
from jax import lax
from jax.experimental import pallas as pl
from jax.experimental.pallas import tpu as pltpu


def _cnn_fused_kernel(x_ref, w1_ref, b1_ref, w2_ref, b2_ref, ii_ref, jj_ref,
                      o_ref, *, H, W):
    # x_ref  : (M, Cin)       bf16   M = B*H*W rows (B whole images)
    # w1_ref : (Cin, 9*Cmid)  bf16   conv1 taps stacked tap-major (t = kh*3+kw)
    # b1_ref : (1, Cmid)      f32
    # w2_ref : (Cmid, 9*Cout) bf16
    # b2_ref : (1, Cout)      f32
    # ii_ref : (M, 1)         int32  row index of each flat row within its image
    # jj_ref : (M, 1)         int32  col index of each flat row within its image
    # o_ref  : (M, Cout)      f32
    M = x_ref.shape[0]
    Cmid = b1_ref.shape[-1]
    Cout = b2_ref.shape[-1]

    ii = ii_ref[...]
    jj = jj_ref[...]

    def conv3x3_bias_relu(x_flat, w_ref, b_ref, cout):
        # One long-N MXU matmul covering all 9 taps (f32 accumulation).
        y = jnp.dot(x_flat, w_ref[...], preferred_element_type=jnp.float32)

        # Centre tap (kh=kw=1) covers every output pixel and seeds the sum.
        acc = y[:, 4 * cout:5 * cout]

        # Remaining 8 taps: out[r] += y_tap[r + dh*W + dw], valid only when the
        # shifted pixel stays inside the same image ("same" zero padding).
        # Shifts go to the XLU (roll), masks to the VPU; every term is a full
        # dense (M, cout) tile -- no partial/masked stores anywhere.
        for kh in range(3):
            for kw in range(3):
                if kh == 1 and kw == 1:
                    continue
                dh, dw = kh - 1, kw - 1
                t = kh * 3 + kw
                shift = (-(dh * W + dw)) % M      # out[r] = y_tap[r + dh*W + dw]
                shifted = pltpu.roll(y[:, t * cout:(t + 1) * cout],
                                     shift=shift, axis=0)
                conds = []
                if dh == -1:
                    conds.append(ii >= 1)
                if dh == 1:
                    conds.append(ii <= H - 2)
                if dw == -1:
                    conds.append(jj >= 1)
                if dw == 1:
                    conds.append(jj <= W - 2)
                mask = conds[0]
                for c in conds[1:]:
                    mask = jnp.logical_and(mask, c)
                acc = acc + jnp.where(mask, shifted, 0.0)

        # Bias + ReLU fused into the single pass over the accumulated value.
        return jnp.maximum(acc + b_ref[...], 0.0)

    h1 = conv3x3_bias_relu(x_ref[...], w1_ref, b1_ref, Cmid)       # (M, Cmid) f32
    h2 = conv3x3_bias_relu(h1.astype(jnp.bfloat16), w2_ref, b2_ref, Cout)
    o_ref[...] = h2.astype(o_ref.dtype)                            # single dense store


def _flatten_taps_oihw(w_oihw):
    """(Cout, Cin, 3, 3) -> (Cin, 9*Cout), taps stacked tap-major (t=kh*3+kw)."""
    cout, cin, kh, kw = w_oihw.shape
    return jnp.transpose(w_oihw, (1, 2, 3, 0)).reshape(cin, kh * kw * cout)


def pack_params(params):
    """One-time repack of nn.Conv2d-layout params for the kernel.

    Hoisted out of the per-forward path so the (128,1024,3,3) transpose +
    bf16 cast is not re-run on every call."""
    w1, b1, w2, b2 = params
    return (_flatten_taps_oihw(w1).astype(jnp.bfloat16),
            b1.reshape(1, -1).astype(jnp.float32),
            _flatten_taps_oihw(w2).astype(jnp.bfloat16),
            b2.reshape(1, -1).astype(jnp.float32))


def _pick_batch_block(n, hw, target_rows=512, max_rows=1024):
    """Images per block B (divisor of n): make M = B*hw large enough to fill
    the 256-wide MXU on v6e/v7x (target >=512 rows) while keeping >= 2 grid
    steps, preferring an even step count so both v7x TensorCores stay busy and
    extra steps remain to hide DMA on v5e."""
    divisors = [b for b in range(1, n + 1) if n % b == 0]
    valid = [b for b in divisors
             if b * hw <= max_rows and (n // b >= 2 or n == 1)]
    if not valid:
        return 1
    even = [b for b in valid if (n // b) % 2 == 0 or n // b == 1]
    pool = even if even else valid
    big_enough = [b for b in pool if b * hw >= target_rows]
    # Smallest block that reaches the target keeps the most grid steps.
    return min(big_enough) if big_enough else max(pool)


def _row_coords(n_imgs, h, w):
    """Per-flat-row (i, j) image coordinates, shape (n*h*w, 1) int32 each."""
    ii = jnp.repeat(jnp.arange(h, dtype=jnp.int32), w)
    jj = jnp.tile(jnp.arange(w, dtype=jnp.int32), h)
    ii = jnp.tile(ii, n_imgs).reshape(-1, 1)
    jj = jnp.tile(jj, n_imgs).reshape(-1, 1)
    return ii, jj


def cnn_fused_2d(x2d, w1_flat, b1_2d, w2_flat, b2_2d, ii_all, jj_all,
                 *, H, W, batch_block=None):
    """Fused relu(conv2(relu(conv1(x)))) on a flattened (N*H*W, Cin) slab."""
    rows, Cin = x2d.shape
    HW = H * W
    N = rows // HW
    Cmid = b1_2d.shape[-1]
    Cout = b2_2d.shape[-1]

    B = batch_block if batch_block is not None else _pick_batch_block(N, HW)
    assert N % B == 0
    M = B * HW
    assert M % 8 == 0, "block rows must be a multiple of the sublane tile"
    grid = (N // B,)

    kernel = functools.partial(_cnn_fused_kernel, H=H, W=W)

    return pl.pallas_call(
        kernel,
        out_shape=jax.ShapeDtypeStruct((rows, Cout), jnp.float32),
        grid_spec=pltpu.PrefetchScalarGridSpec(
            num_scalar_prefetch=0,
            grid=grid,
            in_specs=[
                pl.BlockSpec((M, Cin), lambda n: (n, 0)),
                # Weights / biases have constant index maps, so Pallas keeps
                # them resident and never re-DMAs them across grid steps.
                # TODO(synk): pipeline_mode=pl.Buffered(1) on these specs would
                # also drop their second pipeline buffer (~2.5 MiB headroom).
                pl.BlockSpec((Cin, 9 * Cmid), lambda n: (0, 0)),
                pl.BlockSpec((1, Cmid), lambda n: (0, 0)),
                pl.BlockSpec((Cmid, 9 * Cout), lambda n: (0, 0)),
                pl.BlockSpec((1, Cout), lambda n: (0, 0)),
                pl.BlockSpec((M, 1), lambda n: (n, 0)),
                pl.BlockSpec((M, 1), lambda n: (n, 0)),
            ],
            out_specs=pl.BlockSpec((M, Cout), lambda n: (n, 0)),
        ),
        compiler_params=pltpu.CompilerParams(
            dimension_semantics=("parallel",),
            vmem_limit_bytes=48 * 1024 * 1024,   # <= 64 MiB physical on v7x
        ),
    )(x2d, w1_flat, b1_2d, w2_flat, b2_2d, ii_all, jj_all)


def cnn_forward(x_nchw, packed_params, batch_block=None):
    """Pallas CNN.forward; NCHW f32 in / NCHW f32 out like the PyTorch module."""
    w1_flat, b1_2d, w2_flat, b2_2d = packed_params
    N, Cin, H, W = x_nchw.shape
    Cout = b2_2d.shape[-1]
    # NCHW -> NHWC -> (N*H*W, Cin): channels on lanes, rows tile-dense.
    x2d = jnp.transpose(x_nchw, (0, 2, 3, 1)).reshape(N * H * W, Cin)
    x2d = x2d.astype(jnp.bfloat16)
    ii_all, jj_all = _row_coords(N, H, W)
    y2d = cnn_fused_2d(x2d, w1_flat, b1_2d, w2_flat, b2_2d, ii_all, jj_all,
                       H=H, W=W, batch_block=batch_block)
    y = y2d.reshape(N, H, W, Cout)
    return jnp.transpose(y, (0, 3, 1, 2))        # NHWC -> NCHW (PyTorch layout)


def init_params(key):
    """Deterministic init matching nn.Conv2d shapes:
       conv1.weight (128, 1024, 3, 3), conv2.weight (128, 128, 3, 3)."""
    k1, k2, k3, k4 = jax.random.split(key, 4)
    w1 = 0.02 * jax.random.normal(k1, (128, 1024, 3, 3), jnp.float32)
    b1 = 0.02 * jax.random.normal(k2, (128,), jnp.float32)
    w2 = 0.02 * jax.random.normal(k3, (128, 128, 3, 3), jnp.float32)
    b2 = 0.02 * jax.random.normal(k4, (128,), jnp.float32)
    return (w1, b1, w2, b2)


def _reference_forward(x_nchw, params):
    """Pure-JAX reference (lax.conv) with the same bf16-operand / f32-acc cast
    points as the kernel, for the correctness check."""
    w1, b1, w2, b2 = params

    def conv(x, w, b):
        y = jax.lax.conv_general_dilated(
            x.astype(jnp.bfloat16), w.astype(jnp.bfloat16),
            window_strides=(1, 1), padding="SAME",
            dimension_numbers=("NCHW", "OIHW", "NCHW"),
            preferred_element_type=jnp.float32)
        return jax.nn.relu(y + b.reshape(1, -1, 1, 1))

    return conv(conv(x_nchw, w1, b1), w2, b2)


if __name__ == "__main__":
    key = jax.random.PRNGKey(0)
    kx, kp = jax.random.split(key)

    # Small shapes consistent with the module: conv1 requires 1024 in-channels.
    # N=4, H=W=8 -> batch block B=2 (M = 128 rows per matmul), 2 grid steps.
    N, C, H, W = 4, 1024, 8, 8
    x = jax.random.normal(kx, (N, C, H, W), jnp.float32)

    params = init_params(kp)
    packed = pack_params(params)          # one-time weight repack (hoisted)

    fwd = jax.jit(cnn_forward)
    out = jax.block_until_ready(fwd(x, packed))
    assert out.shape == (N, 128, H, W), out.shape

    ref = jax.block_until_ready(_reference_forward(x, params))
    np.testing.assert_allclose(np.asarray(out), np.asarray(ref),
                               rtol=1e-2, atol=1e-2)

    print("KERNEL_OK")
</pallas_src>

<mosaic_0001>
module attributes {stable_mosaic.version = 11 : i64} {
  func.func @_cnn_fused_kernel(%arg0: i32, %arg1: memref<128x1024xbf16, #tpu.memory_space<vmem>>, %arg2: memref<1024x1152xbf16, #tpu.memory_space<vmem>>, %arg3: memref<1x128xf32, #tpu.memory_space<vmem>>, %arg4: memref<128x1152xbf16, #tpu.memory_space<vmem>>, %arg5: memref<1x128xf32, #tpu.memory_space<vmem>>, %arg6: memref<128x1xi32, #tpu.memory_space<vmem>>, %arg7: memref<128x1xi32, #tpu.memory_space<vmem>>, %arg8: memref<128x128xf32, #tpu.memory_space<vmem>>) attributes {dimension_semantics = [#tpu.dimension_semantics<parallel>], iteration_bounds = array<i64: 2>, scalar_prefetch = 0 : i64, scratch_operands = 0 : i64, tpu.core_type = #tpu.core_type<tc>, window_params = [{transform_indices = @transform_0, window_bounds = array<i64: 128, 1024>}, {pipeline_mode = #tpu.pipeline_mode<synchronous>, transform_indices = @transform_1, window_bounds = array<i64: 1024, 1152>}, {pipeline_mode = #tpu.pipeline_mode<synchronous>, transform_indices = @transform_2, window_bounds = array<i64: 1, 128>}, {pipeline_mode = #tpu.pipeline_mode<synchronous>, transform_indices = @transform_3, window_bounds = array<i64: 128, 1152>}, {pipeline_mode = #tpu.pipeline_mode<synchronous>, transform_indices = @transform_4, window_bounds = array<i64: 1, 128>}, {transform_indices = @transform_5, window_bounds = array<i64: 128, 1>}, {transform_indices = @transform_6, window_bounds = array<i64: 128, 1>}, {transform_indices = @transform_7, window_bounds = array<i64: 128, 128>}]} {
    %c0 = arith.constant 0 : index
    %c0_0 = arith.constant 0 : index
    %0 = vector.load %arg6[%c0, %c0_0] : memref<128x1xi32, #tpu.memory_space<vmem>>, vector<128x1xi32>
    %c0_1 = arith.constant 0 : index
    %c0_2 = arith.constant 0 : index
    %1 = vector.load %arg7[%c0_1, %c0_2] : memref<128x1xi32, #tpu.memory_space<vmem>>, vector<128x1xi32>
    %c0_3 = arith.constant 0 : index
    %c0_4 = arith.constant 0 : index
    %2 = vector.load %arg1[%c0_3, %c0_4] : memref<128x1024xbf16, #tpu.memory_space<vmem>>, vector<128x1024xbf16>
    %c0_5 = arith.constant 0 : index
    %c0_6 = arith.constant 0 : index
    %3 = vector.load %arg2[%c0_5, %c0_6] : memref<1024x1152xbf16, #tpu.memory_space<vmem>>, vector<1024x1152xbf16>
    %cst = arith.constant dense<0.000000e+00> : vector<128x1152xf32>
    %4 = tpu.matmul %2, %3, %cst {dimension_numbers = #tpu.dot_dimension_numbers<[1], [0], [0], [1], [0, 0, 1, 1], [], []>} : vector<128x1024xbf16>, vector<1024x1152xbf16>, vector<128x1152xf32> -> vector<128x1152xf32>
    %5 = vector.extract_strided_slice %4 {offsets = [0, 512], sizes = [128, 128], strides = [1, 1]} : vector<128x1152xf32> to vector<128x128xf32>
    %6 = vector.extract_strided_slice %4 {offsets = [0, 0], sizes = [128, 128], strides = [1, 1]} : vector<128x1152xf32> to vector<128x128xf32>
    %c9_i32 = arith.constant 9 : i32
    %7 = tpu.dynamic_rotate %6 by %c9_i32 dim 0 : vector<128x128xf32>, i32 -> vector<128x128xf32>
    %c1_i32 = arith.constant 1 : i32
    %8 = vector.broadcast %c1_i32 : i32 to vector<128x1xi32>
    %9 = arith.cmpi sge, %0, %8 : vector<128x1xi32>
    %c1_i32_7 = arith.constant 1 : i32
    %10 = vector.broadcast %c1_i32_7 : i32 to vector<128x1xi32>
    %11 = arith.cmpi sge, %1, %10 : vector<128x1xi32>
    %12 = arith.andi %9, %11 : vector<128x1xi1>
    %cst_8 = arith.constant 0.000000e+00 : f32
    %13 = vector.shape_cast %12 : vector<128x1xi1> to vector<128x1xi1>
    %14 = vector.broadcast %13 : vector<128x1xi1> to vector<128x128xi1>
    %15 = vector.broadcast %cst_8 : f32 to vector<128x128xf32>
    %16 = arith.select %14, %7, %15 : vector<128x128xi1>, vector<128x128xf32>
    %17 = arith.addf %5, %16 : vector<128x128xf32>
    %18 = vector.extract_strided_slice %4 {offsets = [0, 128], sizes = [128, 128], strides = [1, 1]} : vector<128x1152xf32> to vector<128x128xf32>
    %c8_i32 = arith.constant 8 : i32
    %19 = tpu.dynamic_rotate %18 by %c8_i32 dim 0 : vector<128x128xf32>, i32 -> vector<128x128xf32>
    %c1_i32_9 = arith.constant 1 : i32
    %20 = vector.broadcast %c1_i32_9 : i32 to vector<128x1xi32>
    %21 = arith.cmpi sge, %0, %20 : vector<128x1xi32>
    %cst_10 = arith.constant 0.000000e+00 : f32
    %22 = vector.shape_cast %21 : vector<128x1xi1> to vector<128x1xi1>
    %23 = vector.broadcast %22 : vector<128x1xi1> to vector<128x128xi1>
    %24 = vector.broadcast %cst_10 : f32 to vector<128x128xf32>
    %25 = arith.select %23, %19, %24 : vector<128x128xi1>, vector<128x128xf32>
    %26 = arith.addf %17, %25 : vector<128x128xf32>
    %27 = vector.extract_strided_slice %4 {offsets = [0, 256], sizes = [128, 128], strides = [1, 1]} : vector<128x1152xf32> to vector<128x128xf32>
    %c7_i32 = arith.constant 7 : i32
    %28 = tpu.dynamic_rotate %27 by %c7_i32 dim 0 : vector<128x128xf32>, i32 -> vector<128x128xf32>
    %c1_i32_11 = arith.constant 1 : i32
    %29 = vector.broadcast %c1_i32_11 : i32 to vector<128x1xi32>
    %30 = arith.cmpi sge, %0, %29 : vector<128x1xi32>
    %c6_i32 = arith.constant 6 : i32
    %31 = vector.broadcast %c6_i32 : i32 to vector<128x1xi32>
    %32 = arith.cmpi sle, %1, %31 : vector<128x1xi32>
    %33 = arith.andi %30, %32 : vector<128x1xi1>
    %cst_12 = arith.constant 0.000000e+00 : f32
    %34 = vector.shape_cast %33 : vector<128x1xi1> to vector<128x1xi1>
    %35 = vector.broadcast %34 : vector<128x1xi1> to vector<128x128xi1>
    %36 = vector.broadcast %cst_12 : f32 to vector<128x128xf32>
    %37 = arith.select %35, %28, %36 : vector<128x128xi1>, vector<128x128xf32>
    %38 = arith.addf %26, %37 : vector<128x128xf32>
    %39 = vector.extract_strided_slice %4 {offsets = [0, 384], sizes = [128, 128], strides = [1, 1]} : vector<128x1152xf32> to vector<128x128xf32>
    %c1_i32_13 = arith.constant 1 : i32
    %40 = tpu.dynamic_rotate %39 by %c1_i32_13 dim 0 : vector<128x128xf32>, i32 -> vector<128x128xf32>
    %c1_i32_14 = arith.constant 1 : i32
    %41 = vector.broadcast %c1_i32_14 : i32 to vector<128x1xi32>
    %42 = arith.cmpi sge, %1, %41 : vector<128x1xi32>
    %cst_15 = arith.constant 0.000000e+00 : f32
    %43 = vector.shape_cast %42 : vector<128x1xi1> to vector<128x1xi1>
    %44 = vector.broadcast %43 : vector<128x1xi1> to vector<128x128xi1>
    %45 = vector.broadcast %cst_15 : f32 to vector<128x128xf32>
    %46 = arith.select %44, %40, %45 : vector<128x128xi1>, vector<128x128xf32>
    %47 = arith.addf %38, %46 : vector<128x128xf32>
    %48 = vector.extract_strided_slice %4 {offsets = [0, 640], sizes = [128, 128], strides = [1, 1]} : vector<128x1152xf32> to vector<128x128xf32>
    %c127_i32 = arith.constant 127 : i32
    %49 = tpu.dynamic_rotate %48 by %c127_i32 dim 0 : vector<128x128xf32>, i32 -> vector<128x128xf32>
    %c6_i32_16 = arith.constant 6 : i32
    %50 = vector.broadcast %c6_i32_16 : i32 to vector<128x1xi32>
    %51 = arith.cmpi sle, %1, %50 : vector<128x1xi32>
    %cst_17 = arith.constant 0.000000e+00 : f32
    %52 = vector.shape_cast %51 : vector<128x1xi1> to vector<128x1xi1>
    %53 = vector.broadcast %52 : vector<128x1xi1> to vector<128x128xi1>
    %54 = vector.broadcast %cst_17 : f32 to vector<128x128xf32>
    %55 = arith.select %53, %49, %54 : vector<128x128xi1>, vector<128x128xf32>
    %56 = arith.addf %47, %55 : vector<128x128xf32>
    %57 = vector.extract_strided_slice %4 {offsets = [0, 768], sizes = [128, 128], strides = [1, 1]} : vector<128x1152xf32> to vector<128x128xf32>
    %c121_i32 = arith.constant 121 : i32
    %58 = tpu.dynamic_rotate %57 by %c121_i32 dim 0 : vector<128x128xf32>, i32 -> vector<128x128xf32>
    %c6_i32_18 = arith.constant 6 : i32
    %59 = vector.broadcast %c6_i32_18 : i32 to vector<128x1xi32>
    %60 = arith.cmpi sle, %0, %59 : vector<128x1xi32>
    %c1_i32_19 = arith.constant 1 : i32
    %61 = vector.broadcast %c1_i32_19 : i32 to vector<128x1xi32>
    %62 = arith.cmpi sge, %1, %61 : vector<128x1xi32>
    %63 = arith.andi %60, %62 : vector<128x1xi1>
    %cst_20 = arith.constant 0.000000e+00 : f32
    %64 = vector.shape_cast %63 : vector<128x1xi1> to vector<128x1xi1>
    %65 = vector.broadcast %64 : vector<128x1xi1> to vector<128x128xi1>
    %66 = vector.broadcast %cst_20 : f32 to vector<128x128xf32>
    %67 = arith.select %65, %58, %66 : vector<128x128xi1>, vector<128x128xf32>
    %68 = arith.addf %56, %67 : vector<128x128xf32>
    %69 = vector.extract_strided_slice %4 {offsets = [0, 896], sizes = [128, 128], strides = [1, 1]} : vector<128x1152xf32> to vector<128x128xf32>
    %c120_i32 = arith.constant 120 : i32
    %70 = tpu.dynamic_rotate %69 by %c120_i32 dim 0 : vector<128x128xf32>, i32 -> vector<128x128xf32>
    %c6_i32_21 = arith.constant 6 : i32
    %71 = vector.broadcast %c6_i32_21 : i32 to vector<128x1xi32>
    %72 = arith.cmpi sle, %0, %71 : vector<128x1xi32>
    %cst_22 = arith.constant 0.000000e+00 : f32
    %73 = vector.shape_cast %72 : vector<128x1xi1> to vector<128x1xi1>
    %74 = vector.broadcast %73 : vector<128x1xi1> to vector<128x128xi1>
    %75 = vector.broadcast %cst_22 : f32 to vector<128x128xf32>
    %76 = arith.select %74, %70, %75 : vector<128x128xi1>, vector<128x128xf32>
    %77 = arith.addf %68, %76 : vector<128x128xf32>
    %78 = vector.extract_strided_slice %4 {offsets = [0, 1024], sizes = [128, 128], strides = [1, 1]} : vector<128x1152xf32> to vector<128x128xf32>
    %c119_i32 = arith.constant 119 : i32
    %79 = tpu.dynamic_rotate %78 by %c119_i32 dim 0 : vector<128x128xf32>, i32 -> vector<128x128xf32>
    %c6_i32_23 = arith.constant 6 : i32
    %80 = vector.broadcast %c6_i32_23 : i32 to vector<128x1xi32>
    %81 = arith.cmpi sle, %0, %80 : vector<128x1xi32>
    %c6_i32_24 = arith.constant 6 : i32
    %82 = vector.broadcast %c6_i32_24 : i32 to vector<128x1xi32>
    %83 = arith.cmpi sle, %1, %82 : vector<128x1xi32>
    %84 = arith.andi %81, %83 : vector<128x1xi1>
    %cst_25 = arith.constant 0.000000e+00 : f32
    %85 = vector.shape_cast %84 : vector<128x1xi1> to vector<128x1xi1>
    %86 = vector.broadcast %85 : vector<128x1xi1> to vector<128x128xi1>
    %87 = vector.broadcast %cst_25 : f32 to vector<128x128xf32>
    %88 = arith.select %86, %79, %87 : vector<128x128xi1>, vector<128x128xf32>
    %89 = arith.addf %77, %88 : vector<128x128xf32>
    %c0_26 = arith.constant 0 : index
    %c0_27 = arith.constant 0 : index
    %90 = vector.load %arg3[%c0_26, %c0_27] : memref<1x128xf32, #tpu.memory_space<vmem>>, vector<1x128xf32>
    %91 = vector.broadcast %90 : vector<1x128xf32> to vector<128x128xf32>
    %92 = arith.addf %89, %91 : vector<128x128xf32>
    %cst_28 = arith.constant 0.000000e+00 : f32
    %93 = vector.broadcast %cst_28 : f32 to vector<128x128xf32>
    %94 = arith.maximumf %92, %93 : vector<128x128xf32>
    %95 = arith.truncf %94 : vector<128x128xf32> to vector<128x128xbf16>
    %c0_29 = arith.constant 0 : index
    %c0_30 = arith.constant 0 : index
    %96 = vector.load %arg4[%c0_29, %c0_30] : memref<128x1152xbf16, #tpu.memory_space<vmem>>, vector<128x1152xbf16>
    %cst_31 = arith.constant dense<0.000000e+00> : vector<128x1152xf32>
    %97 = tpu.matmul %95, %96, %cst_31 {dimension_numbers = #tpu.dot_dimension_numbers<[1], [0], [0], [1], [0, 0, 1, 1], [], []>} : vector<128x128xbf16>, vector<128x1152xbf16>, vector<128x1152xf32> -> vector<128x1152xf32>
    %98 = vector.extract_strided_slice %97 {offsets = [0, 512], sizes = [128, 128], strides = [1, 1]} : vector<128x1152xf32> to vector<128x128xf32>
    %99 = vector.extract_strided_slice %97 {offsets = [0, 0], sizes = [128, 128], strides = [1, 1]} : vector<128x1152xf32> to vector<128x128xf32>
    %c9_i32_32 = arith.constant 9 : i32
    %100 = tpu.dynamic_rotate %99 by %c9_i32_32 dim 0 : vector<128x128xf32>, i32 -> vector<128x128xf32>
    %c1_i32_33 = arith.constant 1 : i32
    %101 = vector.broadcast %c1_i32_33 : i32 to vector<128x1xi32>
    %102 = arith.cmpi sge, %0, %101 : vector<128x1xi32>
    %c1_i32_34 = arith.constant 1 : i32
    %103 = vector.broadcast %c1_i32_34 : i32 to vector<128x1xi32>
    %104 = arith.cmpi sge, %1, %103 : vector<128x1xi32>
    %105 = arith.andi %102, %104 : vector<128x1xi1>
    %cst_35 = arith.constant 0.000000e+00 : f32
    %106 = vector.shape_cast %105 : vector<128x1xi1> to vector<128x1xi1>
    %107 = vector.broadcast %106 : vector<128x1xi1> to vector<128x128xi1>
    %108 = vector.broadcast %cst_35 : f32 to vector<128x128xf32>
    %109 = arith.select %107, %100, %108 : vector<128x128xi1>, vector<128x128xf32>
    %110 = arith.addf %98, %109 : vector<128x128xf32>
    %111 = vector.extract_strided_slice %97 {offsets = [0, 128], sizes = [128, 128], strides = [1, 1]} : vector<128x1152xf32> to vector<128x128xf32>
    %c8_i32_36 = arith.constant 8 : i32
    %112 = tpu.dynamic_rotate %111 by %c8_i32_36 dim 0 : vector<128x128xf32>, i32 -> vector<128x128xf32>
    %c1_i32_37 = arith.constant 1 : i32
    %113 = vector.broadcast %c1_i32_37 : i32 to vector<128x1xi32>
    %114 = arith.cmpi sge, %0, %113 : vector<128x1xi32>
    %cst_38 = arith.constant 0.000000e+00 : f32
    %115 = vector.shape_cast %114 : vector<128x1xi1> to vector<128x1xi1>
    %116 = vector.broadcast %115 : vector<128x1xi1> to vector<128x128xi1>
    %117 = vector.broadcast %cst_38 : f32 to vector<128x128xf32>
    %118 = arith.select %116, %112, %117 : vector<128x128xi1>, vector<128x128xf32>
    %119 = arith.addf %110, %118 : vector<128x128xf32>
    %120 = vector.extract_strided_slice %97 {offsets = [0, 256], sizes = [128, 128], strides = [1, 1]} : vector<128x1152xf32> to vector<128x128xf32>
    %c7_i32_39 = arith.constant 7 : i32
    %121 = tpu.dynamic_rotate %120 by %c7_i32_39 dim 0 : vector<128x128xf32>, i32 -> vector<128x128xf32>
    %c1_i32_40 = arith.constant 1 : i32
    %122 = vector.broadcast %c1_i32_40 : i32 to vector<128x1xi32>
    %123 = arith.cmpi sge, %0, %122 : vector<128x1xi32>
    %c6_i32_41 = arith.constant 6 : i32
    %124 = vector.broadcast %c6_i32_41 : i32 to vector<128x1xi32>
    %125 = arith.cmpi sle, %1, %124 : vector<128x1xi32>
    %126 = arith.andi %123, %125 : vector<128x1xi1>
    %cst_42 = arith.constant 0.000000e+00 : f32
    %127 = vector.shape_cast %126 : vector<128x1xi1> to vector<128x1xi1>
    %128 = vector.broadcast %127 : vector<128x1xi1> to vector<128x128xi1>
    %129 = vector.broadcast %cst_42 : f32 to vector<128x128xf32>
    %130 = arith.select %128, %121, %129 : vector<128x128xi1>, vector<128x128xf32>
    %131 = arith.addf %119, %130 : vector<128x128xf32>
    %132 = vector.extract_strided_slice %97 {offsets = [0, 384], sizes = [128, 128], strides = [1, 1]} : vector<128x1152xf32> to vector<128x128xf32>
    %c1_i32_43 = arith.constant 1 : i32
    %133 = tpu.dynamic_rotate %132 by %c1_i32_43 dim 0 : vector<128x128xf32>, i32 -> vector<128x128xf32>
    %c1_i32_44 = arith.constant 1 : i32
    %134 = vector.broadcast %c1_i32_44 : i32 to vector<128x1xi32>
    %135 = arith.cmpi sge, %1, %134 : vector<128x1xi32>
    %cst_45 = arith.constant 0.000000e+00 : f32
    %136 = vector.shape_cast %135 : vector<128x1xi1> to vector<128x1xi1>
    %137 = vector.broadcast %136 : vector<128x1xi1> to vector<128x128xi1>
    %138 = vector.broadcast %cst_45 : f32 to vector<128x128xf32>
    %139 = arith.select %137, %133, %138 : vector<128x128xi1>, vector<128x128xf32>
    %140 = arith.addf %131, %139 : vector<128x128xf32>
    %141 = vector.extract_strided_slice %97 {offsets = [0, 640], sizes = [128, 128], strides = [1, 1]} : vector<128x1152xf32> to vector<128x128xf32>
    %c127_i32_46 = arith.constant 127 : i32
    %142 = tpu.dynamic_rotate %141 by %c127_i32_46 dim 0 : vector<128x128xf32>, i32 -> vector<128x128xf32>
    %c6_i32_47 = arith.constant 6 : i32
    %143 = vector.broadcast %c6_i32_47 : i32 to vector<128x1xi32>
    %144 = arith.cmpi sle, %1, %143 : vector<128x1xi32>
    %cst_48 = arith.constant 0.000000e+00 : f32
    %145 = vector.shape_cast %144 : vector<128x1xi1> to vector<128x1xi1>
    %146 = vector.broadcast %145 : vector<128x1xi1> to vector<128x128xi1>
    %147 = vector.broadcast %cst_48 : f32 to vector<128x128xf32>
    %148 = arith.select %146, %142, %147 : vector<128x128xi1>, vector<128x128xf32>
    %149 = arith.addf %140, %148 : vector<128x128xf32>
    %150 = vector.extract_strided_slice %97 {offsets = [0, 768], sizes = [128, 128], strides = [1, 1]} : vector<128x1152xf32> to vector<128x128xf32>
    %c121_i32_49 = arith.constant 121 : i32
    %151 = tpu.dynamic_rotate %150 by %c121_i32_49 dim 0 : vector<128x128xf32>, i32 -> vector<128x128xf32>
    %c6_i32_50 = arith.constant 6 : i32
    %152 = vector.broadcast %c6_i32_50 : i32 to vector<128x1xi32>
    %153 = arith.cmpi sle, %0, %152 : vector<128x1xi32>
    %c1_i32_51 = arith.constant 1 : i32
    %154 = vector.broadcast %c1_i32_51 : i32 to vector<128x1xi32>
    %155 = arith.cmpi sge, %1, %154 : vector<128x1xi32>
    %156 = arith.andi %153, %155 : vector<128x1xi1>
    %cst_52 = arith.constant 0.000000e+00 : f32
    %157 = vector.shape_cast %156 : vector<128x1xi1> to vector<128x1xi1>
    %158 = vector.broadcast %157 : vector<128x1xi1> to vector<128x128xi1>
    %159 = vector.broadcast %cst_52 : f32 to vector<128x128xf32>
    %160 = arith.select %158, %151, %159 : vector<128x128xi1>, vector<128x128xf32>
    %161 = arith.addf %149, %160 : vector<128x128xf32>
    %162 = vector.extract_strided_slice %97 {offsets = [0, 896], sizes = [128, 128], strides = [1, 1]} : vector<128x1152xf32> to vector<128x128xf32>
    %c120_i32_53 = arith.constant 120 : i32
    %163 = tpu.dynamic_rotate %162 by %c120_i32_53 dim 0 : vector<128x128xf32>, i32 -> vector<128x128xf32>
    %c6_i32_54 = arith.constant 6 : i32
    %164 = vector.broadcast %c6_i32_54 : i32 to vector<128x1xi32>
    %165 = arith.cmpi sle, %0, %164 : vector<128x1xi32>
    %cst_55 = arith.constant 0.000000e+00 : f32
    %166 = vector.shape_cast %165 : vector<128x1xi1> to vector<128x1xi1>
    %167 = vector.broadcast %166 : vector<128x1xi1> to vector<128x128xi1>
    %168 = vector.broadcast %cst_55 : f32 to vector<128x128xf32>
    %169 = arith.select %167, %163, %168 : vector<128x128xi1>, vector<128x128xf32>
    %170 = arith.addf %161, %169 : vector<128x128xf32>
    %171 = vector.extract_strided_slice %97 {offsets = [0, 1024], sizes = [128, 128], strides = [1, 1]} : vector<128x1152xf32> to vector<128x128xf32>
    %c119_i32_56 = arith.constant 119 : i32
    %172 = tpu.dynamic_rotate %171 by %c119_i32_56 dim 0 : vector<128x128xf32>, i32 -> vector<128x128xf32>
    %c6_i32_57 = arith.constant 6 : i32
    %173 = vector.broadcast %c6_i32_57 : i32 to vector<128x1xi32>
    %174 = arith.cmpi sle, %0, %173 : vector<128x1xi32>
    %c6_i32_58 = arith.constant 6 : i32
    %175 = vector.broadcast %c6_i32_58 : i32 to vector<128x1xi32>
    %176 = arith.cmpi sle, %1, %175 : vector<128x1xi32>
    %177 = arith.andi %174, %176 : vector<128x1xi1>
    %cst_59 = arith.constant 0.000000e+00 : f32
    %178 = vector.shape_cast %177 : vector<128x1xi1> to vector<128x1xi1>
    %179 = vector.broadcast %178 : vector<128x1xi1> to vector<128x128xi1>
    %180 = vector.broadcast %cst_59 : f32 to vector<128x128xf32>
    %181 = arith.select %179, %172, %180 : vector<128x128xi1>, vector<128x128xf32>
    %182 = arith.addf %170, %181 : vector<128x128xf32>
    %c0_60 = arith.constant 0 : index
    %c0_61 = arith.constant 0 : index
    %183 = vector.load %arg5[%c0_60, %c0_61] : memref<1x128xf32, #tpu.memory_space<vmem>>, vector<1x128xf32>
    %184 = vector.broadcast %183 : vector<1x128xf32> to vector<128x128xf32>
    %185 = arith.addf %182, %184 : vector<128x128xf32>
    %cst_62 = arith.constant 0.000000e+00 : f32
    %186 = vector.broadcast %cst_62 : f32 to vector<128x128xf32>
    %187 = arith.maximumf %185, %186 : vector<128x128xf32>
    %c0_63 = arith.constant 0 : index
    %c0_64 = arith.constant 0 : index
    %188 = vector.load %arg8[%c0_63, %c0_64] : memref<128x128xf32, #tpu.memory_space<vmem>>, vector<128x128xf32>
    tpu.vector_store %arg8[%c0_63, %c0_64], %187 {strides = array<i32>} : memref<128x128xf32, #tpu.memory_space<vmem>>, vector<128x128xf32>,
    return
  }
  func.func @transform_0(%arg0: i32) -> (i32, i32) {
    %c0_i32 = arith.constant 0 : i32
    %c0_i32_0 = arith.constant 0 : i32
    return %arg0, %c0_i32 : i32, i32
  }
  func.func @transform_1(%arg0: i32) -> (i32, i32) {
    %c0_i32 = arith.constant 0 : i32
    %c0_i32_0 = arith.constant 0 : i32
    %c0_i32_1 = arith.constant 0 : i32
    return %c0_i32, %c0_i32_0 : i32, i32
  }
  func.func @transform_2(%arg0: i32) -> (i32, i32) {
    %c0_i32 = arith.constant 0 : i32
    %c0_i32_0 = arith.constant 0 : i32
    %c0_i32_1 = arith.constant 0 : i32
    return %c0_i32, %c0_i32_0 : i32, i32
  }
  func.func @transform_3(%arg0: i32) -> (i32, i32) {
    %c0_i32 = arith.constant 0 : i32
    %c0_i32_0 = arith.constant 0 : i32
    %c0_i32_1 = arith.constant 0 : i32
    return %c0_i32, %c0_i32_0 : i32, i32
  }
  func.func @transform_4(%arg0: i32) -> (i32, i32) {
    %c0_i32 = arith.constant 0 : i32
    %c0_i32_0 = arith.constant 0 : i32
    %c0_i32_1 = arith.constant 0 : i32
    return %c0_i32, %c0_i32_0 : i32, i32
  }
  func.func @transform_5(%arg0: i32) -> (i32, i32) {
    %c0_i32 = arith.constant 0 : i32
    %c0_i32_0 = arith.constant 0 : i32
    return %arg0, %c0_i32 : i32, i32
  }
  func.func @transform_6(%arg0: i32) -> (i32, i32) {
    %c0_i32 = arith.constant 0 : i32
    %c0_i32_0 = arith.constant 0 : i32
    return %arg0, %c0_i32 : i32, i32
  }
  func.func @transform_7(%arg0: i32) -> (i32, i32) {
    %c0_i32 = arith.constant 0 : i32
    %c0_i32_0 = arith.constant 0 : i32
    return %arg0, %c0_i32 : i32, i32
  }
}

</mosaic_0001>

<llo_original>
// kernel: tile.24
$region0: #{tile.24}
  #allocation0 [shape = 's32[1]{0}', space=sflag, size = 0x4, scoped, tag = 'scoped memory for tile.24']
  %s0 = inlined_call_operand.vmem [shape: s32[64], index: 0, kind: input, shape index: {}]
  %s1 = inlined_call_operand.vmem [shape: s32[4,64], index: 1, kind: output, shape index: {}]
  // Predicated region
  $region2: #{tile.24} parent=0 // pred_check
    _
  $region3: #{tile.24} parent=0 // pred_check_branch
    %3 = sbr.rel (0) target = $region5
  $region4: #{tile.24} parent=0 // pred_region
    _
  $region5: #{tile.24} parent=0 // pred_fallthru
    _
  %v4 = vld [vmem:[%s0] ss:$0 sm:$0xff]
  %5 = vst [vmem:[%s1] sm:$0xf] %v4

// kernel: tile.23
$region0: #{tile.23}
  %s0 = inlined_call_operand.vmem [shape: s32[8,8], index: 0, kind: input, shape index: {}]
  %s1 = inlined_call_operand.vmem [shape: s32[64], index: 1, kind: output, shape index: {}]
  $region1: #{tile.23} parent=0
    #allocation0 [shape = 'u8[4096]{0}', space=vmem, size = 0x1000, scoped, tag = 'scoped mem for output reshape']
    %v2 = vld [vmem:[%s0] sm:$0x1]
    %vm3 = vcmask 64512
    %4 = vst.msk [vmem:[#allocation0] sm:$0x1] %vm3, %v2
    %s5 = scalar_lea.vmem %s0, 7
    %v6 = vld [vmem:[%s5] sm:$0x1]
    %7 = vrot.lane.b32.xlu0 %v6, 56
    %v8 = vpop.permute.xlu0 %7
    %vm9 = vcmask 523712
    %10 = vst.msk [vmem:[#allocation0] sm:$0x1] %vm9, %v8
    %s11 = scalar_lea.vmem %s0, 6
    %v12 = vld [vmem:[%s11] sm:$0x1]
    %13 = vrot.lane.b32.xlu0 %v12, 48
    %v14 = vpop.permute.xlu0 %13
    %vm15 = vcmask 458112
    %16 = vst.msk [vmem:[#allocation0] sm:$0x1] %vm15, %v14
    %s17 = scalar_lea.vmem %s0, 5
    %v18 = vld [vmem:[%s17] sm:$0x1]
    %19 = vrot.lane.b32.xlu0 %v18, 40
    %v20 = vpop.permute.xlu0 %19
    %vm21 = vcmask 392512
    %22 = vst.msk [vmem:[#allocation0] sm:$0x1] %vm21, %v20
    %s23 = scalar_lea.vmem %s0, 4
    %v24 = vld [vmem:[%s23] sm:$0x1]
    %25 = vrot.lane.b32.xlu0 %v24, 32
    %v26 = vpop.permute.xlu0 %25
    %vm27 = vcmask 326912
    %28 = vst.msk [vmem:[#allocation0] sm:$0x1] %vm27, %v26
    %s29 = scalar_lea.vmem %s0, 3
    %v30 = vld [vmem:[%s29] sm:$0x1]
    %31 = vrot.lane.b32.xlu0 %v30, 24
    %v32 = vpop.permute.xlu0 %31
    %vm33 = vcmask 261312
    %34 = vst.msk [vmem:[#allocation0] sm:$0x1] %vm33, %v32
    %s35 = scalar_lea.vmem %s0, 2
    %v36 = vld [vmem:[%s35] sm:$0x1]
    %37 = vrot.lane.b32.xlu0 %v36, 16
    %v38 = vpop.permute.xlu0 %37
    %vm39 = vcmask 195712
    %40 = vst.msk [vmem:[#allocation0] sm:$0x1] %vm39, %v38
    %s41 = scalar_lea.vmem %s0, 1
    %v42 = vld [vmem:[%s41] sm:$0x1]
    %43 = vrot.lane.b32.xlu0 %v42, 8
    %v44 = vpop.permute.xlu0 %43
    %vm45 = vcmask 130112
    %46 = vst.msk [vmem:[#allocation0] sm:$0x1] %vm45, %v44
    %s48 = sshllo.u32 0, 1
    %v50 = vld [vmem:[#allocation0] sm:%s48]
    %s51 = sshllo.u32 0, 1
    %52 = vst [vmem:[%s1] sm:%s51] %v50

// kernel: tile.0
$region0: #{tile.0}
  %s0 = inlined_call_operand.vmem [shape: s32[4,64], index: 0, kind: input, shape index: {}]
  %s1 = inlined_call_operand.vmem [shape: s32[256,1], index: 1, kind: output, shape index: {}]
  $region1: #{tile.0} parent=0
    #allocation0 [shape = 'u8[4096]{0}', space=vmem, size = 0x1000, scoped, tag = 'scoped mem for input reshape']
    %s3 = sshllo.u32 0, 4
    %v4 = vld [vmem:[%s0] sm:%s3]
    %5 = vst [vmem:[#allocation0] sm:%s3] %v4
    %v6 = vld [vmem:[#allocation0] sm:$0xf]
    %vm7 = vcmask 7168
    %8 = vst.msk [vmem:[%s1] sm:$0x1] %vm7, %v6
    %s9 = scalar_lea.vmem %s1, 63
    %10 = vst.msk [vmem:[%s9] sm:$0x2] %vm7, %v6
    %s11 = scalar_lea.vmem %s1, 126
    %12 = vst.msk [vmem:[%s11] sm:$0x4] %vm7, %v6
    %s13 = scalar_lea.vmem %s1, 189
    %14 = vst.msk [vmem:[%s13] sm:$0x8] %vm7, %v6
    %v15 = vld [vmem:[#allocation0] sm:$0xf]
    %16 = vrot.lane.b32.xlu0 %v15, 127
    %v17 = vpop.permute.xlu0 %16
    %vm18 = vcmask 7168
    %s19 = scalar_lea.vmem %s1, 1
    %20 = vst.msk [vmem:[%s19] sm:$0x1] %vm18, %v17
    %s21 = scalar_lea.vmem %s1, 64
    %22 = vst.msk [vmem:[%s21] sm:$0x2] %vm18, %v17
    %s23 = scalar_lea.vmem %s1, 127
    %24 = vst.msk [vmem:[%s23] sm:$0x4] %vm18, %v17
    %s25 = scalar_lea.vmem %s1, 190
    %26 = vst.msk [vmem:[%s25] sm:$0x8] %vm18, %v17
    %v27 = vld [vmem:[#allocation0] sm:$0xf]
    %28 = vrot.lane.b32.xlu0 %v27, 126
    %v29 = vpop.permute.xlu0 %28
    %vm30 = vcmask 7168
    %s31 = scalar_lea.vmem %s1, 2
    %32 = vst.msk [vmem:[%s31] sm:$0x1] %vm30, %v29
    %s33 = scalar_lea.vmem %s1, 65
    %34 = vst.msk [vmem:[%s33] sm:$0x2] %vm30, %v29
    %s35 = scalar_lea.vmem %s1, 128
    %36 = vst.msk [vmem:[%s35] sm:$0x4] %vm30, %v29
    %s37 = scalar_lea.vmem %s1, 191
    %38 = vst.msk [vmem:[%s37] sm:$0x8] %vm30, %v29
    %v39 = vld [vmem:[#allocation0] sm:$0xf]
    %40 = vrot.lane.b32.xlu0 %v39, 125
    %v41 = vpop.permute.xlu0 %40
    %vm42 = vcmask 7168
    %s43 = scalar_lea.vmem %s1, 3
    %44 = vst.msk [vmem:[%s43] sm:$0x1] %vm42, %v41
    %s45 = scalar_lea.vmem %s1, 66
    %46 = vst.msk [vmem:[%s45] sm:$0x2] %vm42, %v41
    %s47 = scalar_lea.vmem %s1, 129
    %48 = vst.msk [vmem:[%s47] sm:$0x4] %vm42, %v41
    %s49 = scalar_lea.vmem %s1, 192
    %50 = vst.msk [vmem:[%s49] sm:$0x8] %vm42, %v41
    %v51 = vld [vmem:[#allocation0] sm:$0xf]
    %52 = vrot.lane.b32.xlu0 %v51, 124
    %v53 = vpop.permute.xlu0 %52
    %vm54 = vcmask 7168
    %s55 = scalar_lea.vmem %s1, 4
    %56 = vst.msk [vmem:[%s55] sm:$0x1] %vm54, %v53
    %s57 = scalar_lea.vmem %s1, 67
    %58 = vst.msk [vmem:[%s57] sm:$0x2] %vm54, %v53
    %s59 = scalar_lea.vmem %s1, 130
    %60 = vst.msk [vmem:[%s59] sm:$0x4] %vm54, %v53
    %s61 = scalar_lea.vmem %s1, 193
    %62 = vst.msk [vmem:[%s61] sm:$0x8] %vm54, %v53
    %v63 = vld [vmem:[#allocation0] sm:$0xf]
    %64 = vrot.lane.b32.xlu0 %v63, 123
    %v65 = vpop.permute.xlu0 %64
    %vm66 = vcmask 7168
    %s67 = scalar_lea.vmem %s1, 5
    %68 = vst.msk [vmem:[%s67] sm:$0x1] %vm66, %v65
    %s69 = scalar_lea.vmem %s1, 68
    %70 = vst.msk [vmem:[%s69] sm:$0x2] %vm66, %v65
    %s71 = scalar_lea.vmem %s1, 131
    %72 = vst.msk [vmem:[%s71] sm:$0x4] %vm66, %v65
    %s73 = scalar_lea.vmem %s1, 194
    %74 = vst.msk [vmem:[%s73] sm:$0x8] %vm66, %v65
    %v75 = vld [vmem:[#allocation0] sm:$0xf]
    %76 = vrot.lane.b32.xlu0 %v75, 122
    %v77 = vpop.permute.xlu0 %76
    %vm78 = vcmask 7168
    %s79 = scalar_lea.vmem %s1, 6
    %80 = vst.msk [vmem:[%s79] sm:$0x1] %vm78, %v77
    %s81 = scalar_lea.vmem %s1, 69
    %82 = vst.msk [vmem:[%s81] sm:$0x2] %vm78, %v77
    %s83 = scalar_lea.vmem %s1, 132
    %84 = vst.msk [vmem:[%s83] sm:$0x4] %vm78, %v77
    %s85 = scalar_lea.vmem %s1, 195
    %86 = vst.msk [vmem:[%s85] sm:$0x8] %vm78, %v77
    %v87 = vld [vmem:[#allocation0] sm:$0xf]
    %88 = vrot.lane.b32.xlu0 %v87, 121
    %v89 = vpop.permute.xlu0 %88
    %vm90 = vcmask 7168
    %s91 = scalar_lea.vmem %s1, 7
    %92 = vst.msk [vmem:[%s91] sm:$0x1] %vm90, %v89
    %s93 = scalar_lea.vmem %s1, 70
    %94 = vst.msk [vmem:[%s93] sm:$0x2] %vm90, %v89
    %s95 = scalar_lea.vmem %s1, 133
    %96 = vst.msk [vmem:[%s95] sm:$0x4] %vm90, %v89
    %s97 = scalar_lea.vmem %s1, 196
    %98 = vst.msk [vmem:[%s97] sm:$0x8] %vm90, %v89
    %v99 = vld [vmem:[#allocation0] sm:$0xf]
    %100 = vrot.lane.b32.xlu0 %v99, 120
    %v101 = vpop.permute.xlu0 %100
    %vm102 = vcmask 7168
    %s103 = scalar_lea.vmem %s1, 8
    %104 = vst.msk [vmem:[%s103] sm:$0x1] %vm102, %v101
    %s105 = scalar_lea.vmem %s1, 71
    %106 = vst.msk [vmem:[%s105] sm:$0x2] %vm102, %v101
    %s107 = scalar_lea.vmem %s1, 134
    %108 = vst.msk [vmem:[%s107] sm:$0x4] %vm102, %v101
    %s109 = scalar_lea.vmem %s1, 197
    %110 = vst.msk [vmem:[%s109] sm:$0x8] %vm102, %v101
    %v111 = vld [vmem:[#allocation0] sm:$0xf]
    %112 = vrot.lane.b32.xlu0 %v111, 119
    %v113 = vpop.permute.xlu0 %112
    %vm114 = vcmask 7168
    %s115 = scalar_lea.vmem %s1, 9
    %116 = vst.msk [vmem:[%s115] sm:$0x1] %vm114, %v113
    %s117 = scalar_lea.vmem %s1, 72
    %118 = vst.msk [vmem:[%s117] sm:$0x2] %vm114, %v113
    %s119 = scalar_lea.vmem %s1, 135
    %120 = vst.msk [vmem:[%s119] sm:$0x4] %vm114, %v113
    %s121 = scalar_lea.vmem %s1, 198
    %122 = vst.msk [vmem:[%s121] sm:$0x8] %vm114, %v113
    %v123 = vld [vmem:[#allocation0] sm:$0xf]
    %124 = vrot.lane.b32.xlu0 %v123, 118
    %v125 = vpop.permute.xlu0 %124
    %vm126 = vcmask 7168
    %s127 = scalar_lea.vmem %s1, 10
    %128 = vst.msk [vmem:[%s127] sm:$0x1] %vm126, %v125
    %s129 = scalar_lea.vmem %s1, 73
    %130 = vst.msk [vmem:[%s129] sm:$0x2] %vm126, %v125
    %s131 = scalar_lea.vmem %s1, 136
    %132 = vst.msk [vmem:[%s131] sm:$0x4] %vm126, %v125
    %s133 = scalar_lea.vmem %s1, 199
    %134 = vst.msk [vmem:[%s133] sm:$0x8] %vm126, %v125
    %v135 = vld [vmem:[#allocation0] sm:$0xf]
    %136 = vrot.lane.b32.xlu0 %v135, 117
    %v137 = vpop.permute.xlu0 %136
    %vm138 = vcmask 7168
    %s139 = scalar_lea.vmem %s1, 11
    %140 = vst.msk [vmem:[%s139] sm:$0x1] %vm138, %v137
    %s141 = scalar_lea.vmem %s1, 74
    %142 = vst.msk [vmem:[%s141] sm:$0x2] %vm138, %v137
    %s143 = scalar_lea.vmem %s1, 137
    %144 = vst.msk [vmem:[%s143] sm:$0x4] %vm138, %v137
    %s145 = scalar_lea.vmem %s1, 200
    %146 = vst.msk [vmem:[%s145] sm:$0x8] %vm138, %v137
    %v147 = vld [vmem:[#allocation0] sm:$0xf]
    %148 = vrot.lane.b32.xlu0 %v147, 116
    %v149 = vpop.permute.xlu0 %148
    %vm150 = vcmask 7168
    %s151 = scalar_lea.vmem %s1, 12
    %152 = vst.msk [vmem:[%s151] sm:$0x1] %vm150, %v149
    %s153 = scalar_lea.vmem %s1, 75
    %154 = vst.msk [vmem:[%s153] sm:$0x2] %vm150, %v149
    %s155 = scalar_lea.vmem %s1, 138
    %156 = vst.msk [vmem:[%s155] sm:$0x4] %vm150, %v149
    %s157 = scalar_lea.vmem %s1, 201
    %158 = vst.msk [vmem:[%s157] sm:$0x8] %vm150, %v149
    %v159 = vld [vmem:[#allocation0] sm:$0xf]
    %160 = vrot.lane.b32.xlu0 %v159, 115
    %v161 = vpop.permute.xlu0 %160
    %vm162 = vcmask 7168
    %s163 = scalar_lea.vmem %s1, 13
    %164 = vst.msk [vmem:[%s163] sm:$0x1] %vm162, %v161
    %s165 = scalar_lea.vmem %s1, 76
    %166 = vst.msk [vmem:[%s165] sm:$0x2] %vm162, %v161
    %s167 = scalar_lea.vmem %s1, 139
    %168 = vst.msk [vmem:[%s167] sm:$0x4] %vm162, %v161
    %s169 = scalar_lea.vmem %s1, 202
    %170 = vst.msk [vmem:[%s169] sm:$0x8] %vm162, %v161
    %v171 = vld [vmem:[#allocation0] sm:$0xf]
    %172 = vrot.lane.b32.xlu0 %v171, 114
    %v173 = vpop.permute.xlu0 %172
    %vm174 = vcmask 7168
    %s175 = scalar_lea.vmem %s1, 14
    %176 = vst.msk [vmem:[%s175] sm:$0x1] %vm174, %v173
    %s177 = scalar_lea.vmem %s1, 77
    %178 = vst.msk [vmem:[%s177] sm:$0x2] %vm174, %v173
    %s179 = scalar_lea.vmem %s1, 140
    %180 = vst.msk [vmem:[%s179] sm:$0x4] %vm174, %v173
    %s181 = scalar_lea.vmem %s1, 203
    %182 = vst.msk [vmem:[%s181] sm:$0x8] %vm174, %v173
    %v183 = vld [vmem:[#allocation0] sm:$0xf]
    %184 = vrot.lane.b32.xlu0 %v183, 113
    %v185 = vpop.permute.xlu0 %184
    %vm186 = vcmask 7168
    %s187 = scalar_lea.vmem %s1, 15
    %188 = vst.msk [vmem:[%s187] sm:$0x1] %vm186, %v185
    %s189 = scalar_lea.vmem %s1, 78
    %190 = vst.msk [vmem:[%s189] sm:$0x2] %vm186, %v185
    %s191 = scalar_lea.vmem %s1, 141
    %192 = vst.msk [vmem:[%s191] sm:$0x4] %vm186, %v185
    %s193 = scalar_lea.vmem %s1, 204
    %194 = vst.msk [vmem:[%s193] sm:$0x8] %vm186, %v185
    %v195 = vld [vmem:[#allocation0] sm:$0xf]
    %196 = vrot.lane.b32.xlu0 %v195, 112
    %v197 = vpop.permute.xlu0 %196
    %vm198 = vcmask 7168
    %s199 = scalar_lea.vmem %s1, 16
    %200 = vst.msk [vmem:[%s199] sm:$0x1] %vm198, %v197
    %s201 = scalar_lea.vmem %s1, 79
    %202 = vst.msk [vmem:[%s201] sm:$0x2] %vm198, %v197
    %s203 = scalar_lea.vmem %s1, 142
    %204 = vst.msk [vmem:[%s203] sm:$0x4] %vm198, %v197
    %s205 = scalar_lea.vmem %s1, 205
    %206 = vst.msk [vmem:[%s205] sm:$0x8] %vm198, %v197
    %v207 = vld [vmem:[#allocation0] sm:$0xf]
    %208 = vrot.lane.b32.xlu0 %v207, 111
    %v209 = vpop.permute.xlu0 %208
    %vm210 = vcmask 7168
    %s211 = scalar_lea.vmem %s1, 17
    %212 = vst.msk [vmem:[%s211] sm:$0x1] %vm210, %v209
    %s213 = scalar_lea.vmem %s1, 80
    %214 = vst.msk [vmem:[%s213] sm:$0x2] %vm210, %v209
    %s215 = scalar_lea.vmem %s1, 143
    %216 = vst.msk [vmem:[%s215] sm:$0x4] %vm210, %v209
    %s217 = scalar_lea.vmem %s1, 206
    %218 = vst.msk [vmem:[%s217] sm:$0x8] %vm210, %v209
    %v219 = vld [vmem:[#allocation0] sm:$0xf]
    %220 = vrot.lane.b32.xlu0 %v219, 110
    %v221 = vpop.permute.xlu0 %220
    %vm222 = vcmask 7168
    %s223 = scalar_lea.vmem %s1, 18
    %224 = vst.msk [vmem:[%s223] sm:$0x1] %vm222, %v221
    %s225 = scalar_lea.vmem %s1, 81
    %226 = vst.msk [vmem:[%s225] sm:$0x2] %vm222, %v221
    %s227 = scalar_lea.vmem %s1, 144
    %228 = vst.msk [vmem:[%s227] sm:$0x4] %vm222, %v221
    %s229 = scalar_lea.vmem %s1, 207
    %230 = vst.msk [vmem:[%s229] sm:$0x8] %vm222, %v221
    %v231 = vld [vmem:[#allocation0] sm:$0xf]
    %232 = vrot.lane.b32.xlu0 %v231, 109
    %v233 = vpop.permute.xlu0 %232
    %vm234 = vcmask 7168
    %s235 = scalar_lea.vmem %s1, 19
    %236 = vst.msk [vmem:[%s235] sm:$0x1] %vm234, %v233
    %s237 = scalar_lea.vmem %s1, 82
    %238 = vst.msk [vmem:[%s237] sm:$0x2] %vm234, %v233
    %s239 = scalar_lea.vmem %s1, 145
    %240 = vst.msk [vmem:[%s239] sm:$0x4] %vm234, %v233
    %s241 = scalar_lea.vmem %s1, 208
    %242 = vst.msk [vmem:[%s241] sm:$0x8] %vm234, %v233
    %v243 = vld [vmem:[#allocation0] sm:$0xf]
    %244 = vrot.lane.b32.xlu0 %v243, 108
    %v245 = vpop.permute.xlu0 %244
    %vm246 = vcmask 7168
    %s247 = scalar_lea.vmem %s1, 20
    %248 = vst.msk [vmem:[%s247] sm:$0x1] %vm246, %v245
    %s249 = scalar_lea.vmem %s1, 83
    %250 = vst.msk [vmem:[%s249] sm:$0x2] %vm246, %v245
    %s251 = scalar_lea.vmem %s1, 146
    %252 = vst.msk [vmem:[%s251] sm:$0x4] %vm246, %v245
    %s253 = scalar_lea.vmem %s1, 209
    %254 = vst.msk [vmem:[%s253] sm:$0x8] %vm246, %v245
    %v255 = vld [vmem:[#allocation0] sm:$0xf]
    %256 = vrot.lane.b32.xlu0 %v255, 107
    %v257 = vpop.permute.xlu0 %256
    %vm258 = vcmask 7168
    %s259 = scalar_lea.vmem %s1, 21
    %260 = vst.msk [vmem:[%s259] sm:$0x1] %vm258, %v257
    %s261 = scalar_lea.vmem %s1, 84
    %262 = vst.msk [vmem:[%s261] sm:$0x2] %vm258, %v257
    %s263 = scalar_lea.vmem %s1, 147
    %264 = vst.msk [vmem:[%s263] sm:$0x4] %vm258, %v257
    %s265 = scalar_lea.vmem %s1, 210
    %266 = vst.msk [vmem:[%s265] sm:$0x8] %vm258, %v257
    %v267 = vld [vmem:[#allocation0] sm:$0xf]
    %268 = vrot.lane.b32.xlu0 %v267, 106
    %v269 = vpop.permute.xlu0 %268
    %vm270 = vcmask 7168
    %s271 = scalar_lea.vmem %s1, 22
    %272 = vst.msk [vmem:[%s271] sm:$0x1] %vm270, %v269
    %s273 = scalar_lea.vmem %s1, 85
    %274 = vst.msk [vmem:[%s273] sm:$0x2] %vm270, %v269
    %s275 = scalar_lea.vmem %s1, 148
    %276 = vst.msk [vmem:[%s275] sm:$0x4] %vm270, %v269
    %s277 = scalar_lea.vmem %s1, 211
    %278 = vst.msk [vmem:[%s277] sm:$0x8] %vm270, %v269
    %v279 = vld [vmem:[#allocation0] sm:$0xf]
    %280 = vrot.lane.b32.xlu0 %v279, 105
    %v281 = vpop.permute.xlu0 %280
    %vm282 = vcmask 7168
    %s283 = scalar_lea.vmem %s1, 23
    %284 = vst.msk [vmem:[%s283] sm:$0x1] %vm282, %v281
    %s285 = scalar_lea.vmem %s1, 86
    %286 = vst.msk [vmem:[%s285] sm:$0x2] %vm282, %v281
    %s287 = scalar_lea.vmem %s1, 149
    %288 = vst.msk [vmem:[%s287] sm:$0x4] %vm282, %v281
    %s289 = scalar_lea.vmem %s1, 212
    %290 = vst.msk [vmem:[%s289] sm:$0x8] %vm282, %v281
    %v291 = vld [vmem:[#allocation0] sm:$0xf]
    %292 = vrot.lane.b32.xlu0 %v291, 104
    %v293 = vpop.permute.xlu0 %292
    %vm294 = vcmask 7168
    %s295 = scalar_lea.vmem %s1, 24
    %296 = vst.msk [vmem:[%s295] sm:$0x1] %vm294, %v293
    %s297 = scalar_lea.vmem %s1, 87
    %298 = vst.msk [vmem:[%s297] sm:$0x2] %vm294, %v293
    %s299 = scalar_lea.vmem %s1, 150
    %300 = vst.msk [vmem:[%s299] sm:$0x4] %vm294, %v293
    %s301 = scalar_lea.vmem %s1, 213
    %302 = vst.msk [vmem:[%s301] sm:$0x8] %vm294, %v293
    %v303 = vld [vmem:[#allocation0] sm:$0xf]
    %304 = vrot.lane.b32.xlu0 %v303, 103
    %v305 = vpop.permute.xlu0 %304
    %vm306 = vcmask 7168
    %s307 = scalar_lea.vmem %s1, 25
    %308 = vst.msk [vmem:[%s307] sm:$0x1] %vm306, %v305
    %s309 = scalar_lea.vmem %s1, 88
    %310 = vst.msk [vmem:[%s309] sm:$0x2] %vm306, %v305
    %s311 = scalar_lea.vmem %s1, 151
    %312 = vst.msk [vmem:[%s311] sm:$0x4] %vm306, %v305
    %s313 = scalar_lea.vmem %s1, 214
    %314 = vst.msk [vmem:[%s313] sm:$0x8] %vm306, %v305
    %v315 = vld [vmem:[#allocation0] sm:$0xf]
    %316 = vrot.lane.b32.xlu0 %v315, 102
    %v317 = vpop.permute.xlu0 %316
    %vm318 = vcmask 7168
    %s319 = scalar_lea.vmem %s1, 26
    %320 = vst.msk [vmem:[%s319] sm:$0x1] %vm318, %v317
    %s321 = scalar_lea.vmem %s1, 89
    %322 = vst.msk [vmem:[%s321] sm:$0x2] %vm318, %v317
    %s323 = scalar_lea.vmem %s1, 152
    %324 = vst.msk [vmem:[%s323] sm:$0x4] %vm318, %v317
    %s325 = scalar_lea.vmem %s1, 215
    %326 = vst.msk [vmem:[%s325] sm:$0x8] %vm318, %v317
    %v327 = vld [vmem:[#allocation0] sm:$0xf]
    %328 = vrot.lane.b32.xlu0 %v327, 101
    %v329 = vpop.permute.xlu0 %328
    %vm330 = vcmask 7168
    %s331 = scalar_lea.vmem %s1, 27
    %332 = vst.msk [vmem:[%s331] sm:$0x1] %vm330, %v329
    %s333 = scalar_lea.vmem %s1, 90
    %334 = vst.msk [vmem:[%s333] sm:$0x2] %vm330, %v329
    %s335 = scalar_lea.vmem %s1, 153
    %336 = vst.msk [vmem:[%s335] sm:$0x4] %vm330, %v329
    %s337 = scalar_lea.vmem %s1, 216
    %338 = vst.msk [vmem:[%s337] sm:$0x8] %vm330, %v329
    %v339 = vld [vmem:[#allocation0] sm:$0xf]
    %340 = vrot.lane.b32.xlu0 %v339, 100
    %v341 = vpop.permute.xlu0 %340
    %vm342 = vcmask 7168
    %s343 = scalar_lea.vmem %s1, 28
    %344 = vst.msk [vmem:[%s343] sm:$0x1] %vm342, %v341
    %s345 = scalar_lea.vmem %s1, 91
    %346 = vst.msk [vmem:[%s345] sm:$0x2] %vm342, %v341
    %s347 = scalar_lea.vmem %s1, 154
    %348 = vst.msk [vmem:[%s347] sm:$0x4] %vm342, %v341
    %s349 = scalar_lea.vmem %s1, 217
    %350 = vst.msk [vmem:[%s349] sm:$0x8] %vm342, %v341
    %v351 = vld [vmem:[#allocation0] sm:$0xf]
    %352 = vrot.lane.b32.xlu0 %v351, 99
    %v353 = vpop.permute.xlu0 %352
    %vm354 = vcmask 7168
    %s355 = scalar_lea.vmem %s1, 29
    %356 = vst.msk [vmem:[%s355] sm:$0x1] %vm354, %v353
    %s357 = scalar_lea.vmem %s1, 92
    %358 = vst.msk [vmem:[%s357] sm:$0x2] %vm354, %v353
    %s359 = scalar_lea.vmem %s1, 155
    %360 = vst.msk [vmem:[%s359] sm:$0x4] %vm354, %v353
    %s361 = scalar_lea.vmem %s1, 218
    %362 = vst.msk [vmem:[%s361] sm:$0x8] %vm354, %v353
    %v363 = vld [vmem:[#allocation0] sm:$0xf]
    %364 = vrot.lane.b32.xlu0 %v363, 98
    %v365 = vpop.permute.xlu0 %364
    %vm366 = vcmask 7168
    %s367 = scalar_lea.vmem %s1, 30
    %368 = vst.msk [vmem:[%s367] sm:$0x1] %vm366, %v365
    %s369 = scalar_lea.vmem %s1, 93
    %370 = vst.msk [vmem:[%s369] sm:$0x2] %vm366, %v365
    %s371 = scalar_lea.vmem %s1, 156
    %372 = vst.msk [vmem:[%s371] sm:$0x4] %vm366, %v365
    %s373 = scalar_lea.vmem %s1, 219
    %374 = vst.msk [vmem:[%s373] sm:$0x8] %vm366, %v365
    %v375 = vld [vmem:[#allocation0] sm:$0xf]
    %376 = vrot.lane.b32.xlu0 %v375, 97
    %v377 = vpop.permute.xlu0 %376
    %vm378 = vcmask 7168
    %s379 = scalar_lea.vmem %s1, 31
    %380 = vst.msk [vmem:[%s379] sm:$0x1] %vm378, %v377
    %s381 = scalar_lea.vmem %s1, 94
    %382 = vst.msk [vmem:[%s381] sm:$0x2] %vm378, %v377
    %s383 = scalar_lea.vmem %s1, 157
    %384 = vst.msk [vmem:[%s383] sm:$0x4] %vm378, %v377
    %s385 = scalar_lea.vmem %s1, 220
    %386 = vst.msk [vmem:[%s385] sm:$0x8] %vm378, %v377
    %v387 = vld [vmem:[#allocation0] sm:$0xf]
    %388 = vrot.lane.b32.xlu0 %v387, 96
    %v389 = vpop.permute.xlu0 %388
    %vm390 = vcmask 7168
    %s391 = scalar_lea.vmem %s1, 32
    %392 = vst.msk [vmem:[%s391] sm:$0x1] %vm390, %v389
    %s393 = scalar_lea.vmem %s1, 95
    %394 = vst.msk [vmem:[%s393] sm:$0x2] %vm390, %v389
    %s395 = scalar_lea.vmem %s1, 158
    %396 = vst.msk [vmem:[%s395] sm:$0x4] %vm390, %v389
    %s397 = scalar_lea.vmem %s1, 221
    %398 = vst.msk [vmem:[%s397] sm:$0x8] %vm390, %v389
    %v399 = vld [vmem:[#allocation0] sm:$0xf]
    %400 = vrot.lane.b32.xlu0 %v399, 95
    %v401 = vpop.permute.xlu0 %400
    %vm402 = vcmask 7168
    %s403 = scalar_lea.vmem %s1, 33
    %404 = vst.msk [vmem:[%s403] sm:$0x1] %vm402, %v401
    %s405 = scalar_lea.vmem %s1, 96
    %406 = vst.msk [vmem:[%s405] sm:$0x2] %vm402, %v401
    %s407 = scalar_lea.vmem %s1, 159
    %408 = vst.msk [vmem:[%s407] sm:$0x4] %vm402, %v401
    %s409 = scalar_lea.vmem %s1, 222
    %410 = vst.msk [vmem:[%s409] sm:$0x8] %vm402, %v401
    %v411 = vld [vmem:[#allocation0] sm:$0xf]
    %412 = vrot.lane.b32.xlu0 %v411, 94
    %v413 = vpop.permute.xlu0 %412
    %vm414 = vcmask 7168
    %s415 = scalar_lea.vmem %s1, 34
    %416 = vst.msk [vmem:[%s415] sm:$0x1] %vm414, %v413
    %s417 = scalar_lea.vmem %s1, 97
    %418 = vst.msk [vmem:[%s417] sm:$0x2] %vm414, %v413
    %s419 = scalar_lea.vmem %s1, 160
    %420 = vst.msk [vmem:[%s419] sm:$0x4] %vm414, %v413
    %s421 = scalar_lea.vmem %s1, 223
    %422 = vst.msk [vmem:[%s421] sm:$0x8] %vm414, %v413
    %v423 = vld [vmem:[#allocation0] sm:$0xf]
    %424 = vrot.lane.b32.xlu0 %v423, 93
    %v425 = vpop.permute.xlu0 %424
    %vm426 = vcmask 7168
    %s427 = scalar_lea.vmem %s1, 35
    %428 = vst.msk [vmem:[%s427] sm:$0x1] %vm426, %v425
    %s429 = scalar_lea.vmem %s1, 98
    %430 = vst.msk [vmem:[%s429] sm:$0x2] %vm426, %v425
    %s431 = scalar_lea.vmem %s1, 161
    %432 = vst.msk [vmem:[%s431] sm:$0x4] %vm426, %v425
    %s433 = scalar_lea.vmem %s1, 224
    %434 = vst.msk [vmem:[%s433] sm:$0x8] %vm426, %v425
    %v435 = vld [vmem:[#allocation0] sm:$0xf]
    %436 = vrot.lane.b32.xlu0 %v435, 92
    %v437 = vpop.permute.xlu0 %436
    %vm438 = vcmask 7168
    %s439 = scalar_lea.vmem %s1, 36
    %440 = vst.msk [vmem:[%s439] sm:$0x1] %vm438, %v437
    %s441 = scalar_lea.vmem %s1, 99
    %442 = vst.msk [vmem:[%s441] sm:$0x2] %vm438, %v437
    %s443 = scalar_lea.vmem %s1, 162
    %444 = vst.msk [vmem:[%s443] sm:$0x4] %vm438, %v437
    %s445 = scalar_lea.vmem %s1, 225
    %446 = vst.msk [vmem:[%s445] sm:$0x8] %vm438, %v437
    %v447 = vld [vmem:[#allocation0] sm:$0xf]
    %448 = vrot.lane.b32.xlu0 %v447, 91
    %v449 = vpop.permute.xlu0 %448
    %vm450 = vcmask 7168
    %s451 = scalar_lea.vmem %s1, 37
    %452 = vst.msk [vmem:[%s451] sm:$0x1] %vm450, %v449
    %s453 = scalar_lea.vmem %s1, 100
    %454 = vst.msk [vmem:[%s453] sm:$0x2] %vm450, %v449
    %s455 = scalar_lea.vmem %s1, 163
    %456 = vst.msk [vmem:[%s455] sm:$0x4] %vm450, %v449
    %s457 = scalar_lea.vmem %s1, 226
    %458 = vst.msk [vmem:[%s457] sm:$0x8] %vm450, %v449
    %v459 = vld [vmem:[#allocation0] sm:$0xf]
    %460 = vrot.lane.b32.xlu0 %v459, 90
    %v461 = vpop.permute.xlu0 %460
    %vm462 = vcmask 7168
    %s463 = scalar_lea.vmem %s1, 38
    %464 = vst.msk [vmem:[%s463] sm:$0x1] %vm462, %v461
    %s465 = scalar_lea.vmem %s1, 101
    %466 = vst.msk [vmem:[%s465] sm:$0x2] %vm462, %v461
    %s467 = scalar_lea.vmem %s1, 164
    %468 = vst.msk [vmem:[%s467] sm:$0x4] %vm462, %v461
    %s469 = scalar_lea.vmem %s1, 227
    %470 = vst.msk [vmem:[%s469] sm:$0x8] %vm462, %v461
    %v471 = vld [vmem:[#allocation0] sm:$0xf]
    %472 = vrot.lane.b32.xlu0 %v471, 89
    %v473 = vpop.permute.xlu0 %472
    %vm474 = vcmask 7168
    %s475 = scalar_lea.vmem %s1, 39
    %476 = vst.msk [vmem:[%s475] sm:$0x1] %vm474, %v473
    %s477 = scalar_lea.vmem %s1, 102
    %478 = vst.msk [vmem:[%s477] sm:$0x2] %vm474, %v473
    %s479 = scalar_lea.vmem %s1, 165
    %480 = vst.msk [vmem:[%s479] sm:$0x4] %vm474, %v473
    %s481 = scalar_lea.vmem %s1, 228
    %482 = vst.msk [vmem:[%s481] sm:$0x8] %vm474, %v473
    %v483 = vld [vmem:[#allocation0] sm:$0xf]
    %484 = vrot.lane.b32.xlu0 %v483, 88
    %v485 = vpop.permute.xlu0 %484
    %vm486 = vcmask 7168
    %s487 = scalar_lea.vmem %s1, 40
    %488 = vst.msk [vmem:[%s487] sm:$0x1] %vm486, %v485
    %s489 = scalar_lea.vmem %s1, 103
    %490 = vst.msk [vmem:[%s489] sm:$0x2] %vm486, %v485
    %s491 = scalar_lea.vmem %s1, 166
    %492 = vst.msk [vmem:[%s491] sm:$0x4] %vm486, %v485
    %s493 = scalar_lea.vmem %s1, 229
    %494 = vst.msk [vmem:[%s493] sm:$0x8] %vm486, %v485
    %v495 = vld [vmem:[#allocation0] sm:$0xf]
    %496 = vrot.lane.b32.xlu0 %v495, 87
    %v497 = vpop.permute.xlu0 %496
    %vm498 = vcmask 7168
    %s499 = scalar_lea.vmem %s1, 41
    %500 = vst.msk [vmem:[%s499] sm:$0x1] %vm498, %v497
    %s501 = scalar_lea.vmem %s1, 104
    %502 = vst.msk [vmem:[%s501] sm:$0x2] %vm498, %v497
    %s503 = scalar_lea.vmem %s1, 167
    %504 = vst.msk [vmem:[%s503] sm:$0x4] %vm498, %v497
    %s505 = scalar_lea.vmem %s1, 230
    %506 = vst.msk [vmem:[%s505] sm:$0x8] %vm498, %v497
    %v507 = vld [vmem:[#allocation0] sm:$0xf]
    %508 = vrot.lane.b32.xlu0 %v507, 86
    %v509 = vpop.permute.xlu0 %508
    %vm510 = vcmask 7168
    %s511 = scalar_lea.vmem %s1, 42
    %512 = vst.msk [vmem:[%s511] sm:$0x1] %vm510, %v509
    %s513 = scalar_lea.vmem %s1, 105
    %514 = vst.msk [vmem:[%s513] sm:$0x2] %vm510, %v509
    %s515 = scalar_lea.vmem %s1, 168
    %516 = vst.msk [vmem:[%s515] sm:$0x4] %vm510, %v509
    %s517 = scalar_lea.vmem %s1, 231
    %518 = vst.msk [vmem:[%s517] sm:$0x8] %vm510, %v509
    %v519 = vld [vmem:[#allocation0] sm:$0xf]
    %520 = vrot.lane.b32.xlu0 %v519, 85
    %v521 = vpop.permute.xlu0 %520
    %vm522 = vcmask 7168
    %s523 = scalar_lea.vmem %s1, 43
    %524 = vst.msk [vmem:[%s523] sm:$0x1] %vm522, %v521
    %s525 = scalar_lea.vmem %s1, 106
    %526 = vst.msk [vmem:[%s525] sm:$0x2] %vm522, %v521
    %s527 = scalar_lea.vmem %s1, 169
    %528 = vst.msk [vmem:[%s527] sm:$0x4] %vm522, %v521
    %s529 = scalar_lea.vmem %s1, 232
    %530 = vst.msk [vmem:[%s529] sm:$0x8] %vm522, %v521
    %v531 = vld [vmem:[#allocation0] sm:$0xf]
    %532 = vrot.lane.b32.xlu0 %v531, 84
    %v533 = vpop.permute.xlu0 %532
    %vm534 = vcmask 7168
    %s535 = scalar_lea.vmem %s1, 44
    %536 = vst.msk [vmem:[%s535] sm:$0x1] %vm534, %v533
    %s537 = scalar_lea.vmem %s1, 107
    %538 = vst.msk [vmem:[%s537] sm:$0x2] %vm534, %v533
    %s539 = scalar_lea.vmem %s1, 170
    %540 = vst.msk [vmem:[%s539] sm:$0x4] %vm534, %v533
    %s541 = scalar_lea.vmem %s1, 233
    %542 = vst.msk [vmem:[%s541] sm:$0x8] %vm534, %v533
    %v543 = vld [vmem:[#allocation0] sm:$0xf]
    %544 = vrot.lane.b32.xlu0 %v543, 83
    %v545 = vpop.permute.xlu0 %544
    %vm546 = vcmask 7168
    %s547 = scalar_lea.vmem %s1, 45
    %548 = vst.msk [vmem:[%s547] sm:$0x1] %vm546, %v545
    %s549 = scalar_lea.vmem %s1, 108
    %550 = vst.msk [vmem:[%s549] sm:$0x2] %vm546, %v545
    %s551 = scalar_lea.vmem %s1, 171
    %552 = vst.msk [vmem:[%s551] sm:$0x4] %vm546, %v545
    %s553 = scalar_lea.vmem %s1, 234
    %554 = vst.msk [vmem:[%s553] sm:$0x8] %vm546, %v545
    %v555 = vld [vmem:[#allocation0] sm:$0xf]
    %556 = vrot.lane.b32.xlu0 %v555, 82
    %v557 = vpop.permute.xlu0 %556
    %vm558 = vcmask 7168
    %s559 = scalar_lea.vmem %s1, 46
    %560 = vst.msk [vmem:[%s559] sm:$0x1] %vm558, %v557
    %s561 = scalar_lea.vmem %s1, 109
    %562 = vst.msk [vmem:[%s561] sm:$0x2] %vm558, %v557
    %s563 = scalar_lea.vmem %s1, 172
    %564 = vst.msk [vmem:[%s563] sm:$0x4] %vm558, %v557
    %s565 = scalar_lea.vmem %s1, 235
    %566 = vst.msk [vmem:[%s565] sm:$0x8] %vm558, %v557
    %v567 = vld [vmem:[#allocation0] sm:$0xf]
    %568 = vrot.lane.b32.xlu0 %v567, 81
    %v569 = vpop.permute.xlu0 %568
    %vm570 = vcmask 7168
    %s571 = scalar_lea.vmem %s1, 47
    %572 = vst.msk [vmem:[%s571] sm:$0x1] %vm570, %v569
    %s573 = scalar_lea.vmem %s1, 110
    %574 = vst.msk [vmem:[%s573] sm:$0x2] %vm570, %v569
    %s575 = scalar_lea.vmem %s1, 173
    %576 = vst.msk [vmem:[%s575] sm:$0x4] %vm570, %v569
    %s577 = scalar_lea.vmem %s1, 236
    %578 = vst.msk [vmem:[%s577] sm:$0x8] %vm570, %v569
    %v579 = vld [vmem:[#allocation0] sm:$0xf]
    %580 = vrot.lane.b32.xlu0 %v579, 80
    %v581 = vpop.permute.xlu0 %580
    %vm582 = vcmask 7168
    %s583 = scalar_lea.vmem %s1, 48
    %584 = vst.msk [vmem:[%s583] sm:$0x1] %vm582, %v581
    %s585 = scalar_lea.vmem %s1, 111
    %586 = vst.msk [vmem:[%s585] sm:$0x2] %vm582, %v581
    %s587 = scalar_lea.vmem %s1, 174
    %588 = vst.msk [vmem:[%s587] sm:$0x4] %vm582, %v581
    %s589 = scalar_lea.vmem %s1, 237
    %590 = vst.msk [vmem:[%s589] sm:$0x8] %vm582, %v581
    %v591 = vld [vmem:[#allocation0] sm:$0xf]
    %592 = vrot.lane.b32.xlu0 %v591, 79
    %v593 = vpop.permute.xlu0 %592
    %vm594 = vcmask 7168
    %s595 = scalar_lea.vmem %s1, 49
    %596 = vst.msk [vmem:[%s595] sm:$0x1] %vm594, %v593
    %s597 = scalar_lea.vmem %s1, 112
    %598 = vst.msk [vmem:[%s597] sm:$0x2] %vm594, %v593
    %s599 = scalar_lea.vmem %s1, 175
    %600 = vst.msk [vmem:[%s599] sm:$0x4] %vm594, %v593
    %s601 = scalar_lea.vmem %s1, 238
    %602 = vst.msk [vmem:[%s601] sm:$0x8] %vm594, %v593
    %v603 = vld [vmem:[#allocation0] sm:$0xf]
    %604 = vrot.lane.b32.xlu0 %v603, 78
    %v605 = vpop.permute.xlu0 %604
    %vm606 = vcmask 7168
    %s607 = scalar_lea.vmem %s1, 50
    %608 = vst.msk [vmem:[%s607] sm:$0x1] %vm606, %v605
    %s609 = scalar_lea.vmem %s1, 113
    %610 = vst.msk [vmem:[%s609] sm:$0x2] %vm606, %v605
    %s611 = scalar_lea.vmem %s1, 176
    %612 = vst.msk [vmem:[%s611] sm:$0x4] %vm606, %v605
    %s613 = scalar_lea.vmem %s1, 239
    %614 = vst.msk [vmem:[%s613] sm:$0x8] %vm606, %v605
    %v615 = vld [vmem:[#allocation0] sm:$0xf]
    %616 = vrot.lane.b32.xlu0 %v615, 77
    %v617 = vpop.permute.xlu0 %616
    %vm618 = vcmask 7168
    %s619 = scalar_lea.vmem %s1, 51
    %620 = vst.msk [vmem:[%s619] sm:$0x1] %vm618, %v617
    %s621 = scalar_lea.vmem %s1, 114
    %622 = vst.msk [vmem:[%s621] sm:$0x2] %vm618, %v617
    %s623 = scalar_lea.vmem %s1, 177
    %624 = vst.msk [vmem:[%s623] sm:$0x4] %vm618, %v617
    %s625 = scalar_lea.vmem %s1, 240
    %626 = vst.msk [vmem:[%s625] sm:$0x8] %vm618, %v617
    %v627 = vld [vmem:[#allocation0] sm:$0xf]
    %628 = vrot.lane.b32.xlu0 %v627, 76
    %v629 = vpop.permute.xlu0 %628
    %vm630 = vcmask 7168
    %s631 = scalar_lea.vmem %s1, 52
    %632 = vst.msk [vmem:[%s631] sm:$0x1] %vm630, %v629
    %s633 = scalar_lea.vmem %s1, 115
    %634 = vst.msk [vmem:[%s633] sm:$0x2] %vm630, %v629
    %s635 = scalar_lea.vmem %s1, 178
    %636 = vst.msk [vmem:[%s635] sm:$0x4] %vm630, %v629
    %s637 = scalar_lea.vmem %s1, 241
    %638 = vst.msk [vmem:[%s637] sm:$0x8] %vm630, %v629
    %v639 = vld [vmem:[#allocation0] sm:$0xf]
    %640 = vrot.lane.b32.xlu0 %v639, 75
    %v641 = vpop.permute.xlu0 %640
    %vm642 = vcmask 7168
    %s643 = scalar_lea.vmem %s1, 53
    %644 = vst.msk [vmem:[%s643] sm:$0x1] %vm642, %v641
    %s645 = scalar_lea.vmem %s1, 116
    %646 = vst.msk [vmem:[%s645] sm:$0x2] %vm642, %v641
    %s647 = scalar_lea.vmem %s1, 179
    %648 = vst.msk [vmem:[%s647] sm:$0x4] %vm642, %v641
    %s649 = scalar_lea.vmem %s1, 242
    %650 = vst.msk [vmem:[%s649] sm:$0x8] %vm642, %v641
    %v651 = vld [vmem:[#allocation0] sm:$0xf]
    %652 = vrot.lane.b32.xlu0 %v651, 74
    %v653 = vpop.permute.xlu0 %652
    %vm654 = vcmask 7168
    %s655 = scalar_lea.vmem %s1, 54
    %656 = vst.msk [vmem:[%s655] sm:$0x1] %vm654, %v653
    %s657 = scalar_lea.vmem %s1, 117
    %658 = vst.msk [vmem:[%s657] sm:$0x2] %vm654, %v653
    %s659 = scalar_lea.vmem %s1, 180
    %660 = vst.msk [vmem:[%s659] sm:$0x4] %vm654, %v653
    %s661 = scalar_lea.vmem %s1, 243
    %662 = vst.msk [vmem:[%s661] sm:$0x8] %vm654, %v653
    %v663 = vld [vmem:[#allocation0] sm:$0xf]
    %664 = vrot.lane.b32.xlu0 %v663, 73
    %v665 = vpop.permute.xlu0 %664
    %vm666 = vcmask 7168
    %s667 = scalar_lea.vmem %s1, 55
    %668 = vst.msk [vmem:[%s667] sm:$0x1] %vm666, %v665
    %s669 = scalar_lea.vmem %s1, 118
    %670 = vst.msk [vmem:[%s669] sm:$0x2] %vm666, %v665
    %s671 = scalar_lea.vmem %s1, 181
    %672 = vst.msk [vmem:[%s671] sm:$0x4] %vm666, %v665
    %s673 = scalar_lea.vmem %s1, 244
    %674 = vst.msk [vmem:[%s673] sm:$0x8] %vm666, %v665
    %v675 = vld [vmem:[#allocation0] sm:$0xf]
    %676 = vrot.lane.b32.xlu0 %v675, 72
    %v677 = vpop.permute.xlu0 %676
    %vm678 = vcmask 7168
    %s679 = scalar_lea.vmem %s1, 56
    %680 = vst.msk [vmem:[%s679] sm:$0x1] %vm678, %v677
    %s681 = scalar_lea.vmem %s1, 119
    %682 = vst.msk [vmem:[%s681] sm:$0x2] %vm678, %v677
    %s683 = scalar_lea.vmem %s1, 182
    %684 = vst.msk [vmem:[%s683] sm:$0x4] %vm678, %v677
    %s685 = scalar_lea.vmem %s1, 245
    %686 = vst.msk [vmem:[%s685] sm:$0x8] %vm678, %v677
    %v687 = vld [vmem:[#allocation0] sm:$0xf]
    %688 = vrot.lane.b32.xlu0 %v687, 71
    %v689 = vpop.permute.xlu0 %688
    %vm690 = vcmask 7168
    %s691 = scalar_lea.vmem %s1, 57
    %692 = vst.msk [vmem:[%s691] sm:$0x1] %vm690, %v689
    %s693 = scalar_lea.vmem %s1, 120
    %694 = vst.msk [vmem:[%s693] sm:$0x2] %vm690, %v689
    %s695 = scalar_lea.vmem %s1, 183
    %696 = vst.msk [vmem:[%s695] sm:$0x4] %vm690, %v689
    %s697 = scalar_lea.vmem %s1, 246
    %698 = vst.msk [vmem:[%s697] sm:$0x8] %vm690, %v689
    %v699 = vld [vmem:[#allocation0] sm:$0xf]
    %700 = vrot.lane.b32.xlu0 %v699, 70
    %v701 = vpop.permute.xlu0 %700
    %vm702 = vcmask 7168
    %s703 = scalar_lea.vmem %s1, 58
    %704 = vst.msk [vmem:[%s703] sm:$0x1] %vm702, %v701
    %s705 = scalar_lea.vmem %s1, 121
    %706 = vst.msk [vmem:[%s705] sm:$0x2] %vm702, %v701
    %s707 = scalar_lea.vmem %s1, 184
    %708 = vst.msk [vmem:[%s707] sm:$0x4] %vm702, %v701
    %s709 = scalar_lea.vmem %s1, 247
    %710 = vst.msk [vmem:[%s709] sm:$0x8] %vm702, %v701
    %v711 = vld [vmem:[#allocation0] sm:$0xf]
    %712 = vrot.lane.b32.xlu0 %v711, 69
    %v713 = vpop.permute.xlu0 %712
    %vm714 = vcmask 7168
    %s715 = scalar_lea.vmem %s1, 59
    %716 = vst.msk [vmem:[%s715] sm:$0x1] %vm714, %v713
    %s717 = scalar_lea.vmem %s1, 122
    %718 = vst.msk [vmem:[%s717] sm:$0x2] %vm714, %v713
    %s719 = scalar_lea.vmem %s1, 185
    %720 = vst.msk [vmem:[%s719] sm:$0x4] %vm714, %v713
    %s721 = scalar_lea.vmem %s1, 248
    %722 = vst.msk [vmem:[%s721] sm:$0x8] %vm714, %v713
    %v723 = vld [vmem:[#allocation0] sm:$0xf]
    %724 = vrot.lane.b32.xlu0 %v723, 68
    %v725 = vpop.permute.xlu0 %724
    %vm726 = vcmask 7168
    %s727 = scalar_lea.vmem %s1, 60
    %728 = vst.msk [vmem:[%s727] sm:$0x1] %vm726, %v725
    %s729 = scalar_lea.vmem %s1, 123
    %730 = vst.msk [vmem:[%s729] sm:$0x2] %vm726, %v725
    %s731 = scalar_lea.vmem %s1, 186
    %732 = vst.msk [vmem:[%s731] sm:$0x4] %vm726, %v725
    %s733 = scalar_lea.vmem %s1, 249
    %734 = vst.msk [vmem:[%s733] sm:$0x8] %vm726, %v725
    %v735 = vld [vmem:[#allocation0] sm:$0xf]
    %736 = vrot.lane.b32.xlu0 %v735, 67
    %v737 = vpop.permute.xlu0 %736
    %vm738 = vcmask 7168
    %s739 = scalar_lea.vmem %s1, 61
    %740 = vst.msk [vmem:[%s739] sm:$0x1] %vm738, %v737
    %s741 = scalar_lea.vmem %s1, 124
    %742 = vst.msk [vmem:[%s741] sm:$0x2] %vm738, %v737
    %s743 = scalar_lea.vmem %s1, 187
    %744 = vst.msk [vmem:[%s743] sm:$0x4] %vm738, %v737
    %s745 = scalar_lea.vmem %s1, 250
    %746 = vst.msk [vmem:[%s745] sm:$0x8] %vm738, %v737
    %v747 = vld [vmem:[#allocation0] sm:$0xf]
    %748 = vrot.lane.b32.xlu0 %v747, 66
    %v749 = vpop.permute.xlu0 %748
    %vm750 = vcmask 7168
    %s751 = scalar_lea.vmem %s1, 62
    %752 = vst.msk [vmem:[%s751] sm:$0x1] %vm750, %v749
    %s753 = scalar_lea.vmem %s1, 125
    %754 = vst.msk [vmem:[%s753] sm:$0x2] %vm750, %v749
    %s755 = scalar_lea.vmem %s1, 188
    %756 = vst.msk [vmem:[%s755] sm:$0x4] %vm750, %v749
    %s757 = scalar_lea.vmem %s1, 251
    %758 = vst.msk [vmem:[%s757] sm:$0x8] %vm750, %v749
    %v759 = vld [vmem:[#allocation0] sm:$0xf]
    %760 = vrot.lane.b32.xlu0 %v759, 65
    %v761 = vpop.permute.xlu0 %760
    %vm762 = vcmask 7168
    %s763 = scalar_lea.vmem %s1, 63
    %764 = vst.msk [vmem:[%s763] sm:$0x1] %vm762, %v761
    %s765 = scalar_lea.vmem %s1, 126
    %766 = vst.msk [vmem:[%s765] sm:$0x2] %vm762, %v761
    %s767 = scalar_lea.vmem %s1, 189
    %768 = vst.msk [vmem:[%s767] sm:$0x4] %vm762, %v761
    %s769 = scalar_lea.vmem %s1, 252
    %770 = vst.msk [vmem:[%s769] sm:$0x8] %vm762, %v761

// kernel: cnn_forward.1
$region0: #{cnn_forward.1}
  #allocation0 [shape = 'u32[]', space=smem, size = 0x4, offset = 0x4, fixed_abs, tag = 'smem constant byte address 0x4 - core index']
  #allocation1 [shape = 'u32[144,128]{1,0:T(1,128)}', space=vmem, size = 0x12000, scoped, tag = 'internal scratch']
  %s0 = inlined_call_operand.vmem [shape: bf16[256,1024], index: 0, kind: input, shape index: {}]
  %s1 = inlined_call_operand.hbm [shape: bf16[1024,1152], index: 1, kind: input, shape index: {}]
  %s2 = inlined_call_operand.hbm [shape: f32[1,128], index: 2, kind: input, shape index: {}]
  %s3 = inlined_call_operand.hbm [shape: bf16[128,1152], index: 3, kind: input, shape index: {}]
  %s4 = inlined_call_operand.hbm [shape: f32[1,128], index: 4, kind: input, shape index: {}]
  %s5 = inlined_call_operand.vmem [shape: s32[256,1], index: 5, kind: input, shape index: {}]
  %s6 = inlined_call_operand.vmem [shape: s32[256,1], index: 6, kind: input, shape index: {}]
  %s7 = inlined_call_operand.hbm [shape: f32[256,128], index: 7, kind: output, shape index: {}]
  %s8 = sld [smem:[#allocation0]]
  $region77: #{cnn_forward.1} parent=0
    _
  %s10 = ssub.s32 1, %s8
  %s11 = scalar_select 0, %s10, %s8
  $region1: #{cnn_forward.1} parent=0
    #allocation2 [shape = 'u8[2359296]{0}', space=vmem, size = 0x240000, scoped, tag = 'input window, operand 1, single buffered']
    #allocation3 [shape = 's32[2]{0}', space=sflag, size = 0x8, scoped, tag = 'scoped memory for cnn_forward.1']
    #allocation4 [shape = 's32[2]{0}', space=sflag, size = 0x8, scoped, tag = 'scoped memory for cnn_forward.1']
    #allocation5 [shape = 'u8[512]{0}', space=vmem, size = 0x400, scoped, tag = 'input window, operand 2, single buffered']
    #allocation6 [shape = 's32[1]{0}', space=sflag, size = 0x4, scoped, tag = 'scoped memory for cnn_forward.1']
    #allocation7 [shape = 'u8[294912]{0}', space=vmem, size = 0x48000, scoped, tag = 'input window, operand 3, single buffered']
    #allocation8 [shape = 'u8[512]{0}', space=vmem, size = 0x400, scoped, tag = 'input window, operand 4, single buffered']
    #allocation9 [shape = 's32[1]{0}', space=sflag, size = 0x4, scoped, tag = 'scoped memory for cnn_forward.1']
    #allocation10 [shape = 'u8[131072]{0}', space=vmem, size = 0x20000, scoped, tag = 'output window, operand 0']
    %12 = vsyncpa [#allocation3], 0
    %13 = vsyncpa [#allocation6], 0
    %14 = vsyncpa [#allocation9], 0
    %15 = vsyncpa [#allocation4], 0
    %s16 = scalar_lea.sflag [#allocation4], 1
    %17 = vsyncpa %s16, 0
    loop: start=0, step=1, limit=4
    $region2: #{cnn_forward.1} parent=1 // loop_pre_header
      _
    $region3: #{cnn_forward.1} parent=1 // loop_header
      %s19 = sphi 0, %s23
      %p20 = scmp.ge.s32.totalorder %s19, 4
      %s29 = sphi 0, %s31
      %s32 = sphi 0, %s29
      %s33 = sphi 0, %s32
      %s49 = sphi 0, %s33
      %s53 = sphi 0, %s53
      %s55 = sphi 0, %s53
      %s56 = sphi 0, %s55
      %s70 = sphi 0, %s56
      %s74 = sphi 0, %s74
      %s76 = sphi 0, %s74
      %s77 = sphi 0, %s76
      %s91 = sphi 0, %s77
      %s95 = sphi 0, %s95
      %s97 = sphi 0, %s95
      %s98 = sphi 0, %s97
      %s112 = sphi 0, %s98
      %s116 = sphi 0, %s116
      %s118 = sphi 0, %s116
      %s119 = sphi 0, %s118
      %s133 = sphi 0, %s119
      %s139 = sphi 0, %s141
      %s142 = sphi 0, %s139
      %s143 = sphi 0, %s142
      %s159 = sphi 0, %s143
      %s165 = sphi 0, %s167
      %s168 = sphi 0, %s165
      %s169 = sphi 0, %s168
      %s185 = sphi 0, %s169
      %s191 = sphi 0, %s193
      %s194 = sphi 0, %s191
      %s195 = sphi 0, %s194
      %s211 = sphi 0, %s195
    $region4: #{cnn_forward.1} parent=1 // loop_header_branch
      %22 = sbr.rel (%p20) target = $region8
    $region5: #{cnn_forward.1} parent=1 // loop_body
      %s24 = ssub.s32 %s19, 1
      %s25 = ssub.s32 %s19, 2
      %s26 = sadd.s32 %s19, 1
      %s27 = ssub.s32 %s19, %s26
      %p28 = scmp.eq.s32.totalorder %s27, 0
      %s30 = sadd.s32 %s29, 1
      %s31 = scalar_select %p28, %s29, %s30
      %p34 = pneg %p28
      %p35 = scmp.eq.s32.totalorder %s19, 1
      %p36 = por %p34, %p35
      %p37 = scmp.ne.s32.totalorder %s29, %s32
      %p38 = scmp.eq.s32.totalorder %s19, 0
      %p39 = por %p37, %p38
      %p40 = scmp.ne.s32.totalorder %s29, %s32
      %p41 = scmp.eq.s32.totalorder %s24, 1
      %p42 = por %p40, %p41
      %p43 = scmp.ne.s32.totalorder %s32, %s33
      %p44 = scmp.eq.s32.totalorder %s24, 0
      %p45 = por %p43, %p44
      %p46 = scmp.ne.s32.totalorder %s32, %s33
      %p47 = scmp.eq.s32.totalorder %s25, 1
      %p48 = por %p46, %p47
      %p50 = scmp.ne.s32.totalorder %s33, %s49
      %p51 = scmp.eq.s32.totalorder %s25, 0
      %p52 = por %p50, %p51
      %s54 = sadd.s32 %s53, 1
      %p57 = scmp.eq.s32.totalorder %s19, 1
      %p58 = scmp.ne.s32.totalorder %s53, %s55
      %p59 = scmp.eq.s32.totalorder %s19, 0
      %p60 = por %p58, %p59
      %p61 = scmp.ne.s32.totalorder %s53, %s55
      %p62 = scmp.eq.s32.totalorder %s24, 1
      %p63 = por %p61, %p62
      %p64 = scmp.ne.s32.totalorder %s55, %s56
      %p65 = scmp.eq.s32.totalorder %s24, 0
      %p66 = por %p64, %p65
      %p67 = scmp.ne.s32.totalorder %s55, %s56
      %p68 = scmp.eq.s32.totalorder %s25, 1
      %p69 = por %p67, %p68
      %p71 = scmp.ne.s32.totalorder %s56, %s70
      %p72 = scmp.eq.s32.totalorder %s25, 0
      %p73 = por %p71, %p72
      %s75 = sadd.s32 %s74, 1
      %p78 = scmp.eq.s32.totalorder %s19, 1
      %p79 = scmp.ne.s32.totalorder %s74, %s76
      %p80 = scmp.eq.s32.totalorder %s19, 0
      %p81 = por %p79, %p80
      %p82 = scmp.ne.s32.totalorder %s74, %s76
      %p83 = scmp.eq.s32.totalorder %s24, 1
      %p84 = por %p82, %p83
      %p85 = scmp.ne.s32.totalorder %s76, %s77
      %p86 = scmp.eq.s32.totalorder %s24, 0
      %p87 = por %p85, %p86
      %p88 = scmp.ne.s32.totalorder %s76, %s77
      %p89 = scmp.eq.s32.totalorder %s25, 1
      %p90 = por %p88, %p89
      %p92 = scmp.ne.s32.totalorder %s77, %s91
      %p93 = scmp.eq.s32.totalorder %s25, 0
      %p94 = por %p92, %p93
      %s96 = sadd.s32 %s95, 1
      %p99 = scmp.eq.s32.totalorder %s19, 1
      %p100 = scmp.ne.s32.totalorder %s95, %s97
      %p101 = scmp.eq.s32.totalorder %s19, 0
      %p102 = por %p100, %p101
      %p103 = scmp.ne.s32.totalorder %s95, %s97
      %p104 = scmp.eq.s32.totalorder %s24, 1
      %p105 = por %p103, %p104
      %p106 = scmp.ne.s32.totalorder %s97, %s98
      %p107 = scmp.eq.s32.totalorder %s24, 0
      %p108 = por %p106, %p107
      %p109 = scmp.ne.s32.totalorder %s97, %s98
      %p110 = scmp.eq.s32.totalorder %s25, 1
      %p111 = por %p109, %p110
      %p113 = scmp.ne.s32.totalorder %s98, %s112
      %p114 = scmp.eq.s32.totalorder %s25, 0
      %p115 = por %p113, %p114
      %s117 = sadd.s32 %s116, 1
      %p120 = scmp.eq.s32.totalorder %s19, 1
      %p121 = scmp.ne.s32.totalorder %s116, %s118
      %p122 = scmp.eq.s32.totalorder %s19, 0
      %p123 = por %p121, %p122
      %p124 = scmp.ne.s32.totalorder %s116, %s118
      %p125 = scmp.eq.s32.totalorder %s24, 1
      %p126 = por %p124, %p125
      %p127 = scmp.ne.s32.totalorder %s118, %s119
      %p128 = scmp.eq.s32.totalorder %s24, 0
      %p129 = por %p127, %p128
      %p130 = scmp.ne.s32.totalorder %s118, %s119
      %p131 = scmp.eq.s32.totalorder %s25, 1
      %p132 = por %p130, %p131
      %p134 = scmp.ne.s32.totalorder %s119, %s133
      %p135 = scmp.eq.s32.totalorder %s25, 0
      %p136 = por %p134, %p135
      %s137 = ssub.s32 %s19, %s26
      %p138 = scmp.eq.s32.totalorder %s137, 0
      %s140 = sadd.s32 %s139, 1
      %s141 = scalar_select %p138, %s139, %s140
      %p144 = pneg %p138
      %p145 = scmp.eq.s32.totalorder %s19, 1
      %p146 = por %p144, %p145
      %p147 = scmp.ne.s32.totalorder %s139, %s142
      %p148 = scmp.eq.s32.totalorder %s19, 0
      %p149 = por %p147, %p148
      %p150 = scmp.ne.s32.totalorder %s139, %s142
      %p151 = scmp.eq.s32.totalorder %s24, 1
      %p152 = por %p150, %p151
      %p153 = scmp.ne.s32.totalorder %s142, %s143
      %p154 = scmp.eq.s32.totalorder %s24, 0
      %p155 = por %p153, %p154
      %p156 = scmp.ne.s32.totalorder %s142, %s143
      %p157 = scmp.eq.s32.totalorder %s25, 1
      %p158 = por %p156, %p157
      %p160 = scmp.ne.s32.totalorder %s143, %s159
      %p161 = scmp.eq.s32.totalorder %s25, 0
      %p162 = por %p160, %p161
      %s163 = ssub.s32 %s19, %s26
      %p164 = scmp.eq.s32.totalorder %s163, 0
      %s166 = sadd.s32 %s165, 1
      %s167 = scalar_select %p164, %s165, %s166
      %p170 = pneg %p164
      %p171 = scmp.eq.s32.totalorder %s19, 1
      %p172 = por %p170, %p171
      %p173 = scmp.ne.s32.totalorder %s165, %s168
      %p174 = scmp.eq.s32.totalorder %s19, 0
      %p175 = por %p173, %p174
      %p176 = scmp.ne.s32.totalorder %s165, %s168
      %p177 = scmp.eq.s32.totalorder %s24, 1
      %p178 = por %p176, %p177
      %p179 = scmp.ne.s32.totalorder %s168, %s169
      %p180 = scmp.eq.s32.totalorder %s24, 0
      %p181 = por %p179, %p180
      %p182 = scmp.ne.s32.totalorder %s168, %s169
      %p183 = scmp.eq.s32.totalorder %s25, 1
      %p184 = por %p182, %p183
      %p186 = scmp.ne.s32.totalorder %s169, %s185
      %p187 = scmp.eq.s32.totalorder %s25, 0
      %p188 = por %p186, %p187
      %s189 = ssub.s32 %s19, %s26
      %p190 = scmp.eq.s32.totalorder %s189, 0
      %s192 = sadd.s32 %s191, 1
      %s193 = scalar_select %p190, %s191, %s192
      %p196 = pneg %p190
      %p197 = scmp.eq.s32.totalorder %s19, 1
      %p198 = por %p196, %p197
      %p199 = scmp.ne.s32.totalorder %s191, %s194
      %p200 = scmp.eq.s32.totalorder %s19, 0
      %p201 = por %p199, %p200
      %p202 = scmp.ne.s32.totalorder %s191, %s194
      %p203 = scmp.eq.s32.totalorder %s24, 1
      %p204 = por %p202, %p203
      %p205 = scmp.ne.s32.totalorder %s194, %s195
      %p206 = scmp.eq.s32.totalorder %s24, 0
      %p207 = por %p205, %p206
      %p208 = scmp.ne.s32.totalorder %s194, %s195
      %p209 = scmp.eq.s32.totalorder %s25, 1
      %p210 = por %p208, %p209
      %p212 = scmp.ne.s32.totalorder %s195, %s211
      %p213 = scmp.eq.s32.totalorder %s25, 0
      %p214 = por %p212, %p213
      %p215 = scmp.le.s32.totalorder 1, %s19
      %p216 = scmp.lt.s32.totalorder %s19, 3
      %p217 = pnand %p215, %p216
      %p218 = pneg %p217
      // Predicated region
      $region9: #{cnn_forward.1} parent=5 // pred_check
        _
      $region10: #{cnn_forward.1} parent=5 // pred_check_branch
        %220 = sbr.rel (%p217) target = $region12
      $region11: #{cnn_forward.1} parent=5 // pred_region
        %s221 = ssub.s32 %s19, 1
        // Predicated region
        $region13: #{cnn_forward.1} parent=11 // pred_check
          %p222 = pneg %p66
        $region14: #{cnn_forward.1} parent=11 // pred_check_branch
          %224 = sbr.rel (%p222) target = $region16
        $region15: #{cnn_forward.1} parent=11 // pred_region
          %s226 = ssub.s32 73728, 73728
          %227 = vsyncadd [#allocation3], %s226
          %s228 = sshll.u32 [#allocation2], 4
          %s229 = int_to_ptr.vmem [resolvable:$true] %s228
          %234 = dma.hbm_to_vmem [thread:$0]  %s1, 73728, %s229, [#allocation3], 576, 576, 36
        $region16: #{cnn_forward.1} parent=11 // pred_fallthru
          _
        // Predicated region
        $region17: #{cnn_forward.1} parent=11 // pred_check
          %p235 = pneg %p87
        $region18: #{cnn_forward.1} parent=11 // pred_check_branch
          %237 = sbr.rel (%p235) target = $region20
        $region19: #{cnn_forward.1} parent=11 // pred_region
          %s239 = ssub.s32 16, 16
          %240 = vsyncadd [#allocation6], %s239
          %s242 = sshll.u32 [#allocation5], 4
          %s243 = int_to_ptr.vmem [resolvable:$true] %s242
          %245 = dma.hbm_to_vmem [thread:$0]  %s2, 16, %s243, [#allocation6]
        $region20: #{cnn_forward.1} parent=11 // pred_fallthru
          _
        // Predicated region
        $region21: #{cnn_forward.1} parent=11 // pred_check
          %p246 = pneg %p108
        $region22: #{cnn_forward.1} parent=11 // pred_check_branch
          %248 = sbr.rel (%p246) target = $region24
        $region23: #{cnn_forward.1} parent=11 // pred_region
          %s250 = ssub.s32 9216, 9216
          %251 = vsyncadd [#allocation6], %s250
          %s252 = sshll.u32 [#allocation7], 4
          %s253 = int_to_ptr.vmem [resolvable:$true] %s252
          %258 = dma.hbm_to_vmem [thread:$0]  %s3, 9216, %s253, [#allocation6], 576, 576, 36
        $region24: #{cnn_forward.1} parent=11 // pred_fallthru
          _
        // Predicated region
        $region25: #{cnn_forward.1} parent=11 // pred_check
          %p259 = pneg %p129
        $region26: #{cnn_forward.1} parent=11 // pred_check_branch
          %261 = sbr.rel (%p259) target = $region28
        $region27: #{cnn_forward.1} parent=11 // pred_region
          %s263 = ssub.s32 16, 16
          %264 = vsyncadd [#allocation9], %s263
          %s266 = sshll.u32 [#allocation8], 4
          %s267 = int_to_ptr.vmem [resolvable:$true] %s266
          %269 = dma.hbm_to_vmem [thread:$0]  %s4, 16, %s267, [#allocation9]
        $region28: #{cnn_forward.1} parent=11 // pred_fallthru
          _
      $region12: #{cnn_forward.1} parent=5 // pred_fallthru
        _
      %p270 = scmp.lt.s32.totalorder %s19, 2
      // Predicated region
      $region29: #{cnn_forward.1} parent=5 // pred_check
        %p271 = pneg %p270
      $region30: #{cnn_forward.1} parent=5 // pred_check_branch
        %273 = sbr.rel (%p271) target = $region32
      $region31: #{cnn_forward.1} parent=5 // pred_region
        // Predicated region
        $region33: #{cnn_forward.1} parent=31 // pred_check
          %p274 = pneg %p39
        $region34: #{cnn_forward.1} parent=31 // pred_check_branch
          %276 = sbr.rel (%p274) target = $region36
        $region35: #{cnn_forward.1} parent=31 // pred_region
          %s277 = smul.u32 16, %s19
          %p278 = scmp.lt.s32.totalorder %s277, 31
          %s279 = scalar_select %p278, %s277, 31
          %s280 = smul.addr %s279, 8
          %s281 = smul.addr %s280, 4
          %s282 = scalar_lea.vmem %s0, %s281
          %s283 = smul.u32 16, %s19
        $region36: #{cnn_forward.1} parent=31 // pred_fallthru
          _
        // Predicated region
        $region37: #{cnn_forward.1} parent=31 // pred_check
          %p284 = pneg %p149
        $region38: #{cnn_forward.1} parent=31 // pred_check_branch
          %286 = sbr.rel (%p284) target = $region40
        $region39: #{cnn_forward.1} parent=31 // pred_region
          %s287 = smul.u32 16, %s19
          %p288 = scmp.lt.s32.totalorder %s287, 31
          %s289 = scalar_select %p288, %s287, 31
          %s290 = smul.addr %s289, 8
          %s291 = scalar_lea.vmem %s5, %s290
          %s292 = smul.u32 16, %s19
        $region40: #{cnn_forward.1} parent=31 // pred_fallthru
          _
        // Predicated region
        $region41: #{cnn_forward.1} parent=31 // pred_check
          %p293 = pneg %p175
        $region42: #{cnn_forward.1} parent=31 // pred_check_branch
          %295 = sbr.rel (%p293) target = $region44
        $region43: #{cnn_forward.1} parent=31 // pred_region
          %s296 = smul.u32 16, %s19
          %p297 = scmp.lt.s32.totalorder %s296, 31
          %s298 = scalar_select %p297, %s296, 31
          %s299 = smul.addr %s298, 8
          %s300 = scalar_lea.vmem %s6, %s299
          %s301 = smul.u32 16, %s19
        $region44: #{cnn_forward.1} parent=31 // pred_fallthru
          _
      $region32: #{cnn_forward.1} parent=5 // pred_fallthru
        _
      %p302 = scmp.le.s32.totalorder 1, %s19
      %p303 = scmp.lt.s32.totalorder %s19, 3
      %p304 = pnand %p302, %p303
      %p305 = pneg %p304
      // Predicated region
      $region45: #{cnn_forward.1} parent=5 // pred_check
        _
      $region46: #{cnn_forward.1} parent=5 // pred_check_branch
        %307 = sbr.rel (%p304) target = $region48
      $region47: #{cnn_forward.1} parent=5 // pred_region
        %s308 = ssub.s32 %s19, 1
        // Predicated region
        $region49: #{cnn_forward.1} parent=47 // pred_check
          %p309 = pneg %p66
        $region50: #{cnn_forward.1} parent=47 // pred_check_branch
          %311 = sbr.rel (%p309) target = $region52
        $region51: #{cnn_forward.1} parent=47 // pred_region
          %312 = dma.done [#allocation3], 73728
        $region52: #{cnn_forward.1} parent=47 // pred_fallthru
          _
        // Predicated region
        $region53: #{cnn_forward.1} parent=47 // pred_check
          %p313 = pneg %p87
        $region54: #{cnn_forward.1} parent=47 // pred_check_branch
          %315 = sbr.rel (%p313) target = $region56
        $region55: #{cnn_forward.1} parent=47 // pred_region
          %316 = dma.done [#allocation6], 16
        $region56: #{cnn_forward.1} parent=47 // pred_fallthru
          _
        // Predicated region
        $region57: #{cnn_forward.1} parent=47 // pred_check
          %p317 = pneg %p108
        $region58: #{cnn_forward.1} parent=47 // pred_check_branch
          %319 = sbr.rel (%p317) target = $region60
        $region59: #{cnn_forward.1} parent=47 // pred_region
          %320 = dma.done [#allocation6], 9216
        $region60: #{cnn_forward.1} parent=47 // pred_fallthru
          _
        // Predicated region
        $region61: #{cnn_forward.1} parent=47 // pred_check
          %p321 = pneg %p129
        $region62: #{cnn_forward.1} parent=47 // pred_check_branch
          %323 = sbr.rel (%p321) target = $region64
        $region63: #{cnn_forward.1} parent=47 // pred_region
          %324 = dma.done [#allocation9], 16
        $region64: #{cnn_forward.1} parent=47 // pred_fallthru
          _
        %s325 = smul.u32 16, %s24
        %p326 = scmp.lt.s32.totalorder %s325, 31
        %s327 = scalar_select %p326, %s325, 31
        %s328 = smul.addr %s327, 8
        %s329 = smul.addr %s328, 4
        %s330 = scalar_lea.vmem %s0, %s329
        %p331 = pneg %p45
        %p332 = pneg %p42
        %p333 = pneg %p66
        %p334 = pneg %p63
        %p335 = pneg %p87
        %p336 = pneg %p84
        %p337 = pneg %p108
        %p338 = pneg %p105
        %p339 = pneg %p129
        %p340 = pneg %p126
        %s341 = smul.u32 16, %s24
        %p342 = scmp.lt.s32.totalorder %s341, 31
        %s343 = scalar_select %p342, %s341, 31
        %s344 = smul.addr %s343, 8
        %s345 = scalar_lea.vmem %s5, %s344
        %p346 = pneg %p155
        %p347 = pneg %p152
        %s348 = smul.u32 16, %s24
        %p349 = scmp.lt.s32.totalorder %s348, 31
        %s350 = scalar_select %p349, %s348, 31
        %s351 = smul.addr %s350, 8
        %s352 = scalar_lea.vmem %s6, %s351
        %p353 = pneg %p181
        %p354 = pneg %p178
        %p355 = pneg %p207
        %p356 = pneg %p204
        %s357 = sand.u32 %s194, 1
        %s358 = scalar_lea.sflag [#allocation4], %s357
        %s359 = sand.u32 %s194, 1
        %s360 = smul.addr %s359, 128
        %s361 = scalar_lea.vmem [#allocation10], %s360
        %s362 = smul.u32 16, %s24
        %p363 = scmp.lt.s32.totalorder %s362, 31
        %s364 = scalar_select %p363, %s362, 31
        %s365 = smul.addr %s364, 8
        %s366 = smul.addr %s365, 4
        %s367 = scalar_lea.vmem %s0, %s366
        %s368 = smul.u32 16, %s24
        %s369 = smul.u32 16, %s24
        %p370 = scmp.lt.s32.totalorder %s369, 31
        %s371 = scalar_select %p370, %s369, 31
        %s372 = smul.addr %s371, 8
        %s373 = scalar_lea.vmem %s5, %s372
        %s374 = smul.u32 16, %s24
        %s375 = smul.u32 16, %s24
        %p376 = scmp.lt.s32.totalorder %s375, 31
        %s377 = scalar_select %p376, %s375, 31
        %s378 = smul.addr %s377, 8
        %s379 = scalar_lea.vmem %s6, %s378
        %s380 = smul.u32 16, %s24
        %s381 = smul.u32 16, %s24
        %v383 = vld [vmem:[%s373] sm:$0xff]
        %v384 = vld [vmem:[%s373 + $0x8] sm:$0xff]
        %v385 = vld [vmem:[%s373 + $0x10] sm:$0xff]
        %v386 = vld [vmem:[%s373 + $0x18] sm:$0xff]
        %v387 = vld [vmem:[%s373 + $0x20] sm:$0xff]
        %v388 = vld [vmem:[%s373 + $0x28] sm:$0xff]
        %v389 = vld [vmem:[%s373 + $0x30] sm:$0xff]
        %v390 = vld [vmem:[%s373 + $0x38] sm:$0xff]
        %v391 = vld [vmem:[%s373 + $0x40] sm:$0xff]
        %v392 = vld [vmem:[%s373 + $0x48] sm:$0xff]
        %v393 = vld [vmem:[%s373 + $0x50] sm:$0xff]
        %v394 = vld [vmem:[%s373 + $0x58] sm:$0xff]
        %v395 = vld [vmem:[%s373 + $0x60] sm:$0xff]
        %v396 = vld [vmem:[%s373 + $0x68] sm:$0xff]
        %v397 = vld [vmem:[%s373 + $0x70] sm:$0xff]
        %v398 = vld [vmem:[%s373 + $0x78] sm:$0xff]
        %v399 = vld [vmem:[%s379] sm:$0xff]
        %v400 = vld [vmem:[%s379 + $0x8] sm:$0xff]
        %v401 = vld [vmem:[%s379 + $0x10] sm:$0xff]
        %v402 = vld [vmem:[%s379 + $0x18] sm:$0xff]
        %v403 = vld [vmem:[%s379 + $0x20] sm:$0xff]
        %v404 = vld [vmem:[%s379 + $0x28] sm:$0xff]
        %v405 = vld [vmem:[%s379 + $0x30] sm:$0xff]
        %v406 = vld [vmem:[%s379 + $0x38] sm:$0xff]
        %v407 = vld [vmem:[%s379 + $0x40] sm:$0xff]
        %v408 = vld [vmem:[%s379 + $0x48] sm:$0xff]
        %v409 = vld [vmem:[%s379 + $0x50] sm:$0xff]
        %v410 = vld [vmem:[%s379 + $0x58] sm:$0xff]
        %v411 = vld [vmem:[%s379 + $0x60] sm:$0xff]
        %v412 = vld [vmem:[%s379 + $0x68] sm:$0xff]
        %v413 = vld [vmem:[%s379 + $0x70] sm:$0xff]
        %v414 = vld [vmem:[%s379 + $0x78] sm:$0xff]
        %v415 = vld [vmem:[%s367] sm:$0xff]
        %v416 = vld [vmem:[%s367 + $0x8] sm:$0xff]
        %v417 = vld [vmem:[%s367 + $0x10] sm:$0xff]
        %v418 = vld [vmem:[%s367 + $0x18] sm:$0xff]
        %v419 = vld [vmem:[%s367 + $0x20] sm:$0xff]
        %v420 = vld [vmem:[%s367 + $0x28] sm:$0xff]
        %v421 = vld [vmem:[%s367 + $0x30] sm:$0xff]
        %v422 = vld [vmem:[%s367 + $0x38] sm:$0xff]
        %v423 = vld [vmem:[%s367 + $0x40] sm:$0xff]
        %v424 = vld [vmem:[%s367 + $0x48] sm:$0xff]
        %v425 = vld [vmem:[%s367 + $0x50] sm:$0xff]
        %v426 = vld [vmem:[%s367 + $0x58] sm:$0xff]
        %v427 = vld [vmem:[%s367 + $0x60] sm:$0xff]
        %v428 = vld [vmem:[%s367 + $0x68] sm:$0xff]
        %v429 = vld [vmem:[%s367 + $0x70] sm:$0xff]
        %v430 = vld [vmem:[%s367 + $0x78] sm:$0xff]
        %v431 = vld [vmem:[%s367 + $0x80] sm:$0xff]
        %v432 = vld [vmem:[%s367 + $0x88] sm:$0xff]
        %v433 = vld [vmem:[%s367 + $0x90] sm:$0xff]
        %v434 = vld [vmem:[%s367 + $0x98] sm:$0xff]
        %v435 = vld [vmem:[%s367 + $0xa0] sm:$0xff]
        %v436 = vld [vmem:[%s367 + $0xa8] sm:$0xff]
        %v437 = vld [vmem:[%s367 + $0xb0] sm:$0xff]
        %v438 = vld [vmem:[%s367 + $0xb8] sm:$0xff]
        %v439 = vld [vmem:[%s367 + $0xc0] sm:$0xff]
        %v440 = vld [vmem:[%s367 + $0xc8] sm:$0xff]
        %v441 = vld [vmem:[%s367 + $0xd0] sm:$0xff]
        %v442 = vld [vmem:[%s367 + $0xd8] sm:$0xff]
        %v443 = vld [vmem:[%s367 + $0xe0] sm:$0xff]
        %v444 = vld [vmem:[%s367 + $0xe8] sm:$0xff]
        %v445 = vld [vmem:[%s367 + $0xf0] sm:$0xff]
        %v446 = vld [vmem:[%s367 + $0xf8] sm:$0xff]
        %v447 = vld [vmem:[%s367 + $0x100] sm:$0xff]
        %v448 = vld [vmem:[%s367 + $0x108] sm:$0xff]
        %v449 = vld [vmem:[%s367 + $0x110] sm:$0xff]
        %v450 = vld [vmem:[%s367 + $0x118] sm:$0xff]
        %v451 = vld [vmem:[%s367 + $0x120] sm:$0xff]
        %v452 = vld [vmem:[%s367 + $0x128] sm:$0xff]
        %v453 = vld [vmem:[%s367 + $0x130] sm:$0xff]
        %v454 = vld [vmem:[%s367 + $0x138] sm:$0xff]
        %v455 = vld [vmem:[%s367 + $0x140] sm:$0xff]
        %v456 = vld [vmem:[%s367 + $0x148] sm:$0xff]
        %v457 = vld [vmem:[%s367 + $0x150] sm:$0xff]
        %v458 = vld [vmem:[%s367 + $0x158] sm:$0xff]
        %v459 = vld [vmem:[%s367 + $0x160] sm:$0xff]
        %v460 = vld [vmem:[%s367 + $0x168] sm:$0xff]
        %v461 = vld [vmem:[%s367 + $0x170] sm:$0xff]
        %v462 = vld [vmem:[%s367 + $0x178] sm:$0xff]
        %v463 = vld [vmem:[%s367 + $0x180] sm:$0xff]
        %v464 = vld [vmem:[%s367 + $0x188] sm:$0xff]
        %v465 = vld [vmem:[%s367 + $0x190] sm:$0xff]
        %v466 = vld [vmem:[%s367 + $0x198] sm:$0xff]
        %v467 = vld [vmem:[%s367 + $0x1a0] sm:$0xff]
        %v468 = vld [vmem:[%s367 + $0x1a8] sm:$0xff]
        %v469 = vld [vmem:[%s367 + $0x1b0] sm:$0xff]
        %v470 = vld [vmem:[%s367 + $0x1b8] sm:$0xff]
        %v471 = vld [vmem:[%s367 + $0x1c0] sm:$0xff]
        %v472 = vld [vmem:[%s367 + $0x1c8] sm:$0xff]
        %v473 = vld [vmem:[%s367 + $0x1d0] sm:$0xff]
        %v474 = vld [vmem:[%s367 + $0x1d8] sm:$0xff]
        %v475 = vld [vmem:[%s367 + $0x1e0] sm:$0xff]
        %v476 = vld [vmem:[%s367 + $0x1e8] sm:$0xff]
        %v477 = vld [vmem:[%s367 + $0x1f0] sm:$0xff]
        %v478 = vld [vmem:[%s367 + $0x1f8] sm:$0xff]
        %v479 = vld [vmem:[#allocation2] sm:$0xff]
        %v480 = vld [vmem:[#allocation2 + $0x8] sm:$0xff]
        %v481 = vld [vmem:[#allocation2 + $0x10] sm:$0xff]
        %v482 = vld [vmem:[#allocation2 + $0x18] sm:$0xff]
        %v483 = vld [vmem:[#allocation2 + $0x20] sm:$0xf]
        %v484 = vld [vmem:[#allocation2 + $0x24] sm:$0xff]
        %v485 = vld [vmem:[#allocation2 + $0x2c] sm:$0xff]
        %v486 = vld [vmem:[#allocation2 + $0x34] sm:$0xff]
        %v487 = vld [vmem:[#allocation2 + $0x3c] sm:$0xff]
        %v488 = vld [vmem:[#allocation2 + $0x44] sm:$0xf]
        %v489 = vld [vmem:[#allocation2 + $0x48] sm:$0xff]
        %v490 = vld [vmem:[#allocation2 + $0x50] sm:$0xff]
        %v491 = vld [vmem:[#allocation2 + $0x58] sm:$0xff]
        %v492 = vld [vmem:[#allocation2 + $0x60] sm:$0xff]
        %v493 = vld [vmem:[#allocation2 + $0x68] sm:$0xf]
        %v494 = vld [vmem:[#allocation2 + $0x6c] sm:$0xff]
        %v495 = vld [vmem:[#allocation2 + $0x74] sm:$0xff]
        %v496 = vld [vmem:[#allocation2 + $0x7c] sm:$0xff]
        %v497 = vld [vmem:[#allocation2 + $0x84] sm:$0xff]
        %v498 = vld [vmem:[#allocation2 + $0x8c] sm:$0xf]
        %v499 = vld [vmem:[#allocation2 + $0x90] sm:$0xff]
        %v500 = vld [vmem:[#allocation2 + $0x98] sm:$0xff]
        %v501 = vld [vmem:[#allocation2 + $0xa0] sm:$0xff]
        %v502 = vld [vmem:[#allocation2 + $0xa8] sm:$0xff]
        %v503 = vld [vmem:[#allocation2 + $0xb0] sm:$0xf]
        %v504 = vld [vmem:[#allocation2 + $0xb4] sm:$0xff]
        %v505 = vld [vmem:[#allocation2 + $0xbc] sm:$0xff]
        %v506 = vld [vmem:[#allocation2 + $0xc4] sm:$0xff]
        %v507 = vld [vmem:[#allocation2 + $0xcc] sm:$0xff]
        %v508 = vld [vmem:[#allocation2 + $0xd4] sm:$0xf]
        %v509 = vld [vmem:[#allocation2 + $0xd8] sm:$0xff]
        %v510 = vld [vmem:[#allocation2 + $0xe0] sm:$0xff]
        %v511 = vld [vmem:[#allocation2 + $0xe8] sm:$0xff]
        %v512 = vld [vmem:[#allocation2 + $0xf0] sm:$0xff]
        %v513 = vld [vmem:[#allocation2 + $0xf8] sm:$0xf]
        %v514 = vld [vmem:[#allocation2 + $0xfc] sm:$0xff]
        %v515 = vld [vmem:[#allocation2 + $0x104] sm:$0xff]
        %v516 = vld [vmem:[#allocation2 + $0x10c] sm:$0xff]
        %v517 = vld [vmem:[#allocation2 + $0x114] sm:$0xff]
        %v518 = vld [vmem:[#allocation2 + $0x11c] sm:$0xf]
        %v519 = vld [vmem:[#allocation2 + $0x120] sm:$0xff]
        %v520 = vld [vmem:[#allocation2 + $0x128] sm:$0xff]
        %v521 = vld [vmem:[#allocation2 + $0x130] sm:$0xff]
        %v522 = vld [vmem:[#allocation2 + $0x138] sm:$0xff]
        %v523 = vld [vmem:[#allocation2 + $0x140] sm:$0xf]
        %v524 = vld [vmem:[#allocation2 + $0x144] sm:$0xff]
        %v525 = vld [vmem:[#allocation2 + $0x14c] sm:$0xff]
        %v526 = vld [vmem:[#allocation2 + $0x154] sm:$0xff]
        %v527 = vld [vmem:[#allocation2 + $0x15c] sm:$0xff]
        %v528 = vld [vmem:[#allocation2 + $0x164] sm:$0xf]
        %v529 = vld [vmem:[#allocation2 + $0x168] sm:$0xff]
        %v530 = vld [vmem:[#allocation2 + $0x170] sm:$0xff]
        %v531 = vld [vmem:[#allocation2 + $0x178] sm:$0xff]
        %v532 = vld [vmem:[#allocation2 + $0x180] sm:$0xff]
        %v533 = vld [vmem:[#allocation2 + $0x188] sm:$0xf]
        %v534 = vld [vmem:[#allocation2 + $0x18c] sm:$0xff]
        %v535 = vld [vmem:[#allocation2 + $0x194] sm:$0xff]
        %v536 = vld [vmem:[#allocation2 + $0x19c] sm:$0xff]
        %v537 = vld [vmem:[#allocation2 + $0x1a4] sm:$0xff]
        %v538 = vld [vmem:[#allocation2 + $0x1ac] sm:$0xf]
        %v539 = vld [vmem:[#allocation2 + $0x1b0] sm:$0xff]
        %v540 = vld [vmem:[#allocation2 + $0x1b8] sm:$0xff]
        %v541 = vld [vmem:[#allocation2 + $0x1c0] sm:$0xff]
        %v542 = vld [vmem:[#allocation2 + $0x1c8] sm:$0xff]
        %v543 = vld [vmem:[#allocation2 + $0x1d0] sm:$0xf]
        %v544 = vld [vmem:[#allocation2 + $0x1d4] sm:$0xff]
        %v545 = vld [vmem:[#allocation2 + $0x1dc] sm:$0xff]
        %v546 = vld [vmem:[#allocation2 + $0x1e4] sm:$0xff]
        %v547 = vld [vmem:[#allocation2 + $0x1ec] sm:$0xff]
        %v548 = vld [vmem:[#allocation2 + $0x1f4] sm:$0xf]
        %v549 = vld [vmem:[#allocation2 + $0x1f8] sm:$0xff]
        %v550 = vld [vmem:[#allocation2 + $0x200] sm:$0xff]
        %v551 = vld [vmem:[#allocation2 + $0x208] sm:$0xff]
        %v552 = vld [vmem:[#allocation2 + $0x210] sm:$0xff]
        %v553 = vld [vmem:[#allocation2 + $0x218] sm:$0xf]
        %v554 = vld [vmem:[#allocation2 + $0x21c] sm:$0xff]
        %v555 = vld [vmem:[#allocation2 + $0x224] sm:$0xff]
        %v556 = vld [vmem:[#allocation2 + $0x22c] sm:$0xff]
        %v557 = vld [vmem:[#allocation2 + $0x234] sm:$0xff]
        %v558 = vld [vmem:[#allocation2 + $0x23c] sm:$0xf]
        %v559 = vld [vmem:[#allocation2 + $0x240] sm:$0xff]
        %v560 = vld [vmem:[#allocation2 + $0x248] sm:$0xff]
        %v561 = vld [vmem:[#allocation2 + $0x250] sm:$0xff]
        %v562 = vld [vmem:[#allocation2 + $0x258] sm:$0xff]
        %v563 = vld [vmem:[#allocation2 + $0x260] sm:$0xf]
        %v564 = vld [vmem:[#allocation2 + $0x264] sm:$0xff]
        %v565 = vld [vmem:[#allocation2 + $0x26c] sm:$0xff]
        %v566 = vld [vmem:[#allocation2 + $0x274] sm:$0xff]
        %v567 = vld [vmem:[#allocation2 + $0x27c] sm:$0xff]
        %v568 = vld [vmem:[#allocation2 + $0x284] sm:$0xf]
        %v569 = vld [vmem:[#allocation2 + $0x288] sm:$0xff]
        %v570 = vld [vmem:[#allocation2 + $0x290] sm:$0xff]
        %v571 = vld [vmem:[#allocation2 + $0x298] sm:$0xff]
        %v572 = vld [vmem:[#allocation2 + $0x2a0] sm:$0xff]
        %v573 = vld [vmem:[#allocation2 + $0x2a8] sm:$0xf]
        %v574 = vld [vmem:[#allocation2 + $0x2ac] sm:$0xff]
        %v575 = vld [vmem:[#allocation2 + $0x2b4] sm:$0xff]
        %v576 = vld [vmem:[#allocation2 + $0x2bc] sm:$0xff]
        %v577 = vld [vmem:[#allocation2 + $0x2c4] sm:$0xff]
        %v578 = vld [vmem:[#allocation2 + $0x2cc] sm:$0xf]
        %v579 = vld [vmem:[#allocation2 + $0x2d0] sm:$0xff]
        %v580 = vld [vmem:[#allocation2 + $0x2d8] sm:$0xff]
        %v581 = vld [vmem:[#allocation2 + $0x2e0] sm:$0xff]
        %v582 = vld [vmem:[#allocation2 + $0x2e8] sm:$0xff]
        %v583 = vld [vmem:[#allocation2 + $0x2f0] sm:$0xf]
        %v584 = vld [vmem:[#allocation2 + $0x2f4] sm:$0xff]
        %v585 = vld [vmem:[#allocation2 + $0x2fc] sm:$0xff]
        %v586 = vld [vmem:[#allocation2 + $0x304] sm:$0xff]
        %v587 = vld [vmem:[#allocation2 + $0x30c] sm:$0xff]
        %v588 = vld [vmem:[#allocation2 + $0x314] sm:$0xf]
        %v589 = vld [vmem:[#allocation2 + $0x318] sm:$0xff]
        %v590 = vld [vmem:[#allocation2 + $0x320] sm:$0xff]
        %v591 = vld [vmem:[#allocation2 + $0x328] sm:$0xff]
        %v592 = vld [vmem:[#allocation2 + $0x330] sm:$0xff]
        %v593 = vld [vmem:[#allocation2 + $0x338] sm:$0xf]
        %v594 = vld [vmem:[#allocation2 + $0x33c] sm:$0xff]
        %v595 = vld [vmem:[#allocation2 + $0x344] sm:$0xff]
        %v596 = vld [vmem:[#allocation2 + $0x34c] sm:$0xff]
        %v597 = vld [vmem:[#allocation2 + $0x354] sm:$0xff]
        %v598 = vld [vmem:[#allocation2 + $0x35c] sm:$0xf]
        %v599 = vld [vmem:[#allocation2 + $0x360] sm:$0xff]
        %v600 = vld [vmem:[#allocation2 + $0x368] sm:$0xff]
        %v601 = vld [vmem:[#allocation2 + $0x370] sm:$0xff]
        %v602 = vld [vmem:[#allocation2 + $0x378] sm:$0xff]
        %v603 = vld [vmem:[#allocation2 + $0x380] sm:$0xf]
        %v604 = vld [vmem:[#allocation2 + $0x384] sm:$0xff]
        %v605 = vld [vmem:[#allocation2 + $0x38c] sm:$0xff]
        %v606 = vld [vmem:[#allocation2 + $0x394] sm:$0xff]
        %v607 = vld [vmem:[#allocation2 + $0x39c] sm:$0xff]
        %v608 = vld [vmem:[#allocation2 + $0x3a4] sm:$0xf]
        %v609 = vld [vmem:[#allocation2 + $0x3a8] sm:$0xff]
        %v610 = vld [vmem:[#allocation2 + $0x3b0] sm:$0xff]
        %v611 = vld [vmem:[#allocation2 + $0x3b8] sm:$0xff]
        %v612 = vld [vmem:[#allocation2 + $0x3c0] sm:$0xff]
        %v613 = vld [vmem:[#allocation2 + $0x3c8] sm:$0xf]
        %v614 = vld [vmem:[#allocation2 + $0x3cc] sm:$0xff]
        %v615 = vld [vmem:[#allocation2 + $0x3d4] sm:$0xff]
        %v616 = vld [vmem:[#allocation2 + $0x3dc] sm:$0xff]
        %v617 = vld [vmem:[#allocation2 + $0x3e4] sm:$0xff]
        %v618 = vld [vmem:[#allocation2 + $0x3ec] sm:$0xf]
        %v619 = vld [vmem:[#allocation2 + $0x3f0] sm:$0xff]
        %v620 = vld [vmem:[#allocation2 + $0x3f8] sm:$0xff]
        %v621 = vld [vmem:[#allocation2 + $0x400] sm:$0xff]
        %v622 = vld [vmem:[#allocation2 + $0x408] sm:$0xff]
        %v623 = vld [vmem:[#allocation2 + $0x410] sm:$0xf]
        %v624 = vld [vmem:[#allocation2 + $0x414] sm:$0xff]
        %v625 = vld [vmem:[#allocation2 + $0x41c] sm:$0xff]
        %v626 = vld [vmem:[#allocation2 + $0x424] sm:$0xff]
        %v627 = vld [vmem:[#allocation2 + $0x42c] sm:$0xff]
        %v628 = vld [vmem:[#allocation2 + $0x434] sm:$0xf]
        %v629 = vld [vmem:[#allocation2 + $0x438] sm:$0xff]
        %v630 = vld [vmem:[#allocation2 + $0x440] sm:$0xff]
        %v631 = vld [vmem:[#allocation2 + $0x448] sm:$0xff]
        %v632 = vld [vmem:[#allocation2 + $0x450] sm:$0xff]
        %v633 = vld [vmem:[#allocation2 + $0x458] sm:$0xf]
        %v634 = vld [vmem:[#allocation2 + $0x45c] sm:$0xff]
        %v635 = vld [vmem:[#allocation2 + $0x464] sm:$0xff]
        %v636 = vld [vmem:[#allocation2 + $0x46c] sm:$0xff]
        %v637 = vld [vmem:[#allocation2 + $0x474] sm:$0xff]
        %v638 = vld [vmem:[#allocation2 + $0x47c] sm:$0xf]
        %v639 = vld [vmem:[#allocation2 + $0x480] sm:$0xff]
        %v640 = vld [vmem:[#allocation2 + $0x488] sm:$0xff]
        %v641 = vld [vmem:[#allocation2 + $0x490] sm:$0xff]
        %v642 = vld [vmem:[#allocation2 + $0x498] sm:$0xff]
        %v643 = vld [vmem:[#allocation2 + $0x4a0] sm:$0xf]
        %v644 = vld [vmem:[#allocation2 + $0x4a4] sm:$0xff]
        %v645 = vld [vmem:[#allocation2 + $0x4ac] sm:$0xff]
        %v646 = vld [vmem:[#allocation2 + $0x4b4] sm:$0xff]
        %v647 = vld [vmem:[#allocation2 + $0x4bc] sm:$0xff]
        %v648 = vld [vmem:[#allocation2 + $0x4c4] sm:$0xf]
        %v649 = vld [vmem:[#allocation2 + $0x4c8] sm:$0xff]
        %v650 = vld [vmem:[#allocation2 + $0x4d0] sm:$0xff]
        %v651 = vld [vmem:[#allocation2 + $0x4d8] sm:$0xff]
        %v652 = vld [vmem:[#allocation2 + $0x4e0] sm:$0xff]
        %v653 = vld [vmem:[#allocation2 + $0x4e8] sm:$0xf]
        %v654 = vld [vmem:[#allocation2 + $0x4ec] sm:$0xff]
        %v655 = vld [vmem:[#allocation2 + $0x4f4] sm:$0xff]
        %v656 = vld [vmem:[#allocation2 + $0x4fc] sm:$0xff]
        %v657 = vld [vmem:[#allocation2 + $0x504] sm:$0xff]
        %v658 = vld [vmem:[#allocation2 + $0x50c] sm:$0xf]
        %v659 = vld [vmem:[#allocation2 + $0x510] sm:$0xff]
        %v660 = vld [vmem:[#allocation2 + $0x518] sm:$0xff]
        %v661 = vld [vmem:[#allocation2 + $0x520] sm:$0xff]
        %v662 = vld [vmem:[#allocation2 + $0x528] sm:$0xff]
        %v663 = vld [vmem:[#allocation2 + $0x530] sm:$0xf]
        %v664 = vld [vmem:[#allocation2 + $0x534] sm:$0xff]
        %v665 = vld [vmem:[#allocation2 + $0x53c] sm:$0xff]
        %v666 = vld [vmem:[#allocation2 + $0x544] sm:$0xff]
        %v667 = vld [vmem:[#allocation2 + $0x54c] sm:$0xff]
        %v668 = vld [vmem:[#allocation2 + $0x554] sm:$0xf]
        %v669 = vld [vmem:[#allocation2 + $0x558] sm:$0xff]
        %v670 = vld [vmem:[#allocation2 + $0x560] sm:$0xff]
        %v671 = vld [vmem:[#allocation2 + $0x568] sm:$0xff]
        %v672 = vld [vmem:[#allocation2 + $0x570] sm:$0xff]
        %v673 = vld [vmem:[#allocation2 + $0x578] sm:$0xf]
        %v674 = vld [vmem:[#allocation2 + $0x57c] sm:$0xff]
        %v675 = vld [vmem:[#allocation2 + $0x584] sm:$0xff]
        %v676 = vld [vmem:[#allocation2 + $0x58c] sm:$0xff]
        %v677 = vld [vmem:[#allocation2 + $0x594] sm:$0xff]
        %v678 = vld [vmem:[#allocation2 + $0x59c] sm:$0xf]
        %v679 = vld [vmem:[#allocation2 + $0x5a0] sm:$0xff]
        %v680 = vld [vmem:[#allocation2 + $0x5a8] sm:$0xff]
        %v681 = vld [vmem:[#allocation2 + $0x5b0] sm:$0xff]
        %v682 = vld [vmem:[#allocation2 + $0x5b8] sm:$0xff]
        %v683 = vld [vmem:[#allocation2 + $0x5c0] sm:$0xf]
        %v684 = vld [vmem:[#allocation2 + $0x5c4] sm:$0xff]
        %v685 = vld [vmem:[#allocation2 + $0x5cc] sm:$0xff]
        %v686 = vld [vmem:[#allocation2 + $0x5d4] sm:$0xff]
        %v687 = vld [vmem:[#allocation2 + $0x5dc] sm:$0xff]
        %v688 = vld [vmem:[#allocation2 + $0x5e4] sm:$0xf]
        %v689 = vld [vmem:[#allocation2 + $0x5e8] sm:$0xff]
        %v690 = vld [vmem:[#allocation2 + $0x5f0] sm:$0xff]
        %v691 = vld [vmem:[#allocation2 + $0x5f8] sm:$0xff]
        %v692 = vld [vmem:[#allocation2 + $0x600] sm:$0xff]
        %v693 = vld [vmem:[#allocation2 + $0x608] sm:$0xf]
        %v694 = vld [vmem:[#allocation2 + $0x60c] sm:$0xff]
        %v695 = vld [vmem:[#allocation2 + $0x614] sm:$0xff]
        %v696 = vld [vmem:[#allocation2 + $0x61c] sm:$0xff]
        %v697 = vld [vmem:[#allocation2 + $0x624] sm:$0xff]
        %v698 = vld [vmem:[#allocation2 + $0x62c] sm:$0xf]
        %v699 = vld [vmem:[#allocation2 + $0x630] sm:$0xff]
        %v700 = vld [vmem:[#allocation2 + $0x638] sm:$0xff]
        %v701 = vld [vmem:[#allocation2 + $0x640] sm:$0xff]
        %v702 = vld [vmem:[#allocation2 + $0x648] sm:$0xff]
        %v703 = vld [vmem:[#allocation2 + $0x650] sm:$0xf]
        %v704 = vld [vmem:[#allocation2 + $0x654] sm:$0xff]
        %v705 = vld [vmem:[#allocation2 + $0x65c] sm:$0xff]
        %v706 = vld [vmem:[#allocation2 + $0x664] sm:$0xff]
        %v707 = vld [vmem:[#allocation2 + $0x66c] sm:$0xff]
        %v708 = vld [vmem:[#allocation2 + $0x674] sm:$0xf]
        %v709 = vld [vmem:[#allocation2 + $0x678] sm:$0xff]
        %v710 = vld [vmem:[#allocation2 + $0x680] sm:$0xff]
        %v711 = vld [vmem:[#allocation2 + $0x688] sm:$0xff]
        %v712 = vld [vmem:[#allocation2 + $0x690] sm:$0xff]
        %v713 = vld [vmem:[#allocation2 + $0x698] sm:$0xf]
        %v714 = vld [vmem:[#allocation2 + $0x69c] sm:$0xff]
        %v715 = vld [vmem:[#allocation2 + $0x6a4] sm:$0xff]
        %v716 = vld [vmem:[#allocation2 + $0x6ac] sm:$0xff]
        %v717 = vld [vmem:[#allocation2 + $0x6b4] sm:$0xff]
        %v718 = vld [vmem:[#allocation2 + $0x6bc] sm:$0xf]
        %v719 = vld [vmem:[#allocation2 + $0x6c0] sm:$0xff]
        %v720 = vld [vmem:[#allocation2 + $0x6c8] sm:$0xff]
        %v721 = vld [vmem:[#allocation2 + $0x6d0] sm:$0xff]
        %v722 = vld [vmem:[#allocation2 + $0x6d8] sm:$0xff]
        %v723 = vld [vmem:[#allocation2 + $0x6e0] sm:$0xf]
        %v724 = vld [vmem:[#allocation2 + $0x6e4] sm:$0xff]
        %v725 = vld [vmem:[#allocation2 + $0x6ec] sm:$0xff]
        %v726 = vld [vmem:[#allocation2 + $0x6f4] sm:$0xff]
        %v727 = vld [vmem:[#allocation2 + $0x6fc] sm:$0xff]
        %v728 = vld [vmem:[#allocation2 + $0x704] sm:$0xf]
        %v729 = vld [vmem:[#allocation2 + $0x708] sm:$0xff]
        %v730 = vld [vmem:[#allocation2 + $0x710] sm:$0xff]
        %v731 = vld [vmem:[#allocation2 + $0x718] sm:$0xff]
        %v732 = vld [vmem:[#allocation2 + $0x720] sm:$0xff]
        %v733 = vld [vmem:[#allocation2 + $0x728] sm:$0xf]
        %v734 = vld [vmem:[#allocation2 + $0x72c] sm:$0xff]
        %v735 = vld [vmem:[#allocation2 + $0x734] sm:$0xff]
        %v736 = vld [vmem:[#allocation2 + $0x73c] sm:$0xff]
        %v737 = vld [vmem:[#allocation2 + $0x744] sm:$0xff]
        %v738 = vld [vmem:[#allocation2 + $0x74c] sm:$0xf]
        %v739 = vld [vmem:[#allocation2 + $0x750] sm:$0xff]
        %v740 = vld [vmem:[#allocation2 + $0x758] sm:$0xff]
        %v741 = vld [vmem:[#allocation2 + $0x760] sm:$0xff]
        %v742 = vld [vmem:[#allocation2 + $0x768] sm:$0xff]
        %v743 = vld [vmem:[#allocation2 + $0x770] sm:$0xf]
        %v744 = vld [vmem:[#allocation2 + $0x774] sm:$0xff]
        %v745 = vld [vmem:[#allocation2 + $0x77c] sm:$0xff]
        %v746 = vld [vmem:[#allocation2 + $0x784] sm:$0xff]
        %v747 = vld [vmem:[#allocation2 + $0x78c] sm:$0xff]
        %v748 = vld [vmem:[#allocation2 + $0x794] sm:$0xf]
        %v749 = vld [vmem:[#allocation2 + $0x798] sm:$0xff]
        %v750 = vld [vmem:[#allocation2 + $0x7a0] sm:$0xff]
        %v751 = vld [vmem:[#allocation2 + $0x7a8] sm:$0xff]
        %v752 = vld [vmem:[#allocation2 + $0x7b0] sm:$0xff]
        %v753 = vld [vmem:[#allocation2 + $0x7b8] sm:$0xf]
        %v754 = vld [vmem:[#allocation2 + $0x7bc] sm:$0xff]
        %v755 = vld [vmem:[#allocation2 + $0x7c4] sm:$0xff]
        %v756 = vld [vmem:[#allocation2 + $0x7cc] sm:$0xff]
        %v757 = vld [vmem:[#allocation2 + $0x7d4] sm:$0xff]
        %v758 = vld [vmem:[#allocation2 + $0x7dc] sm:$0xf]
        %v759 = vld [vmem:[#allocation2 + $0x7e0] sm:$0xff]
        %v760 = vld [vmem:[#allocation2 + $0x7e8] sm:$0xff]
        %v761 = vld [vmem:[#allocation2 + $0x7f0] sm:$0xff]
        %v762 = vld [vmem:[#allocation2 + $0x7f8] sm:$0xff]
        %v763 = vld [vmem:[#allocation2 + $0x800] sm:$0xf]
        %v764 = vld [vmem:[#allocation2 + $0x804] sm:$0xff]
        %v765 = vld [vmem:[#allocation2 + $0x80c] sm:$0xff]
        %v766 = vld [vmem:[#allocation2 + $0x814] sm:$0xff]
        %v767 = vld [vmem:[#allocation2 + $0x81c] sm:$0xff]
        %v768 = vld [vmem:[#allocation2 + $0x824] sm:$0xf]
        %v769 = vld [vmem:[#allocation2 + $0x828] sm:$0xff]
        %v770 = vld [vmem:[#allocation2 + $0x830] sm:$0xff]
        %v771 = vld [vmem:[#allocation2 + $0x838] sm:$0xff]
        %v772 = vld [vmem:[#allocation2 + $0x840] sm:$0xff]
        %v773 = vld [vmem:[#allocation2 + $0x848] sm:$0xf]
        %v774 = vld [vmem:[#allocation2 + $0x84c] sm:$0xff]
        %v775 = vld [vmem:[#allocation2 + $0x854] sm:$0xff]
        %v776 = vld [vmem:[#allocation2 + $0x85c] sm:$0xff]
        %v777 = vld [vmem:[#allocation2 + $0x864] sm:$0xff]
        %v778 = vld [vmem:[#allocation2 + $0x86c] sm:$0xf]
        %v779 = vld [vmem:[#allocation2 + $0x870] sm:$0xff]
        %v780 = vld [vmem:[#allocation2 + $0x878] sm:$0xff]
        %v781 = vld [vmem:[#allocation2 + $0x880] sm:$0xff]
        %v782 = vld [vmem:[#allocation2 + $0x888] sm:$0xff]
        %v783 = vld [vmem:[#allocation2 + $0x890] sm:$0xf]
        %v784 = vld [vmem:[#allocation2 + $0x894] sm:$0xff]
        %v785 = vld [vmem:[#allocation2 + $0x89c] sm:$0xff]
        %v786 = vld [vmem:[#allocation2 + $0x8a4] sm:$0xff]
        %v787 = vld [vmem:[#allocation2 + $0x8ac] sm:$0xff]
        %v788 = vld [vmem:[#allocation2 + $0x8b4] sm:$0xf]
        %v789 = vld [vmem:[#allocation2 + $0x8b8] sm:$0xff]
        %v790 = vld [vmem:[#allocation2 + $0x8c0] sm:$0xff]
        %v791 = vld [vmem:[#allocation2 + $0x8c8] sm:$0xff]
        %v792 = vld [vmem:[#allocation2 + $0x8d0] sm:$0xff]
        %v793 = vld [vmem:[#allocation2 + $0x8d8] sm:$0xf]
        %v794 = vld [vmem:[#allocation2 + $0x8dc] sm:$0xff]
        %v795 = vld [vmem:[#allocation2 + $0x8e4] sm:$0xff]
        %v796 = vld [vmem:[#allocation2 + $0x8ec] sm:$0xff]
        %v797 = vld [vmem:[#allocation2 + $0x8f4] sm:$0xff]
        %v798 = vld [vmem:[#allocation2 + $0x8fc] sm:$0xf]
        %v799 = vld [vmem:[#allocation2 + $0x900] sm:$0xff]
        %v800 = vld [vmem:[#allocation2 + $0x908] sm:$0xff]
        %v801 = vld [vmem:[#allocation2 + $0x910] sm:$0xff]
        %v802 = vld [vmem:[#allocation2 + $0x918] sm:$0xff]
        %v803 = vld [vmem:[#allocation2 + $0x920] sm:$0xf]
        %v804 = vld [vmem:[#allocation2 + $0x924] sm:$0xff]
        %v805 = vld [vmem:[#allocation2 + $0x92c] sm:$0xff]
        %v806 = vld [vmem:[#allocation2 + $0x934] sm:$0xff]
        %v807 = vld [vmem:[#allocation2 + $0x93c] sm:$0xff]
        %v808 = vld [vmem:[#allocation2 + $0x944] sm:$0xf]
        %v809 = vld [vmem:[#allocation2 + $0x948] sm:$0xff]
        %v810 = vld [vmem:[#allocation2 + $0x950] sm:$0xff]
        %v811 = vld [vmem:[#allocation2 + $0x958] sm:$0xff]
        %v812 = vld [vmem:[#allocation2 + $0x960] sm:$0xff]
        %v813 = vld [vmem:[#allocation2 + $0x968] sm:$0xf]
        %v814 = vld [vmem:[#allocation2 + $0x96c] sm:$0xff]
        %v815 = vld [vmem:[#allocation2 + $0x974] sm:$0xff]
        %v816 = vld [vmem:[#allocation2 + $0x97c] sm:$0xff]
        %v817 = vld [vmem:[#allocation2 + $0x984] sm:$0xff]
        %v818 = vld [vmem:[#allocation2 + $0x98c] sm:$0xf]
        %v819 = vld [vmem:[#allocation2 + $0x990] sm:$0xff]
        %v820 = vld [vmem:[#allocation2 + $0x998] sm:$0xff]
        %v821 = vld [vmem:[#allocation2 + $0x9a0] sm:$0xff]
        %v822 = vld [vmem:[#allocation2 + $0x9a8] sm:$0xff]
        %v823 = vld [vmem:[#allocation2 + $0x9b0] sm:$0xf]
        %v824 = vld [vmem:[#allocation2 + $0x9b4] sm:$0xff]
        %v825 = vld [vmem:[#allocation2 + $0x9bc] sm:$0xff]
        %v826 = vld [vmem:[#allocation2 + $0x9c4] sm:$0xff]
        %v827 = vld [vmem:[#allocation2 + $0x9cc] sm:$0xff]
        %v828 = vld [vmem:[#allocation2 + $0x9d4] sm:$0xf]
        %v829 = vld [vmem:[#allocation2 + $0x9d8] sm:$0xff]
        %v830 = vld [vmem:[#allocation2 + $0x9e0] sm:$0xff]
        %v831 = vld [vmem:[#allocation2 + $0x9e8] sm:$0xff]
        %v832 = vld [vmem:[#allocation2 + $0x9f0] sm:$0xff]
        %v833 = vld [vmem:[#allocation2 + $0x9f8] sm:$0xf]
        %v834 = vld [vmem:[#allocation2 + $0x9fc] sm:$0xff]
        %v835 = vld [vmem:[#allocation2 + $0xa04] sm:$0xff]
        %v836 = vld [vmem:[#allocation2 + $0xa0c] sm:$0xff]
        %v837 = vld [vmem:[#allocation2 + $0xa14] sm:$0xff]
        %v838 = vld [vmem:[#allocation2 + $0xa1c] sm:$0xf]
        %v839 = vld [vmem:[#allocation2 + $0xa20] sm:$0xff]
        %v840 = vld [vmem:[#allocation2 + $0xa28] sm:$0xff]
        %v841 = vld [vmem:[#allocation2 + $0xa30] sm:$0xff]
        %v842 = vld [vmem:[#allocation2 + $0xa38] sm:$0xff]
        %v843 = vld [vmem:[#allocation2 + $0xa40] sm:$0xf]
        %v844 = vld [vmem:[#allocation2 + $0xa44] sm:$0xff]
        %v845 = vld [vmem:[#allocation2 + $0xa4c] sm:$0xff]
        %v846 = vld [vmem:[#allocation2 + $0xa54] sm:$0xff]
        %v847 = vld [vmem:[#allocation2 + $0xa5c] sm:$0xff]
        %v848 = vld [vmem:[#allocation2 + $0xa64] sm:$0xf]
        %v849 = vld [vmem:[#allocation2 + $0xa68] sm:$0xff]
        %v850 = vld [vmem:[#allocation2 + $0xa70] sm:$0xff]
        %v851 = vld [vmem:[#allocation2 + $0xa78] sm:$0xff]
        %v852 = vld [vmem:[#allocation2 + $0xa80] sm:$0xff]
        %v853 = vld [vmem:[#allocation2 + $0xa88] sm:$0xf]
        %v854 = vld [vmem:[#allocation2 + $0xa8c] sm:$0xff]
        %v855 = vld [vmem:[#allocation2 + $0xa94] sm:$0xff]
        %v856 = vld [vmem:[#allocation2 + $0xa9c] sm:$0xff]
        %v857 = vld [vmem:[#allocation2 + $0xaa4] sm:$0xff]
        %v858 = vld [vmem:[#allocation2 + $0xaac] sm:$0xf]
        %v859 = vld [vmem:[#allocation2 + $0xab0] sm:$0xff]
        %v860 = vld [vmem:[#allocation2 + $0xab8] sm:$0xff]
        %v861 = vld [vmem:[#allocation2 + $0xac0] sm:$0xff]
        %v862 = vld [vmem:[#allocation2 + $0xac8] sm:$0xff]
        %v863 = vld [vmem:[#allocation2 + $0xad0] sm:$0xf]
        %v864 = vld [vmem:[#allocation2 + $0xad4] sm:$0xff]
        %v865 = vld [vmem:[#allocation2 + $0xadc] sm:$0xff]
        %v866 = vld [vmem:[#allocation2 + $0xae4] sm:$0xff]
        %v867 = vld [vmem:[#allocation2 + $0xaec] sm:$0xff]
        %v868 = vld [vmem:[#allocation2 + $0xaf4] sm:$0xf]
        %v869 = vld [vmem:[#allocation2 + $0xaf8] sm:$0xff]
        %v870 = vld [vmem:[#allocation2 + $0xb00] sm:$0xff]
        %v871 = vld [vmem:[#allocation2 + $0xb08] sm:$0xff]
        %v872 = vld [vmem:[#allocation2 + $0xb10] sm:$0xff]
        %v873 = vld [vmem:[#allocation2 + $0xb18] sm:$0xf]
        %v874 = vld [vmem:[#allocation2 + $0xb1c] sm:$0xff]
        %v875 = vld [vmem:[#allocation2 + $0xb24] sm:$0xff]
        %v876 = vld [vmem:[#allocation2 + $0xb2c] sm:$0xff]
        %v877 = vld [vmem:[#allocation2 + $0xb34] sm:$0xff]
        %v878 = vld [vmem:[#allocation2 + $0xb3c] sm:$0xf]
        %v879 = vld [vmem:[#allocation2 + $0xb40] sm:$0xff]
        %v880 = vld [vmem:[#allocation2 + $0xb48] sm:$0xff]
        %v881 = vld [vmem:[#allocation2 + $0xb50] sm:$0xff]
        %v882 = vld [vmem:[#allocation2 + $0xb58] sm:$0xff]
        %v883 = vld [vmem:[#allocation2 + $0xb60] sm:$0xf]
        %v884 = vld [vmem:[#allocation2 + $0xb64] sm:$0xff]
        %v885 = vld [vmem:[#allocation2 + $0xb6c] sm:$0xff]
        %v886 = vld [vmem:[#allocation2 + $0xb74] sm:$0xff]
        %v887 = vld [vmem:[#allocation2 + $0xb7c] sm:$0xff]
        %v888 = vld [vmem:[#allocation2 + $0xb84] sm:$0xf]
        %v889 = vld [vmem:[#allocation2 + $0xb88] sm:$0xff]
        %v890 = vld [vmem:[#allocation2 + $0xb90] sm:$0xff]
        %v891 = vld [vmem:[#allocation2 + $0xb98] sm:$0xff]
        %v892 = vld [vmem:[#allocation2 + $0xba0] sm:$0xff]
        %v893 = vld [vmem:[#allocation2 + $0xba8] sm:$0xf]
        %v894 = vld [vmem:[#allocation2 + $0xbac] sm:$0xff]
        %v895 = vld [vmem:[#allocation2 + $0xbb4] sm:$0xff]
        %v896 = vld [vmem:[#allocation2 + $0xbbc] sm:$0xff]
        %v897 = vld [vmem:[#allocation2 + $0xbc4] sm:$0xff]
        %v898 = vld [vmem:[#allocation2 + $0xbcc] sm:$0xf]
        %v899 = vld [vmem:[#allocation2 + $0xbd0] sm:$0xff]
        %v900 = vld [vmem:[#allocation2 + $0xbd8] sm:$0xff]
        %v901 = vld [vmem:[#allocation2 + $0xbe0] sm:$0xff]
        %v902 = vld [vmem:[#allocation2 + $0xbe8] sm:$0xff]
        %v903 = vld [vmem:[#allocation2 + $0xbf0] sm:$0xf]
        %v904 = vld [vmem:[#allocation2 + $0xbf4] sm:$0xff]
        %v905 = vld [vmem:[#allocation2 + $0xbfc] sm:$0xff]
        %v906 = vld [vmem:[#allocation2 + $0xc04] sm:$0xff]
        %v907 = vld [vmem:[#allocation2 + $0xc0c] sm:$0xff]
        %v908 = vld [vmem:[#allocation2 + $0xc14] sm:$0xf]
        %v909 = vld [vmem:[#allocation2 + $0xc18] sm:$0xff]
        %v910 = vld [vmem:[#allocation2 + $0xc20] sm:$0xff]
        %v911 = vld [vmem:[#allocation2 + $0xc28] sm:$0xff]
        %v912 = vld [vmem:[#allocation2 + $0xc30] sm:$0xff]
        %v913 = vld [vmem:[#allocation2 + $0xc38] sm:$0xf]
        %v914 = vld [vmem:[#allocation2 + $0xc3c] sm:$0xff]
        %v915 = vld [vmem:[#allocation2 + $0xc44] sm:$0xff]
        %v916 = vld [vmem:[#allocation2 + $0xc4c] sm:$0xff]
        %v917 = vld [vmem:[#allocation2 + $0xc54] sm:$0xff]
        %v918 = vld [vmem:[#allocation2 + $0xc5c] sm:$0xf]
        %v919 = vld [vmem:[#allocation2 + $0xc60] sm:$0xff]
        %v920 = vld [vmem:[#allocation2 + $0xc68] sm:$0xff]
        %v921 = vld [vmem:[#allocation2 + $0xc70] sm:$0xff]
        %v922 = vld [vmem:[#allocation2 + $0xc78] sm:$0xff]
        %v923 = vld [vmem:[#allocation2 + $0xc80] sm:$0xf]
        %v924 = vld [vmem:[#allocation2 + $0xc84] sm:$0xff]
        %v925 = vld [vmem:[#allocation2 + $0xc8c] sm:$0xff]
        %v926 = vld [vmem:[#allocation2 + $0xc94] sm:$0xff]
        %v927 = vld [vmem:[#allocation2 + $0xc9c] sm:$0xff]
        %v928 = vld [vmem:[#allocation2 + $0xca4] sm:$0xf]
        %v929 = vld [vmem:[#allocation2 + $0xca8] sm:$0xff]
        %v930 = vld [vmem:[#allocation2 + $0xcb0] sm:$0xff]
        %v931 = vld [vmem:[#allocation2 + $0xcb8] sm:$0xff]
        %v932 = vld [vmem:[#allocation2 + $0xcc0] sm:$0xff]
        %v933 = vld [vmem:[#allocation2 + $0xcc8] sm:$0xf]
        %v934 = vld [vmem:[#allocation2 + $0xccc] sm:$0xff]
        %v935 = vld [vmem:[#allocation2 + $0xcd4] sm:$0xff]
        %v936 = vld [vmem:[#allocation2 + $0xcdc] sm:$0xff]
        %v937 = vld [vmem:[#allocation2 + $0xce4] sm:$0xff]
        %v938 = vld [vmem:[#allocation2 + $0xcec] sm:$0xf]
        %v939 = vld [vmem:[#allocation2 + $0xcf0] sm:$0xff]
        %v940 = vld [vmem:[#allocation2 + $0xcf8] sm:$0xff]
        %v941 = vld [vmem:[#allocation2 + $0xd00] sm:$0xff]
        %v942 = vld [vmem:[#allocation2 + $0xd08] sm:$0xff]
        %v943 = vld [vmem:[#allocation2 + $0xd10] sm:$0xf]
        %v944 = vld [vmem:[#allocation2 + $0xd14] sm:$0xff]
        %v945 = vld [vmem:[#allocation2 + $0xd1c] sm:$0xff]
        %v946 = vld [vmem:[#allocation2 + $0xd24] sm:$0xff]
        %v947 = vld [vmem:[#allocation2 + $0xd2c] sm:$0xff]
        %v948 = vld [vmem:[#allocation2 + $0xd34] sm:$0xf]
        %v949 = vld [vmem:[#allocation2 + $0xd38] sm:$0xff]
        %v950 = vld [vmem:[#allocation2 + $0xd40] sm:$0xff]
        %v951 = vld [vmem:[#allocation2 + $0xd48] sm:$0xff]
        %v952 = vld [vmem:[#allocation2 + $0xd50] sm:$0xff]
        %v953 = vld [vmem:[#allocation2 + $0xd58] sm:$0xf]
        %v954 = vld [vmem:[#allocation2 + $0xd5c] sm:$0xff]
        %v955 = vld [vmem:[#allocation2 + $0xd64] sm:$0xff]
        %v956 = vld [vmem:[#allocation2 + $0xd6c] sm:$0xff]
        %v957 = vld [vmem:[#allocation2 + $0xd74] sm:$0xff]
        %v958 = vld [vmem:[#allocation2 + $0xd7c] sm:$0xf]
        %v959 = vld [vmem:[#allocation2 + $0xd80] sm:$0xff]
        %v960 = vld [vmem:[#allocation2 + $0xd88] sm:$0xff]
        %v961 = vld [vmem:[#allocation2 + $0xd90] sm:$0xff]
        %v962 = vld [vmem:[#allocation2 + $0xd98] sm:$0xff]
        %v963 = vld [vmem:[#allocation2 + $0xda0] sm:$0xf]
        %v964 = vld [vmem:[#allocation2 + $0xda4] sm:$0xff]
        %v965 = vld [vmem:[#allocation2 + $0xdac] sm:$0xff]
        %v966 = vld [vmem:[#allocation2 + $0xdb4] sm:$0xff]
        %v967 = vld [vmem:[#allocation2 + $0xdbc] sm:$0xff]
        %v968 = vld [vmem:[#allocation2 + $0xdc4] sm:$0xf]
        %v969 = vld [vmem:[#allocation2 + $0xdc8] sm:$0xff]
        %v970 = vld [vmem:[#allocation2 + $0xdd0] sm:$0xff]
        %v971 = vld [vmem:[#allocation2 + $0xdd8] sm:$0xff]
        %v972 = vld [vmem:[#allocation2 + $0xde0] sm:$0xff]
        %v973 = vld [vmem:[#allocation2 + $0xde8] sm:$0xf]
        %v974 = vld [vmem:[#allocation2 + $0xdec] sm:$0xff]
        %v975 = vld [vmem:[#allocation2 + $0xdf4] sm:$0xff]
        %v976 = vld [vmem:[#allocation2 + $0xdfc] sm:$0xff]
        %v977 = vld [vmem:[#allocation2 + $0xe04] sm:$0xff]
        %v978 = vld [vmem:[#allocation2 + $0xe0c] sm:$0xf]
        %v979 = vld [vmem:[#allocation2 + $0xe10] sm:$0xff]
        %v980 = vld [vmem:[#allocation2 + $0xe18] sm:$0xff]
        %v981 = vld [vmem:[#allocation2 + $0xe20] sm:$0xff]
        %v982 = vld [vmem:[#allocation2 + $0xe28] sm:$0xff]
        %v983 = vld [vmem:[#allocation2 + $0xe30] sm:$0xf]
        %v984 = vld [vmem:[#allocation2 + $0xe34] sm:$0xff]
        %v985 = vld [vmem:[#allocation2 + $0xe3c] sm:$0xff]
        %v986 = vld [vmem:[#allocation2 + $0xe44] sm:$0xff]
        %v987 = vld [vmem:[#allocation2 + $0xe4c] sm:$0xff]
        %v988 = vld [vmem:[#allocation2 + $0xe54] sm:$0xf]
        %v989 = vld [vmem:[#allocation2 + $0xe58] sm:$0xff]
        %v990 = vld [vmem:[#allocation2 + $0xe60] sm:$0xff]
        %v991 = vld [vmem:[#allocation2 + $0xe68] sm:$0xff]
        %v992 = vld [vmem:[#allocation2 + $0xe70] sm:$0xff]
        %v993 = vld [vmem:[#allocation2 + $0xe78] sm:$0xf]
        %v994 = vld [vmem:[#allocation2 + $0xe7c] sm:$0xff]
        %v995 = vld [vmem:[#allocation2 + $0xe84] sm:$0xff]
        %v996 = vld [vmem:[#allocation2 + $0xe8c] sm:$0xff]
        %v997 = vld [vmem:[#allocation2 + $0xe94] sm:$0xff]
        %v998 = vld [vmem:[#allocation2 + $0xe9c] sm:$0xf]
        %v999 = vld [vmem:[#allocation2 + $0xea0] sm:$0xff]
        %v1000 = vld [vmem:[#allocation2 + $0xea8] sm:$0xff]
        %v1001 = vld [vmem:[#allocation2 + $0xeb0] sm:$0xff]
        %v1002 = vld [vmem:[#allocation2 + $0xeb8] sm:$0xff]
        %v1003 = vld [vmem:[#allocation2 + $0xec0] sm:$0xf]
        %v1004 = vld [vmem:[#allocation2 + $0xec4] sm:$0xff]
        %v1005 = vld [vmem:[#allocation2 + $0xecc] sm:$0xff]
        %v1006 = vld [vmem:[#allocation2 + $0xed4] sm:$0xff]
        %v1007 = vld [vmem:[#allocation2 + $0xedc] sm:$0xff]
        %v1008 = vld [vmem:[#allocation2 + $0xee4] sm:$0xf]
        %v1009 = vld [vmem:[#allocation2 + $0xee8] sm:$0xff]
        %v1010 = vld [vmem:[#allocation2 + $0xef0] sm:$0xff]
        %v1011 = vld [vmem:[#allocation2 + $0xef8] sm:$0xff]
        %v1012 = vld [vmem:[#allocation2 + $0xf00] sm:$0xff]
        %v1013 = vld [vmem:[#allocation2 + $0xf08] sm:$0xf]
        %v1014 = vld [vmem:[#allocation2 + $0xf0c] sm:$0xff]
        %v1015 = vld [vmem:[#allocation2 + $0xf14] sm:$0xff]
        %v1016 = vld [vmem:[#allocation2 + $0xf1c] sm:$0xff]
        %v1017 = vld [vmem:[#allocation2 + $0xf24] sm:$0xff]
        %v1018 = vld [vmem:[#allocation2 + $0xf2c] sm:$0xf]
        %v1019 = vld [vmem:[#allocation2 + $0xf30] sm:$0xff]
        %v1020 = vld [vmem:[#allocation2 + $0xf38] sm:$0xff]
        %v1021 = vld [vmem:[#allocation2 + $0xf40] sm:$0xff]
        %v1022 = vld [vmem:[#allocation2 + $0xf48] sm:$0xff]
        %v1023 = vld [vmem:[#allocation2 + $0xf50] sm:$0xf]
        %v1024 = vld [vmem:[#allocation2 + $0xf54] sm:$0xff]
        %v1025 = vld [vmem:[#allocation2 + $0xf5c] sm:$0xff]
        %v1026 = vld [vmem:[#allocation2 + $0xf64] sm:$0xff]
        %v1027 = vld [vmem:[#allocation2 + $0xf6c] sm:$0xff]
        %v1028 = vld [vmem:[#allocation2 + $0xf74] sm:$0xf]
        %v1029 = vld [vmem:[#allocation2 + $0xf78] sm:$0xff]
        %v1030 = vld [vmem:[#allocation2 + $0xf80] sm:$0xff]
        %v1031 = vld [vmem:[#allocation2 + $0xf88] sm:$0xff]
        %v1032 = vld [vmem:[#allocation2 + $0xf90] sm:$0xff]
        %v1033 = vld [vmem:[#allocation2 + $0xf98] sm:$0xf]
        %v1034 = vld [vmem:[#allocation2 + $0xf9c] sm:$0xff]
        %v1035 = vld [vmem:[#allocation2 + $0xfa4] sm:$0xff]
        %v1036 = vld [vmem:[#allocation2 + $0xfac] sm:$0xff]
        %v1037 = vld [vmem:[#allocation2 + $0xfb4] sm:$0xff]
        %v1038 = vld [vmem:[#allocation2 + $0xfbc] sm:$0xf]
        %v1039 = vld [vmem:[#allocation2 + $0xfc0] sm:$0xff]
        %v1040 = vld [vmem:[#allocation2 + $0xfc8] sm:$0xff]
        %v1041 = vld [vmem:[#allocation2 + $0xfd0] sm:$0xff]
        %v1042 = vld [vmem:[#allocation2 + $0xfd8] sm:$0xff]
        %v1043 = vld [vmem:[#allocation2 + $0xfe0] sm:$0xf]
        %v1044 = vld [vmem:[#allocation2 + $0xfe4] sm:$0xff]
        %v1045 = vld [vmem:[#allocation2 + $0xfec] sm:$0xff]
        %v1046 = vld [vmem:[#allocation2 + $0xff4] sm:$0xff]
        %v1047 = vld [vmem:[#allocation2 + $0xffc] sm:$0xff]
        %v1048 = vld [vmem:[#allocation2 + $0x1004] sm:$0xf]
        %v1049 = vld [vmem:[#allocation2 + $0x1008] sm:$0xff]
        %v1050 = vld [vmem:[#allocation2 + $0x1010] sm:$0xff]
        %v1051 = vld [vmem:[#allocation2 + $0x1018] sm:$0xff]
        %v1052 = vld [vmem:[#allocation2 + $0x1020] sm:$0xff]
        %v1053 = vld [vmem:[#allocation2 + $0x1028] sm:$0xf]
        %v1054 = vld [vmem:[#allocation2 + $0x102c] sm:$0xff]
        %v1055 = vld [vmem:[#allocation2 + $0x1034] sm:$0xff]
        %v1056 = vld [vmem:[#allocation2 + $0x103c] sm:$0xff]
        %v1057 = vld [vmem:[#allocation2 + $0x1044] sm:$0xff]
        %v1058 = vld [vmem:[#allocation2 + $0x104c] sm:$0xf]
        %v1059 = vld [vmem:[#allocation2 + $0x1050] sm:$0xff]
        %v1060 = vld [vmem:[#allocation2 + $0x1058] sm:$0xff]
        %v1061 = vld [vmem:[#allocation2 + $0x1060] sm:$0xff]
        %v1062 = vld [vmem:[#allocation2 + $0x1068] sm:$0xff]
        %v1063 = vld [vmem:[#allocation2 + $0x1070] sm:$0xf]
        %v1064 = vld [vmem:[#allocation2 + $0x1074] sm:$0xff]
        %v1065 = vld [vmem:[#allocation2 + $0x107c] sm:$0xff]
        %v1066 = vld [vmem:[#allocation2 + $0x1084] sm:$0xff]
        %v1067 = vld [vmem:[#allocation2 + $0x108c] sm:$0xff]
        %v1068 = vld [vmem:[#allocation2 + $0x1094] sm:$0xf]
        %v1069 = vld [vmem:[#allocation2 + $0x1098] sm:$0xff]
        %v1070 = vld [vmem:[#allocation2 + $0x10a0] sm:$0xff]
        %v1071 = vld [vmem:[#allocation2 + $0x10a8] sm:$0xff]
        %v1072 = vld [vmem:[#allocation2 + $0x10b0] sm:$0xff]
        %v1073 = vld [vmem:[#allocation2 + $0x10b8] sm:$0xf]
        %v1074 = vld [vmem:[#allocation2 + $0x10bc] sm:$0xff]
        %v1075 = vld [vmem:[#allocation2 + $0x10c4] sm:$0xff]
        %v1076 = vld [vmem:[#allocation2 + $0x10cc] sm:$0xff]
        %v1077 = vld [vmem:[#allocation2 + $0x10d4] sm:$0xff]
        %v1078 = vld [vmem:[#allocation2 + $0x10dc] sm:$0xf]
        %v1079 = vld [vmem:[#allocation2 + $0x10e0] sm:$0xff]
        %v1080 = vld [vmem:[#allocation2 + $0x10e8] sm:$0xff]
        %v1081 = vld [vmem:[#allocation2 + $0x10f0] sm:$0xff]
        %v1082 = vld [vmem:[#allocation2 + $0x10f8] sm:$0xff]
        %v1083 = vld [vmem:[#allocation2 + $0x1100] sm:$0xf]
        %v1084 = vld [vmem:[#allocation2 + $0x1104] sm:$0xff]
        %v1085 = vld [vmem:[#allocation2 + $0x110c] sm:$0xff]
        %v1086 = vld [vmem:[#allocation2 + $0x1114] sm:$0xff]
        %v1087 = vld [vmem:[#allocation2 + $0x111c] sm:$0xff]
        %v1088 = vld [vmem:[#allocation2 + $0x1124] sm:$0xf]
        %v1089 = vld [vmem:[#allocation2 + $0x1128] sm:$0xff]
        %v1090 = vld [vmem:[#allocation2 + $0x1130] sm:$0xff]
        %v1091 = vld [vmem:[#allocation2 + $0x1138] sm:$0xff]
        %v1092 = vld [vmem:[#allocation2 + $0x1140] sm:$0xff]
        %v1093 = vld [vmem:[#allocation2 + $0x1148] sm:$0xf]
        %v1094 = vld [vmem:[#allocation2 + $0x114c] sm:$0xff]
        %v1095 = vld [vmem:[#allocation2 + $0x1154] sm:$0xff]
        %v1096 = vld [vmem:[#allocation2 + $0x115c] sm:$0xff]
        %v1097 = vld [vmem:[#allocation2 + $0x1164] sm:$0xff]
        %v1098 = vld [vmem:[#allocation2 + $0x116c] sm:$0xf]
        %v1099 = vld [vmem:[#allocation2 + $0x1170] sm:$0xff]
        %v1100 = vld [vmem:[#allocation2 + $0x1178] sm:$0xff]
        %v1101 = vld [vmem:[#allocation2 + $0x1180] sm:$0xff]
        %v1102 = vld [vmem:[#allocation2 + $0x1188] sm:$0xff]
        %v1103 = vld [vmem:[#allocation2 + $0x1190] sm:$0xf]
        %v1104 = vld [vmem:[#allocation2 + $0x1194] sm:$0xff]
        %v1105 = vld [vmem:[#allocation2 + $0x119c] sm:$0xff]
        %v1106 = vld [vmem:[#allocation2 + $0x11a4] sm:$0xff]
        %v1107 = vld [vmem:[#allocation2 + $0x11ac] sm:$0xff]
        %v1108 = vld [vmem:[#allocation2 + $0x11b4] sm:$0xf]
        %v1109 = vld [vmem:[#allocation2 + $0x11b8] sm:$0xff]
        %v1110 = vld [vmem:[#allocation2 + $0x11c0] sm:$0xff]
        %v1111 = vld [vmem:[#allocation2 + $0x11c8] sm:$0xff]
        %v1112 = vld [vmem:[#allocation2 + $0x11d0] sm:$0xff]
        %v1113 = vld [vmem:[#allocation2 + $0x11d8] sm:$0xf]
        %v1114 = vld [vmem:[#allocation2 + $0x11dc] sm:$0xff]
        %v1115 = vld [vmem:[#allocation2 + $0x11e4] sm:$0xff]
        %v1116 = vld [vmem:[#allocation2 + $0x11ec] sm:$0xff]
        %v1117 = vld [vmem:[#allocation2 + $0x11f4] sm:$0xff]
        %v1118 = vld [vmem:[#allocation2 + $0x11fc] sm:$0xf]
        %v1183 = vunpack.c.l.b16 %v415
        %v1184 = vunpack.c.h.b16 %v415
        %v1185 = vunpack.c.l.b16 %v416
        %v1186 = vunpack.c.h.b16 %v416
        %v1187 = vunpack.c.l.b16 %v417
        %v1188 = vunpack.c.h.b16 %v417
        %v1189 = vunpack.c.l.b16 %v418
        %v1190 = vunpack.c.h.b16 %v418
        %v1191 = vunpack.c.l.b16 %v419
        %v1192 = vunpack.c.h.b16 %v419
        %v1193 = vunpack.c.l.b16 %v420
        %v1194 = vunpack.c.h.b16 %v420
        %v1195 = vunpack.c.l.b16 %v421
        %v1196 = vunpack.c.h.b16 %v421
        %v1197 = vunpack.c.l.b16 %v422
        %v1198 = vunpack.c.h.b16 %v422
        %v1199 = vunpack.c.l.b16 %v423
        %v1200 = vunpack.c.h.b16 %v423
        %v1201 = vunpack.c.l.b16 %v424
        %v1202 = vunpack.c.h.b16 %v424
        %v1203 = vunpack.c.l.b16 %v425
        %v1204 = vunpack.c.h.b16 %v425
        %v1205 = vunpack.c.l.b16 %v426
        %v1206 = vunpack.c.h.b16 %v426
        %v1207 = vunpack.c.l.b16 %v427
        %v1208 = vunpack.c.h.b16 %v427
        %v1209 = vunpack.c.l.b16 %v428
        %v1210 = vunpack.c.h.b16 %v428
        %v1211 = vunpack.c.l.b16 %v429
        %v1212 = vunpack.c.h.b16 %v429
        %v1213 = vunpack.c.l.b16 %v430
        %v1214 = vunpack.c.h.b16 %v430
        %v1215 = vunpack.c.l.b16 %v431
        %v1216 = vunpack.c.h.b16 %v431
        %v1217 = vunpack.c.l.b16 %v432
        %v1218 = vunpack.c.h.b16 %v432
        %v1219 = vunpack.c.l.b16 %v433
        %v1220 = vunpack.c.h.b16 %v433
        %v1221 = vunpack.c.l.b16 %v434
        %v1222 = vunpack.c.h.b16 %v434
        %v1223 = vunpack.c.l.b16 %v435
        %v1224 = vunpack.c.h.b16 %v435
        %v1225 = vunpack.c.l.b16 %v436
        %v1226 = vunpack.c.h.b16 %v436
        %v1227 = vunpack.c.l.b16 %v437
        %v1228 = vunpack.c.h.b16 %v437
        %v1229 = vunpack.c.l.b16 %v438
        %v1230 = vunpack.c.h.b16 %v438
        %v1231 = vunpack.c.l.b16 %v439
        %v1232 = vunpack.c.h.b16 %v439
        %v1233 = vunpack.c.l.b16 %v440
        %v1234 = vunpack.c.h.b16 %v440
        %v1235 = vunpack.c.l.b16 %v441
        %v1236 = vunpack.c.h.b16 %v441
        %v1237 = vunpack.c.l.b16 %v442
        %v1238 = vunpack.c.h.b16 %v442
        %v1239 = vunpack.c.l.b16 %v443
        %v1240 = vunpack.c.h.b16 %v443
        %v1241 = vunpack.c.l.b16 %v444
        %v1242 = vunpack.c.h.b16 %v444
        %v1243 = vunpack.c.l.b16 %v445
        %v1244 = vunpack.c.h.b16 %v445
        %v1245 = vunpack.c.l.b16 %v446
        %v1246 = vunpack.c.h.b16 %v446
        %v1247 = vunpack.c.l.b16 %v447
        %v1248 = vunpack.c.h.b16 %v447
        %v1249 = vunpack.c.l.b16 %v448
        %v1250 = vunpack.c.h.b16 %v448
        %v1251 = vunpack.c.l.b16 %v449
        %v1252 = vunpack.c.h.b16 %v449
        %v1253 = vunpack.c.l.b16 %v450
        %v1254 = vunpack.c.h.b16 %v450
        %v1255 = vunpack.c.l.b16 %v451
        %v1256 = vunpack.c.h.b16 %v451
        %v1257 = vunpack.c.l.b16 %v452
        %v1258 = vunpack.c.h.b16 %v452
        %v1259 = vunpack.c.l.b16 %v453
        %v1260 = vunpack.c.h.b16 %v453
        %v1261 = vunpack.c.l.b16 %v454
        %v1262 = vunpack.c.h.b16 %v454
        %v1263 = vunpack.c.l.b16 %v455
        %v1264 = vunpack.c.h.b16 %v455
        %v1265 = vunpack.c.l.b16 %v456
        %v1266 = vunpack.c.h.b16 %v456
        %v1267 = vunpack.c.l.b16 %v457
        %v1268 = vunpack.c.h.b16 %v457
        %v1269 = vunpack.c.l.b16 %v458
        %v1270 = vunpack.c.h.b16 %v458
        %v1271 = vunpack.c.l.b16 %v459
        %v1272 = vunpack.c.h.b16 %v459
        %v1273 = vunpack.c.l.b16 %v460
        %v1274 = vunpack.c.h.b16 %v460
        %v1275 = vunpack.c.l.b16 %v461
        %v1276 = vunpack.c.h.b16 %v461
        %v1277 = vunpack.c.l.b16 %v462
        %v1278 = vunpack.c.h.b16 %v462
        %v1279 = vunpack.c.l.b16 %v463
        %v1280 = vunpack.c.h.b16 %v463
        %v1281 = vunpack.c.l.b16 %v464
        %v1282 = vunpack.c.h.b16 %v464
        %v1283 = vunpack.c.l.b16 %v465
        %v1284 = vunpack.c.h.b16 %v465
        %v1285 = vunpack.c.l.b16 %v466
        %v1286 = vunpack.c.h.b16 %v466
        %v1287 = vunpack.c.l.b16 %v467
        %v1288 = vunpack.c.h.b16 %v467
        %v1289 = vunpack.c.l.b16 %v468
        %v1290 = vunpack.c.h.b16 %v468
        %v1291 = vunpack.c.l.b16 %v469
        %v1292 = vunpack.c.h.b16 %v469
        %v1293 = vunpack.c.l.b16 %v470
        %v1294 = vunpack.c.h.b16 %v470
        %v1295 = vunpack.c.l.b16 %v471
        %v1296 = vunpack.c.h.b16 %v471
        %v1297 = vunpack.c.l.b16 %v472
        %v1298 = vunpack.c.h.b16 %v472
        %v1299 = vunpack.c.l.b16 %v473
        %v1300 = vunpack.c.h.b16 %v473
        %v1301 = vunpack.c.l.b16 %v474
        %v1302 = vunpack.c.h.b16 %v474
        %v1303 = vunpack.c.l.b16 %v475
        %v1304 = vunpack.c.h.b16 %v475
        %v1305 = vunpack.c.l.b16 %v476
        %v1306 = vunpack.c.h.b16 %v476
        %v1307 = vunpack.c.l.b16 %v477
        %v1308 = vunpack.c.h.b16 %v477
        %v1309 = vunpack.c.l.b16 %v478
        %v1310 = vunpack.c.h.b16 %v478
        %v1311 = vpack.c.b16 %v1191, %v1183
        %v1312 = vpack.c.b16 %v1192, %v1184
        %v1313 = vpack.c.b16 %v1193, %v1185
        %v1314 = vpack.c.b16 %v1194, %v1186
        %v1315 = vpack.c.b16 %v1195, %v1187
        %v1316 = vpack.c.b16 %v1196, %v1188
        %v1317 = vpack.c.b16 %v1197, %v1189
        %v1318 = vpack.c.b16 %v1198, %v1190
        %v1319 = vpack.c.b16 %v1207, %v1199
        %v1320 = vpack.c.b16 %v1208, %v1200
        %v1321 = vpack.c.b16 %v1209, %v1201
        %v1322 = vpack.c.b16 %v1210, %v1202
        %v1323 = vpack.c.b16 %v1211, %v1203
        %v1324 = vpack.c.b16 %v1212, %v1204
        %v1325 = vpack.c.b16 %v1213, %v1205
        %v1326 = vpack.c.b16 %v1214, %v1206
        %v1327 = vpack.c.b16 %v1223, %v1215
        %v1328 = vpack.c.b16 %v1224, %v1216
        %v1329 = vpack.c.b16 %v1225, %v1217
        %v1330 = vpack.c.b16 %v1226, %v1218
        %v1331 = vpack.c.b16 %v1227, %v1219
        %v1332 = vpack.c.b16 %v1228, %v1220
        %v1333 = vpack.c.b16 %v1229, %v1221
        %v1334 = vpack.c.b16 %v1230, %v1222
        %v1335 = vpack.c.b16 %v1239, %v1231
        %v1336 = vpack.c.b16 %v1240, %v1232
        %v1337 = vpack.c.b16 %v1241, %v1233
        %v1338 = vpack.c.b16 %v1242, %v1234
        %v1339 = vpack.c.b16 %v1243, %v1235
        %v1340 = vpack.c.b16 %v1244, %v1236
        %v1341 = vpack.c.b16 %v1245, %v1237
        %v1342 = vpack.c.b16 %v1246, %v1238
        %v1343 = vpack.c.b16 %v1255, %v1247
        %v1344 = vpack.c.b16 %v1256, %v1248
        %v1345 = vpack.c.b16 %v1257, %v1249
        %v1346 = vpack.c.b16 %v1258, %v1250
        %v1347 = vpack.c.b16 %v1259, %v1251
        %v1348 = vpack.c.b16 %v1260, %v1252
        %v1349 = vpack.c.b16 %v1261, %v1253
        %v1350 = vpack.c.b16 %v1262, %v1254
        %v1351 = vpack.c.b16 %v1271, %v1263
        %v1352 = vpack.c.b16 %v1272, %v1264
        %v1353 = vpack.c.b16 %v1273, %v1265
        %v1354 = vpack.c.b16 %v1274, %v1266
        %v1355 = vpack.c.b16 %v1275, %v1267
        %v1356 = vpack.c.b16 %v1276, %v1268
        %v1357 = vpack.c.b16 %v1277, %v1269
        %v1358 = vpack.c.b16 %v1278, %v1270
        %v1359 = vpack.c.b16 %v1287, %v1279
        %v1360 = vpack.c.b16 %v1288, %v1280
        %v1361 = vpack.c.b16 %v1289, %v1281
        %v1362 = vpack.c.b16 %v1290, %v1282
        %v1363 = vpack.c.b16 %v1291, %v1283
        %v1364 = vpack.c.b16 %v1292, %v1284
        %v1365 = vpack.c.b16 %v1293, %v1285
        %v1366 = vpack.c.b16 %v1294, %v1286
        %v1367 = vpack.c.b16 %v1303, %v1295
        %v1368 = vpack.c.b16 %v1304, %v1296
        %v1369 = vpack.c.b16 %v1305, %v1297
        %v1370 = vpack.c.b16 %v1306, %v1298
        %v1371 = vpack.c.b16 %v1307, %v1299
        %v1372 = vpack.c.b16 %v1308, %v1300
        %v1373 = vpack.c.b16 %v1309, %v1301
        %v1374 = vpack.c.b16 %v1310, %v1302
        %v2079 = vunpack.c.l.b16 %v479
        %v2080 = vunpack.c.h.b16 %v479
        %v2081 = vunpack.c.l.b16 %v480
        %v2082 = vunpack.c.h.b16 %v480
        %v2083 = vunpack.c.l.b16 %v481
        %v2084 = vunpack.c.h.b16 %v481
        %v2085 = vunpack.c.l.b16 %v482
        %v2086 = vunpack.c.h.b16 %v482
        %v2087 = vunpack.c.l.b16 %v483
        %v2088 = vunpack.c.l.b16 %v484
        %v2089 = vunpack.c.h.b16 %v484
        %v2090 = vunpack.c.l.b16 %v485
        %v2091 = vunpack.c.h.b16 %v485
        %v2092 = vunpack.c.l.b16 %v486
        %v2093 = vunpack.c.h.b16 %v486
        %v2094 = vunpack.c.l.b16 %v487
        %v2095 = vunpack.c.h.b16 %v487
        %v2096 = vunpack.c.l.b16 %v488
        %v2097 = vunpack.c.l.b16 %v489
        %v2098 = vunpack.c.h.b16 %v489
        %v2099 = vunpack.c.l.b16 %v490
        %v2100 = vunpack.c.h.b16 %v490
        %v2101 = vunpack.c.l.b16 %v491
        %v2102 = vunpack.c.h.b16 %v491
        %v2103 = vunpack.c.l.b16 %v492
        %v2104 = vunpack.c.h.b16 %v492
        %v2105 = vunpack.c.l.b16 %v493
        %v2106 = vunpack.c.l.b16 %v494
        %v2107 = vunpack.c.h.b16 %v494
        %v2108 = vunpack.c.l.b16 %v495
        %v2109 = vunpack.c.h.b16 %v495
        %v2110 = vunpack.c.l.b16 %v496
        %v2111 = vunpack.c.h.b16 %v496
        %v2112 = vunpack.c.l.b16 %v497
        %v2113 = vunpack.c.h.b16 %v497
        %v2114 = vunpack.c.l.b16 %v498
        %v2115 = vunpack.c.l.b16 %v499
        %v2116 = vunpack.c.h.b16 %v499
        %v2117 = vunpack.c.l.b16 %v500
        %v2118 = vunpack.c.h.b16 %v500
        %v2119 = vunpack.c.l.b16 %v501
        %v2120 = vunpack.c.h.b16 %v501
        %v2121 = vunpack.c.l.b16 %v502
        %v2122 = vunpack.c.h.b16 %v502
        %v2123 = vunpack.c.l.b16 %v503
        %v2124 = vunpack.c.l.b16 %v504
        %v2125 = vunpack.c.h.b16 %v504
        %v2126 = vunpack.c.l.b16 %v505
        %v2127 = vunpack.c.h.b16 %v505
        %v2128 = vunpack.c.l.b16 %v506
        %v2129 = vunpack.c.h.b16 %v506
        %v2130 = vunpack.c.l.b16 %v507
        %v2131 = vunpack.c.h.b16 %v507
        %v2132 = vunpack.c.l.b16 %v508
        %v2133 = vunpack.c.l.b16 %v509
        %v2134 = vunpack.c.h.b16 %v509
        %v2135 = vunpack.c.l.b16 %v510
        %v2136 = vunpack.c.h.b16 %v510
        %v2137 = vunpack.c.l.b16 %v511
        %v2138 = vunpack.c.h.b16 %v511
        %v2139 = vunpack.c.l.b16 %v512
        %v2140 = vunpack.c.h.b16 %v512
        %v2141 = vunpack.c.l.b16 %v513
        %v2142 = vunpack.c.l.b16 %v514
        %v2143 = vunpack.c.h.b16 %v514
        %v2144 = vunpack.c.l.b16 %v515
        %v2145 = vunpack.c.h.b16 %v515
        %v2146 = vunpack.c.l.b16 %v516
        %v2147 = vunpack.c.h.b16 %v516
        %v2148 = vunpack.c.l.b16 %v517
        %v2149 = vunpack.c.h.b16 %v517
        %v2150 = vunpack.c.l.b16 %v518
        %v2151 = vunpack.c.l.b16 %v519
        %v2152 = vunpack.c.h.b16 %v519
        %v2153 = vunpack.c.l.b16 %v520
        %v2154 = vunpack.c.h.b16 %v520
        %v2155 = vunpack.c.l.b16 %v521
        %v2156 = vunpack.c.h.b16 %v521
        %v2157 = vunpack.c.l.b16 %v522
        %v2158 = vunpack.c.h.b16 %v522
        %v2159 = vunpack.c.l.b16 %v523
        %v2160 = vunpack.c.l.b16 %v524
        %v2161 = vunpack.c.h.b16 %v524
        %v2162 = vunpack.c.l.b16 %v525
        %v2163 = vunpack.c.h.b16 %v525
        %v2164 = vunpack.c.l.b16 %v526
        %v2165 = vunpack.c.h.b16 %v526
        %v2166 = vunpack.c.l.b16 %v527
        %v2167 = vunpack.c.h.b16 %v527
        %v2168 = vunpack.c.l.b16 %v528
        %v2169 = vunpack.c.l.b16 %v529
        %v2170 = vunpack.c.h.b16 %v529
        %v2171 = vunpack.c.l.b16 %v530
        %v2172 = vunpack.c.h.b16 %v530
        %v2173 = vunpack.c.l.b16 %v531
        %v2174 = vunpack.c.h.b16 %v531
        %v2175 = vunpack.c.l.b16 %v532
        %v2176 = vunpack.c.h.b16 %v532
        %v2177 = vunpack.c.l.b16 %v533
        %v2178 = vunpack.c.l.b16 %v534
        %v2179 = vunpack.c.h.b16 %v534
        %v2180 = vunpack.c.l.b16 %v535
        %v2181 = vunpack.c.h.b16 %v535
        %v2182 = vunpack.c.l.b16 %v536
        %v2183 = vunpack.c.h.b16 %v536
        %v2184 = vunpack.c.l.b16 %v537
        %v2185 = vunpack.c.h.b16 %v537
        %v2186 = vunpack.c.l.b16 %v538
        %v2187 = vunpack.c.l.b16 %v539
        %v2188 = vunpack.c.h.b16 %v539
        %v2189 = vunpack.c.l.b16 %v540
        %v2190 = vunpack.c.h.b16 %v540
        %v2191 = vunpack.c.l.b16 %v541
        %v2192 = vunpack.c.h.b16 %v541
        %v2193 = vunpack.c.l.b16 %v542
        %v2194 = vunpack.c.h.b16 %v542
        %v2195 = vunpack.c.l.b16 %v543
        %v2196 = vunpack.c.l.b16 %v544
        %v2197 = vunpack.c.h.b16 %v544
        %v2198 = vunpack.c.l.b16 %v545
        %v2199 = vunpack.c.h.b16 %v545
        %v2200 = vunpack.c.l.b16 %v546
        %v2201 = vunpack.c.h.b16 %v546
        %v2202 = vunpack.c.l.b16 %v547
        %v2203 = vunpack.c.h.b16 %v547
        %v2204 = vunpack.c.l.b16 %v548
        %v2205 = vunpack.c.l.b16 %v549
        %v2206 = vunpack.c.h.b16 %v549
        %v2207 = vunpack.c.l.b16 %v550
        %v2208 = vunpack.c.h.b16 %v550
        %v2209 = vunpack.c.l.b16 %v551
        %v2210 = vunpack.c.h.b16 %v551
        %v2211 = vunpack.c.l.b16 %v552
        %v2212 = vunpack.c.h.b16 %v552
        %v2213 = vunpack.c.l.b16 %v553
        %v2214 = vunpack.c.l.b16 %v554
        %v2215 = vunpack.c.h.b16 %v554
        %v2216 = vunpack.c.l.b16 %v555
        %v2217 = vunpack.c.h.b16 %v555
        %v2218 = vunpack.c.l.b16 %v556
        %v2219 = vunpack.c.h.b16 %v556
        %v2220 = vunpack.c.l.b16 %v557
        %v2221 = vunpack.c.h.b16 %v557
        %v2222 = vunpack.c.l.b16 %v558
        %v2223 = vunpack.c.l.b16 %v559
        %v2224 = vunpack.c.h.b16 %v559
        %v2225 = vunpack.c.l.b16 %v560
        %v2226 = vunpack.c.h.b16 %v560
        %v2227 = vunpack.c.l.b16 %v561
        %v2228 = vunpack.c.h.b16 %v561
        %v2229 = vunpack.c.l.b16 %v562
        %v2230 = vunpack.c.h.b16 %v562
        %v2231 = vunpack.c.l.b16 %v563
        %v2232 = vunpack.c.l.b16 %v564
        %v2233 = vunpack.c.h.b16 %v564
        %v2234 = vunpack.c.l.b16 %v565
        %v2235 = vunpack.c.h.b16 %v565
        %v2236 = vunpack.c.l.b16 %v566
        %v2237 = vunpack.c.h.b16 %v566
        %v2238 = vunpack.c.l.b16 %v567
        %v2239 = vunpack.c.h.b16 %v567
        %v2240 = vunpack.c.l.b16 %v568
        %v2241 = vunpack.c.l.b16 %v569
        %v2242 = vunpack.c.h.b16 %v569
        %v2243 = vunpack.c.l.b16 %v570
        %v2244 = vunpack.c.h.b16 %v570
        %v2245 = vunpack.c.l.b16 %v571
        %v2246 = vunpack.c.h.b16 %v571
        %v2247 = vunpack.c.l.b16 %v572
        %v2248 = vunpack.c.h.b16 %v572
        %v2249 = vunpack.c.l.b16 %v573
        %v2250 = vunpack.c.l.b16 %v574
        %v2251 = vunpack.c.h.b16 %v574
        %v2252 = vunpack.c.l.b16 %v575
        %v2253 = vunpack.c.h.b16 %v575
        %v2254 = vunpack.c.l.b16 %v576
        %v2255 = vunpack.c.h.b16 %v576
        %v2256 = vunpack.c.l.b16 %v577
        %v2257 = vunpack.c.h.b16 %v577
        %v2258 = vunpack.c.l.b16 %v578
        %v2259 = vunpack.c.l.b16 %v579
        %v2260 = vunpack.c.h.b16 %v579
        %v2261 = vunpack.c.l.b16 %v580
        %v2262 = vunpack.c.h.b16 %v580
        %v2263 = vunpack.c.l.b16 %v581
        %v2264 = vunpack.c.h.b16 %v581
        %v2265 = vunpack.c.l.b16 %v582
        %v2266 = vunpack.c.h.b16 %v582
        %v2267 = vunpack.c.l.b16 %v583
        %v2268 = vunpack.c.l.b16 %v584
        %v2269 = vunpack.c.h.b16 %v584
        %v2270 = vunpack.c.l.b16 %v585
        %v2271 = vunpack.c.h.b16 %v585
        %v2272 = vunpack.c.l.b16 %v586
        %v2273 = vunpack.c.h.b16 %v586
        %v2274 = vunpack.c.l.b16 %v587
        %v2275 = vunpack.c.h.b16 %v587
        %v2276 = vunpack.c.l.b16 %v588
        %v2277 = vunpack.c.l.b16 %v589
        %v2278 = vunpack.c.h.b16 %v589
        %v2279 = vunpack.c.l.b16 %v590
        %v2280 = vunpack.c.h.b16 %v590
        %v2281 = vunpack.c.l.b16 %v591
        %v2282 = vunpack.c.h.b16 %v591
        %v2283 = vunpack.c.l.b16 %v592
        %v2284 = vunpack.c.h.b16 %v592
        %v2285 = vunpack.c.l.b16 %v593
        %v2286 = vunpack.c.l.b16 %v594
        %v2287 = vunpack.c.h.b16 %v594
        %v2288 = vunpack.c.l.b16 %v595
        %v2289 = vunpack.c.h.b16 %v595
        %v2290 = vunpack.c.l.b16 %v596
        %v2291 = vunpack.c.h.b16 %v596
        %v2292 = vunpack.c.l.b16 %v597
        %v2293 = vunpack.c.h.b16 %v597
        %v2294 = vunpack.c.l.b16 %v598
        %v2295 = vunpack.c.l.b16 %v599
        %v2296 = vunpack.c.h.b16 %v599
        %v2297 = vunpack.c.l.b16 %v600
        %v2298 = vunpack.c.h.b16 %v600
        %v2299 = vunpack.c.l.b16 %v601
        %v2300 = vunpack.c.h.b16 %v601
        %v2301 = vunpack.c.l.b16 %v602
        %v2302 = vunpack.c.h.b16 %v602
        %v2303 = vunpack.c.l.b16 %v603
        %v2304 = vunpack.c.l.b16 %v604
        %v2305 = vunpack.c.h.b16 %v604
        %v2306 = vunpack.c.l.b16 %v605
        %v2307 = vunpack.c.h.b16 %v605
        %v2308 = vunpack.c.l.b16 %v606
        %v2309 = vunpack.c.h.b16 %v606
        %v2310 = vunpack.c.l.b16 %v607
        %v2311 = vunpack.c.h.b16 %v607
        %v2312 = vunpack.c.l.b16 %v608
        %v2313 = vunpack.c.l.b16 %v609
        %v2314 = vunpack.c.h.b16 %v609
        %v2315 = vunpack.c.l.b16 %v610
        %v2316 = vunpack.c.h.b16 %v610
        %v2317 = vunpack.c.l.b16 %v611
        %v2318 = vunpack.c.h.b16 %v611
        %v2319 = vunpack.c.l.b16 %v612
        %v2320 = vunpack.c.h.b16 %v612
        %v2321 = vunpack.c.l.b16 %v613
        %v2322 = vunpack.c.l.b16 %v614
        %v2323 = vunpack.c.h.b16 %v614
        %v2324 = vunpack.c.l.b16 %v615
        %v2325 = vunpack.c.h.b16 %v615
        %v2326 = vunpack.c.l.b16 %v616
        %v2327 = vunpack.c.h.b16 %v616
        %v2328 = vunpack.c.l.b16 %v617
        %v2329 = vunpack.c.h.b16 %v617
        %v2330 = vunpack.c.l.b16 %v618
        %v2331 = vunpack.c.l.b16 %v619
        %v2332 = vunpack.c.h.b16 %v619
        %v2333 = vunpack.c.l.b16 %v620
        %v2334 = vunpack.c.h.b16 %v620
        %v2335 = vunpack.c.l.b16 %v621
        %v2336 = vunpack.c.h.b16 %v621
        %v2337 = vunpack.c.l.b16 %v622
        %v2338 = vunpack.c.h.b16 %v622
        %v2339 = vunpack.c.l.b16 %v623
        %v2340 = vunpack.c.l.b16 %v624
        %v2341 = vunpack.c.h.b16 %v624
        %v2342 = vunpack.c.l.b16 %v625
        %v2343 = vunpack.c.h.b16 %v625
        %v2344 = vunpack.c.l.b16 %v626
        %v2345 = vunpack.c.h.b16 %v626
        %v2346 = vunpack.c.l.b16 %v627
        %v2347 = vunpack.c.h.b16 %v627
        %v2348 = vunpack.c.l.b16 %v628
        %v2349 = vunpack.c.l.b16 %v629
        %v2350 = vunpack.c.h.b16 %v629
        %v2351 = vunpack.c.l.b16 %v630
        %v2352 = vunpack.c.h.b16 %v630
        %v2353 = vunpack.c.l.b16 %v631
        %v2354 = vunpack.c.h.b16 %v631
        %v2355 = vunpack.c.l.b16 %v632
        %v2356 = vunpack.c.h.b16 %v632
        %v2357 = vunpack.c.l.b16 %v633
        %v2358 = vunpack.c.l.b16 %v634
        %v2359 = vunpack.c.h.b16 %v634
        %v2360 = vunpack.c.l.b16 %v635
        %v2361 = vunpack.c.h.b16 %v635
        %v2362 = vunpack.c.l.b16 %v636
        %v2363 = vunpack.c.h.b16 %v636
        %v2364 = vunpack.c.l.b16 %v637
        %v2365 = vunpack.c.h.b16 %v637
        %v2366 = vunpack.c.l.b16 %v638
        %v2367 = vunpack.c.l.b16 %v639
        %v2368 = vunpack.c.h.b16 %v639
        %v2369 = vunpack.c.l.b16 %v640
        %v2370 = vunpack.c.h.b16 %v640
        %v2371 = vunpack.c.l.b16 %v641
        %v2372 = vunpack.c.h.b16 %v641
        %v2373 = vunpack.c.l.b16 %v642
        %v2374 = vunpack.c.h.b16 %v642
        %v2375 = vunpack.c.l.b16 %v643
        %v2376 = vunpack.c.l.b16 %v644
        %v2377 = vunpack.c.h.b16 %v644
        %v2378 = vunpack.c.l.b16 %v645
        %v2379 = vunpack.c.h.b16 %v645
        %v2380 = vunpack.c.l.b16 %v646
        %v2381 = vunpack.c.h.b16 %v646
        %v2382 = vunpack.c.l.b16 %v647
        %v2383 = vunpack.c.h.b16 %v647
        %v2384 = vunpack.c.l.b16 %v648
        %v2385 = vunpack.c.l.b16 %v649
        %v2386 = vunpack.c.h.b16 %v649
        %v2387 = vunpack.c.l.b16 %v650
        %v2388 = vunpack.c.h.b16 %v650
        %v2389 = vunpack.c.l.b16 %v651
        %v2390 = vunpack.c.h.b16 %v651
        %v2391 = vunpack.c.l.b16 %v652
        %v2392 = vunpack.c.h.b16 %v652
        %v2393 = vunpack.c.l.b16 %v653
        %v2394 = vunpack.c.l.b16 %v654
        %v2395 = vunpack.c.h.b16 %v654
        %v2396 = vunpack.c.l.b16 %v655
        %v2397 = vunpack.c.h.b16 %v655
        %v2398 = vunpack.c.l.b16 %v656
        %v2399 = vunpack.c.h.b16 %v656
        %v2400 = vunpack.c.l.b16 %v657
        %v2401 = vunpack.c.h.b16 %v657
        %v2402 = vunpack.c.l.b16 %v658
        %v2403 = vunpack.c.l.b16 %v659
        %v2404 = vunpack.c.h.b16 %v659
        %v2405 = vunpack.c.l.b16 %v660
        %v2406 = vunpack.c.h.b16 %v660
        %v2407 = vunpack.c.l.b16 %v661
        %v2408 = vunpack.c.h.b16 %v661
        %v2409 = vunpack.c.l.b16 %v662
        %v2410 = vunpack.c.h.b16 %v662
        %v2411 = vunpack.c.l.b16 %v663
        %v2412 = vunpack.c.l.b16 %v664
        %v2413 = vunpack.c.h.b16 %v664
        %v2414 = vunpack.c.l.b16 %v665
        %v2415 = vunpack.c.h.b16 %v665
        %v2416 = vunpack.c.l.b16 %v666
        %v2417 = vunpack.c.h.b16 %v666
        %v2418 = vunpack.c.l.b16 %v667
        %v2419 = vunpack.c.h.b16 %v667
        %v2420 = vunpack.c.l.b16 %v668
        %v2421 = vunpack.c.l.b16 %v669
        %v2422 = vunpack.c.h.b16 %v669
        %v2423 = vunpack.c.l.b16 %v670
        %v2424 = vunpack.c.h.b16 %v670
        %v2425 = vunpack.c.l.b16 %v671
        %v2426 = vunpack.c.h.b16 %v671
        %v2427 = vunpack.c.l.b16 %v672
        %v2428 = vunpack.c.h.b16 %v672
        %v2429 = vunpack.c.l.b16 %v673
        %v2430 = vunpack.c.l.b16 %v674
        %v2431 = vunpack.c.h.b16 %v674
        %v2432 = vunpack.c.l.b16 %v675
        %v2433 = vunpack.c.h.b16 %v675
        %v2434 = vunpack.c.l.b16 %v676
        %v2435 = vunpack.c.h.b16 %v676
        %v2436 = vunpack.c.l.b16 %v677
        %v2437 = vunpack.c.h.b16 %v677
        %v2438 = vunpack.c.l.b16 %v678
        %v2439 = vunpack.c.l.b16 %v679
        %v2440 = vunpack.c.h.b16 %v679
        %v2441 = vunpack.c.l.b16 %v680
        %v2442 = vunpack.c.h.b16 %v680
        %v2443 = vunpack.c.l.b16 %v681
        %v2444 = vunpack.c.h.b16 %v681
        %v2445 = vunpack.c.l.b16 %v682
        %v2446 = vunpack.c.h.b16 %v682
        %v2447 = vunpack.c.l.b16 %v683
        %v2448 = vunpack.c.l.b16 %v684
        %v2449 = vunpack.c.h.b16 %v684
        %v2450 = vunpack.c.l.b16 %v685
        %v2451 = vunpack.c.h.b16 %v685
        %v2452 = vunpack.c.l.b16 %v686
        %v2453 = vunpack.c.h.b16 %v686
        %v2454 = vunpack.c.l.b16 %v687
        %v2455 = vunpack.c.h.b16 %v687
        %v2456 = vunpack.c.l.b16 %v688
        %v2457 = vunpack.c.l.b16 %v689
        %v2458 = vunpack.c.h.b16 %v689
        %v2459 = vunpack.c.l.b16 %v690
        %v2460 = vunpack.c.h.b16 %v690
        %v2461 = vunpack.c.l.b16 %v691
        %v2462 = vunpack.c.h.b16 %v691
        %v2463 = vunpack.c.l.b16 %v692
        %v2464 = vunpack.c.h.b16 %v692
        %v2465 = vunpack.c.l.b16 %v693
        %v2466 = vunpack.c.l.b16 %v694
        %v2467 = vunpack.c.h.b16 %v694
        %v2468 = vunpack.c.l.b16 %v695
        %v2469 = vunpack.c.h.b16 %v695
        %v2470 = vunpack.c.l.b16 %v696
        %v2471 = vunpack.c.h.b16 %v696
        %v2472 = vunpack.c.l.b16 %v697
        %v2473 = vunpack.c.h.b16 %v697
        %v2474 = vunpack.c.l.b16 %v698
        %v2475 = vunpack.c.l.b16 %v699
        %v2476 = vunpack.c.h.b16 %v699
        %v2477 = vunpack.c.l.b16 %v700
        %v2478 = vunpack.c.h.b16 %v700
        %v2479 = vunpack.c.l.b16 %v701
        %v2480 = vunpack.c.h.b16 %v701
        %v2481 = vunpack.c.l.b16 %v702
        %v2482 = vunpack.c.h.b16 %v702
        %v2483 = vunpack.c.l.b16 %v703
        %v2484 = vunpack.c.l.b16 %v704
        %v2485 = vunpack.c.h.b16 %v704
        %v2486 = vunpack.c.l.b16 %v705
        %v2487 = vunpack.c.h.b16 %v705
        %v2488 = vunpack.c.l.b16 %v706
        %v2489 = vunpack.c.h.b16 %v706
        %v2490 = vunpack.c.l.b16 %v707
        %v2491 = vunpack.c.h.b16 %v707
        %v2492 = vunpack.c.l.b16 %v708
        %v2493 = vunpack.c.l.b16 %v709
        %v2494 = vunpack.c.h.b16 %v709
        %v2495 = vunpack.c.l.b16 %v710
        %v2496 = vunpack.c.h.b16 %v710
        %v2497 = vunpack.c.l.b16 %v711
        %v2498 = vunpack.c.h.b16 %v711
        %v2499 = vunpack.c.l.b16 %v712
        %v2500 = vunpack.c.h.b16 %v712
        %v2501 = vunpack.c.l.b16 %v713
        %v2502 = vunpack.c.l.b16 %v714
        %v2503 = vunpack.c.h.b16 %v714
        %v2504 = vunpack.c.l.b16 %v715
        %v2505 = vunpack.c.h.b16 %v715
        %v2506 = vunpack.c.l.b16 %v716
        %v2507 = vunpack.c.h.b16 %v716
        %v2508 = vunpack.c.l.b16 %v717
        %v2509 = vunpack.c.h.b16 %v717
        %v2510 = vunpack.c.l.b16 %v718
        %v2511 = vunpack.c.l.b16 %v719
        %v2512 = vunpack.c.h.b16 %v719
        %v2513 = vunpack.c.l.b16 %v720
        %v2514 = vunpack.c.h.b16 %v720
        %v2515 = vunpack.c.l.b16 %v721
        %v2516 = vunpack.c.h.b16 %v721
        %v2517 = vunpack.c.l.b16 %v722
        %v2518 = vunpack.c.h.b16 %v722
        %v2519 = vunpack.c.l.b16 %v723
        %v2520 = vunpack.c.l.b16 %v724
        %v2521 = vunpack.c.h.b16 %v724
        %v2522 = vunpack.c.l.b16 %v725
        %v2523 = vunpack.c.h.b16 %v725
        %v2524 = vunpack.c.l.b16 %v726
        %v2525 = vunpack.c.h.b16 %v726
        %v2526 = vunpack.c.l.b16 %v727
        %v2527 = vunpack.c.h.b16 %v727
        %v2528 = vunpack.c.l.b16 %v728
        %v2529 = vunpack.c.l.b16 %v729
        %v2530 = vunpack.c.h.b16 %v729
        %v2531 = vunpack.c.l.b16 %v730
        %v2532 = vunpack.c.h.b16 %v730
        %v2533 = vunpack.c.l.b16 %v731
        %v2534 = vunpack.c.h.b16 %v731
        %v2535 = vunpack.c.l.b16 %v732
        %v2536 = vunpack.c.h.b16 %v732
        %v2537 = vunpack.c.l.b16 %v733
        %v2538 = vunpack.c.l.b16 %v734
        %v2539 = vunpack.c.h.b16 %v734
        %v2540 = vunpack.c.l.b16 %v735
        %v2541 = vunpack.c.h.b16 %v735
        %v2542 = vunpack.c.l.b16 %v736
        %v2543 = vunpack.c.h.b16 %v736
        %v2544 = vunpack.c.l.b16 %v737
        %v2545 = vunpack.c.h.b16 %v737
        %v2546 = vunpack.c.l.b16 %v738
        %v2547 = vunpack.c.l.b16 %v739
        %v2548 = vunpack.c.h.b16 %v739
        %v2549 = vunpack.c.l.b16 %v740
        %v2550 = vunpack.c.h.b16 %v740
        %v2551 = vunpack.c.l.b16 %v741
        %v2552 = vunpack.c.h.b16 %v741
        %v2553 = vunpack.c.l.b16 %v742
        %v2554 = vunpack.c.h.b16 %v742
        %v2555 = vunpack.c.l.b16 %v743
        %v2556 = vunpack.c.l.b16 %v744
        %v2557 = vunpack.c.h.b16 %v744
        %v2558 = vunpack.c.l.b16 %v745
        %v2559 = vunpack.c.h.b16 %v745
        %v2560 = vunpack.c.l.b16 %v746
        %v2561 = vunpack.c.h.b16 %v746
        %v2562 = vunpack.c.l.b16 %v747
        %v2563 = vunpack.c.h.b16 %v747
        %v2564 = vunpack.c.l.b16 %v748
        %v2565 = vunpack.c.l.b16 %v749
        %v2566 = vunpack.c.h.b16 %v749
        %v2567 = vunpack.c.l.b16 %v750
        %v2568 = vunpack.c.h.b16 %v750
        %v2569 = vunpack.c.l.b16 %v751
        %v2570 = vunpack.c.h.b16 %v751
        %v2571 = vunpack.c.l.b16 %v752
        %v2572 = vunpack.c.h.b16 %v752
        %v2573 = vunpack.c.l.b16 %v753
        %v2574 = vunpack.c.l.b16 %v754
        %v2575 = vunpack.c.h.b16 %v754
        %v2576 = vunpack.c.l.b16 %v755
        %v2577 = vunpack.c.h.b16 %v755
        %v2578 = vunpack.c.l.b16 %v756
        %v2579 = vunpack.c.h.b16 %v756
        %v2580 = vunpack.c.l.b16 %v757
        %v2581 = vunpack.c.h.b16 %v757
        %v2582 = vunpack.c.l.b16 %v758
        %v2583 = vunpack.c.l.b16 %v759
        %v2584 = vunpack.c.h.b16 %v759
        %v2585 = vunpack.c.l.b16 %v760
        %v2586 = vunpack.c.h.b16 %v760
        %v2587 = vunpack.c.l.b16 %v761
        %v2588 = vunpack.c.h.b16 %v761
        %v2589 = vunpack.c.l.b16 %v762
        %v2590 = vunpack.c.h.b16 %v762
        %v2591 = vunpack.c.l.b16 %v763
        %v2592 = vunpack.c.l.b16 %v764
        %v2593 = vunpack.c.h.b16 %v764
        %v2594 = vunpack.c.l.b16 %v765
        %v2595 = vunpack.c.h.b16 %v765
        %v2596 = vunpack.c.l.b16 %v766
        %v2597 = vunpack.c.h.b16 %v766
        %v2598 = vunpack.c.l.b16 %v767
        %v2599 = vunpack.c.h.b16 %v767
        %v2600 = vunpack.c.l.b16 %v768
        %v2601 = vunpack.c.l.b16 %v769
        %v2602 = vunpack.c.h.b16 %v769
        %v2603 = vunpack.c.l.b16 %v770
        %v2604 = vunpack.c.h.b16 %v770
        %v2605 = vunpack.c.l.b16 %v771
        %v2606 = vunpack.c.h.b16 %v771
        %v2607 = vunpack.c.l.b16 %v772
        %v2608 = vunpack.c.h.b16 %v772
        %v2609 = vunpack.c.l.b16 %v773
        %v2610 = vunpack.c.l.b16 %v774
        %v2611 = vunpack.c.h.b16 %v774
        %v2612 = vunpack.c.l.b16 %v775
        %v2613 = vunpack.c.h.b16 %v775
        %v2614 = vunpack.c.l.b16 %v776
        %v2615 = vunpack.c.h.b16 %v776
        %v2616 = vunpack.c.l.b16 %v777
        %v2617 = vunpack.c.h.b16 %v777
        %v2618 = vunpack.c.l.b16 %v778
        %v2619 = vunpack.c.l.b16 %v779
        %v2620 = vunpack.c.h.b16 %v779
        %v2621 = vunpack.c.l.b16 %v780
        %v2622 = vunpack.c.h.b16 %v780
        %v2623 = vunpack.c.l.b16 %v781
        %v2624 = vunpack.c.h.b16 %v781
        %v2625 = vunpack.c.l.b16 %v782
        %v2626 = vunpack.c.h.b16 %v782
        %v2627 = vunpack.c.l.b16 %v783
        %v2628 = vunpack.c.l.b16 %v784
        %v2629 = vunpack.c.h.b16 %v784
        %v2630 = vunpack.c.l.b16 %v785
        %v2631 = vunpack.c.h.b16 %v785
        %v2632 = vunpack.c.l.b16 %v786
        %v2633 = vunpack.c.h.b16 %v786
        %v2634 = vunpack.c.l.b16 %v787
        %v2635 = vunpack.c.h.b16 %v787
        %v2636 = vunpack.c.l.b16 %v788
        %v2637 = vunpack.c.l.b16 %v789
        %v2638 = vunpack.c.h.b16 %v789
        %v2639 = vunpack.c.l.b16 %v790
        %v2640 = vunpack.c.h.b16 %v790
        %v2641 = vunpack.c.l.b16 %v791
        %v2642 = vunpack.c.h.b16 %v791
        %v2643 = vunpack.c.l.b16 %v792
        %v2644 = vunpack.c.h.b16 %v792
        %v2645 = vunpack.c.l.b16 %v793
        %v2646 = vunpack.c.l.b16 %v794
        %v2647 = vunpack.c.h.b16 %v794
        %v2648 = vunpack.c.l.b16 %v795
        %v2649 = vunpack.c.h.b16 %v795
        %v2650 = vunpack.c.l.b16 %v796
        %v2651 = vunpack.c.h.b16 %v796
        %v2652 = vunpack.c.l.b16 %v797
        %v2653 = vunpack.c.h.b16 %v797
        %v2654 = vunpack.c.l.b16 %v798
        %v2655 = vunpack.c.l.b16 %v799
        %v2656 = vunpack.c.h.b16 %v799
        %v2657 = vunpack.c.l.b16 %v800
        %v2658 = vunpack.c.h.b16 %v800
        %v2659 = vunpack.c.l.b16 %v801
        %v2660 = vunpack.c.h.b16 %v801
        %v2661 = vunpack.c.l.b16 %v802
        %v2662 = vunpack.c.h.b16 %v802
        %v2663 = vunpack.c.l.b16 %v803
        %v2664 = vunpack.c.l.b16 %v804
        %v2665 = vunpack.c.h.b16 %v804
        %v2666 = vunpack.c.l.b16 %v805
        %v2667 = vunpack.c.h.b16 %v805
        %v2668 = vunpack.c.l.b16 %v806
        %v2669 = vunpack.c.h.b16 %v806
        %v2670 = vunpack.c.l.b16 %v807
        %v2671 = vunpack.c.h.b16 %v807
        %v2672 = vunpack.c.l.b16 %v808
        %v2673 = vunpack.c.l.b16 %v809
        %v2674 = vunpack.c.h.b16 %v809
        %v2675 = vunpack.c.l.b16 %v810
        %v2676 = vunpack.c.h.b16 %v810
        %v2677 = vunpack.c.l.b16 %v811
        %v2678 = vunpack.c.h.b16 %v811
        %v2679 = vunpack.c.l.b16 %v812
        %v2680 = vunpack.c.h.b16 %v812
        %v2681 = vunpack.c.l.b16 %v813
        %v2682 = vunpack.c.l.b16 %v814
        %v2683 = vunpack.c.h.b16 %v814
        %v2684 = vunpack.c.l.b16 %v815
        %v2685 = vunpack.c.h.b16 %v815
        %v2686 = vunpack.c.l.b16 %v816
        %v2687 = vunpack.c.h.b16 %v816
        %v2688 = vunpack.c.l.b16 %v817
        %v2689 = vunpack.c.h.b16 %v817
        %v2690 = vunpack.c.l.b16 %v818
        %v2691 = vunpack.c.l.b16 %v819
        %v2692 = vunpack.c.h.b16 %v819
        %v2693 = vunpack.c.l.b16 %v820
        %v2694 = vunpack.c.h.b16 %v820
        %v2695 = vunpack.c.l.b16 %v821
        %v2696 = vunpack.c.h.b16 %v821
        %v2697 = vunpack.c.l.b16 %v822
        %v2698 = vunpack.c.h.b16 %v822
        %v2699 = vunpack.c.l.b16 %v823
        %v2700 = vunpack.c.l.b16 %v824
        %v2701 = vunpack.c.h.b16 %v824
        %v2702 = vunpack.c.l.b16 %v825
        %v2703 = vunpack.c.h.b16 %v825
        %v2704 = vunpack.c.l.b16 %v826
        %v2705 = vunpack.c.h.b16 %v826
        %v2706 = vunpack.c.l.b16 %v827
        %v2707 = vunpack.c.h.b16 %v827
        %v2708 = vunpack.c.l.b16 %v828
        %v2709 = vunpack.c.l.b16 %v829
        %v2710 = vunpack.c.h.b16 %v829
        %v2711 = vunpack.c.l.b16 %v830
        %v2712 = vunpack.c.h.b16 %v830
        %v2713 = vunpack.c.l.b16 %v831
        %v2714 = vunpack.c.h.b16 %v831
        %v2715 = vunpack.c.l.b16 %v832
        %v2716 = vunpack.c.h.b16 %v832
        %v2717 = vunpack.c.l.b16 %v833
        %v2718 = vunpack.c.l.b16 %v834
        %v2719 = vunpack.c.h.b16 %v834
        %v2720 = vunpack.c.l.b16 %v835
        %v2721 = vunpack.c.h.b16 %v835
        %v2722 = vunpack.c.l.b16 %v836
        %v2723 = vunpack.c.h.b16 %v836
        %v2724 = vunpack.c.l.b16 %v837
        %v2725 = vunpack.c.h.b16 %v837
        %v2726 = vunpack.c.l.b16 %v838
        %v2727 = vunpack.c.l.b16 %v839
        %v2728 = vunpack.c.h.b16 %v839
        %v2729 = vunpack.c.l.b16 %v840
        %v2730 = vunpack.c.h.b16 %v840
        %v2731 = vunpack.c.l.b16 %v841
        %v2732 = vunpack.c.h.b16 %v841
        %v2733 = vunpack.c.l.b16 %v842
        %v2734 = vunpack.c.h.b16 %v842
        %v2735 = vunpack.c.l.b16 %v843
        %v2736 = vunpack.c.l.b16 %v844
        %v2737 = vunpack.c.h.b16 %v844
        %v2738 = vunpack.c.l.b16 %v845
        %v2739 = vunpack.c.h.b16 %v845
        %v2740 = vunpack.c.l.b16 %v846
        %v2741 = vunpack.c.h.b16 %v846
        %v2742 = vunpack.c.l.b16 %v847
        %v2743 = vunpack.c.h.b16 %v847
        %v2744 = vunpack.c.l.b16 %v848
        %v2745 = vunpack.c.l.b16 %v849
        %v2746 = vunpack.c.h.b16 %v849
        %v2747 = vunpack.c.l.b16 %v850
        %v2748 = vunpack.c.h.b16 %v850
        %v2749 = vunpack.c.l.b16 %v851
        %v2750 = vunpack.c.h.b16 %v851
        %v2751 = vunpack.c.l.b16 %v852
        %v2752 = vunpack.c.h.b16 %v852
        %v2753 = vunpack.c.l.b16 %v853
        %v2754 = vunpack.c.l.b16 %v854
        %v2755 = vunpack.c.h.b16 %v854
        %v2756 = vunpack.c.l.b16 %v855
        %v2757 = vunpack.c.h.b16 %v855
        %v2758 = vunpack.c.l.b16 %v856
        %v2759 = vunpack.c.h.b16 %v856
        %v2760 = vunpack.c.l.b16 %v857
        %v2761 = vunpack.c.h.b16 %v857
        %v2762 = vunpack.c.l.b16 %v858
        %v2763 = vunpack.c.l.b16 %v859
        %v2764 = vunpack.c.h.b16 %v859
        %v2765 = vunpack.c.l.b16 %v860
        %v2766 = vunpack.c.h.b16 %v860
        %v2767 = vunpack.c.l.b16 %v861
        %v2768 = vunpack.c.h.b16 %v861
        %v2769 = vunpack.c.l.b16 %v862
        %v2770 = vunpack.c.h.b16 %v862
        %v2771 = vunpack.c.l.b16 %v863
        %v2772 = vunpack.c.l.b16 %v864
        %v2773 = vunpack.c.h.b16 %v864
        %v2774 = vunpack.c.l.b16 %v865
        %v2775 = vunpack.c.h.b16 %v865
        %v2776 = vunpack.c.l.b16 %v866
        %v2777 = vunpack.c.h.b16 %v866
        %v2778 = vunpack.c.l.b16 %v867
        %v2779 = vunpack.c.h.b16 %v867
        %v2780 = vunpack.c.l.b16 %v868
        %v2781 = vunpack.c.l.b16 %v869
        %v2782 = vunpack.c.h.b16 %v869
        %v2783 = vunpack.c.l.b16 %v870
        %v2784 = vunpack.c.h.b16 %v870
        %v2785 = vunpack.c.l.b16 %v871
        %v2786 = vunpack.c.h.b16 %v871
        %v2787 = vunpack.c.l.b16 %v872
        %v2788 = vunpack.c.h.b16 %v872
        %v2789 = vunpack.c.l.b16 %v873
        %v2790 = vunpack.c.l.b16 %v874
        %v2791 = vunpack.c.h.b16 %v874
        %v2792 = vunpack.c.l.b16 %v875
        %v2793 = vunpack.c.h.b16 %v875
        %v2794 = vunpack.c.l.b16 %v876
        %v2795 = vunpack.c.h.b16 %v876
        %v2796 = vunpack.c.l.b16 %v877
        %v2797 = vunpack.c.h.b16 %v877
        %v2798 = vunpack.c.l.b16 %v878
        %v2799 = vunpack.c.l.b16 %v879
        %v2800 = vunpack.c.h.b16 %v879
        %v2801 = vunpack.c.l.b16 %v880
        %v2802 = vunpack.c.h.b16 %v880
        %v2803 = vunpack.c.l.b16 %v881
        %v2804 = vunpack.c.h.b16 %v881
        %v2805 = vunpack.c.l.b16 %v882
        %v2806 = vunpack.c.h.b16 %v882
        %v2807 = vunpack.c.l.b16 %v883
        %v2808 = vunpack.c.l.b16 %v884
        %v2809 = vunpack.c.h.b16 %v884
        %v2810 = vunpack.c.l.b16 %v885
        %v2811 = vunpack.c.h.b16 %v885
        %v2812 = vunpack.c.l.b16 %v886
        %v2813 = vunpack.c.h.b16 %v886
        %v2814 = vunpack.c.l.b16 %v887
        %v2815 = vunpack.c.h.b16 %v887
        %v2816 = vunpack.c.l.b16 %v888
        %v2817 = vunpack.c.l.b16 %v889
        %v2818 = vunpack.c.h.b16 %v889
        %v2819 = vunpack.c.l.b16 %v890
        %v2820 = vunpack.c.h.b16 %v890
        %v2821 = vunpack.c.l.b16 %v891
        %v2822 = vunpack.c.h.b16 %v891
        %v2823 = vunpack.c.l.b16 %v892
        %v2824 = vunpack.c.h.b16 %v892
        %v2825 = vunpack.c.l.b16 %v893
        %v2826 = vunpack.c.l.b16 %v894
        %v2827 = vunpack.c.h.b16 %v894
        %v2828 = vunpack.c.l.b16 %v895
        %v2829 = vunpack.c.h.b16 %v895
        %v2830 = vunpack.c.l.b16 %v896
        %v2831 = vunpack.c.h.b16 %v896
        %v2832 = vunpack.c.l.b16 %v897
        %v2833 = vunpack.c.h.b16 %v897
        %v2834 = vunpack.c.l.b16 %v898
        %v2835 = vunpack.c.l.b16 %v899
        %v2836 = vunpack.c.h.b16 %v899
        %v2837 = vunpack.c.l.b16 %v900
        %v2838 = vunpack.c.h.b16 %v900
        %v2839 = vunpack.c.l.b16 %v901
        %v2840 = vunpack.c.h.b16 %v901
        %v2841 = vunpack.c.l.b16 %v902
        %v2842 = vunpack.c.h.b16 %v902
        %v2843 = vunpack.c.l.b16 %v903
        %v2844 = vunpack.c.l.b16 %v904
        %v2845 = vunpack.c.h.b16 %v904
        %v2846 = vunpack.c.l.b16 %v905
        %v2847 = vunpack.c.h.b16 %v905
        %v2848 = vunpack.c.l.b16 %v906
        %v2849 = vunpack.c.h.b16 %v906
        %v2850 = vunpack.c.l.b16 %v907
        %v2851 = vunpack.c.h.b16 %v907
        %v2852 = vunpack.c.l.b16 %v908
        %v2853 = vunpack.c.l.b16 %v909
        %v2854 = vunpack.c.h.b16 %v909
        %v2855 = vunpack.c.l.b16 %v910
        %v2856 = vunpack.c.h.b16 %v910
        %v2857 = vunpack.c.l.b16 %v911
        %v2858 = vunpack.c.h.b16 %v911
        %v2859 = vunpack.c.l.b16 %v912
        %v2860 = vunpack.c.h.b16 %v912
        %v2861 = vunpack.c.l.b16 %v913
        %v2862 = vunpack.c.l.b16 %v914
        %v2863 = vunpack.c.h.b16 %v914
        %v2864 = vunpack.c.l.b16 %v915
        %v2865 = vunpack.c.h.b16 %v915
        %v2866 = vunpack.c.l.b16 %v916
        %v2867 = vunpack.c.h.b16 %v916
        %v2868 = vunpack.c.l.b16 %v917
        %v2869 = vunpack.c.h.b16 %v917
        %v2870 = vunpack.c.l.b16 %v918
        %v2871 = vunpack.c.l.b16 %v919
        %v2872 = vunpack.c.h.b16 %v919
        %v2873 = vunpack.c.l.b16 %v920
        %v2874 = vunpack.c.h.b16 %v920
        %v2875 = vunpack.c.l.b16 %v921
        %v2876 = vunpack.c.h.b16 %v921
        %v2877 = vunpack.c.l.b16 %v922
        %v2878 = vunpack.c.h.b16 %v922
        %v2879 = vunpack.c.l.b16 %v923
        %v2880 = vunpack.c.l.b16 %v924
        %v2881 = vunpack.c.h.b16 %v924
        %v2882 = vunpack.c.l.b16 %v925
        %v2883 = vunpack.c.h.b16 %v925
        %v2884 = vunpack.c.l.b16 %v926
        %v2885 = vunpack.c.h.b16 %v926
        %v2886 = vunpack.c.l.b16 %v927
        %v2887 = vunpack.c.h.b16 %v927
        %v2888 = vunpack.c.l.b16 %v928
        %v2889 = vunpack.c.l.b16 %v929
        %v2890 = vunpack.c.h.b16 %v929
        %v2891 = vunpack.c.l.b16 %v930
        %v2892 = vunpack.c.h.b16 %v930
        %v2893 = vunpack.c.l.b16 %v931
        %v2894 = vunpack.c.h.b16 %v931
        %v2895 = vunpack.c.l.b16 %v932
        %v2896 = vunpack.c.h.b16 %v932
        %v2897 = vunpack.c.l.b16 %v933
        %v2898 = vunpack.c.l.b16 %v934
        %v2899 = vunpack.c.h.b16 %v934
        %v2900 = vunpack.c.l.b16 %v935
        %v2901 = vunpack.c.h.b16 %v935
        %v2902 = vunpack.c.l.b16 %v936
        %v2903 = vunpack.c.h.b16 %v936
        %v2904 = vunpack.c.l.b16 %v937
        %v2905 = vunpack.c.h.b16 %v937
        %v2906 = vunpack.c.l.b16 %v938
        %v2907 = vunpack.c.l.b16 %v939
        %v2908 = vunpack.c.h.b16 %v939
        %v2909 = vunpack.c.l.b16 %v940
        %v2910 = vunpack.c.h.b16 %v940
        %v2911 = vunpack.c.l.b16 %v941
        %v2912 = vunpack.c.h.b16 %v941
        %v2913 = vunpack.c.l.b16 %v942
        %v2914 = vunpack.c.h.b16 %v942
        %v2915 = vunpack.c.l.b16 %v943
        %v2916 = vunpack.c.l.b16 %v944
        %v2917 = vunpack.c.h.b16 %v944
        %v2918 = vunpack.c.l.b16 %v945
        %v2919 = vunpack.c.h.b16 %v945
        %v2920 = vunpack.c.l.b16 %v946
        %v2921 = vunpack.c.h.b16 %v946
        %v2922 = vunpack.c.l.b16 %v947
        %v2923 = vunpack.c.h.b16 %v947
        %v2924 = vunpack.c.l.b16 %v948
        %v2925 = vunpack.c.l.b16 %v949
        %v2926 = vunpack.c.h.b16 %v949
        %v2927 = vunpack.c.l.b16 %v950
        %v2928 = vunpack.c.h.b16 %v950
        %v2929 = vunpack.c.l.b16 %v951
        %v2930 = vunpack.c.h.b16 %v951
        %v2931 = vunpack.c.l.b16 %v952
        %v2932 = vunpack.c.h.b16 %v952
        %v2933 = vunpack.c.l.b16 %v953
        %v2934 = vunpack.c.l.b16 %v954
        %v2935 = vunpack.c.h.b16 %v954
        %v2936 = vunpack.c.l.b16 %v955
        %v2937 = vunpack.c.h.b16 %v955
        %v2938 = vunpack.c.l.b16 %v956
        %v2939 = vunpack.c.h.b16 %v956
        %v2940 = vunpack.c.l.b16 %v957
        %v2941 = vunpack.c.h.b16 %v957
        %v2942 = vunpack.c.l.b16 %v958
        %v2943 = vunpack.c.l.b16 %v959
        %v2944 = vunpack.c.h.b16 %v959
        %v2945 = vunpack.c.l.b16 %v960
        %v2946 = vunpack.c.h.b16 %v960
        %v2947 = vunpack.c.l.b16 %v961
        %v2948 = vunpack.c.h.b16 %v961
        %v2949 = vunpack.c.l.b16 %v962
        %v2950 = vunpack.c.h.b16 %v962
        %v2951 = vunpack.c.l.b16 %v963
        %v2952 = vunpack.c.l.b16 %v964
        %v2953 = vunpack.c.h.b16 %v964
        %v2954 = vunpack.c.l.b16 %v965
        %v2955 = vunpack.c.h.b16 %v965
        %v2956 = vunpack.c.l.b16 %v966
        %v2957 = vunpack.c.h.b16 %v966
        %v2958 = vunpack.c.l.b16 %v967
        %v2959 = vunpack.c.h.b16 %v967
        %v2960 = vunpack.c.l.b16 %v968
        %v2961 = vunpack.c.l.b16 %v969
        %v2962 = vunpack.c.h.b16 %v969
        %v2963 = vunpack.c.l.b16 %v970
        %v2964 = vunpack.c.h.b16 %v970
        %v2965 = vunpack.c.l.b16 %v971
        %v2966 = vunpack.c.h.b16 %v971
        %v2967 = vunpack.c.l.b16 %v972
        %v2968 = vunpack.c.h.b16 %v972
        %v2969 = vunpack.c.l.b16 %v973
        %v2970 = vunpack.c.l.b16 %v974
        %v2971 = vunpack.c.h.b16 %v974
        %v2972 = vunpack.c.l.b16 %v975
        %v2973 = vunpack.c.h.b16 %v975
        %v2974 = vunpack.c.l.b16 %v976
        %v2975 = vunpack.c.h.b16 %v976
        %v2976 = vunpack.c.l.b16 %v977
        %v2977 = vunpack.c.h.b16 %v977
        %v2978 = vunpack.c.l.b16 %v978
        %v2979 = vunpack.c.l.b16 %v979
        %v2980 = vunpack.c.h.b16 %v979
        %v2981 = vunpack.c.l.b16 %v980
        %v2982 = vunpack.c.h.b16 %v980
        %v2983 = vunpack.c.l.b16 %v981
        %v2984 = vunpack.c.h.b16 %v981
        %v2985 = vunpack.c.l.b16 %v982
        %v2986 = vunpack.c.h.b16 %v982
        %v2987 = vunpack.c.l.b16 %v983
        %v2988 = vunpack.c.l.b16 %v984
        %v2989 = vunpack.c.h.b16 %v984
        %v2990 = vunpack.c.l.b16 %v985
        %v2991 = vunpack.c.h.b16 %v985
        %v2992 = vunpack.c.l.b16 %v986
        %v2993 = vunpack.c.h.b16 %v986
        %v2994 = vunpack.c.l.b16 %v987
        %v2995 = vunpack.c.h.b16 %v987
        %v2996 = vunpack.c.l.b16 %v988
        %v2997 = vunpack.c.l.b16 %v989
        %v2998 = vunpack.c.h.b16 %v989
        %v2999 = vunpack.c.l.b16 %v990
        %v3000 = vunpack.c.h.b16 %v990
        %v3001 = vunpack.c.l.b16 %v991
        %v3002 = vunpack.c.h.b16 %v991
        %v3003 = vunpack.c.l.b16 %v992
        %v3004 = vunpack.c.h.b16 %v992
        %v3005 = vunpack.c.l.b16 %v993
        %v3006 = vunpack.c.l.b16 %v994
        %v3007 = vunpack.c.h.b16 %v994
        %v3008 = vunpack.c.l.b16 %v995
        %v3009 = vunpack.c.h.b16 %v995
        %v3010 = vunpack.c.l.b16 %v996
        %v3011 = vunpack.c.h.b16 %v996
        %v3012 = vunpack.c.l.b16 %v997
        %v3013 = vunpack.c.h.b16 %v997
        %v3014 = vunpack.c.l.b16 %v998
        %v3015 = vunpack.c.l.b16 %v999
        %v3016 = vunpack.c.h.b16 %v999
        %v3017 = vunpack.c.l.b16 %v1000
        %v3018 = vunpack.c.h.b16 %v1000
        %v3019 = vunpack.c.l.b16 %v1001
        %v3020 = vunpack.c.h.b16 %v1001
        %v3021 = vunpack.c.l.b16 %v1002
        %v3022 = vunpack.c.h.b16 %v1002
        %v3023 = vunpack.c.l.b16 %v1003
        %v3024 = vunpack.c.l.b16 %v1004
        %v3025 = vunpack.c.h.b16 %v1004
        %v3026 = vunpack.c.l.b16 %v1005
        %v3027 = vunpack.c.h.b16 %v1005
        %v3028 = vunpack.c.l.b16 %v1006
        %v3029 = vunpack.c.h.b16 %v1006
        %v3030 = vunpack.c.l.b16 %v1007
        %v3031 = vunpack.c.h.b16 %v1007
        %v3032 = vunpack.c.l.b16 %v1008
        %v3033 = vunpack.c.l.b16 %v1009
        %v3034 = vunpack.c.h.b16 %v1009
        %v3035 = vunpack.c.l.b16 %v1010
        %v3036 = vunpack.c.h.b16 %v1010
        %v3037 = vunpack.c.l.b16 %v1011
        %v3038 = vunpack.c.h.b16 %v1011
        %v3039 = vunpack.c.l.b16 %v1012
        %v3040 = vunpack.c.h.b16 %v1012
        %v3041 = vunpack.c.l.b16 %v1013
        %v3042 = vunpack.c.l.b16 %v1014
        %v3043 = vunpack.c.h.b16 %v1014
        %v3044 = vunpack.c.l.b16 %v1015
        %v3045 = vunpack.c.h.b16 %v1015
        %v3046 = vunpack.c.l.b16 %v1016
        %v3047 = vunpack.c.h.b16 %v1016
        %v3048 = vunpack.c.l.b16 %v1017
        %v3049 = vunpack.c.h.b16 %v1017
        %v3050 = vunpack.c.l.b16 %v1018
        %v3051 = vunpack.c.l.b16 %v1019
        %v3052 = vunpack.c.h.b16 %v1019
        %v3053 = vunpack.c.l.b16 %v1020
        %v3054 = vunpack.c.h.b16 %v1020
        %v3055 = vunpack.c.l.b16 %v1021
        %v3056 = vunpack.c.h.b16 %v1021
        %v3057 = vunpack.c.l.b16 %v1022
        %v3058 = vunpack.c.h.b16 %v1022
        %v3059 = vunpack.c.l.b16 %v1023
        %v3060 = vunpack.c.l.b16 %v1024
        %v3061 = vunpack.c.h.b16 %v1024
        %v3062 = vunpack.c.l.b16 %v1025
        %v3063 = vunpack.c.h.b16 %v1025
        %v3064 = vunpack.c.l.b16 %v1026
        %v3065 = vunpack.c.h.b16 %v1026
        %v3066 = vunpack.c.l.b16 %v1027
        %v3067 = vunpack.c.h.b16 %v1027
        %v3068 = vunpack.c.l.b16 %v1028
        %v3069 = vunpack.c.l.b16 %v1029
        %v3070 = vunpack.c.h.b16 %v1029
        %v3071 = vunpack.c.l.b16 %v1030
        %v3072 = vunpack.c.h.b16 %v1030
        %v3073 = vunpack.c.l.b16 %v1031
        %v3074 = vunpack.c.h.b16 %v1031
        %v3075 = vunpack.c.l.b16 %v1032
        %v3076 = vunpack.c.h.b16 %v1032
        %v3077 = vunpack.c.l.b16 %v1033
        %v3078 = vunpack.c.l.b16 %v1034
        %v3079 = vunpack.c.h.b16 %v1034
        %v3080 = vunpack.c.l.b16 %v1035
        %v3081 = vunpack.c.h.b16 %v1035
        %v3082 = vunpack.c.l.b16 %v1036
        %v3083 = vunpack.c.h.b16 %v1036
        %v3084 = vunpack.c.l.b16 %v1037
        %v3085 = vunpack.c.h.b16 %v1037
        %v3086 = vunpack.c.l.b16 %v1038
        %v3087 = vunpack.c.l.b16 %v1039
        %v3088 = vunpack.c.h.b16 %v1039
        %v3089 = vunpack.c.l.b16 %v1040
        %v3090 = vunpack.c.h.b16 %v1040
        %v3091 = vunpack.c.l.b16 %v1041
        %v3092 = vunpack.c.h.b16 %v1041
        %v3093 = vunpack.c.l.b16 %v1042
        %v3094 = vunpack.c.h.b16 %v1042
        %v3095 = vunpack.c.l.b16 %v1043
        %v3096 = vunpack.c.l.b16 %v1044
        %v3097 = vunpack.c.h.b16 %v1044
        %v3098 = vunpack.c.l.b16 %v1045
        %v3099 = vunpack.c.h.b16 %v1045
        %v3100 = vunpack.c.l.b16 %v1046
        %v3101 = vunpack.c.h.b16 %v1046
        %v3102 = vunpack.c.l.b16 %v1047
        %v3103 = vunpack.c.h.b16 %v1047
        %v3104 = vunpack.c.l.b16 %v1048
        %v3105 = vunpack.c.l.b16 %v1049
        %v3106 = vunpack.c.h.b16 %v1049
        %v3107 = vunpack.c.l.b16 %v1050
        %v3108 = vunpack.c.h.b16 %v1050
        %v3109 = vunpack.c.l.b16 %v1051
        %v3110 = vunpack.c.h.b16 %v1051
        %v3111 = vunpack.c.l.b16 %v1052
        %v3112 = vunpack.c.h.b16 %v1052
        %v3113 = vunpack.c.l.b16 %v1053
        %v3114 = vunpack.c.l.b16 %v1054
        %v3115 = vunpack.c.h.b16 %v1054
        %v3116 = vunpack.c.l.b16 %v1055
        %v3117 = vunpack.c.h.b16 %v1055
        %v3118 = vunpack.c.l.b16 %v1056
        %v3119 = vunpack.c.h.b16 %v1056
        %v3120 = vunpack.c.l.b16 %v1057
        %v3121 = vunpack.c.h.b16 %v1057
        %v3122 = vunpack.c.l.b16 %v1058
        %v3123 = vunpack.c.l.b16 %v1059
        %v3124 = vunpack.c.h.b16 %v1059
        %v3125 = vunpack.c.l.b16 %v1060
        %v3126 = vunpack.c.h.b16 %v1060
        %v3127 = vunpack.c.l.b16 %v1061
        %v3128 = vunpack.c.h.b16 %v1061
        %v3129 = vunpack.c.l.b16 %v1062
        %v3130 = vunpack.c.h.b16 %v1062
        %v3131 = vunpack.c.l.b16 %v1063
        %v3132 = vunpack.c.l.b16 %v1064
        %v3133 = vunpack.c.h.b16 %v1064
        %v3134 = vunpack.c.l.b16 %v1065
        %v3135 = vunpack.c.h.b16 %v1065
        %v3136 = vunpack.c.l.b16 %v1066
        %v3137 = vunpack.c.h.b16 %v1066
        %v3138 = vunpack.c.l.b16 %v1067
        %v3139 = vunpack.c.h.b16 %v1067
        %v3140 = vunpack.c.l.b16 %v1068
        %v3141 = vunpack.c.l.b16 %v1069
        %v3142 = vunpack.c.h.b16 %v1069
        %v3143 = vunpack.c.l.b16 %v1070
        %v3144 = vunpack.c.h.b16 %v1070
        %v3145 = vunpack.c.l.b16 %v1071
        %v3146 = vunpack.c.h.b16 %v1071
        %v3147 = vunpack.c.l.b16 %v1072
        %v3148 = vunpack.c.h.b16 %v1072
        %v3149 = vunpack.c.l.b16 %v1073
        %v3150 = vunpack.c.l.b16 %v1074
        %v3151 = vunpack.c.h.b16 %v1074
        %v3152 = vunpack.c.l.b16 %v1075
        %v3153 = vunpack.c.h.b16 %v1075
        %v3154 = vunpack.c.l.b16 %v1076
        %v3155 = vunpack.c.h.b16 %v1076
        %v3156 = vunpack.c.l.b16 %v1077
        %v3157 = vunpack.c.h.b16 %v1077
        %v3158 = vunpack.c.l.b16 %v1078
        %v3159 = vunpack.c.l.b16 %v1079
        %v3160 = vunpack.c.h.b16 %v1079
        %v3161 = vunpack.c.l.b16 %v1080
        %v3162 = vunpack.c.h.b16 %v1080
        %v3163 = vunpack.c.l.b16 %v1081
        %v3164 = vunpack.c.h.b16 %v1081
        %v3165 = vunpack.c.l.b16 %v1082
        %v3166 = vunpack.c.h.b16 %v1082
        %v3167 = vunpack.c.l.b16 %v1083
        %v3168 = vunpack.c.l.b16 %v1084
        %v3169 = vunpack.c.h.b16 %v1084
        %v3170 = vunpack.c.l.b16 %v1085
        %v3171 = vunpack.c.h.b16 %v1085
        %v3172 = vunpack.c.l.b16 %v1086
        %v3173 = vunpack.c.h.b16 %v1086
        %v3174 = vunpack.c.l.b16 %v1087
        %v3175 = vunpack.c.h.b16 %v1087
        %v3176 = vunpack.c.l.b16 %v1088
        %v3177 = vunpack.c.l.b16 %v1089
        %v3178 = vunpack.c.h.b16 %v1089
        %v3179 = vunpack.c.l.b16 %v1090
        %v3180 = vunpack.c.h.b16 %v1090
        %v3181 = vunpack.c.l.b16 %v1091
        %v3182 = vunpack.c.h.b16 %v1091
        %v3183 = vunpack.c.l.b16 %v1092
        %v3184 = vunpack.c.h.b16 %v1092
        %v3185 = vunpack.c.l.b16 %v1093
        %v3186 = vunpack.c.l.b16 %v1094
        %v3187 = vunpack.c.h.b16 %v1094
        %v3188 = vunpack.c.l.b16 %v1095
        %v3189 = vunpack.c.h.b16 %v1095
        %v3190 = vunpack.c.l.b16 %v1096
        %v3191 = vunpack.c.h.b16 %v1096
        %v3192 = vunpack.c.l.b16 %v1097
        %v3193 = vunpack.c.h.b16 %v1097
        %v3194 = vunpack.c.l.b16 %v1098
        %v3195 = vunpack.c.l.b16 %v1099
        %v3196 = vunpack.c.h.b16 %v1099
        %v3197 = vunpack.c.l.b16 %v1100
        %v3198 = vunpack.c.h.b16 %v1100
        %v3199 = vunpack.c.l.b16 %v1101
        %v3200 = vunpack.c.h.b16 %v1101
        %v3201 = vunpack.c.l.b16 %v1102
        %v3202 = vunpack.c.h.b16 %v1102
        %v3203 = vunpack.c.l.b16 %v1103
        %v3204 = vunpack.c.l.b16 %v1104
        %v3205 = vunpack.c.h.b16 %v1104
        %v3206 = vunpack.c.l.b16 %v1105
        %v3207 = vunpack.c.h.b16 %v1105
        %v3208 = vunpack.c.l.b16 %v1106
        %v3209 = vunpack.c.h.b16 %v1106
        %v3210 = vunpack.c.l.b16 %v1107
        %v3211 = vunpack.c.h.b16 %v1107
        %v3212 = vunpack.c.l.b16 %v1108
        %v3213 = vunpack.c.l.b16 %v1109
        %v3214 = vunpack.c.h.b16 %v1109
        %v3215 = vunpack.c.l.b16 %v1110
        %v3216 = vunpack.c.h.b16 %v1110
        %v3217 = vunpack.c.l.b16 %v1111
        %v3218 = vunpack.c.h.b16 %v1111
        %v3219 = vunpack.c.l.b16 %v1112
        %v3220 = vunpack.c.h.b16 %v1112
        %v3221 = vunpack.c.l.b16 %v1113
        %v3222 = vunpack.c.l.b16 %v1114
        %v3223 = vunpack.c.h.b16 %v1114
        %v3224 = vunpack.c.l.b16 %v1115
        %v3225 = vunpack.c.h.b16 %v1115
        %v3226 = vunpack.c.l.b16 %v1116
        %v3227 = vunpack.c.h.b16 %v1116
        %v3228 = vunpack.c.l.b16 %v1117
        %v3229 = vunpack.c.h.b16 %v1117
        %v3230 = vunpack.c.l.b16 %v1118
        %v3231 = vpack.c.b16 %v2088, %v2079
        %v3232 = vpack.c.b16 %v2089, %v2080
        %v3233 = vpack.c.b16 %v2090, %v2081
        %v3234 = vpack.c.b16 %v2091, %v2082
        %v3235 = vpack.c.b16 %v2092, %v2083
        %v3236 = vpack.c.b16 %v2093, %v2084
        %v3237 = vpack.c.b16 %v2094, %v2085
        %v3238 = vpack.c.b16 %v2095, %v2086
        %v3239 = vpack.c.b16 %v2096, %v2087
        %v3240 = vpack.c.b16 %v2106, %v2097
        %v3241 = vpack.c.b16 %v2107, %v2098
        %v3242 = vpack.c.b16 %v2108, %v2099
        %v3243 = vpack.c.b16 %v2109, %v2100
        %v3244 = vpack.c.b16 %v2110, %v2101
        %v3245 = vpack.c.b16 %v2111, %v2102
        %v3246 = vpack.c.b16 %v2112, %v2103
        %v3247 = vpack.c.b16 %v2113, %v2104
        %v3248 = vpack.c.b16 %v2114, %v2105
        %v3249 = vpack.c.b16 %v2124, %v2115
        %v3250 = vpack.c.b16 %v2125, %v2116
        %v3251 = vpack.c.b16 %v2126, %v2117
        %v3252 = vpack.c.b16 %v2127, %v2118
        %v3253 = vpack.c.b16 %v2128, %v2119
        %v3254 = vpack.c.b16 %v2129, %v2120
        %v3255 = vpack.c.b16 %v2130, %v2121
        %v3256 = vpack.c.b16 %v2131, %v2122
        %v3257 = vpack.c.b16 %v2132, %v2123
        %v3258 = vpack.c.b16 %v2142, %v2133
        %v3259 = vpack.c.b16 %v2143, %v2134
        %v3260 = vpack.c.b16 %v2144, %v2135
        %v3261 = vpack.c.b16 %v2145, %v2136
        %v3262 = vpack.c.b16 %v2146, %v2137
        %v3263 = vpack.c.b16 %v2147, %v2138
        %v3264 = vpack.c.b16 %v2148, %v2139
        %v3265 = vpack.c.b16 %v2149, %v2140
        %v3266 = vpack.c.b16 %v2150, %v2141
        %v3267 = vpack.c.b16 %v2160, %v2151
        %v3268 = vpack.c.b16 %v2161, %v2152
        %v3269 = vpack.c.b16 %v2162, %v2153
        %v3270 = vpack.c.b16 %v2163, %v2154
        %v3271 = vpack.c.b16 %v2164, %v2155
        %v3272 = vpack.c.b16 %v2165, %v2156
        %v3273 = vpack.c.b16 %v2166, %v2157
        %v3274 = vpack.c.b16 %v2167, %v2158
        %v3275 = vpack.c.b16 %v2168, %v2159
        %v3276 = vpack.c.b16 %v2178, %v2169
        %v3277 = vpack.c.b16 %v2179, %v2170
        %v3278 = vpack.c.b16 %v2180, %v2171
        %v3279 = vpack.c.b16 %v2181, %v2172
        %v3280 = vpack.c.b16 %v2182, %v2173
        %v3281 = vpack.c.b16 %v2183, %v2174
        %v3282 = vpack.c.b16 %v2184, %v2175
        %v3283 = vpack.c.b16 %v2185, %v2176
        %v3284 = vpack.c.b16 %v2186, %v2177
        %v3285 = vpack.c.b16 %v2196, %v2187
        %v3286 = vpack.c.b16 %v2197, %v2188
        %v3287 = vpack.c.b16 %v2198, %v2189
        %v3288 = vpack.c.b16 %v2199, %v2190
        %v3289 = vpack.c.b16 %v2200, %v2191
        %v3290 = vpack.c.b16 %v2201, %v2192
        %v3291 = vpack.c.b16 %v2202, %v2193
        %v3292 = vpack.c.b16 %v2203, %v2194
        %v3293 = vpack.c.b16 %v2204, %v2195
        %v3294 = vpack.c.b16 %v2214, %v2205
        %v3295 = vpack.c.b16 %v2215, %v2206
        %v3296 = vpack.c.b16 %v2216, %v2207
        %v3297 = vpack.c.b16 %v2217, %v2208
        %v3298 = vpack.c.b16 %v2218, %v2209
        %v3299 = vpack.c.b16 %v2219, %v2210
        %v3300 = vpack.c.b16 %v2220, %v2211
        %v3301 = vpack.c.b16 %v2221, %v2212
        %v3302 = vpack.c.b16 %v2222, %v2213
        %v3303 = vpack.c.b16 %v2232, %v2223
        %v3304 = vpack.c.b16 %v2233, %v2224
        %v3305 = vpack.c.b16 %v2234, %v2225
        %v3306 = vpack.c.b16 %v2235, %v2226
        %v3307 = vpack.c.b16 %v2236, %v2227
        %v3308 = vpack.c.b16 %v2237, %v2228
        %v3309 = vpack.c.b16 %v2238, %v2229
        %v3310 = vpack.c.b16 %v2239, %v2230
        %v3311 = vpack.c.b16 %v2240, %v2231
        %v3312 = vpack.c.b16 %v2250, %v2241
        %v3313 = vpack.c.b16 %v2251, %v2242
        %v3314 = vpack.c.b16 %v2252, %v2243
        %v3315 = vpack.c.b16 %v2253, %v2244
        %v3316 = vpack.c.b16 %v2254, %v2245
        %v3317 = vpack.c.b16 %v2255, %v2246
        %v3318 = vpack.c.b16 %v2256, %v2247
        %v3319 = vpack.c.b16 %v2257, %v2248
        %v3320 = vpack.c.b16 %v2258, %v2249
        %v3321 = vpack.c.b16 %v2268, %v2259
        %v3322 = vpack.c.b16 %v2269, %v2260
        %v3323 = vpack.c.b16 %v2270, %v2261
        %v3324 = vpack.c.b16 %v2271, %v2262
        %v3325 = vpack.c.b16 %v2272, %v2263
        %v3326 = vpack.c.b16 %v2273, %v2264
        %v3327 = vpack.c.b16 %v2274, %v2265
        %v3328 = vpack.c.b16 %v2275, %v2266
        %v3329 = vpack.c.b16 %v2276, %v2267
        %v3330 = vpack.c.b16 %v2286, %v2277
        %v3331 = vpack.c.b16 %v2287, %v2278
        %v3332 = vpack.c.b16 %v2288, %v2279
        %v3333 = vpack.c.b16 %v2289, %v2280
        %v3334 = vpack.c.b16 %v2290, %v2281
        %v3335 = vpack.c.b16 %v2291, %v2282
        %v3336 = vpack.c.b16 %v2292, %v2283
        %v3337 = vpack.c.b16 %v2293, %v2284
        %v3338 = vpack.c.b16 %v2294, %v2285
        %v3339 = vpack.c.b16 %v2304, %v2295
        %v3340 = vpack.c.b16 %v2305, %v2296
        %v3341 = vpack.c.b16 %v2306, %v2297
        %v3342 = vpack.c.b16 %v2307, %v2298
        %v3343 = vpack.c.b16 %v2308, %v2299
        %v3344 = vpack.c.b16 %v2309, %v2300
        %v3345 = vpack.c.b16 %v2310, %v2301
        %v3346 = vpack.c.b16 %v2311, %v2302
        %v3347 = vpack.c.b16 %v2312, %v2303
        %v3348 = vpack.c.b16 %v2322, %v2313
        %v3349 = vpack.c.b16 %v2323, %v2314
        %v3350 = vpack.c.b16 %v2324, %v2315
        %v3351 = vpack.c.b16 %v2325, %v2316
        %v3352 = vpack.c.b16 %v2326, %v2317
        %v3353 = vpack.c.b16 %v2327, %v2318
        %v3354 = vpack.c.b16 %v2328, %v2319
        %v3355 = vpack.c.b16 %v2329, %v2320
        %v3356 = vpack.c.b16 %v2330, %v2321
        %v3357 = vpack.c.b16 %v2340, %v2331
        %v3358 = vpack.c.b16 %v2341, %v2332
        %v3359 = vpack.c.b16 %v2342, %v2333
        %v3360 = vpack.c.b16 %v2343, %v2334
        %v3361 = vpack.c.b16 %v2344, %v2335
        %v3362 = vpack.c.b16 %v2345, %v2336
        %v3363 = vpack.c.b16 %v2346, %v2337
        %v3364 = vpack.c.b16 %v2347, %v2338
        %v3365 = vpack.c.b16 %v2348, %v2339
        %v3366 = vpack.c.b16 %v2358, %v2349
        %v3367 = vpack.c.b16 %v2359, %v2350
        %v3368 = vpack.c.b16 %v2360, %v2351
        %v3369 = vpack.c.b16 %v2361, %v2352
        %v3370 = vpack.c.b16 %v2362, %v2353
        %v3371 = vpack.c.b16 %v2363, %v2354
        %v3372 = vpack.c.b16 %v2364, %v2355
        %v3373 = vpack.c.b16 %v2365, %v2356
        %v3374 = vpack.c.b16 %v2366, %v2357
        %v3375 = vpack.c.b16 %v2376, %v2367
        %v3376 = vpack.c.b16 %v2377, %v2368
        %v3377 = vpack.c.b16 %v2378, %v2369
        %v3378 = vpack.c.b16 %v2379, %v2370
        %v3379 = vpack.c.b16 %v2380, %v2371
        %v3380 = vpack.c.b16 %v2381, %v2372
        %v3381 = vpack.c.b16 %v2382, %v2373
        %v3382 = vpack.c.b16 %v2383, %v2374
        %v3383 = vpack.c.b16 %v2384, %v2375
        %v3384 = vpack.c.b16 %v2394, %v2385
        %v3385 = vpack.c.b16 %v2395, %v2386
        %v3386 = vpack.c.b16 %v2396, %v2387
        %v3387 = vpack.c.b16 %v2397, %v2388
        %v3388 = vpack.c.b16 %v2398, %v2389
        %v3389 = vpack.c.b16 %v2399, %v2390
        %v3390 = vpack.c.b16 %v2400, %v2391
        %v3391 = vpack.c.b16 %v2401, %v2392
        %v3392 = vpack.c.b16 %v2402, %v2393
        %v3393 = vpack.c.b16 %v2412, %v2403
        %v3394 = vpack.c.b16 %v2413, %v2404
        %v3395 = vpack.c.b16 %v2414, %v2405
        %v3396 = vpack.c.b16 %v2415, %v2406
        %v3397 = vpack.c.b16 %v2416, %v2407
        %v3398 = vpack.c.b16 %v2417, %v2408
        %v3399 = vpack.c.b16 %v2418, %v2409
        %v3400 = vpack.c.b16 %v2419, %v2410
        %v3401 = vpack.c.b16 %v2420, %v2411
        %v3402 = vpack.c.b16 %v2430, %v2421
        %v3403 = vpack.c.b16 %v2431, %v2422
        %v3404 = vpack.c.b16 %v2432, %v2423
        %v3405 = vpack.c.b16 %v2433, %v2424
        %v3406 = vpack.c.b16 %v2434, %v2425
        %v3407 = vpack.c.b16 %v2435, %v2426
        %v3408 = vpack.c.b16 %v2436, %v2427
        %v3409 = vpack.c.b16 %v2437, %v2428
        %v3410 = vpack.c.b16 %v2438, %v2429
        %v3411 = vpack.c.b16 %v2448, %v2439
        %v3412 = vpack.c.b16 %v2449, %v2440
        %v3413 = vpack.c.b16 %v2450, %v2441
        %v3414 = vpack.c.b16 %v2451, %v2442
        %v3415 = vpack.c.b16 %v2452, %v2443
        %v3416 = vpack.c.b16 %v2453, %v2444
        %v3417 = vpack.c.b16 %v2454, %v2445
        %v3418 = vpack.c.b16 %v2455, %v2446
        %v3419 = vpack.c.b16 %v2456, %v2447
        %v3420 = vpack.c.b16 %v2466, %v2457
        %v3421 = vpack.c.b16 %v2467, %v2458
        %v3422 = vpack.c.b16 %v2468, %v2459
        %v3423 = vpack.c.b16 %v2469, %v2460
        %v3424 = vpack.c.b16 %v2470, %v2461
        %v3425 = vpack.c.b16 %v2471, %v2462
        %v3426 = vpack.c.b16 %v2472, %v2463
        %v3427 = vpack.c.b16 %v2473, %v2464
        %v3428 = vpack.c.b16 %v2474, %v2465
        %v3429 = vpack.c.b16 %v2484, %v2475
        %v3430 = vpack.c.b16 %v2485, %v2476
        %v3431 = vpack.c.b16 %v2486, %v2477
        %v3432 = vpack.c.b16 %v2487, %v2478
        %v3433 = vpack.c.b16 %v2488, %v2479
        %v3434 = vpack.c.b16 %v2489, %v2480
        %v3435 = vpack.c.b16 %v2490, %v2481
        %v3436 = vpack.c.b16 %v2491, %v2482
        %v3437 = vpack.c.b16 %v2492, %v2483
        %v3438 = vpack.c.b16 %v2502, %v2493
        %v3439 = vpack.c.b16 %v2503, %v2494
        %v3440 = vpack.c.b16 %v2504, %v2495
        %v3441 = vpack.c.b16 %v2505, %v2496
        %v3442 = vpack.c.b16 %v2506, %v2497
        %v3443 = vpack.c.b16 %v2507, %v2498
        %v3444 = vpack.c.b16 %v2508, %v2499
        %v3445 = vpack.c.b16 %v2509, %v2500
        %v3446 = vpack.c.b16 %v2510, %v2501
        %v3447 = vpack.c.b16 %v2520, %v2511
        %v3448 = vpack.c.b16 %v2521, %v2512
        %v3449 = vpack.c.b16 %v2522, %v2513
        %v3450 = vpack.c.b16 %v2523, %v2514
        %v3451 = vpack.c.b16 %v2524, %v2515
        %v3452 = vpack.c.b16 %v2525, %v2516
        %v3453 = vpack.c.b16 %v2526, %v2517
        %v3454 = vpack.c.b16 %v2527, %v2518
        %v3455 = vpack.c.b16 %v2528, %v2519
        %v3456 = vpack.c.b16 %v2538, %v2529
        %v3457 = vpack.c.b16 %v2539, %v2530
        %v3458 = vpack.c.b16 %v2540, %v2531
        %v3459 = vpack.c.b16 %v2541, %v2532
        %v3460 = vpack.c.b16 %v2542, %v2533
        %v3461 = vpack.c.b16 %v2543, %v2534
        %v3462 = vpack.c.b16 %v2544, %v2535
        %v3463 = vpack.c.b16 %v2545, %v2536
        %v3464 = vpack.c.b16 %v2546, %v2537
        %v3465 = vpack.c.b16 %v2556, %v2547
        %v3466 = vpack.c.b16 %v2557, %v2548
        %v3467 = vpack.c.b16 %v2558, %v2549
        %v3468 = vpack.c.b16 %v2559, %v2550
        %v3469 = vpack.c.b16 %v2560, %v2551
        %v3470 = vpack.c.b16 %v2561, %v2552
        %v3471 = vpack.c.b16 %v2562, %v2553
        %v3472 = vpack.c.b16 %v2563, %v2554
        %v3473 = vpack.c.b16 %v2564, %v2555
        %v3474 = vpack.c.b16 %v2574, %v2565
        %v3475 = vpack.c.b16 %v2575, %v2566
        %v3476 = vpack.c.b16 %v2576, %v2567
        %v3477 = vpack.c.b16 %v2577, %v2568
        %v3478 = vpack.c.b16 %v2578, %v2569
        %v3479 = vpack.c.b16 %v2579, %v2570
        %v3480 = vpack.c.b16 %v2580, %v2571
        %v3481 = vpack.c.b16 %v2581, %v2572
        %v3482 = vpack.c.b16 %v2582, %v2573
        %v3483 = vpack.c.b16 %v2592, %v2583
        %v3484 = vpack.c.b16 %v2593, %v2584
        %v3485 = vpack.c.b16 %v2594, %v2585
        %v3486 = vpack.c.b16 %v2595, %v2586
        %v3487 = vpack.c.b16 %v2596, %v2587
        %v3488 = vpack.c.b16 %v2597, %v2588
        %v3489 = vpack.c.b16 %v2598, %v2589
        %v3490 = vpack.c.b16 %v2599, %v2590
        %v3491 = vpack.c.b16 %v2600, %v2591
        %v3492 = vpack.c.b16 %v2610, %v2601
        %v3493 = vpack.c.b16 %v2611, %v2602
        %v3494 = vpack.c.b16 %v2612, %v2603
        %v3495 = vpack.c.b16 %v2613, %v2604
        %v3496 = vpack.c.b16 %v2614, %v2605
        %v3497 = vpack.c.b16 %v2615, %v2606
        %v3498 = vpack.c.b16 %v2616, %v2607
        %v3499 = vpack.c.b16 %v2617, %v2608
        %v3500 = vpack.c.b16 %v2618, %v2609
        %v3501 = vpack.c.b16 %v2628, %v2619
        %v3502 = vpack.c.b16 %v2629, %v2620
        %v3503 = vpack.c.b16 %v2630, %v2621
        %v3504 = vpack.c.b16 %v2631, %v2622
        %v3505 = vpack.c.b16 %v2632, %v2623
        %v3506 = vpack.c.b16 %v2633, %v2624
        %v3507 = vpack.c.b16 %v2634, %v2625
        %v3508 = vpack.c.b16 %v2635, %v2626
        %v3509 = vpack.c.b16 %v2636, %v2627
        %v3510 = vpack.c.b16 %v2646, %v2637
        %v3511 = vpack.c.b16 %v2647, %v2638
        %v3512 = vpack.c.b16 %v2648, %v2639
        %v3513 = vpack.c.b16 %v2649, %v2640
        %v3514 = vpack.c.b16 %v2650, %v2641
        %v3515 = vpack.c.b16 %v2651, %v2642
        %v3516 = vpack.c.b16 %v2652, %v2643
        %v3517 = vpack.c.b16 %v2653, %v2644
        %v3518 = vpack.c.b16 %v2654, %v2645
        %v3519 = vpack.c.b16 %v2664, %v2655
        %v3520 = vpack.c.b16 %v2665, %v2656
        %v3521 = vpack.c.b16 %v2666, %v2657
        %v3522 = vpack.c.b16 %v2667, %v2658
        %v3523 = vpack.c.b16 %v2668, %v2659
        %v3524 = vpack.c.b16 %v2669, %v2660
        %v3525 = vpack.c.b16 %v2670, %v2661
        %v3526 = vpack.c.b16 %v2671, %v2662
        %v3527 = vpack.c.b16 %v2672, %v2663
        %v3528 = vpack.c.b16 %v2682, %v2673
        %v3529 = vpack.c.b16 %v2683, %v2674
        %v3530 = vpack.c.b16 %v2684, %v2675
        %v3531 = vpack.c.b16 %v2685, %v2676
        %v3532 = vpack.c.b16 %v2686, %v2677
        %v3533 = vpack.c.b16 %v2687, %v2678
        %v3534 = vpack.c.b16 %v2688, %v2679
        %v3535 = vpack.c.b16 %v2689, %v2680
        %v3536 = vpack.c.b16 %v2690, %v2681
        %v3537 = vpack.c.b16 %v2700, %v2691
        %v3538 = vpack.c.b16 %v2701, %v2692
        %v3539 = vpack.c.b16 %v2702, %v2693
        %v3540 = vpack.c.b16 %v2703, %v2694
        %v3541 = vpack.c.b16 %v2704, %v2695
        %v3542 = vpack.c.b16 %v2705, %v2696
        %v3543 = vpack.c.b16 %v2706, %v2697
        %v3544 = vpack.c.b16 %v2707, %v2698
        %v3545 = vpack.c.b16 %v2708, %v2699
        %v3546 = vpack.c.b16 %v2718, %v2709
        %v3547 = vpack.c.b16 %v2719, %v2710
        %v3548 = vpack.c.b16 %v2720, %v2711
        %v3549 = vpack.c.b16 %v2721, %v2712
        %v3550 = vpack.c.b16 %v2722, %v2713
        %v3551 = vpack.c.b16 %v2723, %v2714
        %v3552 = vpack.c.b16 %v2724, %v2715
        %v3553 = vpack.c.b16 %v2725, %v2716
        %v3554 = vpack.c.b16 %v2726, %v2717
        %v3555 = vpack.c.b16 %v2736, %v2727
        %v3556 = vpack.c.b16 %v2737, %v2728
        %v3557 = vpack.c.b16 %v2738, %v2729
        %v3558 = vpack.c.b16 %v2739, %v2730
        %v3559 = vpack.c.b16 %v2740, %v2731
        %v3560 = vpack.c.b16 %v2741, %v2732
        %v3561 = vpack.c.b16 %v2742, %v2733
        %v3562 = vpack.c.b16 %v2743, %v2734
        %v3563 = vpack.c.b16 %v2744, %v2735
        %v3564 = vpack.c.b16 %v2754, %v2745
        %v3565 = vpack.c.b16 %v2755, %v2746
        %v3566 = vpack.c.b16 %v2756, %v2747
        %v3567 = vpack.c.b16 %v2757, %v2748
        %v3568 = vpack.c.b16 %v2758, %v2749
        %v3569 = vpack.c.b16 %v2759, %v2750
        %v3570 = vpack.c.b16 %v2760, %v2751
        %v3571 = vpack.c.b16 %v2761, %v2752
        %v3572 = vpack.c.b16 %v2762, %v2753
        %v3573 = vpack.c.b16 %v2772, %v2763
        %v3574 = vpack.c.b16 %v2773, %v2764
        %v3575 = vpack.c.b16 %v2774, %v2765
        %v3576 = vpack.c.b16 %v2775, %v2766
        %v3577 = vpack.c.b16 %v2776, %v2767
        %v3578 = vpack.c.b16 %v2777, %v2768
        %v3579 = vpack.c.b16 %v2778, %v2769
        %v3580 = vpack.c.b16 %v2779, %v2770
        %v3581 = vpack.c.b16 %v2780, %v2771
        %v3582 = vpack.c.b16 %v2790, %v2781
        %v3583 = vpack.c.b16 %v2791, %v2782
        %v3584 = vpack.c.b16 %v2792, %v2783
        %v3585 = vpack.c.b16 %v2793, %v2784
        %v3586 = vpack.c.b16 %v2794, %v2785
        %v3587 = vpack.c.b16 %v2795, %v2786
        %v3588 = vpack.c.b16 %v2796, %v2787
        %v3589 = vpack.c.b16 %v2797, %v2788
        %v3590 = vpack.c.b16 %v2798, %v2789
        %v3591 = vpack.c.b16 %v2808, %v2799
        %v3592 = vpack.c.b16 %v2809, %v2800
        %v3593 = vpack.c.b16 %v2810, %v2801
        %v3594 = vpack.c.b16 %v2811, %v2802
        %v3595 = vpack.c.b16 %v2812, %v2803
        %v3596 = vpack.c.b16 %v2813, %v2804
        %v3597 = vpack.c.b16 %v2814, %v2805
        %v3598 = vpack.c.b16 %v2815, %v2806
        %v3599 = vpack.c.b16 %v2816, %v2807
        %v3600 = vpack.c.b16 %v2826, %v2817
        %v3601 = vpack.c.b16 %v2827, %v2818
        %v3602 = vpack.c.b16 %v2828, %v2819
        %v3603 = vpack.c.b16 %v2829, %v2820
        %v3604 = vpack.c.b16 %v2830, %v2821
        %v3605 = vpack.c.b16 %v2831, %v2822
        %v3606 = vpack.c.b16 %v2832, %v2823
        %v3607 = vpack.c.b16 %v2833, %v2824
        %v3608 = vpack.c.b16 %v2834, %v2825
        %v3609 = vpack.c.b16 %v2844, %v2835
        %v3610 = vpack.c.b16 %v2845, %v2836
        %v3611 = vpack.c.b16 %v2846, %v2837
        %v3612 = vpack.c.b16 %v2847, %v2838
        %v3613 = vpack.c.b16 %v2848, %v2839
        %v3614 = vpack.c.b16 %v2849, %v2840
        %v3615 = vpack.c.b16 %v2850, %v2841
        %v3616 = vpack.c.b16 %v2851, %v2842
        %v3617 = vpack.c.b16 %v2852, %v2843
        %v3618 = vpack.c.b16 %v2862, %v2853
        %v3619 = vpack.c.b16 %v2863, %v2854
        %v3620 = vpack.c.b16 %v2864, %v2855
        %v3621 = vpack.c.b16 %v2865, %v2856
        %v3622 = vpack.c.b16 %v2866, %v2857
        %v3623 = vpack.c.b16 %v2867, %v2858
        %v3624 = vpack.c.b16 %v2868, %v2859
        %v3625 = vpack.c.b16 %v2869, %v2860
        %v3626 = vpack.c.b16 %v2870, %v2861
        %v3627 = vpack.c.b16 %v2880, %v2871
        %v3628 = vpack.c.b16 %v2881, %v2872
        %v3629 = vpack.c.b16 %v2882, %v2873
        %v3630 = vpack.c.b16 %v2883, %v2874
        %v3631 = vpack.c.b16 %v2884, %v2875
        %v3632 = vpack.c.b16 %v2885, %v2876
        %v3633 = vpack.c.b16 %v2886, %v2877
        %v3634 = vpack.c.b16 %v2887, %v2878
        %v3635 = vpack.c.b16 %v2888, %v2879
        %v3636 = vpack.c.b16 %v2898, %v2889
        %v3637 = vpack.c.b16 %v2899, %v2890
        %v3638 = vpack.c.b16 %v2900, %v2891
        %v3639 = vpack.c.b16 %v2901, %v2892
        %v3640 = vpack.c.b16 %v2902, %v2893
        %v3641 = vpack.c.b16 %v2903, %v2894
        %v3642 = vpack.c.b16 %v2904, %v2895
        %v3643 = vpack.c.b16 %v2905, %v2896
        %v3644 = vpack.c.b16 %v2906, %v2897
        %v3645 = vpack.c.b16 %v2916, %v2907
        %v3646 = vpack.c.b16 %v2917, %v2908
        %v3647 = vpack.c.b16 %v2918, %v2909
        %v3648 = vpack.c.b16 %v2919, %v2910
        %v3649 = vpack.c.b16 %v2920, %v2911
        %v3650 = vpack.c.b16 %v2921, %v2912
        %v3651 = vpack.c.b16 %v2922, %v2913
        %v3652 = vpack.c.b16 %v2923, %v2914
        %v3653 = vpack.c.b16 %v2924, %v2915
        %v3654 = vpack.c.b16 %v2934, %v2925
        %v3655 = vpack.c.b16 %v2935, %v2926
        %v3656 = vpack.c.b16 %v2936, %v2927
        %v3657 = vpack.c.b16 %v2937, %v2928
        %v3658 = vpack.c.b16 %v2938, %v2929
        %v3659 = vpack.c.b16 %v2939, %v2930
        %v3660 = vpack.c.b16 %v2940, %v2931
        %v3661 = vpack.c.b16 %v2941, %v2932
        %v3662 = vpack.c.b16 %v2942, %v2933
        %v3663 = vpack.c.b16 %v2952, %v2943
        %v3664 = vpack.c.b16 %v2953, %v2944
        %v3665 = vpack.c.b16 %v2954, %v2945
        %v3666 = vpack.c.b16 %v2955, %v2946
        %v3667 = vpack.c.b16 %v2956, %v2947
        %v3668 = vpack.c.b16 %v2957, %v2948
        %v3669 = vpack.c.b16 %v2958, %v2949
        %v3670 = vpack.c.b16 %v2959, %v2950
        %v3671 = vpack.c.b16 %v2960, %v2951
        %v3672 = vpack.c.b16 %v2970, %v2961
        %v3673 = vpack.c.b16 %v2971, %v2962
        %v3674 = vpack.c.b16 %v2972, %v2963
        %v3675 = vpack.c.b16 %v2973, %v2964
        %v3676 = vpack.c.b16 %v2974, %v2965
        %v3677 = vpack.c.b16 %v2975, %v2966
        %v3678 = vpack.c.b16 %v2976, %v2967
        %v3679 = vpack.c.b16 %v2977, %v2968
        %v3680 = vpack.c.b16 %v2978, %v2969
        %v3681 = vpack.c.b16 %v2988, %v2979
        %v3682 = vpack.c.b16 %v2989, %v2980
        %v3683 = vpack.c.b16 %v2990, %v2981
        %v3684 = vpack.c.b16 %v2991, %v2982
        %v3685 = vpack.c.b16 %v2992, %v2983
        %v3686 = vpack.c.b16 %v2993, %v2984
        %v3687 = vpack.c.b16 %v2994, %v2985
        %v3688 = vpack.c.b16 %v2995, %v2986
        %v3689 = vpack.c.b16 %v2996, %v2987
        %v3690 = vpack.c.b16 %v3006, %v2997
        %v3691 = vpack.c.b16 %v3007, %v2998
        %v3692 = vpack.c.b16 %v3008, %v2999
        %v3693 = vpack.c.b16 %v3009, %v3000
        %v3694 = vpack.c.b16 %v3010, %v3001
        %v3695 = vpack.c.b16 %v3011, %v3002
        %v3696 = vpack.c.b16 %v3012, %v3003
        %v3697 = vpack.c.b16 %v3013, %v3004
        %v3698 = vpack.c.b16 %v3014, %v3005
        %v3699 = vpack.c.b16 %v3024, %v3015
        %v3700 = vpack.c.b16 %v3025, %v3016
        %v3701 = vpack.c.b16 %v3026, %v3017
        %v3702 = vpack.c.b16 %v3027, %v3018
        %v3703 = vpack.c.b16 %v3028, %v3019
        %v3704 = vpack.c.b16 %v3029, %v3020
        %v3705 = vpack.c.b16 %v3030, %v3021
        %v3706 = vpack.c.b16 %v3031, %v3022
        %v3707 = vpack.c.b16 %v3032, %v3023
        %v3708 = vpack.c.b16 %v3042, %v3033
        %v3709 = vpack.c.b16 %v3043, %v3034
        %v3710 = vpack.c.b16 %v3044, %v3035
        %v3711 = vpack.c.b16 %v3045, %v3036
        %v3712 = vpack.c.b16 %v3046, %v3037
        %v3713 = vpack.c.b16 %v3047, %v3038
        %v3714 = vpack.c.b16 %v3048, %v3039
        %v3715 = vpack.c.b16 %v3049, %v3040
        %v3716 = vpack.c.b16 %v3050, %v3041
        %v3717 = vpack.c.b16 %v3060, %v3051
        %v3718 = vpack.c.b16 %v3061, %v3052
        %v3719 = vpack.c.b16 %v3062, %v3053
        %v3720 = vpack.c.b16 %v3063, %v3054
        %v3721 = vpack.c.b16 %v3064, %v3055
        %v3722 = vpack.c.b16 %v3065, %v3056
        %v3723 = vpack.c.b16 %v3066, %v3057
        %v3724 = vpack.c.b16 %v3067, %v3058
        %v3725 = vpack.c.b16 %v3068, %v3059
        %v3726 = vpack.c.b16 %v3078, %v3069
        %v3727 = vpack.c.b16 %v3079, %v3070
        %v3728 = vpack.c.b16 %v3080, %v3071
        %v3729 = vpack.c.b16 %v3081, %v3072
        %v3730 = vpack.c.b16 %v3082, %v3073
        %v3731 = vpack.c.b16 %v3083, %v3074
        %v3732 = vpack.c.b16 %v3084, %v3075
        %v3733 = vpack.c.b16 %v3085, %v3076
        %v3734 = vpack.c.b16 %v3086, %v3077
        %v3735 = vpack.c.b16 %v3096, %v3087
        %v3736 = vpack.c.b16 %v3097, %v3088
        %v3737 = vpack.c.b16 %v3098, %v3089
        %v3738 = vpack.c.b16 %v3099, %v3090
        %v3739 = vpack.c.b16 %v3100, %v3091
        %v3740 = vpack.c.b16 %v3101, %v3092
        %v3741 = vpack.c.b16 %v3102, %v3093
        %v3742 = vpack.c.b16 %v3103, %v3094
        %v3743 = vpack.c.b16 %v3104, %v3095
        %v3744 = vpack.c.b16 %v3114, %v3105
        %v3745 = vpack.c.b16 %v3115, %v3106
        %v3746 = vpack.c.b16 %v3116, %v3107
        %v3747 = vpack.c.b16 %v3117, %v3108
        %v3748 = vpack.c.b16 %v3118, %v3109
        %v3749 = vpack.c.b16 %v3119, %v3110
        %v3750 = vpack.c.b16 %v3120, %v3111
        %v3751 = vpack.c.b16 %v3121, %v3112
        %v3752 = vpack.c.b16 %v3122, %v3113
        %v3753 = vpack.c.b16 %v3132, %v3123
        %v3754 = vpack.c.b16 %v3133, %v3124
        %v3755 = vpack.c.b16 %v3134, %v3125
        %v3756 = vpack.c.b16 %v3135, %v3126
        %v3757 = vpack.c.b16 %v3136, %v3127
        %v3758 = vpack.c.b16 %v3137, %v3128
        %v3759 = vpack.c.b16 %v3138, %v3129
        %v3760 = vpack.c.b16 %v3139, %v3130
        %v3761 = vpack.c.b16 %v3140, %v3131
        %v3762 = vpack.c.b16 %v3150, %v3141
        %v3763 = vpack.c.b16 %v3151, %v3142
        %v3764 = vpack.c.b16 %v3152, %v3143
        %v3765 = vpack.c.b16 %v3153, %v3144
        %v3766 = vpack.c.b16 %v3154, %v3145
        %v3767 = vpack.c.b16 %v3155, %v3146
        %v3768 = vpack.c.b16 %v3156, %v3147
        %v3769 = vpack.c.b16 %v3157, %v3148
        %v3770 = vpack.c.b16 %v3158, %v3149
        %v3771 = vpack.c.b16 %v3168, %v3159
        %v3772 = vpack.c.b16 %v3169, %v3160
        %v3773 = vpack.c.b16 %v3170, %v3161
        %v3774 = vpack.c.b16 %v3171, %v3162
        %v3775 = vpack.c.b16 %v3172, %v3163
        %v3776 = vpack.c.b16 %v3173, %v3164
        %v3777 = vpack.c.b16 %v3174, %v3165
        %v3778 = vpack.c.b16 %v3175, %v3166
        %v3779 = vpack.c.b16 %v3176, %v3167
        %v3780 = vpack.c.b16 %v3186, %v3177
        %v3781 = vpack.c.b16 %v3187, %v3178
        %v3782 = vpack.c.b16 %v3188, %v3179
        %v3783 = vpack.c.b16 %v3189, %v3180
        %v3784 = vpack.c.b16 %v3190, %v3181
        %v3785 = vpack.c.b16 %v3191, %v3182
        %v3786 = vpack.c.b16 %v3192, %v3183
        %v3787 = vpack.c.b16 %v3193, %v3184
        %v3788 = vpack.c.b16 %v3194, %v3185
        %v3789 = vpack.c.b16 %v3204, %v3195
        %v3790 = vpack.c.b16 %v3205, %v3196
        %v3791 = vpack.c.b16 %v3206, %v3197
        %v3792 = vpack.c.b16 %v3207, %v3198
        %v3793 = vpack.c.b16 %v3208, %v3199
        %v3794 = vpack.c.b16 %v3209, %v3200
        %v3795 = vpack.c.b16 %v3210, %v3201
        %v3796 = vpack.c.b16 %v3211, %v3202
        %v3797 = vpack.c.b16 %v3212, %v3203
        %v3798 = vpack.c.b16 %v3222, %v3213
        %v3799 = vpack.c.b16 %v3223, %v3214
        %v3800 = vpack.c.b16 %v3224, %v3215
        %v3801 = vpack.c.b16 %v3225, %v3216
        %v3802 = vpack.c.b16 %v3226, %v3217
        %v3803 = vpack.c.b16 %v3227, %v3218
        %v3804 = vpack.c.b16 %v3228, %v3219
        %v3805 = vpack.c.b16 %v3229, %v3220
        %v3806 = vpack.c.b16 %v3230, %v3221
        %4383 = vmatprep.subr.bf16.mxu0 %v3232
        %4384 = vmatpush1.bf16.msra.mxu0 %v3231
        %4385 = vmatprep.subr.bf16.mxu0 %v3241
        %4386 = vmatpush1.bf16.msra.mxu0 %v3240
        %4387 = vmatprep.subr.bf16.mxu0 %v3250
        %4388 = vmatpush1.bf16.msra.mxu0 %v3249
        %4389 = vmatprep.subr.bf16.mxu0 %v3259
        %4390 = vmatpush1.bf16.msra.mxu0 %v3258
        %4391 = vmatprep.subr.bf16.mxu0 %v3268
        %4392 = vmatpush1.bf16.msra.mxu0 %v3267
        %4393 = vmatprep.subr.bf16.mxu0 %v3277
        %4394 = vmatpush1.bf16.msra.mxu0 %v3276
        %4395 = vmatprep.subr.bf16.mxu0 %v3286
        %4396 = vmatpush1.bf16.msra.mxu0 %v3285
        %4397 = vmatprep.subr.bf16.mxu0 %v3295
        %4398 = vmatpush1.bf16.msra.mxu0 %v3294
        %4399 = vmatprep.subr.bf16.mxu0 %v3304
        %4400 = vmatpush1.bf16.msra.mxu0 %v3303
        %4401 = vmatprep.subr.bf16.mxu0 %v3313
        %4402 = vmatpush1.bf16.msra.mxu0 %v3312
        %4403 = vmatprep.subr.bf16.mxu0 %v3322
        %4404 = vmatpush1.bf16.msra.mxu0 %v3321
        %4405 = vmatprep.subr.bf16.mxu0 %v3331
        %4406 = vmatpush1.bf16.msra.mxu0 %v3330
        %4407 = vmatprep.subr.bf16.mxu0 %v3340
        %4408 = vmatpush1.bf16.msra.mxu0 %v3339
        %4409 = vmatprep.subr.bf16.mxu0 %v3349
        %4410 = vmatpush1.bf16.msra.mxu0 %v3348
        %4411 = vmatprep.subr.bf16.mxu0 %v3358
        %4412 = vmatpush1.bf16.msra.mxu0 %v3357
        %4413 = vmatprep.subr.bf16.mxu0 %v3367
        %4414 = vmatpush1.bf16.msra.mxu0 %v3366
        %4415 = vmatprep.mubr.bf16.mxu0 %v1312
        %4416 = vmatmul.mubr.bf16.gmra.mrb[0].mxu0 %v1311
        %v4417 = vpop.f32.mrb[0].mxu0
        %v4418 = vadd.f32 0.0, %v4417
        %v4419 = vpop.f32.mrb[0].mxu0
        %v4420 = vadd.f32 0.0, %v4419
        %v4421 = vpop.f32.mrb[0].mxu0
        %v4422 = vadd.f32 0.0, %v4421
        %v4423 = vpop.f32.mrb[0].mxu0
        %v4424 = vadd.f32 0.0, %v4423
        %4425 = vmatprep.mubr.bf16.mxu0 %v1320
        %4426 = vmatmul.mubr.bf16.gmra.mrb[0].mxu0 %v1319
        %v4427 = vpop.f32.mrb[0].mxu0
        %v4428 = vadd.f32 0.0, %v4427
        %v4429 = vpop.f32.mrb[0].mxu0
        %v4430 = vadd.f32 0.0, %v4429
        %v4431 = vpop.f32.mrb[0].mxu0
        %v4432 = vadd.f32 0.0, %v4431
        %v4433 = vpop.f32.mrb[0].mxu0
        %v4434 = vadd.f32 0.0, %v4433
        %4435 = vmatprep.mubr.bf16.mxu0 %v1328
        %4436 = vmatmul.mubr.bf16.gmra.mrb[0].mxu0 %v1327
        %v4437 = vpop.f32.mrb[0].mxu0
        %v4438 = vadd.f32 0.0, %v4437
        %v4439 = vpop.f32.mrb[0].mxu0
        %v4440 = vadd.f32 0.0, %v4439
        %v4441 = vpop.f32.mrb[0].mxu0
        %v4442 = vadd.f32 0.0, %v4441
        %v4443 = vpop.f32.mrb[0].mxu0
        %v4444 = vadd.f32 0.0, %v4443
        %4445 = vmatprep.mubr.bf16.mxu0 %v1336
        %4446 = vmatmul.mubr.bf16.gmra.mrb[0].mxu0 %v1335
        %v4447 = vpop.f32.mrb[0].mxu0
        %v4448 = vadd.f32 0.0, %v4447
        %v4449 = vpop.f32.mrb[0].mxu0
        %v4450 = vadd.f32 0.0, %v4449
        %v4451 = vpop.f32.mrb[0].mxu0
        %v4452 = vadd.f32 0.0, %v4451
        %v4453 = vpop.f32.mrb[0].mxu0
        %v4454 = vadd.f32 0.0, %v4453
        %4455 = vmatprep.mubr.bf16.mxu0 %v1344
        %4456 = vmatmul.mubr.bf16.gmra.mrb[0].mxu0 %v1343
        %v4457 = vpop.f32.mrb[0].mxu0
        %v4458 = vadd.f32 0.0, %v4457
        %v4459 = vpop.f32.mrb[0].mxu0
        %v4460 = vadd.f32 0.0, %v4459
        %v4461 = vpop.f32.mrb[0].mxu0
        %v4462 = vadd.f32 0.0, %v4461
        %v4463 = vpop.f32.mrb[0].mxu0
        %v4464 = vadd.f32 0.0, %v4463
        %4465 = vmatprep.mubr.bf16.mxu0 %v1352
        %4466 = vmatmul.mubr.bf16.gmra.mrb[0].mxu0 %v1351
        %v4467 = vpop.f32.mrb[0].mxu0
        %v4468 = vadd.f32 0.0, %v4467
        %v4469 = vpop.f32.mrb[0].mxu0
        %v4470 = vadd.f32 0.0, %v4469
        %v4471 = vpop.f32.mrb[0].mxu0
        %v4472 = vadd.f32 0.0, %v4471
        %v4473 = vpop.f32.mrb[0].mxu0
        %v4474 = vadd.f32 0.0, %v4473
        %4475 = vmatprep.mubr.bf16.mxu0 %v1360
        %4476 = vmatmul.mubr.bf16.gmra.mrb[0].mxu0 %v1359
        %v4477 = vpop.f32.mrb[0].mxu0
        %v4478 = vadd.f32 0.0, %v4477
        %v4479 = vpop.f32.mrb[0].mxu0
        %v4480 = vadd.f32 0.0, %v4479
        %v4481 = vpop.f32.mrb[0].mxu0
        %v4482 = vadd.f32 0.0, %v4481
        %v4483 = vpop.f32.mrb[0].mxu0
        %v4484 = vadd.f32 0.0, %v4483
        %4485 = vmatprep.mubr.bf16.mxu0 %v1368
        %4486 = vmatmul.mubr.bf16.gmra.mrb[0].mxu0 %v1367
        %v4487 = vpop.f32.mrb[0].mxu0
        %v4488 = vadd.f32 0.0, %v4487
        %v4489 = vpop.f32.mrb[0].mxu0
        %v4490 = vadd.f32 0.0, %v4489
        %v4491 = vpop.f32.mrb[0].mxu0
        %v4492 = vadd.f32 0.0, %v4491
        %v4493 = vpop.f32.mrb[0].mxu0
        %v4494 = vadd.f32 0.0, %v4493
        %4495 = vdwg.mxu0
        %4496 = vmatprep.subr.bf16.mxu0 %v3376
        %4497 = vmatpush1.bf16.msra.mxu0 %v3375
        %4498 = vmatprep.subr.bf16.mxu0 %v3385
        %4499 = vmatpush1.bf16.msra.mxu0 %v3384
        %4500 = vmatprep.subr.bf16.mxu0 %v3394
        %4501 = vmatpush1.bf16.msra.mxu0 %v3393
        %4502 = vmatprep.subr.bf16.mxu0 %v3403
        %4503 = vmatpush1.bf16.msra.mxu0 %v3402
        %4504 = vmatprep.subr.bf16.mxu0 %v3412
        %4505 = vmatpush1.bf16.msra.mxu0 %v3411
        %4506 = vmatprep.subr.bf16.mxu0 %v3421
        %4507 = vmatpush1.bf16.msra.mxu0 %v3420
        %4508 = vmatprep.subr.bf16.mxu0 %v3430
        %4509 = vmatpush1.bf16.msra.mxu0 %v3429
        %4510 = vmatprep.subr.bf16.mxu0 %v3439
        %4511 = vmatpush1.bf16.msra.mxu0 %v3438
        %4512 = vmatprep.subr.bf16.mxu0 %v3448
        %4513 = vmatpush1.bf16.msra.mxu0 %v3447
        %4514 = vmatprep.subr.bf16.mxu0 %v3457
        %4515 = vmatpush1.bf16.msra.mxu0 %v3456
        %4516 = vmatprep.subr.bf16.mxu0 %v3466
        %4517 = vmatpush1.bf16.msra.mxu0 %v3465
        %4518 = vmatprep.subr.bf16.mxu0 %v3475
        %4519 = vmatpush1.bf16.msra.mxu0 %v3474
        %4520 = vmatprep.subr.bf16.mxu0 %v3484
        %4521 = vmatpush1.bf16.msra.mxu0 %v3483
        %4522 = vmatprep.subr.bf16.mxu0 %v3493
        %4523 = vmatpush1.bf16.msra.mxu0 %v3492
        %4524 = vmatprep.subr.bf16.mxu0 %v3502
        %4525 = vmatpush1.bf16.msra.mxu0 %v3501
        %4526 = vmatprep.subr.bf16.mxu0 %v3511
        %4527 = vmatpush1.bf16.msra.mxu0 %v3510
        %4528 = vmatprep.mubr.bf16.mxu0 %v1314
        %4529 = vmatmul.mubr.bf16.gmra.mrb[0].mxu0 %v1313
        %v4530 = vpop.f32.mrb[0].mxu0
        %v4531 = vadd.f32 %v4418, %v4530
        %v4532 = vpop.f32.mrb[0].mxu0
        %v4533 = vadd.f32 %v4420, %v4532
        %v4534 = vpop.f32.mrb[0].mxu0
        %v4535 = vadd.f32 %v4422, %v4534
        %v4536 = vpop.f32.mrb[0].mxu0
        %v4537 = vadd.f32 %v4424, %v4536
        %4538 = vmatprep.mubr.bf16.mxu0 %v1322
        %4539 = vmatmul.mubr.bf16.gmra.mrb[0].mxu0 %v1321
        %v4540 = vpop.f32.mrb[0].mxu0
        %v4541 = vadd.f32 %v4428, %v4540
        %v4542 = vpop.f32.mrb[0].mxu0
        %v4543 = vadd.f32 %v4430, %v4542
        %v4544 = vpop.f32.mrb[0].mxu0
        %v4545 = vadd.f32 %v4432, %v4544
        %v4546 = vpop.f32.mrb[0].mxu0
        %v4547 = vadd.f32 %v4434, %v4546
        %4548 = vmatprep.mubr.bf16.mxu0 %v1330
        %4549 = vmatmul.mubr.bf16.gmra.mrb[0].mxu0 %v1329
        %v4550 = vpop.f32.mrb[0].mxu0
        %v4551 = vadd.f32 %v4438, %v4550
        %v4552 = vpop.f32.mrb[0].mxu0
        %v4553 = vadd.f32 %v4440, %v4552
        %v4554 = vpop.f32.mrb[0].mxu0
        %v4555 = vadd.f32 %v4442, %v4554
        %v4556 = vpop.f32.mrb[0].mxu0
        %v4557 = vadd.f32 %v4444, %v4556
        %4558 = vmatprep.mubr.bf16.mxu0 %v1338
        %4559 = vmatmul.mubr.bf16.gmra.mrb[0].mxu0 %v1337
        %v4560 = vpop.f32.mrb[0].mxu0
        %v4561 = vadd.f32 %v4448, %v4560
        %v4562 = vpop.f32.mrb[0].mxu0
        %v4563 = vadd.f32 %v4450, %v4562
        %v4564 = vpop.f32.mrb[0].mxu0
        %v4565 = vadd.f32 %v4452, %v4564
        %v4566 = vpop.f32.mrb[0].mxu0
        %v4567 = vadd.f32 %v4454, %v4566
        %4568 = vmatprep.mubr.bf16.mxu0 %v1346
        %4569 = vmatmul.mubr.bf16.gmra.mrb[0].mxu0 %v1345
        %v4570 = vpop.f32.mrb[0].mxu0
        %v4571 = vadd.f32 %v4458, %v4570
        %v4572 = vpop.f32.mrb[0].mxu0
        %v4573 = vadd.f32 %v4460, %v4572
        %v4574 = vpop.f32.mrb[0].mxu0
        %v4575 = vadd.f32 %v4462, %v4574
        %v4576 = vpop.f32.mrb[0].mxu0
        %v4577 = vadd.f32 %v4464, %v4576
        %4578 = vmatprep.mubr.bf16.mxu0 %v1354
        %4579 = vmatmul.mubr.bf16.gmra.mrb[0].mxu0 %v1353
        %v4580 = vpop.f32.mrb[0].mxu0
        %v4581 = vadd.f32 %v4468, %v4580
        %v4582 = vpop.f32.mrb[0].mxu0
        %v4583 = vadd.f32 %v4470, %v4582
        %v4584 = vpop.f32.mrb[0].mxu0
        %v4585 = vadd.f32 %v4472, %v4584
        %v4586 = vpop.f32.mrb[0].mxu0
        %v4587 = vadd.f32 %v4474, %v4586
        %4588 = vmatprep.mubr.bf16.mxu0 %v1362
        %4589 = vmatmul.mubr.bf16.gmra.mrb[0].mxu0 %v1361
        %v4590 = vpop.f32.mrb[0].mxu0
        %v4591 = vadd.f32 %v4478, %v4590
        %v4592 = vpop.f32.mrb[0].mxu0
        %v4593 = vadd.f32 %v4480, %v4592
        %v4594 = vpop.f32.mrb[0].mxu0
        %v4595 = vadd.f32 %v4482, %v4594
        %v4596 = vpop.f32.mrb[0].mxu0
        %v4597 = vadd.f32 %v4484, %v4596
        %4598 = vmatprep.mubr.bf16.mxu0 %v1370
        %4599 = vmatmul.mubr.bf16.gmra.mrb[0].mxu0 %v1369
        %v4600 = vpop.f32.mrb[0].mxu0
        %v4601 = vadd.f32 %v4488, %v4600
        %v4602 = vpop.f32.mrb[0].mxu0
        %v4603 = vadd.f32 %v4490, %v4602
        %v4604 = vpop.f32.mrb[0].mxu0
        %v4605 = vadd.f32 %v4492, %v4604
        %v4606 = vpop.f32.mrb[0].mxu0
        %v4607 = vadd.f32 %v4494, %v4606
        %4608 = vdwg.mxu0
        %4609 = vmatprep.subr.bf16.mxu0 %v3520
        %4610 = vmatpush1.bf16.msra.mxu0 %v3519
        %4611 = vmatprep.subr.bf16.mxu0 %v3529
        %4612 = vmatpush1.bf16.msra.mxu0 %v3528
        %4613 = vmatprep.subr.bf16.mxu0 %v3538
        %4614 = vmatpush1.bf16.msra.mxu0 %v3537
        %4615 = vmatprep.subr.bf16.mxu0 %v3547
        %4616 = vmatpush1.bf16.msra.mxu0 %v3546
        %4617 = vmatprep.subr.bf16.mxu0 %v3556
        %4618 = vmatpush1.bf16.msra.mxu0 %v3555
        %4619 = vmatprep.subr.bf16.mxu0 %v3565
        %4620 = vmatpush1.bf16.msra.mxu0 %v3564
        %4621 = vmatprep.subr.bf16.mxu0 %v3574
        %4622 = vmatpush1.bf16.msra.mxu0 %v3573
        %4623 = vmatprep.subr.bf16.mxu0 %v3583
        %4624 = vmatpush1.bf16.msra.mxu0 %v3582
        %4625 = vmatprep.subr.bf16.mxu0 %v3592
        %4626 = vmatpush1.bf16.msra.mxu0 %v3591
        %4627 = vmatprep.subr.bf16.mxu0 %v3601
        %4628 = vmatpush1.bf16.msra.mxu0 %v3600
        %4629 = vmatprep.subr.bf16.mxu0 %v3610
        %4630 = vmatpush1.bf16.msra.mxu0 %v3609
        %4631 = vmatprep.subr.bf16.mxu0 %v3619
        %4632 = vmatpush1.bf16.msra.mxu0 %v3618
        %4633 = vmatprep.subr.bf16.mxu0 %v3628
        %4634 = vmatpush1.bf16.msra.mxu0 %v3627
        %4635 = vmatprep.subr.bf16.mxu0 %v3637
        %4636 = vmatpush1.bf16.msra.mxu0 %v3636
        %4637 = vmatprep.subr.bf16.mxu0 %v3646
        %4638 = vmatpush1.bf16.msra.mxu0 %v3645
        %4639 = vmatprep.subr.bf16.mxu0 %v3655
        %4640 = vmatpush1.bf16.msra.mxu0 %v3654
        %4641 = vmatprep.mubr.bf16.mxu0 %v1316
        %4642 = vmatmul.mubr.bf16.gmra.mrb[0].mxu0 %v1315
        %v4643 = vpop.f32.mrb[0].mxu0
        %v4644 = vadd.f32 %v4531, %v4643
        %v4645 = vpop.f32.mrb[0].mxu0
        %v4646 = vadd.f32 %v4533, %v4645
        %v4647 = vpop.f32.mrb[0].mxu0
        %v4648 = vadd.f32 %v4535, %v4647
        %v4649 = vpop.f32.mrb[0].mxu0
        %v4650 = vadd.f32 %v4537, %v4649
        %4651 = vmatprep.mubr.bf16.mxu0 %v1324
        %4652 = vmatmul.mubr.bf16.gmra.mrb[0].mxu0 %v1323
        %v4653 = vpop.f32.mrb[0].mxu0
        %v4654 = vadd.f32 %v4541, %v4653
        %v4655 = vpop.f32.mrb[0].mxu0
        %v4656 = vadd.f32 %v4543, %v4655
        %v4657 = vpop.f32.mrb[0].mxu0
        %v4658 = vadd.f32 %v4545, %v4657
        %v4659 = vpop.f32.mrb[0].mxu0
        %v4660 = vadd.f32 %v4547, %v4659
        %4661 = vmatprep.mubr.bf16.mxu0 %v1332
        %4662 = vmatmul.mubr.bf16.gmra.mrb[0].mxu0 %v1331
        %v4663 = vpop.f32.mrb[0].mxu0
        %v4664 = vadd.f32 %v4551, %v4663
        %v4665 = vpop.f32.mrb[0].mxu0
        %v4666 = vadd.f32 %v4553, %v4665
        %v4667 = vpop.f32.mrb[0].mxu0
        %v4668 = vadd.f32 %v4555, %v4667
        %v4669 = vpop.f32.mrb[0].mxu0
        %v4670 = vadd.f32 %v4557, %v4669
        %4671 = vmatprep.mubr.bf16.mxu0 %v1340
        %4672 = vmatmul.mubr.bf16.gmra.mrb[0].mxu0 %v1339
        %v4673 = vpop.f32.mrb[0].mxu0
        %v4674 = vadd.f32 %v4561, %v4673
        %v4675 = vpop.f32.mrb[0].mxu0
        %v4676 = vadd.f32 %v4563, %v4675
        %v4677 = vpop.f32.mrb[0].mxu0
        %v4678 = vadd.f32 %v4565, %v4677
        %v4679 = vpop.f32.mrb[0].mxu0
        %v4680 = vadd.f32 %v4567, %v4679
        %4681 = vmatprep.mubr.bf16.mxu0 %v1348
        %4682 = vmatmul.mubr.bf16.gmra.mrb[0].mxu0 %v1347
        %v4683 = vpop.f32.mrb[0].mxu0
        %v4684 = vadd.f32 %v4571, %v4683
        %v4685 = vpop.f32.mrb[0].mxu0
        %v4686 = vadd.f32 %v4573, %v4685
        %v4687 = vpop.f32.mrb[0].mxu0
        %v4688 = vadd.f32 %v4575, %v4687
        %v4689 = vpop.f32.mrb[0].mxu0
        %v4690 = vadd.f32 %v4577, %v4689
        %4691 = vmatprep.mubr.bf16.mxu0 %v1356
        %4692 = vmatmul.mubr.bf16.gmra.mrb[0].mxu0 %v1355
        %v4693 = vpop.f32.mrb[0].mxu0
        %v4694 = vadd.f32 %v4581, %v4693
        %v4695 = vpop.f32.mrb[0].mxu0
        %v4696 = vadd.f32 %v4583, %v4695
        %v4697 = vpop.f32.mrb[0].mxu0
        %v4698 = vadd.f32 %v4585, %v4697
        %v4699 = vpop.f32.mrb[0].mxu0
        %v4700 = vadd.f32 %v4587, %v4699
        %4701 = vmatprep.mubr.bf16.mxu0 %v1364
        %4702 = vmatmul.mubr.bf16.gmra.mrb[0].mxu0 %v1363
        %v4703 = vpop.f32.mrb[0].mxu0
        %v4704 = vadd.f32 %v4591, %v4703
        %v4705 = vpop.f32.mrb[0].mxu0
        %v4706 = vadd.f32 %v4593, %v4705
        %v4707 = vpop.f32.mrb[0].mxu0
        %v4708 = vadd.f32 %v4595, %v4707
        %v4709 = vpop.f32.mrb[0].mxu0
        %v4710 = vadd.f32 %v4597, %v4709
        %4711 = vmatprep.mubr.bf16.mxu0 %v1372
        %4712 = vmatmul.mubr.bf16.gmra.mrb[0].mxu0 %v1371
        %v4713 = vpop.f32.mrb[0].mxu0
        %v4714 = vadd.f32 %v4601, %v4713
        %v4715 = vpop.f32.mrb[0].mxu0
        %v4716 = vadd.f32 %v4603, %v4715
        %v4717 = vpop.f32.mrb[0].mxu0
        %v4718 = vadd.f32 %v4605, %v4717
        %v4719 = vpop.f32.mrb[0].mxu0
        %v4720 = vadd.f32 %v4607, %v4719
        %4721 = vdwg.mxu0
        %4722 = vmatprep.subr.bf16.mxu0 %v3664
        %4723 = vmatpush1.bf16.msra.mxu0 %v3663
        %4724 = vmatprep.subr.bf16.mxu0 %v3673
        %4725 = vmatpush1.bf16.msra.mxu0 %v3672
        %4726 = vmatprep.subr.bf16.mxu0 %v3682
        %4727 = vmatpush1.bf16.msra.mxu0 %v3681
        %4728 = vmatprep.subr.bf16.mxu0 %v3691
        %4729 = vmatpush1.bf16.msra.mxu0 %v3690
        %4730 = vmatprep.subr.bf16.mxu0 %v3700
        %4731 = vmatpush1.bf16.msra.mxu0 %v3699
        %4732 = vmatprep.subr.bf16.mxu0 %v3709
        %4733 = vmatpush1.bf16.msra.mxu0 %v3708
        %4734 = vmatprep.subr.bf16.mxu0 %v3718
        %4735 = vmatpush1.bf16.msra.mxu0 %v3717
        %4736 = vmatprep.subr.bf16.mxu0 %v3727
        %4737 = vmatpush1.bf16.msra.mxu0 %v3726
        %4738 = vmatprep.subr.bf16.mxu0 %v3736
        %4739 = vmatpush1.bf16.msra.mxu0 %v3735
        %4740 = vmatprep.subr.bf16.mxu0 %v3745
        %4741 = vmatpush1.bf16.msra.mxu0 %v3744
        %4742 = vmatprep.subr.bf16.mxu0 %v3754
        %4743 = vmatpush1.bf16.msra.mxu0 %v3753
        %4744 = vmatprep.subr.bf16.mxu0 %v3763
        %4745 = vmatpush1.bf16.msra.mxu0 %v3762
        %4746 = vmatprep.subr.bf16.mxu0 %v3772
        %4747 = vmatpush1.bf16.msra.mxu0 %v3771
        %4748 = vmatprep.subr.bf16.mxu0 %v3781
        %4749 = vmatpush1.bf16.msra.mxu0 %v3780
        %4750 = vmatprep.subr.bf16.mxu0 %v3790
        %4751 = vmatpush1.bf16.msra.mxu0 %v3789
        %4752 = vmatprep.subr.bf16.mxu0 %v3799
        %4753 = vmatpush1.bf16.msra.mxu0 %v3798
        %4754 = vmatprep.mubr.bf16.mxu0 %v1318
        %4755 = vmatmul.mubr.bf16.gmra.mrb[0].mxu0 %v1317
        %v4756 = vpop.f32.mrb[0].mxu0
        %v4757 = vadd.f32 %v4644, %v4756
        %v4758 = vpop.f32.mrb[0].mxu0
        %v4759 = vadd.f32 %v4646, %v4758
        %v4760 = vpop.f32.mrb[0].mxu0
        %v4761 = vadd.f32 %v4648, %v4760
        %v4762 = vpop.f32.mrb[0].mxu0
        %v4763 = vadd.f32 %v4650, %v4762
        %4764 = vmatprep.mubr.bf16.mxu0 %v1326
        %4765 = vmatmul.mubr.bf16.gmra.mrb[0].mxu0 %v1325
        %v4766 = vpop.f32.mrb[0].mxu0
        %v4767 = vadd.f32 %v4654, %v4766
        %v4768 = vpop.f32.mrb[0].mxu0
        %v4769 = vadd.f32 %v4656, %v4768
        %v4770 = vpop.f32.mrb[0].mxu0
        %v4771 = vadd.f32 %v4658, %v4770
        %v4772 = vpop.f32.mrb[0].mxu0
        %v4773 = vadd.f32 %v4660, %v4772
        %4774 = vmatprep.mubr.bf16.mxu0 %v1334
        %4775 = vmatmul.mubr.bf16.gmra.mrb[0].mxu0 %v1333
        %v4776 = vpop.f32.mrb[0].mxu0
        %v4777 = vadd.f32 %v4664, %v4776
        %v4778 = vpop.f32.mrb[0].mxu0
        %v4779 = vadd.f32 %v4666, %v4778
        %v4780 = vpop.f32.mrb[0].mxu0
        %v4781 = vadd.f32 %v4668, %v4780
        %v4782 = vpop.f32.mrb[0].mxu0
        %v4783 = vadd.f32 %v4670, %v4782
        %4784 = vmatprep.mubr.bf16.mxu0 %v1342
        %4785 = vmatmul.mubr.bf16.gmra.mrb[0].mxu0 %v1341
        %v4786 = vpop.f32.mrb[0].mxu0
        %v4787 = vadd.f32 %v4674, %v4786
        %v4788 = vpop.f32.mrb[0].mxu0
        %v4789 = vadd.f32 %v4676, %v4788
        %v4790 = vpop.f32.mrb[0].mxu0
        %v4791 = vadd.f32 %v4678, %v4790
        %v4792 = vpop.f32.mrb[0].mxu0
        %v4793 = vadd.f32 %v4680, %v4792
        %4794 = vmatprep.mubr.bf16.mxu0 %v1350
        %4795 = vmatmul.mubr.bf16.gmra.mrb[0].mxu0 %v1349
        %v4796 = vpop.f32.mrb[0].mxu0
        %v4797 = vadd.f32 %v4684, %v4796
        %v4798 = vpop.f32.mrb[0].mxu0
        %v4799 = vadd.f32 %v4686, %v4798
        %v4800 = vpop.f32.mrb[0].mxu0
        %v4801 = vadd.f32 %v4688, %v4800
        %v4802 = vpop.f32.mrb[0].mxu0
        %v4803 = vadd.f32 %v4690, %v4802
        %4804 = vmatprep.mubr.bf16.mxu0 %v1358
        %4805 = vmatmul.mubr.bf16.gmra.mrb[0].mxu0 %v1357
        %v4806 = vpop.f32.mrb[0].mxu0
        %v4807 = vadd.f32 %v4694, %v4806
        %v4808 = vpop.f32.mrb[0].mxu0
        %v4809 = vadd.f32 %v4696, %v4808
        %v4810 = vpop.f32.mrb[0].mxu0
        %v4811 = vadd.f32 %v4698, %v4810
        %v4812 = vpop.f32.mrb[0].mxu0
        %v4813 = vadd.f32 %v4700, %v4812
        %4814 = vmatprep.mubr.bf16.mxu0 %v1366
        %4815 = vmatmul.mubr.bf16.gmra.mrb[0].mxu0 %v1365
        %v4816 = vpop.f32.mrb[0].mxu0
        %v4817 = vadd.f32 %v4704, %v4816
        %v4818 = vpop.f32.mrb[0].mxu0
        %v4819 = vadd.f32 %v4706, %v4818
        %v4820 = vpop.f32.mrb[0].mxu0
        %v4821 = vadd.f32 %v4708, %v4820
        %v4822 = vpop.f32.mrb[0].mxu0
        %v4823 = vadd.f32 %v4710, %v4822
        %4824 = vmatprep.mubr.bf16.mxu0 %v1374
        %4825 = vmatmul.mubr.bf16.gmra.mrb[0].mxu0 %v1373
        %v4826 = vpop.f32.mrb[0].mxu0
        %v4827 = vadd.f32 %v4714, %v4826
        %v4828 = vpop.f32.mrb[0].mxu0
        %v4829 = vadd.f32 %v4716, %v4828
        %v4830 = vpop.f32.mrb[0].mxu0
        %v4831 = vadd.f32 %v4718, %v4830
        %v4832 = vpop.f32.mrb[0].mxu0
        %v4833 = vadd.f32 %v4720, %v4832
        %4834 = vdwg.mxu0
        %4835 = vmatprep.subr.bf16.mxu0 %v3234
        %4836 = vmatpush1.bf16.msra.mxu0 %v3233
        %4837 = vmatprep.subr.bf16.mxu0 %v3243
        %4838 = vmatpush1.bf16.msra.mxu0 %v3242
        %4839 = vmatprep.subr.bf16.mxu0 %v3252
        %4840 = vmatpush1.bf16.msra.mxu0 %v3251
        %4841 = vmatprep.subr.bf16.mxu0 %v3261
        %4842 = vmatpush1.bf16.msra.mxu0 %v3260
        %4843 = vmatprep.subr.bf16.mxu0 %v3270
        %4844 = vmatpush1.bf16.msra.mxu0 %v3269
        %4845 = vmatprep.subr.bf16.mxu0 %v3279
        %4846 = vmatpush1.bf16.msra.mxu0 %v3278
        %4847 = vmatprep.subr.bf16.mxu0 %v3288
        %4848 = vmatpush1.bf16.msra.mxu0 %v3287
        %4849 = vmatprep.subr.bf16.mxu0 %v3297
        %4850 = vmatpush1.bf16.msra.mxu0 %v3296
        %4851 = vmatprep.subr.bf16.mxu0 %v3306
        %4852 = vmatpush1.bf16.msra.mxu0 %v3305
        %4853 = vmatprep.subr.bf16.mxu0 %v3315
        %4854 = vmatpush1.bf16.msra.mxu0 %v3314
        %4855 = vmatprep.subr.bf16.mxu0 %v3324
        %4856 = vmatpush1.bf16.msra.mxu0 %v3323
        %4857 = vmatprep.subr.bf16.mxu0 %v3333
        %4858 = vmatpush1.bf16.msra.mxu0 %v3332
        %4859 = vmatprep.subr.bf16.mxu0 %v3342
        %4860 = vmatpush1.bf16.msra.mxu0 %v3341
        %4861 = vmatprep.subr.bf16.mxu0 %v3351
        %4862 = vmatpush1.bf16.msra.mxu0 %v3350
        %4863 = vmatprep.subr.bf16.mxu0 %v3360
        %4864 = vmatpush1.bf16.msra.mxu0 %v3359
        %4865 = vmatprep.subr.bf16.mxu0 %v3369
        %4866 = vmatpush1.bf16.msra.mxu0 %v3368
        %4867 = vmatprep.mubr.bf16.mxu0 %v1312
        %4868 = vmatmul.mubr.bf16.gmra.mrb[0].mxu0 %v1311
        %v4869 = vpop.f32.mrb[0].mxu0
        %v4870 = vadd.f32 0.0, %v4869
        %v4871 = vpop.f32.mrb[0].mxu0
        %v4872 = vadd.f32 0.0, %v4871
        %v4873 = vpop.f32.mrb[0].mxu0
        %v4874 = vadd.f32 0.0, %v4873
        %v4875 = vpop.f32.mrb[0].mxu0
        %v4876 = vadd.f32 0.0, %v4875
        %4877 = vmatprep.mubr.bf16.mxu0 %v1320
        %4878 = vmatmul.mubr.bf16.gmra.mrb[0].mxu0 %v1319
        %v4879 = vpop.f32.mrb[0].mxu0
        %v4880 = vadd.f32 0.0, %v4879
        %v4881 = vpop.f32.mrb[0].mxu0
        %v4882 = vadd.f32 0.0, %v4881
        %v4883 = vpop.f32.mrb[0].mxu0
        %v4884 = vadd.f32 0.0, %v4883
        %v4885 = vpop.f32.mrb[0].mxu0
        %v4886 = vadd.f32 0.0, %v4885
        %4887 = vmatprep.mubr.bf16.mxu0 %v1328
        %4888 = vmatmul.mubr.bf16.gmra.mrb[0].mxu0 %v1327
        %v4889 = vpop.f32.mrb[0].mxu0
        %v4890 = vadd.f32 0.0, %v4889
        %v4891 = vpop.f32.mrb[0].mxu0
        %v4892 = vadd.f32 0.0, %v4891
        %v4893 = vpop.f32.mrb[0].mxu0
        %v4894 = vadd.f32 0.0, %v4893
        %v4895 = vpop.f32.mrb[0].mxu0
        %v4896 = vadd.f32 0.0, %v4895
        %4897 = vmatprep.mubr.bf16.mxu0 %v1336
        %4898 = vmatmul.mubr.bf16.gmra.mrb[0].mxu0 %v1335
        %v4899 = vpop.f32.mrb[0].mxu0
        %v4900 = vadd.f32 0.0, %v4899
        %v4901 = vpop.f32.mrb[0].mxu0
        %v4902 = vadd.f32 0.0, %v4901
        %v4903 = vpop.f32.mrb[0].mxu0
        %v4904 = vadd.f32 0.0, %v4903
        %v4905 = vpop.f32.mrb[0].mxu0
        %v4906 = vadd.f32 0.0, %v4905
        %4907 = vmatprep.mubr.bf16.mxu0 %v1344
        %4908 = vmatmul.mubr.bf16.gmra.mrb[0].mxu0 %v1343
        %v4909 = vpop.f32.mrb[0].mxu0
        %v4910 = vadd.f32 0.0, %v4909
        %v4911 = vpop.f32.mrb[0].mxu0
        %v4912 = vadd.f32 0.0, %v4911
        %v4913 = vpop.f32.mrb[0].mxu0
        %v4914 = vadd.f32 0.0, %v4913
        %v4915 = vpop.f32.mrb[0].mxu0
        %v4916 = vadd.f32 0.0, %v4915
        %4917 = vmatprep.mubr.bf16.mxu0 %v1352
        %4918 = vmatmul.mubr.bf16.gmra.mrb[0].mxu0 %v1351
        %v4919 = vpop.f32.mrb[0].mxu0
        %v4920 = vadd.f32 0.0, %v4919
        %v4921 = vpop.f32.mrb[0].mxu0
        %v4922 = vadd.f32 0.0, %v4921
        %v4923 = vpop.f32.mrb[0].mxu0
        %v4924 = vadd.f32 0.0, %v4923
        %v4925 = vpop.f32.mrb[0].mxu0
        %v4926 = vadd.f32 0.0, %v4925
        %4927 = vmatprep.mubr.bf16.mxu0 %v1360
        %4928 = vmatmul.mubr.bf16.gmra.mrb[0].mxu0 %v1359
        %v4929 = vpop.f32.mrb[0].mxu0
        %v4930 = vadd.f32 0.0, %v4929
        %v4931 = vpop.f32.mrb[0].mxu0
        %v4932 = vadd.f32 0.0, %v4931
        %v4933 = vpop.f32.mrb[0].mxu0
        %v4934 = vadd.f32 0.0, %v4933
        %v4935 = vpop.f32.mrb[0].mxu0
        %v4936 = vadd.f32 0.0, %v4935
        %4937 = vmatprep.mubr.bf16.mxu0 %v1368
        %4938 = vmatmul.mubr.bf16.gmra.mrb[0].mxu0 %v1367
        %v4939 = vpop.f32.mrb[0].mxu0
        %v4940 = vadd.f32 0.0, %v4939
        %v4941 = vpop.f32.mrb[0].mxu0
        %v4942 = vadd.f32 0.0, %v4941
        %v4943 = vpop.f32.mrb[0].mxu0
        %v4944 = vadd.f32 0.0, %v4943
        %v4945 = vpop.f32.mrb[0].mxu0
        %v4946 = vadd.f32 0.0, %v4945
        %4947 = vdwg.mxu0
        %4948 = vmatprep.subr.bf16.mxu0 %v3378
        %4949 = vmatpush1.bf16.msra.mxu0 %v3377
        %4950 = vmatprep.subr.bf16.mxu0 %v3387
        %4951 = vmatpush1.bf16.msra.mxu0 %v3386
        %4952 = vmatprep.subr.bf16.mxu0 %v3396
        %4953 = vmatpush1.bf16.msra.mxu0 %v3395
        %4954 = vmatprep.subr.bf16.mxu0 %v3405
        %4955 = vmatpush1.bf16.msra.mxu0 %v3404
        %4956 = vmatprep.subr.bf16.mxu0 %v3414
        %4957 = vmatpush1.bf16.msra.mxu0 %v3413
        %4958 = vmatprep.subr.bf16.mxu0 %v3423
        %4959 = vmatpush1.bf16.msra.mxu0 %v3422
        %4960 = vmatprep.subr.bf16.mxu0 %v3432
        %4961 = vmatpush1.bf16.msra.mxu0 %v3431
        %4962 = vmatprep.subr.bf16.mxu0 %v3441
        %4963 = vmatpush1.bf16.msra.mxu0 %v3440
        %4964 = vmatprep.subr.bf16.mxu0 %v3450
        %4965 = vmatpush1.bf16.msra.mxu0 %v3449
        %4966 = vmatprep.subr.bf16.mxu0 %v3459
        %4967 = vmatpush1.bf16.msra.mxu0 %v3458
        %4968 = vmatprep.subr.bf16.mxu0 %v3468
        %4969 = vmatpush1.bf16.msra.mxu0 %v3467
        %4970 = vmatprep.subr.bf16.mxu0 %v3477
        %4971 = vmatpush1.bf16.msra.mxu0 %v3476
        %4972 = vmatprep.subr.bf16.mxu0 %v3486
        %4973 = vmatpush1.bf16.msra.mxu0 %v3485
        %4974 = vmatprep.subr.bf16.mxu0 %v3495
        %4975 = vmatpush1.bf16.msra.mxu0 %v3494
        %4976 = vmatprep.subr.bf16.mxu0 %v3504
        %4977 = vmatpush1.bf16.msra.mxu0 %v3503
        %4978 = vmatprep.subr.bf16.mxu0 %v3513
        %4979 = vmatpush1.bf16.msra.mxu0 %v3512
        %4980 = vmatprep.mubr.bf16.mxu0 %v1314
        %4981 = vmatmul.mubr.bf16.gmra.mrb[0].mxu0 %v1313
        %v4982 = vpop.f32.mrb[0].mxu0
        %v4983 = vadd.f32 %v4870, %v4982
        %v4984 = vpop.f32.mrb[0].mxu0
        %v4985 = vadd.f32 %v4872, %v4984
        %v4986 = vpop.f32.mrb[0].mxu0
        %v4987 = vadd.f32 %v4874, %v4986
        %v4988 = vpop.f32.mrb[0].mxu0
        %v4989 = vadd.f32 %v4876, %v4988
        %4990 = vmatprep.mubr.bf16.mxu0 %v1322
        %4991 = vmatmul.mubr.bf16.gmra.mrb[0].mxu0 %v1321
        %v4992 = vpop.f32.mrb[0].mxu0
        %v4993 = vadd.f32 %v4880, %v4992
        %v4994 = vpop.f32.mrb[0].mxu0
        %v4995 = vadd.f32 %v4882, %v4994
        %v4996 = vpop.f32.mrb[0].mxu0
        %v4997 = vadd.f32 %v4884, %v4996
        %v4998 = vpop.f32.mrb[0].mxu0
        %v4999 = vadd.f32 %v4886, %v4998
        %5000 = vmatprep.mubr.bf16.mxu0 %v1330
        %5001 = vmatmul.mubr.bf16.gmra.mrb[0].mxu0 %v1329
        %v5002 = vpop.f32.mrb[0].mxu0
        %v5003 = vadd.f32 %v4890, %v5002
        %v5004 = vpop.f32.mrb[0].mxu0
        %v5005 = vadd.f32 %v4892, %v5004
        %v5006 = vpop.f32.mrb[0].mxu0
        %v5007 = vadd.f32 %v4894, %v5006
        %v5008 = vpop.f32.mrb[0].mxu0
        %v5009 = vadd.f32 %v4896, %v5008
        %5010 = vmatprep.mubr.bf16.mxu0 %v1338
        %5011 = vmatmul.mubr.bf16.gmra.mrb[0].mxu0 %v1337
        %v5012 = vpop.f32.mrb[0].mxu0
        %v5013 = vadd.f32 %v4900, %v5012
        %v5014 = vpop.f32.mrb[0].mxu0
        %v5015 = vadd.f32 %v4902, %v5014
        %v5016 = vpop.f32.mrb[0].mxu0
        %v5017 = vadd.f32 %v4904, %v5016
        %v5018 = vpop.f32.mrb[0].mxu0
        %v5019 = vadd.f32 %v4906, %v5018
        %5020 = vmatprep.mubr.bf16.mxu0 %v1346
        %5021 = vmatmul.mubr.bf16.gmra.mrb[0].mxu0 %v1345
        %v5022 = vpop.f32.mrb[0].mxu0
        %v5023 = vadd.f32 %v4910, %v5022
        %v5024 = vpop.f32.mrb[0].mxu0
        %v5025 = vadd.f32 %v4912, %v5024
        %v5026 = vpop.f32.mrb[0].mxu0
        %v5027 = vadd.f32 %v4914, %v5026
        %v5028 = vpop.f32.mrb[0].mxu0
        %v5029 = vadd.f32 %v4916, %v5028
        %5030 = vmatprep.mubr.bf16.mxu0 %v1354
        %5031 = vmatmul.mubr.bf16.gmra.mrb[0].mxu0 %v1353
        %v5032 = vpop.f32.mrb[0].mxu0
        %v5033 = vadd.f32 %v4920, %v5032
        %v5034 = vpop.f32.mrb[0].mxu0
        %v5035 = vadd.f32 %v4922, %v5034
        %v5036 = vpop.f32.mrb[0].mxu0
        %v5037 = vadd.f32 %v4924, %v5036
        %v5038 = vpop.f32.mrb[0].mxu0
        %v5039 = vadd.f32 %v4926, %v5038
        %5040 = vmatprep.mubr.bf16.mxu0 %v1362
        %5041 = vmatmul.mubr.bf16.gmra.mrb[0].mxu0 %v1361
        %v5042 = vpop.f32.mrb[0].mxu0
        %v5043 = vadd.f32 %v4930, %v5042
        %v5044 = vpop.f32.mrb[0].mxu0
        %v5045 = vadd.f32 %v4932, %v5044
        %v5046 = vpop.f32.mrb[0].mxu0
        %v5047 = vadd.f32 %v4934, %v5046
        %v5048 = vpop.f32.mrb[0].mxu0
        %v5049 = vadd.f32 %v4936, %v5048
        %5050 = vmatprep.mubr.bf16.mxu0 %v1370
        %5051 = vmatmul.mubr.bf16.gmra.mrb[0].mxu0 %v1369
        %v5052 = vpop.f32.mrb[0].mxu0
        %v5053 = vadd.f32 %v4940, %v5052
        %v5054 = vpop.f32.mrb[0].mxu0
        %v5055 = vadd.f32 %v4942, %v5054
        %v5056 = vpop.f32.mrb[0].mxu0
        %v5057 = vadd.f32 %v4944, %v5056
        %v5058 = vpop.f32.mrb[0].mxu0
        %v5059 = vadd.f32 %v4946, %v5058
        %5060 = vdwg.mxu0
        %5061 = vmatprep.subr.bf16.mxu0 %v3522
        %5062 = vmatpush1.bf16.msra.mxu0 %v3521
        %5063 = vmatprep.subr.bf16.mxu0 %v3531
        %5064 = vmatpush1.bf16.msra.mxu0 %v3530
        %5065 = vmatprep.subr.bf16.mxu0 %v3540
        %5066 = vmatpush1.bf16.msra.mxu0 %v3539
        %5067 = vmatprep.subr.bf16.mxu0 %v3549
        %5068 = vmatpush1.bf16.msra.mxu0 %v3548
        %5069 = vmatprep.subr.bf16.mxu0 %v3558
        %5070 = vmatpush1.bf16.msra.mxu0 %v3557
        %5071 = vmatprep.subr.bf16.mxu0 %v3567
        %5072 = vmatpush1.bf16.msra.mxu0 %v3566
        %5073 = vmatprep.subr.bf16.mxu0 %v3576
        %5074 = vmatpush1.bf16.msra.mxu0 %v3575
        %5075 = vmatprep.subr.bf16.mxu0 %v3585
        %5076 = vmatpush1.bf16.msra.mxu0 %v3584
        %5077 = vmatprep.subr.bf16.mxu0 %v3594
        %5078 = vmatpush1.bf16.msra.mxu0 %v3593
        %5079 = vmatprep.subr.bf16.mxu0 %v3603
        %5080 = vmatpush1.bf16.msra.mxu0 %v3602
        %5081 = vmatprep.subr.bf16.mxu0 %v3612
        %5082 = vmatpush1.bf16.msra.mxu0 %v3611
        %5083 = vmatprep.subr.bf16.mxu0 %v3621
        %5084 = vmatpush1.bf16.msra.mxu0 %v3620
        %5085 = vmatprep.subr.bf16.mxu0 %v3630
        %5086 = vmatpush1.bf16.msra.mxu0 %v3629
        %5087 = vmatprep.subr.bf16.mxu0 %v3639
        %5088 = vmatpush1.bf16.msra.mxu0 %v3638
        %5089 = vmatprep.subr.bf16.mxu0 %v3648
        %5090 = vmatpush1.bf16.msra.mxu0 %v3647
        %5091 = vmatprep.subr.bf16.mxu0 %v3657
        %5092 = vmatpush1.bf16.msra.mxu0 %v3656
        %5093 = vmatprep.mubr.bf16.mxu0 %v1316
        %5094 = vmatmul.mubr.bf16.gmra.mrb[0].mxu0 %v1315
        %v5095 = vpop.f32.mrb[0].mxu0
        %v5096 = vadd.f32 %v4983, %v5095
        %v5097 = vpop.f32.mrb[0].mxu0
        %v5098 = vadd.f32 %v4985, %v5097
        %v5099 = vpop.f32.mrb[0].mxu0
        %v5100 = vadd.f32 %v4987, %v5099
        %v5101 = vpop.f32.mrb[0].mxu0
        %v5102 = vadd.f32 %v4989, %v5101
        %5103 = vmatprep.mubr.bf16.mxu0 %v1324
        %5104 = vmatmul.mubr.bf16.gmra.mrb[0].mxu0 %v1323
        %v5105 = vpop.f32.mrb[0].mxu0
        %v5106 = vadd.f32 %v4993, %v5105
        %v5107 = vpop.f32.mrb[0].mxu0
        %v5108 = vadd.f32 %v4995, %v5107
        %v5109 = vpop.f32.mrb[0].mxu0
        %v5110 = vadd.f32 %v4997, %v5109
        %v5111 = vpop.f32.mrb[0].mxu0
        %v5112 = vadd.f32 %v4999, %v5111
        %5113 = vmatprep.mubr.bf16.mxu0 %v1332
        %5114 = vmatmul.mubr.bf16.gmra.mrb[0].mxu0 %v1331
        %v5115 = vpop.f32.mrb[0].mxu0
        %v5116 = vadd.f32 %v5003, %v5115
        %v5117 = vpop.f32.mrb[0].mxu0
        %v5118 = vadd.f32 %v5005, %v5117
        %v5119 = vpop.f32.mrb[0].mxu0
        %v5120 = vadd.f32 %v5007, %v5119
        %v5121 = vpop.f32.mrb[0].mxu0
        %v5122 = vadd.f32 %v5009, %v5121
        %5123 = vmatprep.mubr.bf16.mxu0 %v1340
        %5124 = vmatmul.mubr.bf16.gmra.mrb[0].mxu0 %v1339
        %v5125 = vpop.f32.mrb[0].mxu0
        %v5126 = vadd.f32 %v5013, %v5125
        %v5127 = vpop.f32.mrb[0].mxu0
        %v5128 = vadd.f32 %v5015, %v5127
        %v5129 = vpop.f32.mrb[0].mxu0
        %v5130 = vadd.f32 %v5017, %v5129
        %v5131 = vpop.f32.mrb[0].mxu0
        %v5132 = vadd.f32 %v5019, %v5131
        %5133 = vmatprep.mubr.bf16.mxu0 %v1348
        %5134 = vmatmul.mubr.bf16.gmra.mrb[0].mxu0 %v1347
        %v5135 = vpop.f32.mrb[0].mxu0
        %v5136 = vadd.f32 %v5023, %v5135
        %v5137 = vpop.f32.mrb[0].mxu0
        %v5138 = vadd.f32 %v5025, %v5137
        %v5139 = vpop.f32.mrb[0].mxu0
        %v5140 = vadd.f32 %v5027, %v5139
        %v5141 = vpop.f32.mrb[0].mxu0
        %v5142 = vadd.f32 %v5029, %v5141
        %5143 = vmatprep.mubr.bf16.mxu0 %v1356
        %5144 = vmatmul.mubr.bf16.gmra.mrb[0].mxu0 %v1355
        %v5145 = vpop.f32.mrb[0].mxu0
        %v5146 = vadd.f32 %v5033, %v5145
        %v5147 = vpop.f32.mrb[0].mxu0
        %v5148 = vadd.f32 %v5035, %v5147
        %v5149 = vpop.f32.mrb[0].mxu0
        %v5150 = vadd.f32 %v5037, %v5149
        %v5151 = vpop.f32.mrb[0].mxu0
        %v5152 = vadd.f32 %v5039, %v5151
        %5153 = vmatprep.mubr.bf16.mxu0 %v1364
        %5154 = vmatmul.mubr.bf16.gmra.mrb[0].mxu0 %v1363
        %v5155 = vpop.f32.mrb[0].mxu0
        %v5156 = vadd.f32 %v5043, %v5155
        %v5157 = vpop.f32.mrb[0].mxu0
        %v5158 = vadd.f32 %v5045, %v5157
        %v5159 = vpop.f32.mrb[0].mxu0
        %v5160 = vadd.f32 %v5047, %v5159
        %v5161 = vpop.f32.mrb[0].mxu0
        %v5162 = vadd.f32 %v5049, %v5161
        %5163 = vmatprep.mubr.bf16.mxu0 %v1372
        %5164 = vmatmul.mubr.bf16.gmra.mrb[0].mxu0 %v1371
        %v5165 = vpop.f32.mrb[0].mxu0
        %v5166 = vadd.f32 %v5053, %v5165
        %v5167 = vpop.f32.mrb[0].mxu0
        %v5168 = vadd.f32 %v5055, %v5167
        %v5169 = vpop.f32.mrb[0].mxu0
        %v5170 = vadd.f32 %v5057, %v5169
        %v5171 = vpop.f32.mrb[0].mxu0
        %v5172 = vadd.f32 %v5059, %v5171
        %5173 = vdwg.mxu0
        %5174 = vmatprep.subr.bf16.mxu0 %v3666
        %5175 = vmatpush1.bf16.msra.mxu0 %v3665
        %5176 = vmatprep.subr.bf16.mxu0 %v3675
        %5177 = vmatpush1.bf16.msra.mxu0 %v3674
        %5178 = vmatprep.subr.bf16.mxu0 %v3684
        %5179 = vmatpush1.bf16.msra.mxu0 %v3683
        %5180 = vmatprep.subr.bf16.mxu0 %v3693
        %5181 = vmatpush1.bf16.msra.mxu0 %v3692
        %5182 = vmatprep.subr.bf16.mxu0 %v3702
        %5183 = vmatpush1.bf16.msra.mxu0 %v3701
        %5184 = vmatprep.subr.bf16.mxu0 %v3711
        %5185 = vmatpush1.bf16.msra.mxu0 %v3710
        %5186 = vmatprep.subr.bf16.mxu0 %v3720
        %5187 = vmatpush1.bf16.msra.mxu0 %v3719
        %5188 = vmatprep.subr.bf16.mxu0 %v3729
        %5189 = vmatpush1.bf16.msra.mxu0 %v3728
        %5190 = vmatprep.subr.bf16.mxu0 %v3738
        %5191 = vmatpush1.bf16.msra.mxu0 %v3737
        %5192 = vmatprep.subr.bf16.mxu0 %v3747
        %5193 = vmatpush1.bf16.msra.mxu0 %v3746
        %5194 = vmatprep.subr.bf16.mxu0 %v3756
        %5195 = vmatpush1.bf16.msra.mxu0 %v3755
        %5196 = vmatprep.subr.bf16.mxu0 %v3765
        %5197 = vmatpush1.bf16.msra.mxu0 %v3764
        %5198 = vmatprep.subr.bf16.mxu0 %v3774
        %5199 = vmatpush1.bf16.msra.mxu0 %v3773
        %5200 = vmatprep.subr.bf16.mxu0 %v3783
        %5201 = vmatpush1.bf16.msra.mxu0 %v3782
        %5202 = vmatprep.subr.bf16.mxu0 %v3792
        %5203 = vmatpush1.bf16.msra.mxu0 %v3791
        %5204 = vmatprep.subr.bf16.mxu0 %v3801
        %5205 = vmatpush1.bf16.msra.mxu0 %v3800
        %5206 = vmatprep.mubr.bf16.mxu0 %v1318
        %5207 = vmatmul.mubr.bf16.gmra.mrb[0].mxu0 %v1317
        %v5208 = vpop.f32.mrb[0].mxu0
        %v5209 = vadd.f32 %v5096, %v5208
        %v5210 = vpop.f32.mrb[0].mxu0
        %v5211 = vadd.f32 %v5098, %v5210
        %v5212 = vpop.f32.mrb[0].mxu0
        %v5213 = vadd.f32 %v5100, %v5212
        %v5214 = vpop.f32.mrb[0].mxu0
        %v5215 = vadd.f32 %v5102, %v5214
        %5216 = vmatprep.mubr.bf16.mxu0 %v1326
        %5217 = vmatmul.mubr.bf16.gmra.mrb[0].mxu0 %v1325
        %v5218 = vpop.f32.mrb[0].mxu0
        %v5219 = vadd.f32 %v5106, %v5218
        %v5220 = vpop.f32.mrb[0].mxu0
        %v5221 = vadd.f32 %v5108, %v5220
        %v5222 = vpop.f32.mrb[0].mxu0
        %v5223 = vadd.f32 %v5110, %v5222
        %v5224 = vpop.f32.mrb[0].mxu0
        %v5225 = vadd.f32 %v5112, %v5224
        %5226 = vmatprep.mubr.bf16.mxu0 %v1334
        %5227 = vmatmul.mubr.bf16.gmra.mrb[0].mxu0 %v1333
        %v5228 = vpop.f32.mrb[0].mxu0
        %v5229 = vadd.f32 %v5116, %v5228
        %v5230 = vpop.f32.mrb[0].mxu0
        %v5231 = vadd.f32 %v5118, %v5230
        %v5232 = vpop.f32.mrb[0].mxu0
        %v5233 = vadd.f32 %v5120, %v5232
        %v5234 = vpop.f32.mrb[0].mxu0
        %v5235 = vadd.f32 %v5122, %v5234
        %5236 = vmatprep.mubr.bf16.mxu0 %v1342
        %5237 = vmatmul.mubr.bf16.gmra.mrb[0].mxu0 %v1341
        %v5238 = vpop.f32.mrb[0].mxu0
        %v5239 = vadd.f32 %v5126, %v5238
        %v5240 = vpop.f32.mrb[0].mxu0
        %v5241 = vadd.f32 %v5128, %v5240
        %v5242 = vpop.f32.mrb[0].mxu0
        %v5243 = vadd.f32 %v5130, %v5242
        %v5244 = vpop.f32.mrb[0].mxu0
        %v5245 = vadd.f32 %v5132, %v5244
        %5246 = vmatprep.mubr.bf16.mxu0 %v1350
        %5247 = vmatmul.mubr.bf16.gmra.mrb[0].mxu0 %v1349
        %v5248 = vpop.f32.mrb[0].mxu0
        %v5249 = vadd.f32 %v5136, %v5248
        %v5250 = vpop.f32.mrb[0].mxu0
        %v5251 = vadd.f32 %v5138, %v5250
        %v5252 = vpop.f32.mrb[0].mxu0
        %v5253 = vadd.f32 %v5140, %v5252
        %v5254 = vpop.f32.mrb[0].mxu0
        %v5255 = vadd.f32 %v5142, %v5254
        %5256 = vmatprep.mubr.bf16.mxu0 %v1358
        %5257 = vmatmul.mubr.bf16.gmra.mrb[0].mxu0 %v1357
        %v5258 = vpop.f32.mrb[0].mxu0
        %v5259 = vadd.f32 %v5146, %v5258
        %v5260 = vpop.f32.mrb[0].mxu0
        %v5261 = vadd.f32 %v5148, %v5260
        %v5262 = vpop.f32.mrb[0].mxu0
        %v5263 = vadd.f32 %v5150, %v5262
        %v5264 = vpop.f32.mrb[0].mxu0
        %v5265 = vadd.f32 %v5152, %v5264
        %5266 = vmatprep.mubr.bf16.mxu0 %v1366
        %5267 = vmatmul.mubr.bf16.gmra.mrb[0].mxu0 %v1365
        %v5268 = vpop.f32.mrb[0].mxu0
        %v5269 = vadd.f32 %v5156, %v5268
        %v5270 = vpop.f32.mrb[0].mxu0
        %v5271 = vadd.f32 %v5158, %v5270
        %v5272 = vpop.f32.mrb[0].mxu0
        %v5273 = vadd.f32 %v5160, %v5272
        %v5274 = vpop.f32.mrb[0].mxu0
        %v5275 = vadd.f32 %v5162, %v5274
        %5276 = vmatprep.mubr.bf16.mxu0 %v1374
        %5277 = vmatmul.mubr.bf16.gmra.mrb[0].mxu0 %v1373
        %v5278 = vpop.f32.mrb[0].mxu0
        %v5279 = vadd.f32 %v5166, %v5278
        %v5280 = vpop.f32.mrb[0].mxu0
        %v5281 = vadd.f32 %v5168, %v5280
        %v5282 = vpop.f32.mrb[0].mxu0
        %v5283 = vadd.f32 %v5170, %v5282
        %v5284 = vpop.f32.mrb[0].mxu0
        %v5285 = vadd.f32 %v5172, %v5284
        %5286 = vdwg.mxu0
        %5287 = vmatprep.subr.bf16.mxu0 %v3236
        %5288 = vmatpush1.bf16.msra.mxu0 %v3235
        %5289 = vmatprep.subr.bf16.mxu0 %v3245
        %5290 = vmatpush1.bf16.msra.mxu0 %v3244
        %5291 = vmatprep.subr.bf16.mxu0 %v3254
        %5292 = vmatpush1.bf16.msra.mxu0 %v3253
        %5293 = vmatprep.subr.bf16.mxu0 %v3263
        %5294 = vmatpush1.bf16.msra.mxu0 %v3262
        %5295 = vmatprep.subr.bf16.mxu0 %v3272
        %5296 = vmatpush1.bf16.msra.mxu0 %v3271
        %5297 = vmatprep.subr.bf16.mxu0 %v3281
        %5298 = vmatpush1.bf16.msra.mxu0 %v3280
        %5299 = vmatprep.subr.bf16.mxu0 %v3290
        %5300 = vmatpush1.bf16.msra.mxu0 %v3289
        %5301 = vmatprep.subr.bf16.mxu0 %v3299
        %5302 = vmatpush1.bf16.msra.mxu0 %v3298
        %5303 = vmatprep.subr.bf16.mxu0 %v3308
        %5304 = vmatpush1.bf16.msra.mxu0 %v3307
        %5305 = vmatprep.subr.bf16.mxu0 %v3317
        %5306 = vmatpush1.bf16.msra.mxu0 %v3316
        %5307 = vmatprep.subr.bf16.mxu0 %v3326
        %5308 = vmatpush1.bf16.msra.mxu0 %v3325
        %5309 = vmatprep.subr.bf16.mxu0 %v3335
        %5310 = vmatpush1.bf16.msra.mxu0 %v3334
        %5311 = vmatprep.subr.bf16.mxu0 %v3344
        %5312 = vmatpush1.bf16.msra.mxu0 %v3343
        %5313 = vmatprep.subr.bf16.mxu0 %v3353
        %5314 = vmatpush1.bf16.msra.mxu0 %v3352
        %5315 = vmatprep.subr.bf16.mxu0 %v3362
        %5316 = vmatpush1.bf16.msra.mxu0 %v3361
        %5317 = vmatprep.subr.bf16.mxu0 %v3371
        %5318 = vmatpush1.bf16.msra.mxu0 %v3370
        %5319 = vmatprep.mubr.bf16.mxu0 %v1312
        %5320 = vmatmul.mubr.bf16.gmra.mrb[0].mxu0 %v1311
        %v5321 = vpop.f32.mrb[0].mxu0
        %v5322 = vadd.f32 0.0, %v5321
        %v5323 = vpop.f32.mrb[0].mxu0
        %v5324 = vadd.f32 0.0, %v5323
        %v5325 = vpop.f32.mrb[0].mxu0
        %v5326 = vadd.f32 0.0, %v5325
        %v5327 = vpop.f32.mrb[0].mxu0
        %v5328 = vadd.f32 0.0, %v5327
        %5329 = vmatprep.mubr.bf16.mxu0 %v1320
        %5330 = vmatmul.mubr.bf16.gmra.mrb[0].mxu0 %v1319
        %v5331 = vpop.f32.mrb[0].mxu0
        %v5332 = vadd.f32 0.0, %v5331
        %v5333 = vpop.f32.mrb[0].mxu0
        %v5334 = vadd.f32 0.0, %v5333
        %v5335 = vpop.f32.mrb[0].mxu0
        %v5336 = vadd.f32 0.0, %v5335
        %v5337 = vpop.f32.mrb[0].mxu0
        %v5338 = vadd.f32 0.0, %v5337
        %5339 = vmatprep.mubr.bf16.mxu0 %v1328
        %5340 = vmatmul.mubr.bf16.gmra.mrb[0].mxu0 %v1327
        %v5341 = vpop.f32.mrb[0].mxu0
        %v5342 = vadd.f32 0.0, %v5341
        %v5343 = vpop.f32.mrb[0].mxu0
        %v5344 = vadd.f32 0.0, %v5343
        %v5345 = vpop.f32.mrb[0].mxu0
        %v5346 = vadd.f32 0.0, %v5345
        %v5347 = vpop.f32.mrb[0].mxu0
        %v5348 = vadd.f32 0.0, %v5347
        %5349 = vmatprep.mubr.bf16.mxu0 %v1336
        %5350 = vmatmul.mubr.bf16.gmra.mrb[0].mxu0 %v1335
        %v5351 = vpop.f32.mrb[0].mxu0
        %v5352 = vadd.f32 0.0, %v5351
        %v5353 = vpop.f32.mrb[0].mxu0
        %v5354 = vadd.f32 0.0, %v5353
        %v5355 = vpop.f32.mrb[0].mxu0
        %v5356 = vadd.f32 0.0, %v5355
        %v5357 = vpop.f32.mrb[0].mxu0
        %v5358 = vadd.f32 0.0, %v5357
        %5359 = vmatprep.mubr.bf16.mxu0 %v1344
        %5360 = vmatmul.mubr.bf16.gmra.mrb[0].mxu0 %v1343
        %v5361 = vpop.f32.mrb[0].mxu0
        %v5362 = vadd.f32 0.0, %v5361
        %v5363 = vpop.f32.mrb[0].mxu0
        %v5364 = vadd.f32 0.0, %v5363
        %v5365 = vpop.f32.mrb[0].mxu0
        %v5366 = vadd.f32 0.0, %v5365
        %v5367 = vpop.f32.mrb[0].mxu0
        %v5368 = vadd.f32 0.0, %v5367
        %5369 = vmatprep.mubr.bf16.mxu0 %v1352
        %5370 = vmatmul.mubr.bf16.gmra.mrb[0].mxu0 %v1351
        %v5371 = vpop.f32.mrb[0].mxu0
        %v5372 = vadd.f32 0.0, %v5371
        %v5373 = vpop.f32.mrb[0].mxu0
        %v5374 = vadd.f32 0.0, %v5373
        %v5375 = vpop.f32.mrb[0].mxu0
        %v5376 = vadd.f32 0.0, %v5375
        %v5377 = vpop.f32.mrb[0].mxu0
        %v5378 = vadd.f32 0.0, %v5377
        %5379 = vmatprep.mubr.bf16.mxu0 %v1360
        %5380 = vmatmul.mubr.bf16.gmra.mrb[0].mxu0 %v1359
        %v5381 = vpop.f32.mrb[0].mxu0
        %v5382 = vadd.f32 0.0, %v5381
        %v5383 = vpop.f32.mrb[0].mxu0
        %v5384 = vadd.f32 0.0, %v5383
        %v5385 = vpop.f32.mrb[0].mxu0
        %v5386 = vadd.f32 0.0, %v5385
        %v5387 = vpop.f32.mrb[0].mxu0
        %v5388 = vadd.f32 0.0, %v5387
        %5389 = vmatprep.mubr.bf16.mxu0 %v1368
        %5390 = vmatmul.mubr.bf16.gmra.mrb[0].mxu0 %v1367
        %v5391 = vpop.f32.mrb[0].mxu0
        %v5392 = vadd.f32 0.0, %v5391
        %v5393 = vpop.f32.mrb[0].mxu0
        %v5394 = vadd.f32 0.0, %v5393
        %v5395 = vpop.f32.mrb[0].mxu0
        %v5396 = vadd.f32 0.0, %v5395
        %v5397 = vpop.f32.mrb[0].mxu0
        %v5398 = vadd.f32 0.0, %v5397
        %5399 = vdwg.mxu0
        %5400 = vmatprep.subr.bf16.mxu0 %v3380
        %5401 = vmatpush1.bf16.msra.mxu0 %v3379
        %5402 = vmatprep.subr.bf16.mxu0 %v3389
        %5403 = vmatpush1.bf16.msra.mxu0 %v3388
        %5404 = vmatprep.subr.bf16.mxu0 %v3398
        %5405 = vmatpush1.bf16.msra.mxu0 %v3397
        %5406 = vmatprep.subr.bf16.mxu0 %v3407
        %5407 = vmatpush1.bf16.msra.mxu0 %v3406
        %5408 = vmatprep.subr.bf16.mxu0 %v3416
        %5409 = vmatpush1.bf16.msra.mxu0 %v3415
        %5410 = vmatprep.subr.bf16.mxu0 %v3425
        %5411 = vmatpush1.bf16.msra.mxu0 %v3424
        %5412 = vmatprep.subr.bf16.mxu0 %v3434
        %5413 = vmatpush1.bf16.msra.mxu0 %v3433
        %5414 = vmatprep.subr.bf16.mxu0 %v3443
        %5415 = vmatpush1.bf16.msra.mxu0 %v3442
        %5416 = vmatprep.subr.bf16.mxu0 %v3452
        %5417 = vmatpush1.bf16.msra.mxu0 %v3451
        %5418 = vmatprep.subr.bf16.mxu0 %v3461
        %5419 = vmatpush1.bf16.msra.mxu0 %v3460
        %5420 = vmatprep.subr.bf16.mxu0 %v3470
        %5421 = vmatpush1.bf16.msra.mxu0 %v3469
        %5422 = vmatprep.subr.bf16.mxu0 %v3479
        %5423 = vmatpush1.bf16.msra.mxu0 %v3478
        %5424 = vmatprep.subr.bf16.mxu0 %v3488
        %5425 = vmatpush1.bf16.msra.mxu0 %v3487
        %5426 = vmatprep.subr.bf16.mxu0 %v3497
        %5427 = vmatpush1.bf16.msra.mxu0 %v3496
        %5428 = vmatprep.subr.bf16.mxu0 %v3506
        %5429 = vmatpush1.bf16.msra.mxu0 %v3505
        %5430 = vmatprep.subr.bf16.mxu0 %v3515
        %5431 = vmatpush1.bf16.msra.mxu0 %v3514
        %5432 = vmatprep.mubr.bf16.mxu0 %v1314
        %5433 = vmatmul.mubr.bf16.gmra.mrb[0].mxu0 %v1313
        %v5434 = vpop.f32.mrb[0].mxu0
        %v5435 = vadd.f32 %v5322, %v5434
        %v5436 = vpop.f32.mrb[0].mxu0
        %v5437 = vadd.f32 %v5324, %v5436
        %v5438 = vpop.f32.mrb[0].mxu0
        %v5439 = vadd.f32 %v5326, %v5438
        %v5440 = vpop.f32.mrb[0].mxu0
        %v5441 = vadd.f32 %v5328, %v5440
        %5442 = vmatprep.mubr.bf16.mxu0 %v1322
        %5443 = vmatmul.mubr.bf16.gmra.mrb[0].mxu0 %v1321
        %v5444 = vpop.f32.mrb[0].mxu0
        %v5445 = vadd.f32 %v5332, %v5444
        %v5446 = vpop.f32.mrb[0].mxu0
        %v5447 = vadd.f32 %v5334, %v5446
        %v5448 = vpop.f32.mrb[0].mxu0
        %v5449 = vadd.f32 %v5336, %v5448
        %v5450 = vpop.f32.mrb[0].mxu0
        %v5451 = vadd.f32 %v5338, %v5450
        %5452 = vmatprep.mubr.bf16.mxu0 %v1330
        %5453 = vmatmul.mubr.bf16.gmra.mrb[0].mxu0 %v1329
        %v5454 = vpop.f32.mrb[0].mxu0
        %v5455 = vadd.f32 %v5342, %v5454
        %v5456 = vpop.f32.mrb[0].mxu0
        %v5457 = vadd.f32 %v5344, %v5456
        %v5458 = vpop.f32.mrb[0].mxu0
        %v5459 = vadd.f32 %v5346, %v5458
        %v5460 = vpop.f32.mrb[0].mxu0
        %v5461 = vadd.f32 %v5348, %v5460
        %5462 = vmatprep.mubr.bf16.mxu0 %v1338
        %5463 = vmatmul.mubr.bf16.gmra.mrb[0].mxu0 %v1337
        %v5464 = vpop.f32.mrb[0].mxu0
        %v5465 = vadd.f32 %v5352, %v5464
        %v5466 = vpop.f32.mrb[0].mxu0
        %v5467 = vadd.f32 %v5354, %v5466
        %v5468 = vpop.f32.mrb[0].mxu0
        %v5469 = vadd.f32 %v5356, %v5468
        %v5470 = vpop.f32.mrb[0].mxu0
        %v5471 = vadd.f32 %v5358, %v5470
        %5472 = vmatprep.mubr.bf16.mxu0 %v1346
        %5473 = vmatmul.mubr.bf16.gmra.mrb[0].mxu0 %v1345
        %v5474 = vpop.f32.mrb[0].mxu0
        %v5475 = vadd.f32 %v5362, %v5474
        %v5476 = vpop.f32.mrb[0].mxu0
        %v5477 = vadd.f32 %v5364, %v5476
        %v5478 = vpop.f32.mrb[0].mxu0
        %v5479 = vadd.f32 %v5366, %v5478
        %v5480 = vpop.f32.mrb[0].mxu0
        %v5481 = vadd.f32 %v5368, %v5480
        %5482 = vmatprep.mubr.bf16.mxu0 %v1354
        %5483 = vmatmul.mubr.bf16.gmra.mrb[0].mxu0 %v1353
        %v5484 = vpop.f32.mrb[0].mxu0
        %v5485 = vadd.f32 %v5372, %v5484
        %v5486 = vpop.f32.mrb[0].mxu0
        %v5487 = vadd.f32 %v5374, %v5486
        %v5488 = vpop.f32.mrb[0].mxu0
        %v5489 = vadd.f32 %v5376, %v5488
        %v5490 = vpop.f32.mrb[0].mxu0
        %v5491 = vadd.f32 %v5378, %v5490
        %5492 = vmatprep.mubr.bf16.mxu0 %v1362
        %5493 = vmatmul.mubr.bf16.gmra.mrb[0].mxu0 %v1361
        %v5494 = vpop.f32.mrb[0].mxu0
        %v5495 = vadd.f32 %v5382, %v5494
        %v5496 = vpop.f32.mrb[0].mxu0
        %v5497 = vadd.f32 %v5384, %v5496
        %v5498 = vpop.f32.mrb[0].mxu0
        %v5499 = vadd.f32 %v5386, %v5498
        %v5500 = vpop.f32.mrb[0].mxu0
        %v5501 = vadd.f32 %v5388, %v5500
        %5502 = vmatprep.mubr.bf16.mxu0 %v1370
        %5503 = vmatmul.mubr.bf16.gmra.mrb[0].mxu0 %v1369
        %v5504 = vpop.f32.mrb[0].mxu0
        %v5505 = vadd.f32 %v5392, %v5504
        %v5506 = vpop.f32.mrb[0].mxu0
        %v5507 = vadd.f32 %v5394, %v5506
        %v5508 = vpop.f32.mrb[0].mxu0
        %v5509 = vadd.f32 %v5396, %v5508
        %v5510 = vpop.f32.mrb[0].mxu0
        %v5511 = vadd.f32 %v5398, %v5510
        %5512 = vdwg.mxu0
        %5513 = vmatprep.subr.bf16.mxu0 %v3524
        %5514 = vmatpush1.bf16.msra.mxu0 %v3523
        %5515 = vmatprep.subr.bf16.mxu0 %v3533
        %5516 = vmatpush1.bf16.msra.mxu0 %v3532
        %5517 = vmatprep.subr.bf16.mxu0 %v3542
        %5518 = vmatpush1.bf16.msra.mxu0 %v3541
        %5519 = vmatprep.subr.bf16.mxu0 %v3551
        %5520 = vmatpush1.bf16.msra.mxu0 %v3550
        %5521 = vmatprep.subr.bf16.mxu0 %v3560
        %5522 = vmatpush1.bf16.msra.mxu0 %v3559
        %5523 = vmatprep.subr.bf16.mxu0 %v3569
        %5524 = vmatpush1.bf16.msra.mxu0 %v3568
        %5525 = vmatprep.subr.bf16.mxu0 %v3578
        %5526 = vmatpush1.bf16.msra.mxu0 %v3577
        %5527 = vmatprep.subr.bf16.mxu0 %v3587
        %5528 = vmatpush1.bf16.msra.mxu0 %v3586
        %5529 = vmatprep.subr.bf16.mxu0 %v3596
        %5530 = vmatpush1.bf16.msra.mxu0 %v3595
        %5531 = vmatprep.subr.bf16.mxu0 %v3605
        %5532 = vmatpush1.bf16.msra.mxu0 %v3604
        %5533 = vmatprep.subr.bf16.mxu0 %v3614
        %5534 = vmatpush1.bf16.msra.mxu0 %v3613
        %5535 = vmatprep.subr.bf16.mxu0 %v3623
        %5536 = vmatpush1.bf16.msra.mxu0 %v3622
        %5537 = vmatprep.subr.bf16.mxu0 %v3632
        %5538 = vmatpush1.bf16.msra.mxu0 %v3631
        %5539 = vmatprep.subr.bf16.mxu0 %v3641
        %5540 = vmatpush1.bf16.msra.mxu0 %v3640
        %5541 = vmatprep.subr.bf16.mxu0 %v3650
        %5542 = vmatpush1.bf16.msra.mxu0 %v3649
        %5543 = vmatprep.subr.bf16.mxu0 %v3659
        %5544 = vmatpush1.bf16.msra.mxu0 %v3658
        %5545 = vmatprep.mubr.bf16.mxu0 %v1316
        %5546 = vmatmul.mubr.bf16.gmra.mrb[0].mxu0 %v1315
        %v5547 = vpop.f32.mrb[0].mxu0
        %v5548 = vadd.f32 %v5435, %v5547
        %v5549 = vpop.f32.mrb[0].mxu0
        %v5550 = vadd.f32 %v5437, %v5549
        %v5551 = vpop.f32.mrb[0].mxu0
        %v5552 = vadd.f32 %v5439, %v5551
        %v5553 = vpop.f32.mrb[0].mxu0
        %v5554 = vadd.f32 %v5441, %v5553
        %5555 = vmatprep.mubr.bf16.mxu0 %v1324
        %5556 = vmatmul.mubr.bf16.gmra.mrb[0].mxu0 %v1323
        %v5557 = vpop.f32.mrb[0].mxu0
        %v5558 = vadd.f32 %v5445, %v5557
        %v5559 = vpop.f32.mrb[0].mxu0
        %v5560 = vadd.f32 %v5447, %v5559
        %v5561 = vpop.f32.mrb[0].mxu0
        %v5562 = vadd.f32 %v5449, %v5561
        %v5563 = vpop.f32.mrb[0].mxu0
        %v5564 = vadd.f32 %v5451, %v5563
        %5565 = vmatprep.mubr.bf16.mxu0 %v1332
        %5566 = vmatmul.mubr.bf16.gmra.mrb[0].mxu0 %v1331
        %v5567 = vpop.f32.mrb[0].mxu0
        %v5568 = vadd.f32 %v5455, %v5567
        %v5569 = vpop.f32.mrb[0].mxu0
        %v5570 = vadd.f32 %v5457, %v5569
        %v5571 = vpop.f32.mrb[0].mxu0
        %v5572 = vadd.f32 %v5459, %v5571
        %v5573 = vpop.f32.mrb[0].mxu0
        %v5574 = vadd.f32 %v5461, %v5573
        %5575 = vmatprep.mubr.bf16.mxu0 %v1340
        %5576 = vmatmul.mubr.bf16.gmra.mrb[0].mxu0 %v1339
        %v5577 = vpop.f32.mrb[0].mxu0
        %v5578 = vadd.f32 %v5465, %v5577
        %v5579 = vpop.f32.mrb[0].mxu0
        %v5580 = vadd.f32 %v5467, %v5579
        %v5581 = vpop.f32.mrb[0].mxu0
        %v5582 = vadd.f32 %v5469, %v5581
        %v5583 = vpop.f32.mrb[0].mxu0
        %v5584 = vadd.f32 %v5471, %v5583
        %5585 = vmatprep.mubr.bf16.mxu0 %v1348
        %5586 = vmatmul.mubr.bf16.gmra.mrb[0].mxu0 %v1347
        %v5587 = vpop.f32.mrb[0].mxu0
        %v5588 = vadd.f32 %v5475, %v5587
        %v5589 = vpop.f32.mrb[0].mxu0
        %v5590 = vadd.f32 %v5477, %v5589
        %v5591 = vpop.f32.mrb[0].mxu0
        %v5592 = vadd.f32 %v5479, %v5591
        %v5593 = vpop.f32.mrb[0].mxu0
        %v5594 = vadd.f32 %v5481, %v5593
        %5595 = vmatprep.mubr.bf16.mxu0 %v1356
        %5596 = vmatmul.mubr.bf16.gmra.mrb[0].mxu0 %v1355
        %v5597 = vpop.f32.mrb[0].mxu0
        %v5598 = vadd.f32 %v5485, %v5597
        %v5599 = vpop.f32.mrb[0].mxu0
        %v5600 = vadd.f32 %v5487, %v5599
        %v5601 = vpop.f32.mrb[0].mxu0
        %v5602 = vadd.f32 %v5489, %v5601
        %v5603 = vpop.f32.mrb[0].mxu0
        %v5604 = vadd.f32 %v5491, %v5603
        %5605 = vmatprep.mubr.bf16.mxu0 %v1364
        %5606 = vmatmul.mubr.bf16.gmra.mrb[0].mxu0 %v1363
        %v5607 = vpop.f32.mrb[0].mxu0
        %v5608 = vadd.f32 %v5495, %v5607
        %v5609 = vpop.f32.mrb[0].mxu0
        %v5610 = vadd.f32 %v5497, %v5609
        %v5611 = vpop.f32.mrb[0].mxu0
        %v5612 = vadd.f32 %v5499, %v5611
        %v5613 = vpop.f32.mrb[0].mxu0
        %v5614 = vadd.f32 %v5501, %v5613
        %5615 = vmatprep.mubr.bf16.mxu0 %v1372
        %5616 = vmatmul.mubr.bf16.gmra.mrb[0].mxu0 %v1371
        %v5617 = vpop.f32.mrb[0].mxu0
        %v5618 = vadd.f32 %v5505, %v5617
        %v5619 = vpop.f32.mrb[0].mxu0
        %v5620 = vadd.f32 %v5507, %v5619
        %v5621 = vpop.f32.mrb[0].mxu0
        %v5622 = vadd.f32 %v5509, %v5621
        %v5623 = vpop.f32.mrb[0].mxu0
        %v5624 = vadd.f32 %v5511, %v5623
        %5625 = vdwg.mxu0
        %5626 = vmatprep.subr.bf16.mxu0 %v3668
        %5627 = vmatpush1.bf16.msra.mxu0 %v3667
        %5628 = vmatprep.subr.bf16.mxu0 %v3677
        %5629 = vmatpush1.bf16.msra.mxu0 %v3676
        %5630 = vmatprep.subr.bf16.mxu0 %v3686
        %5631 = vmatpush1.bf16.msra.mxu0 %v3685
        %5632 = vmatprep.subr.bf16.mxu0 %v3695
        %5633 = vmatpush1.bf16.msra.mxu0 %v3694
        %5634 = vmatprep.subr.bf16.mxu0 %v3704
        %5635 = vmatpush1.bf16.msra.mxu0 %v3703
        %5636 = vmatprep.subr.bf16.mxu0 %v3713
        %5637 = vmatpush1.bf16.msra.mxu0 %v3712
        %5638 = vmatprep.subr.bf16.mxu0 %v3722
        %5639 = vmatpush1.bf16.msra.mxu0 %v3721
        %5640 = vmatprep.subr.bf16.mxu0 %v3731
        %5641 = vmatpush1.bf16.msra.mxu0 %v3730
        %5642 = vmatprep.subr.bf16.mxu0 %v3740
        %5643 = vmatpush1.bf16.msra.mxu0 %v3739
        %5644 = vmatprep.subr.bf16.mxu0 %v3749
        %5645 = vmatpush1.bf16.msra.mxu0 %v3748
        %5646 = vmatprep.subr.bf16.mxu0 %v3758
        %5647 = vmatpush1.bf16.msra.mxu0 %v3757
        %5648 = vmatprep.subr.bf16.mxu0 %v3767
        %5649 = vmatpush1.bf16.msra.mxu0 %v3766
        %5650 = vmatprep.subr.bf16.mxu0 %v3776
        %5651 = vmatpush1.bf16.msra.mxu0 %v3775
        %5652 = vmatprep.subr.bf16.mxu0 %v3785
        %5653 = vmatpush1.bf16.msra.mxu0 %v3784
        %5654 = vmatprep.subr.bf16.mxu0 %v3794
        %5655 = vmatpush1.bf16.msra.mxu0 %v3793
        %5656 = vmatprep.subr.bf16.mxu0 %v3803
        %5657 = vmatpush1.bf16.msra.mxu0 %v3802
        %5658 = vmatprep.mubr.bf16.mxu0 %v1318
        %5659 = vmatmul.mubr.bf16.gmra.mrb[0].mxu0 %v1317
        %v5660 = vpop.f32.mrb[0].mxu0
        %v5661 = vadd.f32 %v5548, %v5660
        %v5662 = vpop.f32.mrb[0].mxu0
        %v5663 = vadd.f32 %v5550, %v5662
        %v5664 = vpop.f32.mrb[0].mxu0
        %v5665 = vadd.f32 %v5552, %v5664
        %v5666 = vpop.f32.mrb[0].mxu0
        %v5667 = vadd.f32 %v5554, %v5666
        %5668 = vmatprep.mubr.bf16.mxu0 %v1326
        %5669 = vmatmul.mubr.bf16.gmra.mrb[0].mxu0 %v1325
        %v5670 = vpop.f32.mrb[0].mxu0
        %v5671 = vadd.f32 %v5558, %v5670
        %v5672 = vpop.f32.mrb[0].mxu0
        %v5673 = vadd.f32 %v5560, %v5672
        %v5674 = vpop.f32.mrb[0].mxu0
        %v5675 = vadd.f32 %v5562, %v5674
        %v5676 = vpop.f32.mrb[0].mxu0
        %v5677 = vadd.f32 %v5564, %v5676
        %5678 = vmatprep.mubr.bf16.mxu0 %v1334
        %5679 = vmatmul.mubr.bf16.gmra.mrb[0].mxu0 %v1333
        %v5680 = vpop.f32.mrb[0].mxu0
        %v5681 = vadd.f32 %v5568, %v5680
        %v5682 = vpop.f32.mrb[0].mxu0
        %v5683 = vadd.f32 %v5570, %v5682
        %v5684 = vpop.f32.mrb[0].mxu0
        %v5685 = vadd.f32 %v5572, %v5684
        %v5686 = vpop.f32.mrb[0].mxu0
        %v5687 = vadd.f32 %v5574, %v5686
        %5688 = vmatprep.mubr.bf16.mxu0 %v1342
        %5689 = vmatmul.mubr.bf16.gmra.mrb[0].mxu0 %v1341
        %v5690 = vpop.f32.mrb[0].mxu0
        %v5691 = vadd.f32 %v5578, %v5690
        %v5692 = vpop.f32.mrb[0].mxu0
        %v5693 = vadd.f32 %v5580, %v5692
        %v5694 = vpop.f32.mrb[0].mxu0
        %v5695 = vadd.f32 %v5582, %v5694
        %v5696 = vpop.f32.mrb[0].mxu0
        %v5697 = vadd.f32 %v5584, %v5696
        %5698 = vmatprep.mubr.bf16.mxu0 %v1350
        %5699 = vmatmul.mubr.bf16.gmra.mrb[0].mxu0 %v1349
        %v5700 = vpop.f32.mrb[0].mxu0
        %v5701 = vadd.f32 %v5588, %v5700
        %v5702 = vpop.f32.mrb[0].mxu0
        %v5703 = vadd.f32 %v5590, %v5702
        %v5704 = vpop.f32.mrb[0].mxu0
        %v5705 = vadd.f32 %v5592, %v5704
        %v5706 = vpop.f32.mrb[0].mxu0
        %v5707 = vadd.f32 %v5594, %v5706
        %5708 = vmatprep.mubr.bf16.mxu0 %v1358
        %5709 = vmatmul.mubr.bf16.gmra.mrb[0].mxu0 %v1357
        %v5710 = vpop.f32.mrb[0].mxu0
        %v5711 = vadd.f32 %v5598, %v5710
        %v5712 = vpop.f32.mrb[0].mxu0
        %v5713 = vadd.f32 %v5600, %v5712
        %v5714 = vpop.f32.mrb[0].mxu0
        %v5715 = vadd.f32 %v5602, %v5714
        %v5716 = vpop.f32.mrb[0].mxu0
        %v5717 = vadd.f32 %v5604, %v5716
        %5718 = vmatprep.mubr.bf16.mxu0 %v1366
        %5719 = vmatmul.mubr.bf16.gmra.mrb[0].mxu0 %v1365
        %v5720 = vpop.f32.mrb[0].mxu0
        %v5721 = vadd.f32 %v5608, %v5720
        %v5722 = vpop.f32.mrb[0].mxu0
        %v5723 = vadd.f32 %v5610, %v5722
        %v5724 = vpop.f32.mrb[0].mxu0
        %v5725 = vadd.f32 %v5612, %v5724
        %v5726 = vpop.f32.mrb[0].mxu0
        %v5727 = vadd.f32 %v5614, %v5726
        %5728 = vmatprep.mubr.bf16.mxu0 %v1374
        %5729 = vmatmul.mubr.bf16.gmra.mrb[0].mxu0 %v1373
        %v5730 = vpop.f32.mrb[0].mxu0
        %v5731 = vadd.f32 %v5618, %v5730
        %v5732 = vpop.f32.mrb[0].mxu0
        %v5733 = vadd.f32 %v5620, %v5732
        %v5734 = vpop.f32.mrb[0].mxu0
        %v5735 = vadd.f32 %v5622, %v5734
        %v5736 = vpop.f32.mrb[0].mxu0
        %v5737 = vadd.f32 %v5624, %v5736
        %5738 = vdwg.mxu0
        %5739 = vmatprep.subr.bf16.mxu0 %v3238
        %5740 = vmatpush1.bf16.msra.mxu0 %v3237
        %5741 = vmatprep.subr.bf16.mxu0 %v3247
        %5742 = vmatpush1.bf16.msra.mxu0 %v3246
        %5743 = vmatprep.subr.bf16.mxu0 %v3256
        %5744 = vmatpush1.bf16.msra.mxu0 %v3255
        %5745 = vmatprep.subr.bf16.mxu0 %v3265
        %5746 = vmatpush1.bf16.msra.mxu0 %v3264
        %5747 = vmatprep.subr.bf16.mxu0 %v3274
        %5748 = vmatpush1.bf16.msra.mxu0 %v3273
        %5749 = vmatprep.subr.bf16.mxu0 %v3283
        %5750 = vmatpush1.bf16.msra.mxu0 %v3282
        %5751 = vmatprep.subr.bf16.mxu0 %v3292
        %5752 = vmatpush1.bf16.msra.mxu0 %v3291
        %5753 = vmatprep.subr.bf16.mxu0 %v3301
        %5754 = vmatpush1.bf16.msra.mxu0 %v3300
        %5755 = vmatprep.subr.bf16.mxu0 %v3310
        %5756 = vmatpush1.bf16.msra.mxu0 %v3309
        %5757 = vmatprep.subr.bf16.mxu0 %v3319
        %5758 = vmatpush1.bf16.msra.mxu0 %v3318
        %5759 = vmatprep.subr.bf16.mxu0 %v3328
        %5760 = vmatpush1.bf16.msra.mxu0 %v3327
        %5761 = vmatprep.subr.bf16.mxu0 %v3337
        %5762 = vmatpush1.bf16.msra.mxu0 %v3336
        %5763 = vmatprep.subr.bf16.mxu0 %v3346
        %5764 = vmatpush1.bf16.msra.mxu0 %v3345
        %5765 = vmatprep.subr.bf16.mxu0 %v3355
        %5766 = vmatpush1.bf16.msra.mxu0 %v3354
        %5767 = vmatprep.subr.bf16.mxu0 %v3364
        %5768 = vmatpush1.bf16.msra.mxu0 %v3363
        %5769 = vmatprep.subr.bf16.mxu0 %v3373
        %5770 = vmatpush1.bf16.msra.mxu0 %v3372
        %5771 = vmatprep.mubr.bf16.mxu0 %v1312
        %5772 = vmatmul.mubr.bf16.gmra.mrb[0].mxu0 %v1311
        %v5773 = vpop.f32.mrb[0].mxu0
        %v5774 = vadd.f32 0.0, %v5773
        %v5775 = vpop.f32.mrb[0].mxu0
        %v5776 = vadd.f32 0.0, %v5775
        %v5777 = vpop.f32.mrb[0].mxu0
        %v5778 = vadd.f32 0.0, %v5777
        %v5779 = vpop.f32.mrb[0].mxu0
        %v5780 = vadd.f32 0.0, %v5779
        %5781 = vmatprep.mubr.bf16.mxu0 %v1320
        %5782 = vmatmul.mubr.bf16.gmra.mrb[0].mxu0 %v1319
        %v5783 = vpop.f32.mrb[0].mxu0
        %v5784 = vadd.f32 0.0, %v5783
        %v5785 = vpop.f32.mrb[0].mxu0
        %v5786 = vadd.f32 0.0, %v5785
        %v5787 = vpop.f32.mrb[0].mxu0
        %v5788 = vadd.f32 0.0, %v5787
        %v5789 = vpop.f32.mrb[0].mxu0
        %v5790 = vadd.f32 0.0, %v5789
        %5791 = vmatprep.mubr.bf16.mxu0 %v1328
        %5792 = vmatmul.mubr.bf16.gmra.mrb[0].mxu0 %v1327
        %v5793 = vpop.f32.mrb[0].mxu0
        %v5794 = vadd.f32 0.0, %v5793
        %v5795 = vpop.f32.mrb[0].mxu0
        %v5796 = vadd.f32 0.0, %v5795
        %v5797 = vpop.f32.mrb[0].mxu0
        %v5798 = vadd.f32 0.0, %v5797
        %v5799 = vpop.f32.mrb[0].mxu0
        %v5800 = vadd.f32 0.0, %v5799
        %5801 = vmatprep.mubr.bf16.mxu0 %v1336
        %5802 = vmatmul.mubr.bf16.gmra.mrb[0].mxu0 %v1335
        %v5803 = vpop.f32.mrb[0].mxu0
        %v5804 = vadd.f32 0.0, %v5803
        %v5805 = vpop.f32.mrb[0].mxu0
        %v5806 = vadd.f32 0.0, %v5805
        %v5807 = vpop.f32.mrb[0].mxu0
        %v5808 = vadd.f32 0.0, %v5807
        %v5809 = vpop.f32.mrb[0].mxu0
        %v5810 = vadd.f32 0.0, %v5809
        %5811 = vmatprep.mubr.bf16.mxu0 %v1344
        %5812 = vmatmul.mubr.bf16.gmra.mrb[0].mxu0 %v1343
        %v5813 = vpop.f32.mrb[0].mxu0
        %v5814 = vadd.f32 0.0, %v5813
        %v5815 = vpop.f32.mrb[0].mxu0
        %v5816 = vadd.f32 0.0, %v5815
        %v5817 = vpop.f32.mrb[0].mxu0
        %v5818 = vadd.f32 0.0, %v5817
        %v5819 = vpop.f32.mrb[0].mxu0
        %v5820 = vadd.f32 0.0, %v5819
        %5821 = vmatprep.mubr.bf16.mxu0 %v1352
        %5822 = vmatmul.mubr.bf16.gmra.mrb[0].mxu0 %v1351
        %v5823 = vpop.f32.mrb[0].mxu0
        %v5824 = vadd.f32 0.0, %v5823
        %v5825 = vpop.f32.mrb[0].mxu0
        %v5826 = vadd.f32 0.0, %v5825
        %v5827 = vpop.f32.mrb[0].mxu0
        %v5828 = vadd.f32 0.0, %v5827
        %v5829 = vpop.f32.mrb[0].mxu0
        %v5830 = vadd.f32 0.0, %v5829
        %5831 = vmatprep.mubr.bf16.mxu0 %v1360
        %5832 = vmatmul.mubr.bf16.gmra.mrb[0].mxu0 %v1359
        %v5833 = vpop.f32.mrb[0].mxu0
        %v5834 = vadd.f32 0.0, %v5833
        %v5835 = vpop.f32.mrb[0].mxu0
        %v5836 = vadd.f32 0.0, %v5835
        %v5837 = vpop.f32.mrb[0].mxu0
        %v5838 = vadd.f32 0.0, %v5837
        %v5839 = vpop.f32.mrb[0].mxu0
        %v5840 = vadd.f32 0.0, %v5839
        %5841 = vmatprep.mubr.bf16.mxu0 %v1368
        %5842 = vmatmul.mubr.bf16.gmra.mrb[0].mxu0 %v1367
        %v5843 = vpop.f32.mrb[0].mxu0
        %v5844 = vadd.f32 0.0, %v5843
        %v5845 = vpop.f32.mrb[0].mxu0
        %v5846 = vadd.f32 0.0, %v5845
        %v5847 = vpop.f32.mrb[0].mxu0
        %v5848 = vadd.f32 0.0, %v5847
        %v5849 = vpop.f32.mrb[0].mxu0
        %v5850 = vadd.f32 0.0, %v5849
        %5851 = vdwg.mxu0
        %5852 = vmatprep.subr.bf16.mxu0 %v3382
        %5853 = vmatpush1.bf16.msra.mxu0 %v3381
        %5854 = vmatprep.subr.bf16.mxu0 %v3391
        %5855 = vmatpush1.bf16.msra.mxu0 %v3390
        %5856 = vmatprep.subr.bf16.mxu0 %v3400
        %5857 = vmatpush1.bf16.msra.mxu0 %v3399
        %5858 = vmatprep.subr.bf16.mxu0 %v3409
        %5859 = vmatpush1.bf16.msra.mxu0 %v3408
        %5860 = vmatprep.subr.bf16.mxu0 %v3418
        %5861 = vmatpush1.bf16.msra.mxu0 %v3417
        %5862 = vmatprep.subr.bf16.mxu0 %v3427
        %5863 = vmatpush1.bf16.msra.mxu0 %v3426
        %5864 = vmatprep.subr.bf16.mxu0 %v3436
        %5865 = vmatpush1.bf16.msra.mxu0 %v3435
        %5866 = vmatprep.subr.bf16.mxu0 %v3445
        %5867 = vmatpush1.bf16.msra.mxu0 %v3444
        %5868 = vmatprep.subr.bf16.mxu0 %v3454
        %5869 = vmatpush1.bf16.msra.mxu0 %v3453
        %5870 = vmatprep.subr.bf16.mxu0 %v3463
        %5871 = vmatpush1.bf16.msra.mxu0 %v3462
        %5872 = vmatprep.subr.bf16.mxu0 %v3472
        %5873 = vmatpush1.bf16.msra.mxu0 %v3471
        %5874 = vmatprep.subr.bf16.mxu0 %v3481
        %5875 = vmatpush1.bf16.msra.mxu0 %v3480
        %5876 = vmatprep.subr.bf16.mxu0 %v3490
        %5877 = vmatpush1.bf16.msra.mxu0 %v3489
        %5878 = vmatprep.subr.bf16.mxu0 %v3499
        %5879 = vmatpush1.bf16.msra.mxu0 %v3498
        %5880 = vmatprep.subr.bf16.mxu0 %v3508
        %5881 = vmatpush1.bf16.msra.mxu0 %v3507
        %5882 = vmatprep.subr.bf16.mxu0 %v3517
        %5883 = vmatpush1.bf16.msra.mxu0 %v3516
        %5884 = vmatprep.mubr.bf16.mxu0 %v1314
        %5885 = vmatmul.mubr.bf16.gmra.mrb[0].mxu0 %v1313
        %v5886 = vpop.f32.mrb[0].mxu0
        %v5887 = vadd.f32 %v5774, %v5886
        %v5888 = vpop.f32.mrb[0].mxu0
        %v5889 = vadd.f32 %v5776, %v5888
        %v5890 = vpop.f32.mrb[0].mxu0
        %v5891 = vadd.f32 %v5778, %v5890
        %v5892 = vpop.f32.mrb[0].mxu0
        %v5893 = vadd.f32 %v5780, %v5892
        %5894 = vmatprep.mubr.bf16.mxu0 %v1322
        %5895 = vmatmul.mubr.bf16.gmra.mrb[0].mxu0 %v1321
        %v5896 = vpop.f32.mrb[0].mxu0
        %v5897 = vadd.f32 %v5784, %v5896
        %v5898 = vpop.f32.mrb[0].mxu0
        %v5899 = vadd.f32 %v5786, %v5898
        %v5900 = vpop.f32.mrb[0].mxu0
        %v5901 = vadd.f32 %v5788, %v5900
        %v5902 = vpop.f32.mrb[0].mxu0
        %v5903 = vadd.f32 %v5790, %v5902
        %5904 = vmatprep.mubr.bf16.mxu0 %v1330
        %5905 = vmatmul.mubr.bf16.gmra.mrb[0].mxu0 %v1329
        %v5906 = vpop.f32.mrb[0].mxu0
        %v5907 = vadd.f32 %v5794, %v5906
        %v5908 = vpop.f32.mrb[0].mxu0
        %v5909 = vadd.f32 %v5796, %v5908
        %v5910 = vpop.f32.mrb[0].mxu0
        %v5911 = vadd.f32 %v5798, %v5910
        %v5912 = vpop.f32.mrb[0].mxu0
        %v5913 = vadd.f32 %v5800, %v5912
        %5914 = vmatprep.mubr.bf16.mxu0 %v1338
        %5915 = vmatmul.mubr.bf16.gmra.mrb[0].mxu0 %v1337
        %v5916 = vpop.f32.mrb[0].mxu0
        %v5917 = vadd.f32 %v5804, %v5916
        %v5918 = vpop.f32.mrb[0].mxu0
        %v5919 = vadd.f32 %v5806, %v5918
        %v5920 = vpop.f32.mrb[0].mxu0
        %v5921 = vadd.f32 %v5808, %v5920
        %v5922 = vpop.f32.mrb[0].mxu0
        %v5923 = vadd.f32 %v5810, %v5922
        %5924 = vmatprep.mubr.bf16.mxu0 %v1346
        %5925 = vmatmul.mubr.bf16.gmra.mrb[0].mxu0 %v1345
        %v5926 = vpop.f32.mrb[0].mxu0
        %v5927 = vadd.f32 %v5814, %v5926
        %v5928 = vpop.f32.mrb[0].mxu0
        %v5929 = vadd.f32 %v5816, %v5928
        %v5930 = vpop.f32.mrb[0].mxu0
        %v5931 = vadd.f32 %v5818, %v5930
        %v5932 = vpop.f32.mrb[0].mxu0
        %v5933 = vadd.f32 %v5820, %v5932
        %5934 = vmatprep.mubr.bf16.mxu0 %v1354
        %5935 = vmatmul.mubr.bf16.gmra.mrb[0].mxu0 %v1353
        %v5936 = vpop.f32.mrb[0].mxu0
        %v5937 = vadd.f32 %v5824, %v5936
        %v5938 = vpop.f32.mrb[0].mxu0
        %v5939 = vadd.f32 %v5826, %v5938
        %v5940 = vpop.f32.mrb[0].mxu0
        %v5941 = vadd.f32 %v5828, %v5940
        %v5942 = vpop.f32.mrb[0].mxu0
        %v5943 = vadd.f32 %v5830, %v5942
        %5944 = vmatprep.mubr.bf16.mxu0 %v1362
        %5945 = vmatmul.mubr.bf16.gmra.mrb[0].mxu0 %v1361
        %v5946 = vpop.f32.mrb[0].mxu0
        %v5947 = vadd.f32 %v5834, %v5946
        %v5948 = vpop.f32.mrb[0].mxu0
        %v5949 = vadd.f32 %v5836, %v5948
        %v5950 = vpop.f32.mrb[0].mxu0
        %v5951 = vadd.f32 %v5838, %v5950
        %v5952 = vpop.f32.mrb[0].mxu0
        %v5953 = vadd.f32 %v5840, %v5952
        %5954 = vmatprep.mubr.bf16.mxu0 %v1370
        %5955 = vmatmul.mubr.bf16.gmra.mrb[0].mxu0 %v1369
        %v5956 = vpop.f32.mrb[0].mxu0
        %v5957 = vadd.f32 %v5844, %v5956
        %v5958 = vpop.f32.mrb[0].mxu0
        %v5959 = vadd.f32 %v5846, %v5958
        %v5960 = vpop.f32.mrb[0].mxu0
        %v5961 = vadd.f32 %v5848, %v5960
        %v5962 = vpop.f32.mrb[0].mxu0
        %v5963 = vadd.f32 %v5850, %v5962
        %5964 = vdwg.mxu0
        %5965 = vmatprep.subr.bf16.mxu0 %v3526
        %5966 = vmatpush1.bf16.msra.mxu0 %v3525
        %5967 = vmatprep.subr.bf16.mxu0 %v3535
        %5968 = vmatpush1.bf16.msra.mxu0 %v3534
        %5969 = vmatprep.subr.bf16.mxu0 %v3544
        %5970 = vmatpush1.bf16.msra.mxu0 %v3543
        %5971 = vmatprep.subr.bf16.mxu0 %v3553
        %5972 = vmatpush1.bf16.msra.mxu0 %v3552
        %5973 = vmatprep.subr.bf16.mxu0 %v3562
        %5974 = vmatpush1.bf16.msra.mxu0 %v3561
        %5975 = vmatprep.subr.bf16.mxu0 %v3571
        %5976 = vmatpush1.bf16.msra.mxu0 %v3570
        %5977 = vmatprep.subr.bf16.mxu0 %v3580
        %5978 = vmatpush1.bf16.msra.mxu0 %v3579
        %5979 = vmatprep.subr.bf16.mxu0 %v3589
        %5980 = vmatpush1.bf16.msra.mxu0 %v3588
        %5981 = vmatprep.subr.bf16.mxu0 %v3598
        %5982 = vmatpush1.bf16.msra.mxu0 %v3597
        %5983 = vmatprep.subr.bf16.mxu0 %v3607
        %5984 = vmatpush1.bf16.msra.mxu0 %v3606
        %5985 = vmatprep.subr.bf16.mxu0 %v3616
        %5986 = vmatpush1.bf16.msra.mxu0 %v3615
        %5987 = vmatprep.subr.bf16.mxu0 %v3625
        %5988 = vmatpush1.bf16.msra.mxu0 %v3624
        %5989 = vmatprep.subr.bf16.mxu0 %v3634
        %5990 = vmatpush1.bf16.msra.mxu0 %v3633
        %5991 = vmatprep.subr.bf16.mxu0 %v3643
        %5992 = vmatpush1.bf16.msra.mxu0 %v3642
        %5993 = vmatprep.subr.bf16.mxu0 %v3652
        %5994 = vmatpush1.bf16.msra.mxu0 %v3651
        %5995 = vmatprep.subr.bf16.mxu0 %v3661
        %5996 = vmatpush1.bf16.msra.mxu0 %v3660
        %5997 = vmatprep.mubr.bf16.mxu0 %v1316
        %5998 = vmatmul.mubr.bf16.gmra.mrb[0].mxu0 %v1315
        %v5999 = vpop.f32.mrb[0].mxu0
        %v6000 = vadd.f32 %v5887, %v5999
        %v6001 = vpop.f32.mrb[0].mxu0
        %v6002 = vadd.f32 %v5889, %v6001
        %v6003 = vpop.f32.mrb[0].mxu0
        %v6004 = vadd.f32 %v5891, %v6003
        %v6005 = vpop.f32.mrb[0].mxu0
        %v6006 = vadd.f32 %v5893, %v6005
        %6007 = vmatprep.mubr.bf16.mxu0 %v1324
        %6008 = vmatmul.mubr.bf16.gmra.mrb[0].mxu0 %v1323
        %v6009 = vpop.f32.mrb[0].mxu0
        %v6010 = vadd.f32 %v5897, %v6009
        %v6011 = vpop.f32.mrb[0].mxu0
        %v6012 = vadd.f32 %v5899, %v6011
        %v6013 = vpop.f32.mrb[0].mxu0
        %v6014 = vadd.f32 %v5901, %v6013
        %v6015 = vpop.f32.mrb[0].mxu0
        %v6016 = vadd.f32 %v5903, %v6015
        %6017 = vmatprep.mubr.bf16.mxu0 %v1332
        %6018 = vmatmul.mubr.bf16.gmra.mrb[0].mxu0 %v1331
        %v6019 = vpop.f32.mrb[0].mxu0
        %v6020 = vadd.f32 %v5907, %v6019
        %v6021 = vpop.f32.mrb[0].mxu0
        %v6022 = vadd.f32 %v5909, %v6021
        %v6023 = vpop.f32.mrb[0].mxu0
        %v6024 = vadd.f32 %v5911, %v6023
        %v6025 = vpop.f32.mrb[0].mxu0
        %v6026 = vadd.f32 %v5913, %v6025
        %6027 = vmatprep.mubr.bf16.mxu0 %v1340
        %6028 = vmatmul.mubr.bf16.gmra.mrb[0].mxu0 %v1339
        %v6029 = vpop.f32.mrb[0].mxu0
        %v6030 = vadd.f32 %v5917, %v6029
        %v6031 = vpop.f32.mrb[0].mxu0
        %v6032 = vadd.f32 %v5919, %v6031
        %v6033 = vpop.f32.mrb[0].mxu0
        %v6034 = vadd.f32 %v5921, %v6033
        %v6035 = vpop.f32.mrb[0].mxu0
        %v6036 = vadd.f32 %v5923, %v6035
        %6037 = vmatprep.mubr.bf16.mxu0 %v1348
        %6038 = vmatmul.mubr.bf16.gmra.mrb[0].mxu0 %v1347
        %v6039 = vpop.f32.mrb[0].mxu0
        %v6040 = vadd.f32 %v5927, %v6039
        %v6041 = vpop.f32.mrb[0].mxu0
        %v6042 = vadd.f32 %v5929, %v6041
        %v6043 = vpop.f32.mrb[0].mxu0
        %v6044 = vadd.f32 %v5931, %v6043
        %v6045 = vpop.f32.mrb[0].mxu0
        %v6046 = vadd.f32 %v5933, %v6045
        %6047 = vmatprep.mubr.bf16.mxu0 %v1356
        %6048 = vmatmul.mubr.bf16.gmra.mrb[0].mxu0 %v1355
        %v6049 = vpop.f32.mrb[0].mxu0
        %v6050 = vadd.f32 %v5937, %v6049
        %v6051 = vpop.f32.mrb[0].mxu0
        %v6052 = vadd.f32 %v5939, %v6051
        %v6053 = vpop.f32.mrb[0].mxu0
        %v6054 = vadd.f32 %v5941, %v6053
        %v6055 = vpop.f32.mrb[0].mxu0
        %v6056 = vadd.f32 %v5943, %v6055
        %6057 = vmatprep.mubr.bf16.mxu0 %v1364
        %6058 = vmatmul.mubr.bf16.gmra.mrb[0].mxu0 %v1363
        %v6059 = vpop.f32.mrb[0].mxu0
        %v6060 = vadd.f32 %v5947, %v6059
        %v6061 = vpop.f32.mrb[0].mxu0
        %v6062 = vadd.f32 %v5949, %v6061
        %v6063 = vpop.f32.mrb[0].mxu0
        %v6064 = vadd.f32 %v5951, %v6063
        %v6065 = vpop.f32.mrb[0].mxu0
        %v6066 = vadd.f32 %v5953, %v6065
        %6067 = vmatprep.mubr.bf16.mxu0 %v1372
        %6068 = vmatmul.mubr.bf16.gmra.mrb[0].mxu0 %v1371
        %v6069 = vpop.f32.mrb[0].mxu0
        %v6070 = vadd.f32 %v5957, %v6069
        %v6071 = vpop.f32.mrb[0].mxu0
        %v6072 = vadd.f32 %v5959, %v6071
        %v6073 = vpop.f32.mrb[0].mxu0
        %v6074 = vadd.f32 %v5961, %v6073
        %v6075 = vpop.f32.mrb[0].mxu0
        %v6076 = vadd.f32 %v5963, %v6075
        %6077 = vdwg.mxu0
        %6078 = vmatprep.subr.bf16.mxu0 %v3670
        %6079 = vmatpush1.bf16.msra.mxu0 %v3669
        %6080 = vmatprep.subr.bf16.mxu0 %v3679
        %6081 = vmatpush1.bf16.msra.mxu0 %v3678
        %6082 = vmatprep.subr.bf16.mxu0 %v3688
        %6083 = vmatpush1.bf16.msra.mxu0 %v3687
        %6084 = vmatprep.subr.bf16.mxu0 %v3697
        %6085 = vmatpush1.bf16.msra.mxu0 %v3696
        %6086 = vmatprep.subr.bf16.mxu0 %v3706
        %6087 = vmatpush1.bf16.msra.mxu0 %v3705
        %6088 = vmatprep.subr.bf16.mxu0 %v3715
        %6089 = vmatpush1.bf16.msra.mxu0 %v3714
        %6090 = vmatprep.subr.bf16.mxu0 %v3724
        %6091 = vmatpush1.bf16.msra.mxu0 %v3723
        %6092 = vmatprep.subr.bf16.mxu0 %v3733
        %6093 = vmatpush1.bf16.msra.mxu0 %v3732
        %6094 = vmatprep.subr.bf16.mxu0 %v3742
        %6095 = vmatpush1.bf16.msra.mxu0 %v3741
        %6096 = vmatprep.subr.bf16.mxu0 %v3751
        %6097 = vmatpush1.bf16.msra.mxu0 %v3750
        %6098 = vmatprep.subr.bf16.mxu0 %v3760
        %6099 = vmatpush1.bf16.msra.mxu0 %v3759
        %6100 = vmatprep.subr.bf16.mxu0 %v3769
        %6101 = vmatpush1.bf16.msra.mxu0 %v3768
        %6102 = vmatprep.subr.bf16.mxu0 %v3778
        %6103 = vmatpush1.bf16.msra.mxu0 %v3777
        %6104 = vmatprep.subr.bf16.mxu0 %v3787
        %6105 = vmatpush1.bf16.msra.mxu0 %v3786
        %6106 = vmatprep.subr.bf16.mxu0 %v3796
        %6107 = vmatpush1.bf16.msra.mxu0 %v3795
        %6108 = vmatprep.subr.bf16.mxu0 %v3805
        %6109 = vmatpush1.bf16.msra.mxu0 %v3804
        %6110 = vmatprep.mubr.bf16.mxu0 %v1318
        %6111 = vmatmul.mubr.bf16.gmra.mrb[0].mxu0 %v1317
        %v6112 = vpop.f32.mrb[0].mxu0
        %v6113 = vadd.f32 %v6000, %v6112
        %v6114 = vpop.f32.mrb[0].mxu0
        %v6115 = vadd.f32 %v6002, %v6114
        %v6116 = vpop.f32.mrb[0].mxu0
        %v6117 = vadd.f32 %v6004, %v6116
        %v6118 = vpop.f32.mrb[0].mxu0
        %v6119 = vadd.f32 %v6006, %v6118
        %6120 = vmatprep.mubr.bf16.mxu0 %v1326
        %6121 = vmatmul.mubr.bf16.gmra.mrb[0].mxu0 %v1325
        %v6122 = vpop.f32.mrb[0].mxu0
        %v6123 = vadd.f32 %v6010, %v6122
        %v6124 = vpop.f32.mrb[0].mxu0
        %v6125 = vadd.f32 %v6012, %v6124
        %v6126 = vpop.f32.mrb[0].mxu0
        %v6127 = vadd.f32 %v6014, %v6126
        %v6128 = vpop.f32.mrb[0].mxu0
        %v6129 = vadd.f32 %v6016, %v6128
        %6130 = vmatprep.mubr.bf16.mxu0 %v1334
        %6131 = vmatmul.mubr.bf16.gmra.mrb[0].mxu0 %v1333
        %v6132 = vpop.f32.mrb[0].mxu0
        %v6133 = vadd.f32 %v6020, %v6132
        %v6134 = vpop.f32.mrb[0].mxu0
        %v6135 = vadd.f32 %v6022, %v6134
        %v6136 = vpop.f32.mrb[0].mxu0
        %v6137 = vadd.f32 %v6024, %v6136
        %v6138 = vpop.f32.mrb[0].mxu0
        %v6139 = vadd.f32 %v6026, %v6138
        %6140 = vmatprep.mubr.bf16.mxu0 %v1342
        %6141 = vmatmul.mubr.bf16.gmra.mrb[0].mxu0 %v1341
        %v6142 = vpop.f32.mrb[0].mxu0
        %v6143 = vadd.f32 %v6030, %v6142
        %v6144 = vpop.f32.mrb[0].mxu0
        %v6145 = vadd.f32 %v6032, %v6144
        %v6146 = vpop.f32.mrb[0].mxu0
        %v6147 = vadd.f32 %v6034, %v6146
        %v6148 = vpop.f32.mrb[0].mxu0
        %v6149 = vadd.f32 %v6036, %v6148
        %6150 = vmatprep.mubr.bf16.mxu0 %v1350
        %6151 = vmatmul.mubr.bf16.gmra.mrb[0].mxu0 %v1349
        %v6152 = vpop.f32.mrb[0].mxu0
        %v6153 = vadd.f32 %v6040, %v6152
        %v6154 = vpop.f32.mrb[0].mxu0
        %v6155 = vadd.f32 %v6042, %v6154
        %v6156 = vpop.f32.mrb[0].mxu0
        %v6157 = vadd.f32 %v6044, %v6156
        %v6158 = vpop.f32.mrb[0].mxu0
        %v6159 = vadd.f32 %v6046, %v6158
        %6160 = vmatprep.mubr.bf16.mxu0 %v1358
        %6161 = vmatmul.mubr.bf16.gmra.mrb[0].mxu0 %v1357
        %v6162 = vpop.f32.mrb[0].mxu0
        %v6163 = vadd.f32 %v6050, %v6162
        %v6164 = vpop.f32.mrb[0].mxu0
        %v6165 = vadd.f32 %v6052, %v6164
        %v6166 = vpop.f32.mrb[0].mxu0
        %v6167 = vadd.f32 %v6054, %v6166
        %v6168 = vpop.f32.mrb[0].mxu0
        %v6169 = vadd.f32 %v6056, %v6168
        %6170 = vmatprep.mubr.bf16.mxu0 %v1366
        %6171 = vmatmul.mubr.bf16.gmra.mrb[0].mxu0 %v1365
        %v6172 = vpop.f32.mrb[0].mxu0
        %v6173 = vadd.f32 %v6060, %v6172
        %v6174 = vpop.f32.mrb[0].mxu0
        %v6175 = vadd.f32 %v6062, %v6174
        %v6176 = vpop.f32.mrb[0].mxu0
        %v6177 = vadd.f32 %v6064, %v6176
        %v6178 = vpop.f32.mrb[0].mxu0
        %v6179 = vadd.f32 %v6066, %v6178
        %6180 = vmatprep.mubr.bf16.mxu0 %v1374
        %6181 = vmatmul.mubr.bf16.gmra.mrb[0].mxu0 %v1373
        %v6182 = vpop.f32.mrb[0].mxu0
        %v6183 = vadd.f32 %v6070, %v6182
        %v6184 = vpop.f32.mrb[0].mxu0
        %v6185 = vadd.f32 %v6072, %v6184
        %v6186 = vpop.f32.mrb[0].mxu0
        %v6187 = vadd.f32 %v6074, %v6186
        %v6188 = vpop.f32.mrb[0].mxu0
        %v6189 = vadd.f32 %v6076, %v6188
        %6190 = vdwg.mxu0
        %6191 = vmatprep.subr.bf16.mxu0 0
        %6192 = vmatpush1.bf16.msra.mxu0 %v3239
        %6193 = vmatprep.subr.bf16.mxu0 0
        %6194 = vmatpush1.bf16.msra.mxu0 %v3248
        %6195 = vmatprep.subr.bf16.mxu0 0
        %6196 = vmatpush1.bf16.msra.mxu0 %v3257
        %6197 = vmatprep.subr.bf16.mxu0 0
        %6198 = vmatpush1.bf16.msra.mxu0 %v3266
        %6199 = vmatprep.subr.bf16.mxu0 0
        %6200 = vmatpush1.bf16.msra.mxu0 %v3275
        %6201 = vmatprep.subr.bf16.mxu0 0
        %6202 = vmatpush1.bf16.msra.mxu0 %v3284
        %6203 = vmatprep.subr.bf16.mxu0 0
        %6204 = vmatpush1.bf16.msra.mxu0 %v3293
        %6205 = vmatprep.subr.bf16.mxu0 0
        %6206 = vmatpush1.bf16.msra.mxu0 %v3302
        %6207 = vmatprep.subr.bf16.mxu0 0
        %6208 = vmatpush1.bf16.msra.mxu0 %v3311
        %6209 = vmatprep.subr.bf16.mxu0 0
        %6210 = vmatpush1.bf16.msra.mxu0 %v3320
        %6211 = vmatprep.subr.bf16.mxu0 0
        %6212 = vmatpush1.bf16.msra.mxu0 %v3329
        %6213 = vmatprep.subr.bf16.mxu0 0
        %6214 = vmatpush1.bf16.msra.mxu0 %v3338
        %6215 = vmatprep.subr.bf16.mxu0 0
        %6216 = vmatpush1.bf16.msra.mxu0 %v3347
        %6217 = vmatprep.subr.bf16.mxu0 0
        %6218 = vmatpush1.bf16.msra.mxu0 %v3356
        %6219 = vmatprep.subr.bf16.mxu0 0
        %6220 = vmatpush1.bf16.msra.mxu0 %v3365
        %6221 = vmatprep.subr.bf16.mxu0 0
        %6222 = vmatpush1.bf16.msra.mxu0 %v3374
        %6223 = vmatprep.mubr.bf16.mxu0 %v1312
        %6224 = vmatmul.mubr.bf16.gmra.mrb[0].mxu0 %v1311
        %v6225 = vpop.f32.mrb[0].mxu0
        %v6226 = vadd.f32 0.0, %v6225
        %v6227 = vpop.f32.mrb[0].mxu0
        %v6228 = vpop.f32.mrb[0].mxu0
        %v6229 = vadd.f32 0.0, %v6228
        %v6230 = vpop.f32.mrb[0].mxu0
        %6231 = vmatprep.mubr.bf16.mxu0 %v1320
        %6232 = vmatmul.mubr.bf16.gmra.mrb[0].mxu0 %v1319
        %v6233 = vpop.f32.mrb[0].mxu0
        %v6234 = vadd.f32 0.0, %v6233
        %v6235 = vpop.f32.mrb[0].mxu0
        %v6236 = vpop.f32.mrb[0].mxu0
        %v6237 = vadd.f32 0.0, %v6236
        %v6238 = vpop.f32.mrb[0].mxu0
        %6239 = vmatprep.mubr.bf16.mxu0 %v1328
        %6240 = vmatmul.mubr.bf16.gmra.mrb[0].mxu0 %v1327
        %v6241 = vpop.f32.mrb[0].mxu0
        %v6242 = vadd.f32 0.0, %v6241
        %v6243 = vpop.f32.mrb[0].mxu0
        %v6244 = vpop.f32.mrb[0].mxu0
        %v6245 = vadd.f32 0.0, %v6244
        %v6246 = vpop.f32.mrb[0].mxu0
        %6247 = vmatprep.mubr.bf16.mxu0 %v1336
        %6248 = vmatmul.mubr.bf16.gmra.mrb[0].mxu0 %v1335
        %v6249 = vpop.f32.mrb[0].mxu0
        %v6250 = vadd.f32 0.0, %v6249
        %v6251 = vpop.f32.mrb[0].mxu0
        %v6252 = vpop.f32.mrb[0].mxu0
        %v6253 = vadd.f32 0.0, %v6252
        %v6254 = vpop.f32.mrb[0].mxu0
        %6255 = vmatprep.mubr.bf16.mxu0 %v1344
        %6256 = vmatmul.mubr.bf16.gmra.mrb[0].mxu0 %v1343
        %v6257 = vpop.f32.mrb[0].mxu0
        %v6258 = vadd.f32 0.0, %v6257
        %v6259 = vpop.f32.mrb[0].mxu0
        %v6260 = vpop.f32.mrb[0].mxu0
        %v6261 = vadd.f32 0.0, %v6260
        %v6262 = vpop.f32.mrb[0].mxu0
        %6263 = vmatprep.mubr.bf16.mxu0 %v1352
        %6264 = vmatmul.mubr.bf16.gmra.mrb[0].mxu0 %v1351
        %v6265 = vpop.f32.mrb[0].mxu0
        %v6266 = vadd.f32 0.0, %v6265
        %v6267 = vpop.f32.mrb[0].mxu0
        %v6268 = vpop.f32.mrb[0].mxu0
        %v6269 = vadd.f32 0.0, %v6268
        %v6270 = vpop.f32.mrb[0].mxu0
        %6271 = vmatprep.mubr.bf16.mxu0 %v1360
        %6272 = vmatmul.mubr.bf16.gmra.mrb[0].mxu0 %v1359
        %v6273 = vpop.f32.mrb[0].mxu0
        %v6274 = vadd.f32 0.0, %v6273
        %v6275 = vpop.f32.mrb[0].mxu0
        %v6276 = vpop.f32.mrb[0].mxu0
        %v6277 = vadd.f32 0.0, %v6276
        %v6278 = vpop.f32.mrb[0].mxu0
        %6279 = vmatprep.mubr.bf16.mxu0 %v1368
        %6280 = vmatmul.mubr.bf16.gmra.mrb[0].mxu0 %v1367
        %v6281 = vpop.f32.mrb[0].mxu0
        %v6282 = vadd.f32 0.0, %v6281
        %v6283 = vpop.f32.mrb[0].mxu0
        %v6284 = vpop.f32.mrb[0].mxu0
        %v6285 = vadd.f32 0.0, %v6284
        %v6286 = vpop.f32.mrb[0].mxu0
        %6287 = vdwg.mxu0
        %6288 = vmatprep.subr.bf16.mxu0 0
        %6289 = vmatpush1.bf16.msra.mxu0 %v3383
        %6290 = vmatprep.subr.bf16.mxu0 0
        %6291 = vmatpush1.bf16.msra.mxu0 %v3392
        %6292 = vmatprep.subr.bf16.mxu0 0
        %6293 = vmatpush1.bf16.msra.mxu0 %v3401
        %6294 = vmatprep.subr.bf16.mxu0 0
        %6295 = vmatpush1.bf16.msra.mxu0 %v3410
        %6296 = vmatprep.subr.bf16.mxu0 0
        %6297 = vmatpush1.bf16.msra.mxu0 %v3419
        %6298 = vmatprep.subr.bf16.mxu0 0
        %6299 = vmatpush1.bf16.msra.mxu0 %v3428
        %6300 = vmatprep.subr.bf16.mxu0 0
        %6301 = vmatpush1.bf16.msra.mxu0 %v3437
        %6302 = vmatprep.subr.bf16.mxu0 0
        %6303 = vmatpush1.bf16.msra.mxu0 %v3446
        %6304 = vmatprep.subr.bf16.mxu0 0
        %6305 = vmatpush1.bf16.msra.mxu0 %v3455
        %6306 = vmatprep.subr.bf16.mxu0 0
        %6307 = vmatpush1.bf16.msra.mxu0 %v3464
        %6308 = vmatprep.subr.bf16.mxu0 0
        %6309 = vmatpush1.bf16.msra.mxu0 %v3473
        %6310 = vmatprep.subr.bf16.mxu0 0
        %6311 = vmatpush1.bf16.msra.mxu0 %v3482
        %6312 = vmatprep.subr.bf16.mxu0 0
        %6313 = vmatpush1.bf16.msra.mxu0 %v3491
        %6314 = vmatprep.subr.bf16.mxu0 0
        %6315 = vmatpush1.bf16.msra.mxu0 %v3500
        %6316 = vmatprep.subr.bf16.mxu0 0
        %6317 = vmatpush1.bf16.msra.mxu0 %v3509
        %6318 = vmatprep.subr.bf16.mxu0 0
        %6319 = vmatpush1.bf16.msra.mxu0 %v3518
        %6320 = vmatprep.mubr.bf16.mxu0 %v1314
        %6321 = vmatmul.mubr.bf16.gmra.mrb[0].mxu0 %v1313
        %v6322 = vpop.f32.mrb[0].mxu0
        %v6323 = vadd.f32 %v6226, %v6322
        %v6324 = vpop.f32.mrb[0].mxu0
        %v6325 = vpop.f32.mrb[0].mxu0
        %v6326 = vadd.f32 %v6229, %v6325
        %v6327 = vpop.f32.mrb[0].mxu0
        %6328 = vmatprep.mubr.bf16.mxu0 %v1322
        %6329 = vmatmul.mubr.bf16.gmra.mrb[0].mxu0 %v1321
        %v6330 = vpop.f32.mrb[0].mxu0
        %v6331 = vadd.f32 %v6234, %v6330
        %v6332 = vpop.f32.mrb[0].mxu0
        %v6333 = vpop.f32.mrb[0].mxu0
        %v6334 = vadd.f32 %v6237, %v6333
        %v6335 = vpop.f32.mrb[0].mxu0
        %6336 = vmatprep.mubr.bf16.mxu0 %v1330
        %6337 = vmatmul.mubr.bf16.gmra.mrb[0].mxu0 %v1329
        %v6338 = vpop.f32.mrb[0].mxu0
        %v6339 = vadd.f32 %v6242, %v6338
        %v6340 = vpop.f32.mrb[0].mxu0
        %v6341 = vpop.f32.mrb[0].mxu0
        %v6342 = vadd.f32 %v6245, %v6341
        %v6343 = vpop.f32.mrb[0].mxu0
        %6344 = vmatprep.mubr.bf16.mxu0 %v1338
        %6345 = vmatmul.mubr.bf16.gmra.mrb[0].mxu0 %v1337
        %v6346 = vpop.f32.mrb[0].mxu0
        %v6347 = vadd.f32 %v6250, %v6346
        %v6348 = vpop.f32.mrb[0].mxu0
        %v6349 = vpop.f32.mrb[0].mxu0
        %v6350 = vadd.f32 %v6253, %v6349
        %v6351 = vpop.f32.mrb[0].mxu0
        %6352 = vmatprep.mubr.bf16.mxu0 %v1346
        %6353 = vmatmul.mubr.bf16.gmra.mrb[0].mxu0 %v1345
        %v6354 = vpop.f32.mrb[0].mxu0
        %v6355 = vadd.f32 %v6258, %v6354
        %v6356 = vpop.f32.mrb[0].mxu0
        %v6357 = vpop.f32.mrb[0].mxu0
        %v6358 = vadd.f32 %v6261, %v6357
        %v6359 = vpop.f32.mrb[0].mxu0
        %6360 = vmatprep.mubr.bf16.mxu0 %v1354
        %6361 = vmatmul.mubr.bf16.gmra.mrb[0].mxu0 %v1353
        %v6362 = vpop.f32.mrb[0].mxu0
        %v6363 = vadd.f32 %v6266, %v6362
        %v6364 = vpop.f32.mrb[0].mxu0
        %v6365 = vpop.f32.mrb[0].mxu0
        %v6366 = vadd.f32 %v6269, %v6365
        %v6367 = vpop.f32.mrb[0].mxu0
        %6368 = vmatprep.mubr.bf16.mxu0 %v1362
        %6369 = vmatmul.mubr.bf16.gmra.mrb[0].mxu0 %v1361
        %v6370 = vpop.f32.mrb[0].mxu0
        %v6371 = vadd.f32 %v6274, %v6370
        %v6372 = vpop.f32.mrb[0].mxu0
        %v6373 = vpop.f32.mrb[0].mxu0
        %v6374 = vadd.f32 %v6277, %v6373
        %v6375 = vpop.f32.mrb[0].mxu0
        %6376 = vmatprep.mubr.bf16.mxu0 %v1370
        %6377 = vmatmul.mubr.bf16.gmra.mrb[0].mxu0 %v1369
        %v6378 = vpop.f32.mrb[0].mxu0
        %v6379 = vadd.f32 %v6282, %v6378
        %v6380 = vpop.f32.mrb[0].mxu0
        %v6381 = vpop.f32.mrb[0].mxu0
        %v6382 = vadd.f32 %v6285, %v6381
        %v6383 = vpop.f32.mrb[0].mxu0
        %6384 = vdwg.mxu0
        %6385 = vmatprep.subr.bf16.mxu0 0
        %6386 = vmatpush1.bf16.msra.mxu0 %v3527
        %6387 = vmatprep.subr.bf16.mxu0 0
        %6388 = vmatpush1.bf16.msra.mxu0 %v3536
        %6389 = vmatprep.subr.bf16.mxu0 0
        %6390 = vmatpush1.bf16.msra.mxu0 %v3545
        %6391 = vmatprep.subr.bf16.mxu0 0
        %6392 = vmatpush1.bf16.msra.mxu0 %v3554
        %6393 = vmatprep.subr.bf16.mxu0 0
        %6394 = vmatpush1.bf16.msra.mxu0 %v3563
        %6395 = vmatprep.subr.bf16.mxu0 0
        %6396 = vmatpush1.bf16.msra.mxu0 %v3572
        %6397 = vmatprep.subr.bf16.mxu0 0
        %6398 = vmatpush1.bf16.msra.mxu0 %v3581
        %6399 = vmatprep.subr.bf16.mxu0 0
        %6400 = vmatpush1.bf16.msra.mxu0 %v3590
        %6401 = vmatprep.subr.bf16.mxu0 0
        %6402 = vmatpush1.bf16.msra.mxu0 %v3599
        %6403 = vmatprep.subr.bf16.mxu0 0
        %6404 = vmatpush1.bf16.msra.mxu0 %v3608
        %6405 = vmatprep.subr.bf16.mxu0 0
        %6406 = vmatpush1.bf16.msra.mxu0 %v3617
        %6407 = vmatprep.subr.bf16.mxu0 0
        %6408 = vmatpush1.bf16.msra.mxu0 %v3626
        %6409 = vmatprep.subr.bf16.mxu0 0
        %6410 = vmatpush1.bf16.msra.mxu0 %v3635
        %6411 = vmatprep.subr.bf16.mxu0 0
        %6412 = vmatpush1.bf16.msra.mxu0 %v3644
        %6413 = vmatprep.subr.bf16.mxu0 0
        %6414 = vmatpush1.bf16.msra.mxu0 %v3653
        %6415 = vmatprep.subr.bf16.mxu0 0
        %6416 = vmatpush1.bf16.msra.mxu0 %v3662
        %6417 = vmatprep.mubr.bf16.mxu0 %v1316
        %6418 = vmatmul.mubr.bf16.gmra.mrb[0].mxu0 %v1315
        %v6419 = vpop.f32.mrb[0].mxu0
        %v6420 = vadd.f32 %v6323, %v6419
        %v6421 = vpop.f32.mrb[0].mxu0
        %v6422 = vpop.f32.mrb[0].mxu0
        %v6423 = vadd.f32 %v6326, %v6422
        %v6424 = vpop.f32.mrb[0].mxu0
        %6425 = vmatprep.mubr.bf16.mxu0 %v1324
        %6426 = vmatmul.mubr.bf16.gmra.mrb[0].mxu0 %v1323
        %v6427 = vpop.f32.mrb[0].mxu0
        %v6428 = vadd.f32 %v6331, %v6427
        %v6429 = vpop.f32.mrb[0].mxu0
        %v6430 = vpop.f32.mrb[0].mxu0
        %v6431 = vadd.f32 %v6334, %v6430
        %v6432 = vpop.f32.mrb[0].mxu0
        %6433 = vmatprep.mubr.bf16.mxu0 %v1332
        %6434 = vmatmul.mubr.bf16.gmra.mrb[0].mxu0 %v1331
        %v6435 = vpop.f32.mrb[0].mxu0
        %v6436 = vadd.f32 %v6339, %v6435
        %v6437 = vpop.f32.mrb[0].mxu0
        %v6438 = vpop.f32.mrb[0].mxu0
        %v6439 = vadd.f32 %v6342, %v6438
        %v6440 = vpop.f32.mrb[0].mxu0
        %6441 = vmatprep.mubr.bf16.mxu0 %v1340
        %6442 = vmatmul.mubr.bf16.gmra.mrb[0].mxu0 %v1339
        %v6443 = vpop.f32.mrb[0].mxu0
        %v6444 = vadd.f32 %v6347, %v6443
        %v6445 = vpop.f32.mrb[0].mxu0
        %v6446 = vpop.f32.mrb[0].mxu0
        %v6447 = vadd.f32 %v6350, %v6446
        %v6448 = vpop.f32.mrb[0].mxu0
        %6449 = vmatprep.mubr.bf16.mxu0 %v1348
        %6450 = vmatmul.mubr.bf16.gmra.mrb[0].mxu0 %v1347
        %v6451 = vpop.f32.mrb[0].mxu0
        %v6452 = vadd.f32 %v6355, %v6451
        %v6453 = vpop.f32.mrb[0].mxu0
        %v6454 = vpop.f32.mrb[0].mxu0
        %v6455 = vadd.f32 %v6358, %v6454
        %v6456 = vpop.f32.mrb[0].mxu0
        %6457 = vmatprep.mubr.bf16.mxu0 %v1356
        %6458 = vmatmul.mubr.bf16.gmra.mrb[0].mxu0 %v1355
        %v6459 = vpop.f32.mrb[0].mxu0
        %v6460 = vadd.f32 %v6363, %v6459
        %v6461 = vpop.f32.mrb[0].mxu0
        %v6462 = vpop.f32.mrb[0].mxu0
        %v6463 = vadd.f32 %v6366, %v6462
        %v6464 = vpop.f32.mrb[0].mxu0
        %6465 = vmatprep.mubr.bf16.mxu0 %v1364
        %6466 = vmatmul.mubr.bf16.gmra.mrb[0].mxu0 %v1363
        %v6467 = vpop.f32.mrb[0].mxu0
        %v6468 = vadd.f32 %v6371, %v6467
        %v6469 = vpop.f32.mrb[0].mxu0
        %v6470 = vpop.f32.mrb[0].mxu0
        %v6471 = vadd.f32 %v6374, %v6470
        %v6472 = vpop.f32.mrb[0].mxu0
        %6473 = vmatprep.mubr.bf16.mxu0 %v1372
        %6474 = vmatmul.mubr.bf16.gmra.mrb[0].mxu0 %v1371
        %v6475 = vpop.f32.mrb[0].mxu0
        %v6476 = vadd.f32 %v6379, %v6475
        %v6477 = vpop.f32.mrb[0].mxu0
        %v6478 = vpop.f32.mrb[0].mxu0
        %v6479 = vadd.f32 %v6382, %v6478
        %v6480 = vpop.f32.mrb[0].mxu0
        %6481 = vdwg.mxu0
        %6482 = vmatprep.subr.bf16.mxu0 0
        %6483 = vmatpush1.bf16.msra.mxu0 %v3671
        %6484 = vmatprep.subr.bf16.mxu0 0
        %6485 = vmatpush1.bf16.msra.mxu0 %v3680
        %6486 = vmatprep.subr.bf16.mxu0 0
        %6487 = vmatpush1.bf16.msra.mxu0 %v3689
        %6488 = vmatprep.subr.bf16.mxu0 0
        %6489 = vmatpush1.bf16.msra.mxu0 %v3698
        %6490 = vmatprep.subr.bf16.mxu0 0
        %6491 = vmatpush1.bf16.msra.mxu0 %v3707
        %6492 = vmatprep.subr.bf16.mxu0 0
        %6493 = vmatpush1.bf16.msra.mxu0 %v3716
        %6494 = vmatprep.subr.bf16.mxu0 0
        %6495 = vmatpush1.bf16.msra.mxu0 %v3725
        %6496 = vmatprep.subr.bf16.mxu0 0
        %6497 = vmatpush1.bf16.msra.mxu0 %v3734
        %6498 = vmatprep.subr.bf16.mxu0 0
        %6499 = vmatpush1.bf16.msra.mxu0 %v3743
        %6500 = vmatprep.subr.bf16.mxu0 0
        %6501 = vmatpush1.bf16.msra.mxu0 %v3752
        %6502 = vmatprep.subr.bf16.mxu0 0
        %6503 = vmatpush1.bf16.msra.mxu0 %v3761
        %6504 = vmatprep.subr.bf16.mxu0 0
        %6505 = vmatpush1.bf16.msra.mxu0 %v3770
        %6506 = vmatprep.subr.bf16.mxu0 0
        %6507 = vmatpush1.bf16.msra.mxu0 %v3779
        %6508 = vmatprep.subr.bf16.mxu0 0
        %6509 = vmatpush1.bf16.msra.mxu0 %v3788
        %6510 = vmatprep.subr.bf16.mxu0 0
        %6511 = vmatpush1.bf16.msra.mxu0 %v3797
        %6512 = vmatprep.subr.bf16.mxu0 0
        %6513 = vmatpush1.bf16.msra.mxu0 %v3806
        %6514 = vmatprep.mubr.bf16.mxu0 %v1318
        %6515 = vmatmul.mubr.bf16.gmra.mrb[0].mxu0 %v1317
        %v6516 = vpop.f32.mrb[0].mxu0
        %v6517 = vadd.f32 %v6420, %v6516
        %v6518 = vpop.f32.mrb[0].mxu0
        %v6519 = vpop.f32.mrb[0].mxu0
        %v6520 = vadd.f32 %v6423, %v6519
        %v6521 = vpop.f32.mrb[0].mxu0
        %6522 = vmatprep.mubr.bf16.mxu0 %v1326
        %6523 = vmatmul.mubr.bf16.gmra.mrb[0].mxu0 %v1325
        %v6524 = vpop.f32.mrb[0].mxu0
        %v6525 = vadd.f32 %v6428, %v6524
        %v6526 = vpop.f32.mrb[0].mxu0
        %v6527 = vpop.f32.mrb[0].mxu0
        %v6528 = vadd.f32 %v6431, %v6527
        %v6529 = vpop.f32.mrb[0].mxu0
        %6530 = vmatprep.mubr.bf16.mxu0 %v1334
        %6531 = vmatmul.mubr.bf16.gmra.mrb[0].mxu0 %v1333
        %v6532 = vpop.f32.mrb[0].mxu0
        %v6533 = vadd.f32 %v6436, %v6532
        %v6534 = vpop.f32.mrb[0].mxu0
        %v6535 = vpop.f32.mrb[0].mxu0
        %v6536 = vadd.f32 %v6439, %v6535
        %v6537 = vpop.f32.mrb[0].mxu0
        %6538 = vmatprep.mubr.bf16.mxu0 %v1342
        %6539 = vmatmul.mubr.bf16.gmra.mrb[0].mxu0 %v1341
        %v6540 = vpop.f32.mrb[0].mxu0
        %v6541 = vadd.f32 %v6444, %v6540
        %v6542 = vpop.f32.mrb[0].mxu0
        %v6543 = vpop.f32.mrb[0].mxu0
        %v6544 = vadd.f32 %v6447, %v6543
        %v6545 = vpop.f32.mrb[0].mxu0
        %6546 = vmatprep.mubr.bf16.mxu0 %v1350
        %6547 = vmatmul.mubr.bf16.gmra.mrb[0].mxu0 %v1349
        %v6548 = vpop.f32.mrb[0].mxu0
        %v6549 = vadd.f32 %v6452, %v6548
        %v6550 = vpop.f32.mrb[0].mxu0
        %v6551 = vpop.f32.mrb[0].mxu0
        %v6552 = vadd.f32 %v6455, %v6551
        %v6553 = vpop.f32.mrb[0].mxu0
        %6554 = vmatprep.mubr.bf16.mxu0 %v1358
        %6555 = vmatmul.mubr.bf16.gmra.mrb[0].mxu0 %v1357
        %v6556 = vpop.f32.mrb[0].mxu0
        %v6557 = vadd.f32 %v6460, %v6556
        %v6558 = vpop.f32.mrb[0].mxu0
        %v6559 = vpop.f32.mrb[0].mxu0
        %v6560 = vadd.f32 %v6463, %v6559
        %v6561 = vpop.f32.mrb[0].mxu0
        %6562 = vmatprep.mubr.bf16.mxu0 %v1366
        %6563 = vmatmul.mubr.bf16.gmra.mrb[0].mxu0 %v1365
        %v6564 = vpop.f32.mrb[0].mxu0
        %v6565 = vadd.f32 %v6468, %v6564
        %v6566 = vpop.f32.mrb[0].mxu0
        %v6567 = vpop.f32.mrb[0].mxu0
        %v6568 = vadd.f32 %v6471, %v6567
        %v6569 = vpop.f32.mrb[0].mxu0
        %6570 = vmatprep.mubr.bf16.mxu0 %v1374
        %6571 = vmatmul.mubr.bf16.gmra.mrb[0].mxu0 %v1373
        %v6572 = vpop.f32.mrb[0].mxu0
        %v6573 = vadd.f32 %v6476, %v6572
        %v6574 = vpop.f32.mrb[0].mxu0
        %v6575 = vpop.f32.mrb[0].mxu0
        %v6576 = vadd.f32 %v6479, %v6575
        %v6577 = vpop.f32.mrb[0].mxu0
        %6578 = vdwg.mxu0
        %v6579 = vrot.slane %v4757, 7
        %v6580 = vrot.slane %v4761, 7
        %v6581 = vrot.slane %v4767, 7
        %v6582 = vrot.slane %v4771, 7
        %v6583 = vrot.slane %v4777, 7
        %v6584 = vrot.slane %v4781, 7
        %v6585 = vrot.slane %v4787, 7
        %v6586 = vrot.slane %v4791, 7
        %v6587 = vrot.slane %v4797, 7
        %v6588 = vrot.slane %v4801, 7
        %v6589 = vrot.slane %v4807, 7
        %v6590 = vrot.slane %v4811, 7
        %v6591 = vrot.slane %v4817, 7
        %v6592 = vrot.slane %v4821, 7
        %v6593 = vrot.slane %v4827, 7
        %v6594 = vrot.slane %v4831, 7
        %v6595 = vlaneseq
        %v6596 = vshrl.u32 %v6595, 7
        %vm6597 = vcmp.lt.s32.totalorder %v6596, 1
        %v6598 = vsel %vm6597, %v6593, %v6594
        %v6599 = vsel %vm6597, %v6592, %v6593
        %v6600 = vsel %vm6597, %v6591, %v6592
        %v6601 = vsel %vm6597, %v6590, %v6591
        %v6602 = vsel %vm6597, %v6589, %v6590
        %v6603 = vsel %vm6597, %v6588, %v6589
        %v6604 = vsel %vm6597, %v6587, %v6588
        %v6605 = vsel %vm6597, %v6586, %v6587
        %v6606 = vsel %vm6597, %v6585, %v6586
        %v6607 = vsel %vm6597, %v6584, %v6585
        %v6608 = vsel %vm6597, %v6583, %v6584
        %v6609 = vsel %vm6597, %v6582, %v6583
        %v6610 = vsel %vm6597, %v6581, %v6582
        %v6611 = vsel %vm6597, %v6580, %v6581
        %v6612 = vsel %vm6597, %v6579, %v6580
        %v6613 = vsel %vm6597, %v6594, %v6579
        %vm6614 = vcmp.ge.s32.totalorder %v383, 1
        %vm6615 = vcmp.ge.s32.totalorder %v384, 1
        %vm6616 = vcmp.ge.s32.totalorder %v385, 1
        %vm6617 = vcmp.ge.s32.totalorder %v386, 1
        %vm6618 = vcmp.ge.s32.totalorder %v387, 1
        %vm6619 = vcmp.ge.s32.totalorder %v388, 1
        %vm6620 = vcmp.ge.s32.totalorder %v389, 1
        %vm6621 = vcmp.ge.s32.totalorder %v390, 1
        %vm6622 = vcmp.ge.s32.totalorder %v391, 1
        %vm6623 = vcmp.ge.s32.totalorder %v392, 1
        %vm6624 = vcmp.ge.s32.totalorder %v393, 1
        %vm6625 = vcmp.ge.s32.totalorder %v394, 1
        %vm6626 = vcmp.ge.s32.totalorder %v395, 1
        %vm6627 = vcmp.ge.s32.totalorder %v396, 1
        %vm6628 = vcmp.ge.s32.totalorder %v397, 1
        %vm6629 = vcmp.ge.s32.totalorder %v398, 1
        %vm6630 = vcmp.ge.s32.totalorder %v399, 1
        %vm6631 = vcmp.ge.s32.totalorder %v400, 1
        %vm6632 = vcmp.ge.s32.totalorder %v401, 1
        %vm6633 = vcmp.ge.s32.totalorder %v402, 1
        %vm6634 = vcmp.ge.s32.totalorder %v403, 1
        %vm6635 = vcmp.ge.s32.totalorder %v404, 1
        %vm6636 = vcmp.ge.s32.totalorder %v405, 1
        %vm6637 = vcmp.ge.s32.totalorder %v406, 1
        %vm6638 = vcmp.ge.s32.totalorder %v407, 1
        %vm6639 = vcmp.ge.s32.totalorder %v408, 1
        %vm6640 = vcmp.ge.s32.totalorder %v409, 1
        %vm6641 = vcmp.ge.s32.totalorder %v410, 1
        %vm6642 = vcmp.ge.s32.totalorder %v411, 1
        %vm6643 = vcmp.ge.s32.totalorder %v412, 1
        %vm6644 = vcmp.ge.s32.totalorder %v413, 1
        %vm6645 = vcmp.ge.s32.totalorder %v414, 1
        %vm6646 = vmand %vm6614, %vm6630
        %vm6647 = vmand %vm6615, %vm6631
        %vm6648 = vmand %vm6616, %vm6632
        %vm6649 = vmand %vm6617, %vm6633
        %vm6650 = vmand %vm6618, %vm6634
        %vm6651 = vmand %vm6619, %vm6635
        %vm6652 = vmand %vm6620, %vm6636
        %vm6653 = vmand %vm6621, %vm6637
        %vm6654 = vmand %vm6622, %vm6638
        %vm6655 = vmand %vm6623, %vm6639
        %vm6656 = vmand %vm6624, %vm6640
        %vm6657 = vmand %vm6625, %vm6641
        %vm6658 = vmand %vm6626, %vm6642
        %vm6659 = vmand %vm6627, %vm6643
        %vm6660 = vmand %vm6628, %vm6644
        %vm6661 = vmand %vm6629, %vm6645
        %v6662 = vsel %vm6646, 1, 0
        %v6663 = vsel %vm6647, 1, 0
        %v6664 = vsel %vm6648, 1, 0
        %v6665 = vsel %vm6649, 1, 0
        %v6666 = vsel %vm6650, 1, 0
        %v6667 = vsel %vm6651, 1, 0
        %v6668 = vsel %vm6652, 1, 0
        %v6669 = vsel %vm6653, 1, 0
        %v6670 = vsel %vm6654, 1, 0
        %v6671 = vsel %vm6655, 1, 0
        %v6672 = vsel %vm6656, 1, 0
        %v6673 = vsel %vm6657, 1, 0
        %v6674 = vsel %vm6658, 1, 0
        %v6675 = vsel %vm6659, 1, 0
        %v6676 = vsel %vm6660, 1, 0
        %v6677 = vsel %vm6661, 1, 0
        %6678 = vset.pattern.permute.xlu0 0
        %6679 = vperm.xlu0 %6678, %v6662
        %v6680 = vpop.permute.xlu0 %6679
        %6681 = vset.pattern.permute.xlu0 0
        %6682 = vperm.xlu0 %6681, %v6663
        %v6683 = vpop.permute.xlu0 %6682
        %6684 = vset.pattern.permute.xlu0 0
        %6685 = vperm.xlu0 %6684, %v6664
        %v6686 = vpop.permute.xlu0 %6685
        %6687 = vset.pattern.permute.xlu0 0
        %6688 = vperm.xlu0 %6687, %v6665
        %v6689 = vpop.permute.xlu0 %6688
        %6690 = vset.pattern.permute.xlu0 0
        %6691 = vperm.xlu0 %6690, %v6666
        %v6692 = vpop.permute.xlu0 %6691
        %6693 = vset.pattern.permute.xlu0 0
        %6694 = vperm.xlu0 %6693, %v6667
        %v6695 = vpop.permute.xlu0 %6694
        %6696 = vset.pattern.permute.xlu0 0
        %6697 = vperm.xlu0 %6696, %v6668
        %v6698 = vpop.permute.xlu0 %6697
        %6699 = vset.pattern.permute.xlu0 0
        %6700 = vperm.xlu0 %6699, %v6669
        %v6701 = vpop.permute.xlu0 %6700
        %6702 = vset.pattern.permute.xlu0 0
        %6703 = vperm.xlu0 %6702, %v6670
        %v6704 = vpop.permute.xlu0 %6703
        %6705 = vset.pattern.permute.xlu0 0
        %6706 = vperm.xlu0 %6705, %v6671
        %v6707 = vpop.permute.xlu0 %6706
        %6708 = vset.pattern.permute.xlu0 0
        %6709 = vperm.xlu0 %6708, %v6672
        %v6710 = vpop.permute.xlu0 %6709
        %6711 = vset.pattern.permute.xlu0 0
        %6712 = vperm.xlu0 %6711, %v6673
        %v6713 = vpop.permute.xlu0 %6712
        %6714 = vset.pattern.permute.xlu0 0
        %6715 = vperm.xlu0 %6714, %v6674
        %v6716 = vpop.permute.xlu0 %6715
        %6717 = vset.pattern.permute.xlu0 0
        %6718 = vperm.xlu0 %6717, %v6675
        %v6719 = vpop.permute.xlu0 %6718
        %6720 = vset.pattern.permute.xlu0 0
        %6721 = vperm.xlu0 %6720, %v6676
        %v6722 = vpop.permute.xlu0 %6721
        %6723 = vset.pattern.permute.xlu0 0
        %6724 = vperm.xlu0 %6723, %v6677
        %v6725 = vpop.permute.xlu0 %6724
        %vm6726 = vcmp.eq.s32.totalorder %v6680, 1
        %vm6727 = vcmp.eq.s32.totalorder %v6683, 1
        %vm6728 = vcmp.eq.s32.totalorder %v6686, 1
        %vm6729 = vcmp.eq.s32.totalorder %v6689, 1
        %vm6730 = vcmp.eq.s32.totalorder %v6692, 1
        %vm6731 = vcmp.eq.s32.totalorder %v6695, 1
        %vm6732 = vcmp.eq.s32.totalorder %v6698, 1
        %vm6733 = vcmp.eq.s32.totalorder %v6701, 1
        %vm6734 = vcmp.eq.s32.totalorder %v6704, 1
        %vm6735 = vcmp.eq.s32.totalorder %v6707, 1
        %vm6736 = vcmp.eq.s32.totalorder %v6710, 1
        %vm6737 = vcmp.eq.s32.totalorder %v6713, 1
        %vm6738 = vcmp.eq.s32.totalorder %v6716, 1
        %vm6739 = vcmp.eq.s32.totalorder %v6719, 1
        %vm6740 = vcmp.eq.s32.totalorder %v6722, 1
        %vm6741 = vcmp.eq.s32.totalorder %v6725, 1
        %v6742 = vsel %vm6726, %v6598, 0.0
        %v6743 = vsel %vm6727, %v6613, 0.0
        %v6744 = vsel %vm6728, %v6612, 0.0
        %v6745 = vsel %vm6729, %v6611, 0.0
        %v6746 = vsel %vm6730, %v6610, 0.0
        %v6747 = vsel %vm6731, %v6609, 0.0
        %v6748 = vsel %vm6732, %v6608, 0.0
        %v6749 = vsel %vm6733, %v6607, 0.0
        %v6750 = vsel %vm6734, %v6606, 0.0
        %v6751 = vsel %vm6735, %v6605, 0.0
        %v6752 = vsel %vm6736, %v6604, 0.0
        %v6753 = vsel %vm6737, %v6603, 0.0
        %v6754 = vsel %vm6738, %v6602, 0.0
        %v6755 = vsel %vm6739, %v6601, 0.0
        %v6756 = vsel %vm6740, %v6600, 0.0
        %v6757 = vsel %vm6741, %v6599, 0.0
        %v6758 = vadd.f32 %v5661, %v6742
        %v6759 = vadd.f32 %v5665, %v6743
        %v6760 = vadd.f32 %v5671, %v6744
        %v6761 = vadd.f32 %v5675, %v6745
        %v6762 = vadd.f32 %v5681, %v6746
        %v6763 = vadd.f32 %v5685, %v6747
        %v6764 = vadd.f32 %v5691, %v6748
        %v6765 = vadd.f32 %v5695, %v6749
        %v6766 = vadd.f32 %v5701, %v6750
        %v6767 = vadd.f32 %v5705, %v6751
        %v6768 = vadd.f32 %v5711, %v6752
        %v6769 = vadd.f32 %v5715, %v6753
        %v6770 = vadd.f32 %v5721, %v6754
        %v6771 = vadd.f32 %v5725, %v6755
        %v6772 = vadd.f32 %v5731, %v6756
        %v6773 = vadd.f32 %v5735, %v6757
        %v6774 = vsel %vm6614, 1, 0
        %v6775 = vsel %vm6615, 1, 0
        %v6776 = vsel %vm6616, 1, 0
        %v6777 = vsel %vm6617, 1, 0
        %v6778 = vsel %vm6618, 1, 0
        %v6779 = vsel %vm6619, 1, 0
        %v6780 = vsel %vm6620, 1, 0
        %v6781 = vsel %vm6621, 1, 0
        %v6782 = vsel %vm6622, 1, 0
        %v6783 = vsel %vm6623, 1, 0
        %v6784 = vsel %vm6624, 1, 0
        %v6785 = vsel %vm6625, 1, 0
        %v6786 = vsel %vm6626, 1, 0
        %v6787 = vsel %vm6627, 1, 0
        %v6788 = vsel %vm6628, 1, 0
        %v6789 = vsel %vm6629, 1, 0
        %6790 = vset.pattern.permute.xlu0 0
        %6791 = vperm.xlu0 %6790, %v6774
        %v6792 = vpop.permute.xlu0 %6791
        %6793 = vset.pattern.permute.xlu0 0
        %6794 = vperm.xlu0 %6793, %v6775
        %v6795 = vpop.permute.xlu0 %6794
        %6796 = vset.pattern.permute.xlu0 0
        %6797 = vperm.xlu0 %6796, %v6776
        %v6798 = vpop.permute.xlu0 %6797
        %6799 = vset.pattern.permute.xlu0 0
        %6800 = vperm.xlu0 %6799, %v6777
        %v6801 = vpop.permute.xlu0 %6800
        %6802 = vset.pattern.permute.xlu0 0
        %6803 = vperm.xlu0 %6802, %v6778
        %v6804 = vpop.permute.xlu0 %6803
        %6805 = vset.pattern.permute.xlu0 0
        %6806 = vperm.xlu0 %6805, %v6779
        %v6807 = vpop.permute.xlu0 %6806
        %6808 = vset.pattern.permute.xlu0 0
        %6809 = vperm.xlu0 %6808, %v6780
        %v6810 = vpop.permute.xlu0 %6809
        %6811 = vset.pattern.permute.xlu0 0
        %6812 = vperm.xlu0 %6811, %v6781
        %v6813 = vpop.permute.xlu0 %6812
        %6814 = vset.pattern.permute.xlu0 0
        %6815 = vperm.xlu0 %6814, %v6782
        %v6816 = vpop.permute.xlu0 %6815
        %6817 = vset.pattern.permute.xlu0 0
        %6818 = vperm.xlu0 %6817, %v6783
        %v6819 = vpop.permute.xlu0 %6818
        %6820 = vset.pattern.permute.xlu0 0
        %6821 = vperm.xlu0 %6820, %v6784
        %v6822 = vpop.permute.xlu0 %6821
        %6823 = vset.pattern.permute.xlu0 0
        %6824 = vperm.xlu0 %6823, %v6785
        %v6825 = vpop.permute.xlu0 %6824
        %6826 = vset.pattern.permute.xlu0 0
        %6827 = vperm.xlu0 %6826, %v6786
        %v6828 = vpop.permute.xlu0 %6827
        %6829 = vset.pattern.permute.xlu0 0
        %6830 = vperm.xlu0 %6829, %v6787
        %v6831 = vpop.permute.xlu0 %6830
        %6832 = vset.pattern.permute.xlu0 0
        %6833 = vperm.xlu0 %6832, %v6788
        %v6834 = vpop.permute.xlu0 %6833
        %6835 = vset.pattern.permute.xlu0 0
        %6836 = vperm.xlu0 %6835, %v6789
        %v6837 = vpop.permute.xlu0 %6836
        %vm6838 = vcmp.eq.s32.totalorder %v6792, 1
        %vm6839 = vcmp.eq.s32.totalorder %v6795, 1
        %vm6840 = vcmp.eq.s32.totalorder %v6798, 1
        %vm6841 = vcmp.eq.s32.totalorder %v6801, 1
        %vm6842 = vcmp.eq.s32.totalorder %v6804, 1
        %vm6843 = vcmp.eq.s32.totalorder %v6807, 1
        %vm6844 = vcmp.eq.s32.totalorder %v6810, 1
        %vm6845 = vcmp.eq.s32.totalorder %v6813, 1
        %vm6846 = vcmp.eq.s32.totalorder %v6816, 1
        %vm6847 = vcmp.eq.s32.totalorder %v6819, 1
        %vm6848 = vcmp.eq.s32.totalorder %v6822, 1
        %vm6849 = vcmp.eq.s32.totalorder %v6825, 1
        %vm6850 = vcmp.eq.s32.totalorder %v6828, 1
        %vm6851 = vcmp.eq.s32.totalorder %v6831, 1
        %vm6852 = vcmp.eq.s32.totalorder %v6834, 1
        %vm6853 = vcmp.eq.s32.totalorder %v6837, 1
        %v6854 = vsel %vm6838, %v4833, 0.0
        %v6855 = vsel %vm6839, %v4759, 0.0
        %v6856 = vsel %vm6840, %v4763, 0.0
        %v6857 = vsel %vm6841, %v4769, 0.0
        %v6858 = vsel %vm6842, %v4773, 0.0
        %v6859 = vsel %vm6843, %v4779, 0.0
        %v6860 = vsel %vm6844, %v4783, 0.0
        %v6861 = vsel %vm6845, %v4789, 0.0
        %v6862 = vsel %vm6846, %v4793, 0.0
        %v6863 = vsel %vm6847, %v4799, 0.0
        %v6864 = vsel %vm6848, %v4803, 0.0
        %v6865 = vsel %vm6849, %v4809, 0.0
        %v6866 = vsel %vm6850, %v4813, 0.0
        %v6867 = vsel %vm6851, %v4819, 0.0
        %v6868 = vsel %vm6852, %v4823, 0.0
        %v6869 = vsel %vm6853, %v4829, 0.0
        %v6870 = vadd.f32 %v6758, %v6854
        %v6871 = vadd.f32 %v6759, %v6855
        %v6872 = vadd.f32 %v6760, %v6856
        %v6873 = vadd.f32 %v6761, %v6857
        %v6874 = vadd.f32 %v6762, %v6858
        %v6875 = vadd.f32 %v6763, %v6859
        %v6876 = vadd.f32 %v6764, %v6860
        %v6877 = vadd.f32 %v6765, %v6861
        %v6878 = vadd.f32 %v6766, %v6862
        %v6879 = vadd.f32 %v6767, %v6863
        %v6880 = vadd.f32 %v6768, %v6864
        %v6881 = vadd.f32 %v6769, %v6865
        %v6882 = vadd.f32 %v6770, %v6866
        %v6883 = vadd.f32 %v6771, %v6867
        %v6884 = vadd.f32 %v6772, %v6868
        %v6885 = vadd.f32 %v6773, %v6869
        %v6886 = vrot.slane %v5209, 1
        %v6887 = vrot.slane %v5213, 1
        %v6888 = vrot.slane %v5219, 1
        %v6889 = vrot.slane %v5223, 1
        %v6890 = vrot.slane %v5229, 1
        %v6891 = vrot.slane %v5233, 1
        %v6892 = vrot.slane %v5239, 1
        %v6893 = vrot.slane %v5243, 1
        %v6894 = vrot.slane %v5249, 1
        %v6895 = vrot.slane %v5253, 1
        %v6896 = vrot.slane %v5259, 1
        %v6897 = vrot.slane %v5263, 1
        %v6898 = vrot.slane %v5269, 1
        %v6899 = vrot.slane %v5273, 1
        %v6900 = vrot.slane %v5279, 1
        %v6901 = vrot.slane %v5283, 1
        %vm6902 = vcmp.lt.s32.totalorder %v6596, 7
        %v6903 = vsel %vm6902, %v6900, %v6901
        %v6904 = vsel %vm6902, %v6899, %v6900
        %v6905 = vsel %vm6902, %v6898, %v6899
        %v6906 = vsel %vm6902, %v6897, %v6898
        %v6907 = vsel %vm6902, %v6896, %v6897
        %v6908 = vsel %vm6902, %v6895, %v6896
        %v6909 = vsel %vm6902, %v6894, %v6895
        %v6910 = vsel %vm6902, %v6893, %v6894
        %v6911 = vsel %vm6902, %v6892, %v6893
        %v6912 = vsel %vm6902, %v6891, %v6892
        %v6913 = vsel %vm6902, %v6890, %v6891
        %v6914 = vsel %vm6902, %v6889, %v6890
        %v6915 = vsel %vm6902, %v6888, %v6889
        %v6916 = vsel %vm6902, %v6887, %v6888
        %v6917 = vsel %vm6902, %v6886, %v6887
        %v6918 = vsel %vm6902, %v6901, %v6886
        %vm6919 = vcmp.le.s32.totalorder %v399, 6
        %vm6920 = vcmp.le.s32.totalorder %v400, 6
        %vm6921 = vcmp.le.s32.totalorder %v401, 6
        %vm6922 = vcmp.le.s32.totalorder %v402, 6
        %vm6923 = vcmp.le.s32.totalorder %v403, 6
        %vm6924 = vcmp.le.s32.totalorder %v404, 6
        %vm6925 = vcmp.le.s32.totalorder %v405, 6
        %vm6926 = vcmp.le.s32.totalorder %v406, 6
        %vm6927 = vcmp.le.s32.totalorder %v407, 6
        %vm6928 = vcmp.le.s32.totalorder %v408, 6
        %vm6929 = vcmp.le.s32.totalorder %v409, 6
        %vm6930 = vcmp.le.s32.totalorder %v410, 6
        %vm6931 = vcmp.le.s32.totalorder %v411, 6
        %vm6932 = vcmp.le.s32.totalorder %v412, 6
        %vm6933 = vcmp.le.s32.totalorder %v413, 6
        %vm6934 = vcmp.le.s32.totalorder %v414, 6
        %vm6935 = vmand %vm6614, %vm6919
        %vm6936 = vmand %vm6615, %vm6920
        %vm6937 = vmand %vm6616, %vm6921
        %vm6938 = vmand %vm6617, %vm6922
        %vm6939 = vmand %vm6618, %vm6923
        %vm6940 = vmand %vm6619, %vm6924
        %vm6941 = vmand %vm6620, %vm6925
        %vm6942 = vmand %vm6621, %vm6926
        %vm6943 = vmand %vm6622, %vm6927
        %vm6944 = vmand %vm6623, %vm6928
        %vm6945 = vmand %vm6624, %vm6929
        %vm6946 = vmand %vm6625, %vm6930
        %vm6947 = vmand %vm6626, %vm6931
        %vm6948 = vmand %vm6627, %vm6932
        %vm6949 = vmand %vm6628, %vm6933
        %vm6950 = vmand %vm6629, %vm6934
        %v6951 = vsel %vm6935, 1, 0
        %v6952 = vsel %vm6936, 1, 0
        %v6953 = vsel %vm6937, 1, 0
        %v6954 = vsel %vm6938, 1, 0
        %v6955 = vsel %vm6939, 1, 0
        %v6956 = vsel %vm6940, 1, 0
        %v6957 = vsel %vm6941, 1, 0
        %v6958 = vsel %vm6942, 1, 0
        %v6959 = vsel %vm6943, 1, 0
        %v6960 = vsel %vm6944, 1, 0
        %v6961 = vsel %vm6945, 1, 0
        %v6962 = vsel %vm6946, 1, 0
        %v6963 = vsel %vm6947, 1, 0
        %v6964 = vsel %vm6948, 1, 0
        %v6965 = vsel %vm6949, 1, 0
        %v6966 = vsel %vm6950, 1, 0
        %6967 = vset.pattern.permute.xlu0 0
        %6968 = vperm.xlu0 %6967, %v6951
        %v6969 = vpop.permute.xlu0 %6968
        %6970 = vset.pattern.permute.xlu0 0
        %6971 = vperm.xlu0 %6970, %v6952
        %v6972 = vpop.permute.xlu0 %6971
        %6973 = vset.pattern.permute.xlu0 0
        %6974 = vperm.xlu0 %6973, %v6953
        %v6975 = vpop.permute.xlu0 %6974
        %6976 = vset.pattern.permute.xlu0 0
        %6977 = vperm.xlu0 %6976, %v6954
        %v6978 = vpop.permute.xlu0 %6977
        %6979 = vset.pattern.permute.xlu0 0
        %6980 = vperm.xlu0 %6979, %v6955
        %v6981 = vpop.permute.xlu0 %6980
        %6982 = vset.pattern.permute.xlu0 0
        %6983 = vperm.xlu0 %6982, %v6956
        %v6984 = vpop.permute.xlu0 %6983
        %6985 = vset.pattern.permute.xlu0 0
        %6986 = vperm.xlu0 %6985, %v6957
        %v6987 = vpop.permute.xlu0 %6986
        %6988 = vset.pattern.permute.xlu0 0
        %6989 = vperm.xlu0 %6988, %v6958
        %v6990 = vpop.permute.xlu0 %6989
        %6991 = vset.pattern.permute.xlu0 0
        %6992 = vperm.xlu0 %6991, %v6959
        %v6993 = vpop.permute.xlu0 %6992
        %6994 = vset.pattern.permute.xlu0 0
        %6995 = vperm.xlu0 %6994, %v6960
        %v6996 = vpop.permute.xlu0 %6995
        %6997 = vset.pattern.permute.xlu0 0
        %6998 = vperm.xlu0 %6997, %v6961
        %v6999 = vpop.permute.xlu0 %6998
        %7000 = vset.pattern.permute.xlu0 0
        %7001 = vperm.xlu0 %7000, %v6962
        %v7002 = vpop.permute.xlu0 %7001
        %7003 = vset.pattern.permute.xlu0 0
        %7004 = vperm.xlu0 %7003, %v6963
        %v7005 = vpop.permute.xlu0 %7004
        %7006 = vset.pattern.permute.xlu0 0
        %7007 = vperm.xlu0 %7006, %v6964
        %v7008 = vpop.permute.xlu0 %7007
        %7009 = vset.pattern.permute.xlu0 0
        %7010 = vperm.xlu0 %7009, %v6965
        %v7011 = vpop.permute.xlu0 %7010
        %7012 = vset.pattern.permute.xlu0 0
        %7013 = vperm.xlu0 %7012, %v6966
        %v7014 = vpop.permute.xlu0 %7013
        %vm7015 = vcmp.eq.s32.totalorder %v6969, 1
        %vm7016 = vcmp.eq.s32.totalorder %v6972, 1
        %vm7017 = vcmp.eq.s32.totalorder %v6975, 1
        %vm7018 = vcmp.eq.s32.totalorder %v6978, 1
        %vm7019 = vcmp.eq.s32.totalorder %v6981, 1
        %vm7020 = vcmp.eq.s32.totalorder %v6984, 1
        %vm7021 = vcmp.eq.s32.totalorder %v6987, 1
        %vm7022 = vcmp.eq.s32.totalorder %v6990, 1
        %vm7023 = vcmp.eq.s32.totalorder %v6993, 1
        %vm7024 = vcmp.eq.s32.totalorder %v6996, 1
        %vm7025 = vcmp.eq.s32.totalorder %v6999, 1
        %vm7026 = vcmp.eq.s32.totalorder %v7002, 1
        %vm7027 = vcmp.eq.s32.totalorder %v7005, 1
        %vm7028 = vcmp.eq.s32.totalorder %v7008, 1
        %vm7029 = vcmp.eq.s32.totalorder %v7011, 1
        %vm7030 = vcmp.eq.s32.totalorder %v7014, 1
        %v7031 = vsel %vm7015, %v6918, 0.0
        %v7032 = vsel %vm7016, %v6917, 0.0
        %v7033 = vsel %vm7017, %v6916, 0.0
        %v7034 = vsel %vm7018, %v6915, 0.0
        %v7035 = vsel %vm7019, %v6914, 0.0
        %v7036 = vsel %vm7020, %v6913, 0.0
        %v7037 = vsel %vm7021, %v6912, 0.0
        %v7038 = vsel %vm7022, %v6911, 0.0
        %v7039 = vsel %vm7023, %v6910, 0.0
        %v7040 = vsel %vm7024, %v6909, 0.0
        %v7041 = vsel %vm7025, %v6908, 0.0
        %v7042 = vsel %vm7026, %v6907, 0.0
        %v7043 = vsel %vm7027, %v6906, 0.0
        %v7044 = vsel %vm7028, %v6905, 0.0
        %v7045 = vsel %vm7029, %v6904, 0.0
        %v7046 = vsel %vm7030, %v6903, 0.0
        %v7047 = vadd.f32 %v6870, %v7031
        %v7048 = vadd.f32 %v6871, %v7032
        %v7049 = vadd.f32 %v6872, %v7033
        %v7050 = vadd.f32 %v6873, %v7034
        %v7051 = vadd.f32 %v6874, %v7035
        %v7052 = vadd.f32 %v6875, %v7036
        %v7053 = vadd.f32 %v6876, %v7037
        %v7054 = vadd.f32 %v6877, %v7038
        %v7055 = vadd.f32 %v6878, %v7039
        %v7056 = vadd.f32 %v6879, %v7040
        %v7057 = vadd.f32 %v6880, %v7041
        %v7058 = vadd.f32 %v6881, %v7042
        %v7059 = vadd.f32 %v6882, %v7043
        %v7060 = vadd.f32 %v6883, %v7044
        %v7061 = vadd.f32 %v6884, %v7045
        %v7062 = vadd.f32 %v6885, %v7046
        %v7063 = vrot.slane %v5211, 7
        %v7064 = vrot.slane %v5215, 7
        %v7065 = vrot.slane %v5221, 7
        %v7066 = vrot.slane %v5225, 7
        %v7067 = vrot.slane %v5231, 7
        %v7068 = vrot.slane %v5235, 7
        %v7069 = vrot.slane %v5241, 7
        %v7070 = vrot.slane %v5245, 7
        %v7071 = vrot.slane %v5251, 7
        %v7072 = vrot.slane %v5255, 7
        %v7073 = vrot.slane %v5261, 7
        %v7074 = vrot.slane %v5265, 7
        %v7075 = vrot.slane %v5271, 7
        %v7076 = vrot.slane %v5275, 7
        %v7077 = vrot.slane %v5281, 7
        %v7078 = vrot.slane %v5285, 7
        %v7079 = vsel %vm6597, %v7077, %v7078
        %v7080 = vsel %vm6597, %v7076, %v7077
        %v7081 = vsel %vm6597, %v7075, %v7076
        %v7082 = vsel %vm6597, %v7074, %v7075
        %v7083 = vsel %vm6597, %v7073, %v7074
        %v7084 = vsel %vm6597, %v7072, %v7073
        %v7085 = vsel %vm6597, %v7071, %v7072
        %v7086 = vsel %vm6597, %v7070, %v7071
        %v7087 = vsel %vm6597, %v7069, %v7070
        %v7088 = vsel %vm6597, %v7068, %v7069
        %v7089 = vsel %vm6597, %v7067, %v7068
        %v7090 = vsel %vm6597, %v7066, %v7067
        %v7091 = vsel %vm6597, %v7065, %v7066
        %v7092 = vsel %vm6597, %v7064, %v7065
        %v7093 = vsel %vm6597, %v7063, %v7064
        %v7094 = vsel %vm6597, %v7078, %v7063
        %v7095 = vsel %vm6630, 1, 0
        %v7096 = vsel %vm6631, 1, 0
        %v7097 = vsel %vm6632, 1, 0
        %v7098 = vsel %vm6633, 1, 0
        %v7099 = vsel %vm6634, 1, 0
        %v7100 = vsel %vm6635, 1, 0
        %v7101 = vsel %vm6636, 1, 0
        %v7102 = vsel %vm6637, 1, 0
        %v7103 = vsel %vm6638, 1, 0
        %v7104 = vsel %vm6639, 1, 0
        %v7105 = vsel %vm6640, 1, 0
        %v7106 = vsel %vm6641, 1, 0
        %v7107 = vsel %vm6642, 1, 0
        %v7108 = vsel %vm6643, 1, 0
        %v7109 = vsel %vm6644, 1, 0
        %v7110 = vsel %vm6645, 1, 0
        %7111 = vset.pattern.permute.xlu0 0
        %7112 = vperm.xlu0 %7111, %v7095
        %v7113 = vpop.permute.xlu0 %7112
        %7114 = vset.pattern.permute.xlu0 0
        %7115 = vperm.xlu0 %7114, %v7096
        %v7116 = vpop.permute.xlu0 %7115
        %7117 = vset.pattern.permute.xlu0 0
        %7118 = vperm.xlu0 %7117, %v7097
        %v7119 = vpop.permute.xlu0 %7118
        %7120 = vset.pattern.permute.xlu0 0
        %7121 = vperm.xlu0 %7120, %v7098
        %v7122 = vpop.permute.xlu0 %7121
        %7123 = vset.pattern.permute.xlu0 0
        %7124 = vperm.xlu0 %7123, %v7099
        %v7125 = vpop.permute.xlu0 %7124
        %7126 = vset.pattern.permute.xlu0 0
        %7127 = vperm.xlu0 %7126, %v7100
        %v7128 = vpop.permute.xlu0 %7127
        %7129 = vset.pattern.permute.xlu0 0
        %7130 = vperm.xlu0 %7129, %v7101
        %v7131 = vpop.permute.xlu0 %7130
        %7132 = vset.pattern.permute.xlu0 0
        %7133 = vperm.xlu0 %7132, %v7102
        %v7134 = vpop.permute.xlu0 %7133
        %7135 = vset.pattern.permute.xlu0 0
        %7136 = vperm.xlu0 %7135, %v7103
        %v7137 = vpop.permute.xlu0 %7136
        %7138 = vset.pattern.permute.xlu0 0
        %7139 = vperm.xlu0 %7138, %v7104
        %v7140 = vpop.permute.xlu0 %7139
        %7141 = vset.pattern.permute.xlu0 0
        %7142 = vperm.xlu0 %7141, %v7105
        %v7143 = vpop.permute.xlu0 %7142
        %7144 = vset.pattern.permute.xlu0 0
        %7145 = vperm.xlu0 %7144, %v7106
        %v7146 = vpop.permute.xlu0 %7145
        %7147 = vset.pattern.permute.xlu0 0
        %7148 = vperm.xlu0 %7147, %v7107
        %v7149 = vpop.permute.xlu0 %7148
        %7150 = vset.pattern.permute.xlu0 0
        %7151 = vperm.xlu0 %7150, %v7108
        %v7152 = vpop.permute.xlu0 %7151
        %7153 = vset.pattern.permute.xlu0 0
        %7154 = vperm.xlu0 %7153, %v7109
        %v7155 = vpop.permute.xlu0 %7154
        %7156 = vset.pattern.permute.xlu0 0
        %7157 = vperm.xlu0 %7156, %v7110
        %v7158 = vpop.permute.xlu0 %7157
        %vm7159 = vcmp.eq.s32.totalorder %v7113, 1
        %vm7160 = vcmp.eq.s32.totalorder %v7116, 1
        %vm7161 = vcmp.eq.s32.totalorder %v7119, 1
        %vm7162 = vcmp.eq.s32.totalorder %v7122, 1
        %vm7163 = vcmp.eq.s32.totalorder %v7125, 1
        %vm7164 = vcmp.eq.s32.totalorder %v7128, 1
        %vm7165 = vcmp.eq.s32.totalorder %v7131, 1
        %vm7166 = vcmp.eq.s32.totalorder %v7134, 1
        %vm7167 = vcmp.eq.s32.totalorder %v7137, 1
        %vm7168 = vcmp.eq.s32.totalorder %v7140, 1
        %vm7169 = vcmp.eq.s32.totalorder %v7143, 1
        %vm7170 = vcmp.eq.s32.totalorder %v7146, 1
        %vm7171 = vcmp.eq.s32.totalorder %v7149, 1
        %vm7172 = vcmp.eq.s32.totalorder %v7152, 1
        %vm7173 = vcmp.eq.s32.totalorder %v7155, 1
        %vm7174 = vcmp.eq.s32.totalorder %v7158, 1
        %v7175 = vsel %vm7159, %v7094, 0.0
        %v7176 = vsel %vm7160, %v7093, 0.0
        %v7177 = vsel %vm7161, %v7092, 0.0
        %v7178 = vsel %vm7162, %v7091, 0.0
        %v7179 = vsel %vm7163, %v7090, 0.0
        %v7180 = vsel %vm7164, %v7089, 0.0
        %v7181 = vsel %vm7165, %v7088, 0.0
        %v7182 = vsel %vm7166, %v7087, 0.0
        %v7183 = vsel %vm7167, %v7086, 0.0
        %v7184 = vsel %vm7168, %v7085, 0.0
        %v7185 = vsel %vm7169, %v7084, 0.0
        %v7186 = vsel %vm7170, %v7083, 0.0
        %v7187 = vsel %vm7171, %v7082, 0.0
        %v7188 = vsel %vm7172, %v7081, 0.0
        %v7189 = vsel %vm7173, %v7080, 0.0
        %v7190 = vsel %vm7174, %v7079, 0.0
        %v7191 = vadd.f32 %v7047, %v7175
        %v7192 = vadd.f32 %v7048, %v7176
        %v7193 = vadd.f32 %v7049, %v7177
        %v7194 = vadd.f32 %v7050, %v7178
        %v7195 = vadd.f32 %v7051, %v7179
        %v7196 = vadd.f32 %v7052, %v7180
        %v7197 = vadd.f32 %v7053, %v7181
        %v7198 = vadd.f32 %v7054, %v7182
        %v7199 = vadd.f32 %v7055, %v7183
        %v7200 = vadd.f32 %v7056, %v7184
        %v7201 = vadd.f32 %v7057, %v7185
        %v7202 = vadd.f32 %v7058, %v7186
        %v7203 = vadd.f32 %v7059, %v7187
        %v7204 = vadd.f32 %v7060, %v7188
        %v7205 = vadd.f32 %v7061, %v7189
        %v7206 = vadd.f32 %v7062, %v7190
        %v7207 = vrot.slane %v5663, 1
        %v7208 = vrot.slane %v5667, 1
        %v7209 = vrot.slane %v5673, 1
        %v7210 = vrot.slane %v5677, 1
        %v7211 = vrot.slane %v5683, 1
        %v7212 = vrot.slane %v5687, 1
        %v7213 = vrot.slane %v5693, 1
        %v7214 = vrot.slane %v5697, 1
        %v7215 = vrot.slane %v5703, 1
        %v7216 = vrot.slane %v5707, 1
        %v7217 = vrot.slane %v5713, 1
        %v7218 = vrot.slane %v5717, 1
        %v7219 = vrot.slane %v5723, 1
        %v7220 = vrot.slane %v5727, 1
        %v7221 = vrot.slane %v5733, 1
        %v7222 = vrot.slane %v5737, 1
        %v7223 = vsel %vm6902, %v7221, %v7222
        %v7224 = vsel %vm6902, %v7220, %v7221
        %v7225 = vsel %vm6902, %v7219, %v7220
        %v7226 = vsel %vm6902, %v7218, %v7219
        %v7227 = vsel %vm6902, %v7217, %v7218
        %v7228 = vsel %vm6902, %v7216, %v7217
        %v7229 = vsel %vm6902, %v7215, %v7216
        %v7230 = vsel %vm6902, %v7214, %v7215
        %v7231 = vsel %vm6902, %v7213, %v7214
        %v7232 = vsel %vm6902, %v7212, %v7213
        %v7233 = vsel %vm6902, %v7211, %v7212
        %v7234 = vsel %vm6902, %v7210, %v7211
        %v7235 = vsel %vm6902, %v7209, %v7210
        %v7236 = vsel %vm6902, %v7208, %v7209
        %v7237 = vsel %vm6902, %v7207, %v7208
        %v7238 = vsel %vm6902, %v7222, %v7207
        %v7239 = vsel %vm6919, 1, 0
        %v7240 = vsel %vm6920, 1, 0
        %v7241 = vsel %vm6921, 1, 0
        %v7242 = vsel %vm6922, 1, 0
        %v7243 = vsel %vm6923, 1, 0
        %v7244 = vsel %vm6924, 1, 0
        %v7245 = vsel %vm6925, 1, 0
        %v7246 = vsel %vm6926, 1, 0
        %v7247 = vsel %vm6927, 1, 0
        %v7248 = vsel %vm6928, 1, 0
        %v7249 = vsel %vm6929, 1, 0
        %v7250 = vsel %vm6930, 1, 0
        %v7251 = vsel %vm6931, 1, 0
        %v7252 = vsel %vm6932, 1, 0
        %v7253 = vsel %vm6933, 1, 0
        %v7254 = vsel %vm6934, 1, 0
        %7255 = vset.pattern.permute.xlu0 0
        %7256 = vperm.xlu0 %7255, %v7239
        %v7257 = vpop.permute.xlu0 %7256
        %7258 = vset.pattern.permute.xlu0 0
        %7259 = vperm.xlu0 %7258, %v7240
        %v7260 = vpop.permute.xlu0 %7259
        %7261 = vset.pattern.permute.xlu0 0
        %7262 = vperm.xlu0 %7261, %v7241
        %v7263 = vpop.permute.xlu0 %7262
        %7264 = vset.pattern.permute.xlu0 0
        %7265 = vperm.xlu0 %7264, %v7242
        %v7266 = vpop.permute.xlu0 %7265
        %7267 = vset.pattern.permute.xlu0 0
        %7268 = vperm.xlu0 %7267, %v7243
        %v7269 = vpop.permute.xlu0 %7268
        %7270 = vset.pattern.permute.xlu0 0
        %7271 = vperm.xlu0 %7270, %v7244
        %v7272 = vpop.permute.xlu0 %7271
        %7273 = vset.pattern.permute.xlu0 0
        %7274 = vperm.xlu0 %7273, %v7245
        %v7275 = vpop.permute.xlu0 %7274
        %7276 = vset.pattern.permute.xlu0 0
        %7277 = vperm.xlu0 %7276, %v7246
        %v7278 = vpop.permute.xlu0 %7277
        %7279 = vset.pattern.permute.xlu0 0
        %7280 = vperm.xlu0 %7279, %v7247
        %v7281 = vpop.permute.xlu0 %7280
        %7282 = vset.pattern.permute.xlu0 0
        %7283 = vperm.xlu0 %7282, %v7248
        %v7284 = vpop.permute.xlu0 %7283
        %7285 = vset.pattern.permute.xlu0 0
        %7286 = vperm.xlu0 %7285, %v7249
        %v7287 = vpop.permute.xlu0 %7286
        %7288 = vset.pattern.permute.xlu0 0
        %7289 = vperm.xlu0 %7288, %v7250
        %v7290 = vpop.permute.xlu0 %7289
        %7291 = vset.pattern.permute.xlu0 0
        %7292 = vperm.xlu0 %7291, %v7251
        %v7293 = vpop.permute.xlu0 %7292
        %7294 = vset.pattern.permute.xlu0 0
        %7295 = vperm.xlu0 %7294, %v7252
        %v7296 = vpop.permute.xlu0 %7295
        %7297 = vset.pattern.permute.xlu0 0
        %7298 = vperm.xlu0 %7297, %v7253
        %v7299 = vpop.permute.xlu0 %7298
        %7300 = vset.pattern.permute.xlu0 0
        %7301 = vperm.xlu0 %7300, %v7254
        %v7302 = vpop.permute.xlu0 %7301
        %vm7303 = vcmp.eq.s32.totalorder %v7257, 1
        %vm7304 = vcmp.eq.s32.totalorder %v7260, 1
        %vm7305 = vcmp.eq.s32.totalorder %v7263, 1
        %vm7306 = vcmp.eq.s32.totalorder %v7266, 1
        %vm7307 = vcmp.eq.s32.totalorder %v7269, 1
        %vm7308 = vcmp.eq.s32.totalorder %v7272, 1
        %vm7309 = vcmp.eq.s32.totalorder %v7275, 1
        %vm7310 = vcmp.eq.s32.totalorder %v7278, 1
        %vm7311 = vcmp.eq.s32.totalorder %v7281, 1
        %vm7312 = vcmp.eq.s32.totalorder %v7284, 1
        %vm7313 = vcmp.eq.s32.totalorder %v7287, 1
        %vm7314 = vcmp.eq.s32.totalorder %v7290, 1
        %vm7315 = vcmp.eq.s32.totalorder %v7293, 1
        %vm7316 = vcmp.eq.s32.totalorder %v7296, 1
        %vm7317 = vcmp.eq.s32.totalorder %v7299, 1
        %vm7318 = vcmp.eq.s32.totalorder %v7302, 1
        %v7319 = vsel %vm7303, %v7237, 0.0
        %v7320 = vsel %vm7304, %v7236, 0.0
        %v7321 = vsel %vm7305, %v7235, 0.0
        %v7322 = vsel %vm7306, %v7234, 0.0
        %v7323 = vsel %vm7307, %v7233, 0.0
        %v7324 = vsel %vm7308, %v7232, 0.0
        %v7325 = vsel %vm7309, %v7231, 0.0
        %v7326 = vsel %vm7310, %v7230, 0.0
        %v7327 = vsel %vm7311, %v7229, 0.0
        %v7328 = vsel %vm7312, %v7228, 0.0
        %v7329 = vsel %vm7313, %v7227, 0.0
        %v7330 = vsel %vm7314, %v7226, 0.0
        %v7331 = vsel %vm7315, %v7225, 0.0
        %v7332 = vsel %vm7316, %v7224, 0.0
        %v7333 = vsel %vm7317, %v7223, 0.0
        %v7334 = vsel %vm7318, %v7238, 0.0
        %v7335 = vadd.f32 %v7191, %v7319
        %v7336 = vadd.f32 %v7192, %v7320
        %v7337 = vadd.f32 %v7193, %v7321
        %v7338 = vadd.f32 %v7194, %v7322
        %v7339 = vadd.f32 %v7195, %v7323
        %v7340 = vadd.f32 %v7196, %v7324
        %v7341 = vadd.f32 %v7197, %v7325
        %v7342 = vadd.f32 %v7198, %v7326
        %v7343 = vadd.f32 %v7199, %v7327
        %v7344 = vadd.f32 %v7200, %v7328
        %v7345 = vadd.f32 %v7201, %v7329
        %v7346 = vadd.f32 %v7202, %v7330
        %v7347 = vadd.f32 %v7203, %v7331
        %v7348 = vadd.f32 %v7204, %v7332
        %v7349 = vadd.f32 %v7205, %v7333
        %v7350 = vadd.f32 %v7206, %v7334
        %v7351 = vrot.slane %v6113, 7
        %v7352 = vrot.slane %v6117, 7
        %v7353 = vrot.slane %v6123, 7
        %v7354 = vrot.slane %v6127, 7
        %v7355 = vrot.slane %v6133, 7
        %v7356 = vrot.slane %v6137, 7
        %v7357 = vrot.slane %v6143, 7
        %v7358 = vrot.slane %v6147, 7
        %v7359 = vrot.slane %v6153, 7
        %v7360 = vrot.slane %v6157, 7
        %v7361 = vrot.slane %v6163, 7
        %v7362 = vrot.slane %v6167, 7
        %v7363 = vrot.slane %v6173, 7
        %v7364 = vrot.slane %v6177, 7
        %v7365 = vrot.slane %v6183, 7
        %v7366 = vrot.slane %v6187, 7
        %v7367 = vsel %vm6597, %v7365, %v7366
        %v7368 = vsel %vm6597, %v7364, %v7365
        %v7369 = vsel %vm6597, %v7363, %v7364
        %v7370 = vsel %vm6597, %v7362, %v7363
        %v7371 = vsel %vm6597, %v7361, %v7362
        %v7372 = vsel %vm6597, %v7360, %v7361
        %v7373 = vsel %vm6597, %v7359, %v7360
        %v7374 = vsel %vm6597, %v7358, %v7359
        %v7375 = vsel %vm6597, %v7357, %v7358
        %v7376 = vsel %vm6597, %v7356, %v7357
        %v7377 = vsel %vm6597, %v7355, %v7356
        %v7378 = vsel %vm6597, %v7354, %v7355
        %v7379 = vsel %vm6597, %v7353, %v7354
        %v7380 = vsel %vm6597, %v7352, %v7353
        %v7381 = vsel %vm6597, %v7351, %v7352
        %v7382 = vsel %vm6597, %v7366, %v7351
        %vm7383 = vcmp.le.s32.totalorder %v383, 6
        %vm7384 = vcmp.le.s32.totalorder %v384, 6
        %vm7385 = vcmp.le.s32.totalorder %v385, 6
        %vm7386 = vcmp.le.s32.totalorder %v386, 6
        %vm7387 = vcmp.le.s32.totalorder %v387, 6
        %vm7388 = vcmp.le.s32.totalorder %v388, 6
        %vm7389 = vcmp.le.s32.totalorder %v389, 6
        %vm7390 = vcmp.le.s32.totalorder %v390, 6
        %vm7391 = vcmp.le.s32.totalorder %v391, 6
        %vm7392 = vcmp.le.s32.totalorder %v392, 6
        %vm7393 = vcmp.le.s32.totalorder %v393, 6
        %vm7394 = vcmp.le.s32.totalorder %v394, 6
        %vm7395 = vcmp.le.s32.totalorder %v395, 6
        %vm7396 = vcmp.le.s32.totalorder %v396, 6
        %vm7397 = vcmp.le.s32.totalorder %v397, 6
        %vm7398 = vcmp.le.s32.totalorder %v398, 6
        %vm7399 = vmand %vm7383, %vm6630
        %vm7400 = vmand %vm7384, %vm6631
        %vm7401 = vmand %vm7385, %vm6632
        %vm7402 = vmand %vm7386, %vm6633
        %vm7403 = vmand %vm7387, %vm6634
        %vm7404 = vmand %vm7388, %vm6635
        %vm7405 = vmand %vm7389, %vm6636
        %vm7406 = vmand %vm7390, %vm6637
        %vm7407 = vmand %vm7391, %vm6638
        %vm7408 = vmand %vm7392, %vm6639
        %vm7409 = vmand %vm7393, %vm6640
        %vm7410 = vmand %vm7394, %vm6641
        %vm7411 = vmand %vm7395, %vm6642
        %vm7412 = vmand %vm7396, %vm6643
        %vm7413 = vmand %vm7397, %vm6644
        %vm7414 = vmand %vm7398, %vm6645
        %v7415 = vsel %vm7399, 1, 0
        %v7416 = vsel %vm7400, 1, 0
        %v7417 = vsel %vm7401, 1, 0
        %v7418 = vsel %vm7402, 1, 0
        %v7419 = vsel %vm7403, 1, 0
        %v7420 = vsel %vm7404, 1, 0
        %v7421 = vsel %vm7405, 1, 0
        %v7422 = vsel %vm7406, 1, 0
        %v7423 = vsel %vm7407, 1, 0
        %v7424 = vsel %vm7408, 1, 0
        %v7425 = vsel %vm7409, 1, 0
        %v7426 = vsel %vm7410, 1, 0
        %v7427 = vsel %vm7411, 1, 0
        %v7428 = vsel %vm7412, 1, 0
        %v7429 = vsel %vm7413, 1, 0
        %v7430 = vsel %vm7414, 1, 0
        %7431 = vset.pattern.permute.xlu0 0
        %7432 = vperm.xlu0 %7431, %v7415
        %v7433 = vpop.permute.xlu0 %7432
        %7434 = vset.pattern.permute.xlu0 0
        %7435 = vperm.xlu0 %7434, %v7416
        %v7436 = vpop.permute.xlu0 %7435
        %7437 = vset.pattern.permute.xlu0 0
        %7438 = vperm.xlu0 %7437, %v7417
        %v7439 = vpop.permute.xlu0 %7438
        %7440 = vset.pattern.permute.xlu0 0
        %7441 = vperm.xlu0 %7440, %v7418
        %v7442 = vpop.permute.xlu0 %7441
        %7443 = vset.pattern.permute.xlu0 0
        %7444 = vperm.xlu0 %7443, %v7419
        %v7445 = vpop.permute.xlu0 %7444
        %7446 = vset.pattern.permute.xlu0 0
        %7447 = vperm.xlu0 %7446, %v7420
        %v7448 = vpop.permute.xlu0 %7447
        %7449 = vset.pattern.permute.xlu0 0
        %7450 = vperm.xlu0 %7449, %v7421
        %v7451 = vpop.permute.xlu0 %7450
        %7452 = vset.pattern.permute.xlu0 0
        %7453 = vperm.xlu0 %7452, %v7422
        %v7454 = vpop.permute.xlu0 %7453
        %7455 = vset.pattern.permute.xlu0 0
        %7456 = vperm.xlu0 %7455, %v7423
        %v7457 = vpop.permute.xlu0 %7456
        %7458 = vset.pattern.permute.xlu0 0
        %7459 = vperm.xlu0 %7458, %v7424
        %v7460 = vpop.permute.xlu0 %7459
        %7461 = vset.pattern.permute.xlu0 0
        %7462 = vperm.xlu0 %7461, %v7425
        %v7463 = vpop.permute.xlu0 %7462
        %7464 = vset.pattern.permute.xlu0 0
        %7465 = vperm.xlu0 %7464, %v7426
        %v7466 = vpop.permute.xlu0 %7465
        %7467 = vset.pattern.permute.xlu0 0
        %7468 = vperm.xlu0 %7467, %v7427
        %v7469 = vpop.permute.xlu0 %7468
        %7470 = vset.pattern.permute.xlu0 0
        %7471 = vperm.xlu0 %7470, %v7428
        %v7472 = vpop.permute.xlu0 %7471
        %7473 = vset.pattern.permute.xlu0 0
        %7474 = vperm.xlu0 %7473, %v7429
        %v7475 = vpop.permute.xlu0 %7474
        %7476 = vset.pattern.permute.xlu0 0
        %7477 = vperm.xlu0 %7476, %v7430
        %v7478 = vpop.permute.xlu0 %7477
        %vm7479 = vcmp.eq.s32.totalorder %v7433, 1
        %vm7480 = vcmp.eq.s32.totalorder %v7436, 1
        %vm7481 = vcmp.eq.s32.totalorder %v7439, 1
        %vm7482 = vcmp.eq.s32.totalorder %v7442, 1
        %vm7483 = vcmp.eq.s32.totalorder %v7445, 1
        %vm7484 = vcmp.eq.s32.totalorder %v7448, 1
        %vm7485 = vcmp.eq.s32.totalorder %v7451, 1
        %vm7486 = vcmp.eq.s32.totalorder %v7454, 1
        %vm7487 = vcmp.eq.s32.totalorder %v7457, 1
        %vm7488 = vcmp.eq.s32.totalorder %v7460, 1
        %vm7489 = vcmp.eq.s32.totalorder %v7463, 1
        %vm7490 = vcmp.eq.s32.totalorder %v7466, 1
        %vm7491 = vcmp.eq.s32.totalorder %v7469, 1
        %vm7492 = vcmp.eq.s32.totalorder %v7472, 1
        %vm7493 = vcmp.eq.s32.totalorder %v7475, 1
        %vm7494 = vcmp.eq.s32.totalorder %v7478, 1
        %v7495 = vsel %vm7479, %v7381, 0.0
        %v7496 = vsel %vm7480, %v7380, 0.0
        %v7497 = vsel %vm7481, %v7379, 0.0
        %v7498 = vsel %vm7482, %v7378, 0.0
        %v7499 = vsel %vm7483, %v7377, 0.0
        %v7500 = vsel %vm7484, %v7376, 0.0
        %v7501 = vsel %vm7485, %v7375, 0.0
        %v7502 = vsel %vm7486, %v7374, 0.0
        %v7503 = vsel %vm7487, %v7373, 0.0
        %v7504 = vsel %vm7488, %v7372, 0.0
        %v7505 = vsel %vm7489, %v7371, 0.0
        %v7506 = vsel %vm7490, %v7370, 0.0
        %v7507 = vsel %vm7491, %v7369, 0.0
        %v7508 = vsel %vm7492, %v7368, 0.0
        %v7509 = vsel %vm7493, %v7367, 0.0
        %v7510 = vsel %vm7494, %v7382, 0.0
        %v7511 = vadd.f32 %v7335, %v7495
        %v7512 = vadd.f32 %v7336, %v7496
        %v7513 = vadd.f32 %v7337, %v7497
        %v7514 = vadd.f32 %v7338, %v7498
        %v7515 = vadd.f32 %v7339, %v7499
        %v7516 = vadd.f32 %v7340, %v7500
        %v7517 = vadd.f32 %v7341, %v7501
        %v7518 = vadd.f32 %v7342, %v7502
        %v7519 = vadd.f32 %v7343, %v7503
        %v7520 = vadd.f32 %v7344, %v7504
        %v7521 = vadd.f32 %v7345, %v7505
        %v7522 = vadd.f32 %v7346, %v7506
        %v7523 = vadd.f32 %v7347, %v7507
        %v7524 = vadd.f32 %v7348, %v7508
        %v7525 = vadd.f32 %v7349, %v7509
        %v7526 = vadd.f32 %v7350, %v7510
        %v7527 = vsel %vm7383, 1, 0
        %v7528 = vsel %vm7384, 1, 0
        %v7529 = vsel %vm7385, 1, 0
        %v7530 = vsel %vm7386, 1, 0
        %v7531 = vsel %vm7387, 1, 0
        %v7532 = vsel %vm7388, 1, 0
        %v7533 = vsel %vm7389, 1, 0
        %v7534 = vsel %vm7390, 1, 0
        %v7535 = vsel %vm7391, 1, 0
        %v7536 = vsel %vm7392, 1, 0
        %v7537 = vsel %vm7393, 1, 0
        %v7538 = vsel %vm7394, 1, 0
        %v7539 = vsel %vm7395, 1, 0
        %v7540 = vsel %vm7396, 1, 0
        %v7541 = vsel %vm7397, 1, 0
        %v7542 = vsel %vm7398, 1, 0
        %7543 = vset.pattern.permute.xlu0 0
        %7544 = vperm.xlu0 %7543, %v7527
        %v7545 = vpop.permute.xlu0 %7544
        %7546 = vset.pattern.permute.xlu0 0
        %7547 = vperm.xlu0 %7546, %v7528
        %v7548 = vpop.permute.xlu0 %7547
        %7549 = vset.pattern.permute.xlu0 0
        %7550 = vperm.xlu0 %7549, %v7529
        %v7551 = vpop.permute.xlu0 %7550
        %7552 = vset.pattern.permute.xlu0 0
        %7553 = vperm.xlu0 %7552, %v7530
        %v7554 = vpop.permute.xlu0 %7553
        %7555 = vset.pattern.permute.xlu0 0
        %7556 = vperm.xlu0 %7555, %v7531
        %v7557 = vpop.permute.xlu0 %7556
        %7558 = vset.pattern.permute.xlu0 0
        %7559 = vperm.xlu0 %7558, %v7532
        %v7560 = vpop.permute.xlu0 %7559
        %7561 = vset.pattern.permute.xlu0 0
        %7562 = vperm.xlu0 %7561, %v7533
        %v7563 = vpop.permute.xlu0 %7562
        %7564 = vset.pattern.permute.xlu0 0
        %7565 = vperm.xlu0 %7564, %v7534
        %v7566 = vpop.permute.xlu0 %7565
        %7567 = vset.pattern.permute.xlu0 0
        %7568 = vperm.xlu0 %7567, %v7535
        %v7569 = vpop.permute.xlu0 %7568
        %7570 = vset.pattern.permute.xlu0 0
        %7571 = vperm.xlu0 %7570, %v7536
        %v7572 = vpop.permute.xlu0 %7571
        %7573 = vset.pattern.permute.xlu0 0
        %7574 = vperm.xlu0 %7573, %v7537
        %v7575 = vpop.permute.xlu0 %7574
        %7576 = vset.pattern.permute.xlu0 0
        %7577 = vperm.xlu0 %7576, %v7538
        %v7578 = vpop.permute.xlu0 %7577
        %7579 = vset.pattern.permute.xlu0 0
        %7580 = vperm.xlu0 %7579, %v7539
        %v7581 = vpop.permute.xlu0 %7580
        %7582 = vset.pattern.permute.xlu0 0
        %7583 = vperm.xlu0 %7582, %v7540
        %v7584 = vpop.permute.xlu0 %7583
        %7585 = vset.pattern.permute.xlu0 0
        %7586 = vperm.xlu0 %7585, %v7541
        %v7587 = vpop.permute.xlu0 %7586
        %7588 = vset.pattern.permute.xlu0 0
        %7589 = vperm.xlu0 %7588, %v7542
        %v7590 = vpop.permute.xlu0 %7589
        %vm7591 = vcmp.eq.s32.totalorder %v7545, 1
        %vm7592 = vcmp.eq.s32.totalorder %v7548, 1
        %vm7593 = vcmp.eq.s32.totalorder %v7551, 1
        %vm7594 = vcmp.eq.s32.totalorder %v7554, 1
        %vm7595 = vcmp.eq.s32.totalorder %v7557, 1
        %vm7596 = vcmp.eq.s32.totalorder %v7560, 1
        %vm7597 = vcmp.eq.s32.totalorder %v7563, 1
        %vm7598 = vcmp.eq.s32.totalorder %v7566, 1
        %vm7599 = vcmp.eq.s32.totalorder %v7569, 1
        %vm7600 = vcmp.eq.s32.totalorder %v7572, 1
        %vm7601 = vcmp.eq.s32.totalorder %v7575, 1
        %vm7602 = vcmp.eq.s32.totalorder %v7578, 1
        %vm7603 = vcmp.eq.s32.totalorder %v7581, 1
        %vm7604 = vcmp.eq.s32.totalorder %v7584, 1
        %vm7605 = vcmp.eq.s32.totalorder %v7587, 1
        %vm7606 = vcmp.eq.s32.totalorder %v7590, 1
        %v7607 = vsel %vm7591, %v6119, 0.0
        %v7608 = vsel %vm7592, %v6125, 0.0
        %v7609 = vsel %vm7593, %v6129, 0.0
        %v7610 = vsel %vm7594, %v6135, 0.0
        %v7611 = vsel %vm7595, %v6139, 0.0
        %v7612 = vsel %vm7596, %v6145, 0.0
        %v7613 = vsel %vm7597, %v6149, 0.0
        %v7614 = vsel %vm7598, %v6155, 0.0
        %v7615 = vsel %vm7599, %v6159, 0.0
        %v7616 = vsel %vm7600, %v6165, 0.0
        %v7617 = vsel %vm7601, %v6169, 0.0
        %v7618 = vsel %vm7602, %v6175, 0.0
        %v7619 = vsel %vm7603, %v6179, 0.0
        %v7620 = vsel %vm7604, %v6185, 0.0
        %v7621 = vsel %vm7605, %v6189, 0.0
        %v7622 = vsel %vm7606, %v6115, 0.0
        %v7623 = vadd.f32 %v7511, %v7607
        %v7624 = vadd.f32 %v7512, %v7608
        %v7625 = vadd.f32 %v7513, %v7609
        %v7626 = vadd.f32 %v7514, %v7610
        %v7627 = vadd.f32 %v7515, %v7611
        %v7628 = vadd.f32 %v7516, %v7612
        %v7629 = vadd.f32 %v7517, %v7613
        %v7630 = vadd.f32 %v7518, %v7614
        %v7631 = vadd.f32 %v7519, %v7615
        %v7632 = vadd.f32 %v7520, %v7616
        %v7633 = vadd.f32 %v7521, %v7617
        %v7634 = vadd.f32 %v7522, %v7618
        %v7635 = vadd.f32 %v7523, %v7619
        %v7636 = vadd.f32 %v7524, %v7620
        %v7637 = vadd.f32 %v7525, %v7621
        %v7638 = vadd.f32 %v7526, %v7622
        %v7639 = vrot.slane %v6517, 1
        %v7640 = vrot.slane %v6520, 1
        %v7641 = vrot.slane %v6525, 1
        %v7642 = vrot.slane %v6528, 1
        %v7643 = vrot.slane %v6533, 1
        %v7644 = vrot.slane %v6536, 1
        %v7645 = vrot.slane %v6541, 1
        %v7646 = vrot.slane %v6544, 1
        %v7647 = vrot.slane %v6549, 1
        %v7648 = vrot.slane %v6552, 1
        %v7649 = vrot.slane %v6557, 1
        %v7650 = vrot.slane %v6560, 1
        %v7651 = vrot.slane %v6565, 1
        %v7652 = vrot.slane %v6568, 1
        %v7653 = vrot.slane %v6573, 1
        %v7654 = vrot.slane %v6576, 1
        %v7655 = vsel %vm6902, %v7653, %v7654
        %v7656 = vsel %vm6902, %v7652, %v7653
        %v7657 = vsel %vm6902, %v7651, %v7652
        %v7658 = vsel %vm6902, %v7650, %v7651
        %v7659 = vsel %vm6902, %v7649, %v7650
        %v7660 = vsel %vm6902, %v7648, %v7649
        %v7661 = vsel %vm6902, %v7647, %v7648
        %v7662 = vsel %vm6902, %v7646, %v7647
        %v7663 = vsel %vm6902, %v7645, %v7646
        %v7664 = vsel %vm6902, %v7644, %v7645
        %v7665 = vsel %vm6902, %v7643, %v7644
        %v7666 = vsel %vm6902, %v7642, %v7643
        %v7667 = vsel %vm6902, %v7641, %v7642
        %v7668 = vsel %vm6902, %v7640, %v7641
        %v7669 = vsel %vm6902, %v7639, %v7640
        %v7670 = vsel %vm6902, %v7654, %v7639
        %vm7671 = vmand %vm7383, %vm6919
        %vm7672 = vmand %vm7384, %vm6920
        %vm7673 = vmand %vm7385, %vm6921
        %vm7674 = vmand %vm7386, %vm6922
        %vm7675 = vmand %vm7387, %vm6923
        %vm7676 = vmand %vm7388, %vm6924
        %vm7677 = vmand %vm7389, %vm6925
        %vm7678 = vmand %vm7390, %vm6926
        %vm7679 = vmand %vm7391, %vm6927
        %vm7680 = vmand %vm7392, %vm6928
        %vm7681 = vmand %vm7393, %vm6929
        %vm7682 = vmand %vm7394, %vm6930
        %vm7683 = vmand %vm7395, %vm6931
        %vm7684 = vmand %vm7396, %vm6932
        %vm7685 = vmand %vm7397, %vm6933
        %vm7686 = vmand %vm7398, %vm6934
        %v7687 = vsel %vm7671, 1, 0
        %v7688 = vsel %vm7672, 1, 0
        %v7689 = vsel %vm7673, 1, 0
        %v7690 = vsel %vm7674, 1, 0
        %v7691 = vsel %vm7675, 1, 0
        %v7692 = vsel %vm7676, 1, 0
        %v7693 = vsel %vm7677, 1, 0
        %v7694 = vsel %vm7678, 1, 0
        %v7695 = vsel %vm7679, 1, 0
        %v7696 = vsel %vm7680, 1, 0
        %v7697 = vsel %vm7681, 1, 0
        %v7698 = vsel %vm7682, 1, 0
        %v7699 = vsel %vm7683, 1, 0
        %v7700 = vsel %vm7684, 1, 0
        %v7701 = vsel %vm7685, 1, 0
        %v7702 = vsel %vm7686, 1, 0
        %7703 = vset.pattern.permute.xlu0 0
        %7704 = vperm.xlu0 %7703, %v7687
        %v7705 = vpop.permute.xlu0 %7704
        %7706 = vset.pattern.permute.xlu0 0
        %7707 = vperm.xlu0 %7706, %v7688
        %v7708 = vpop.permute.xlu0 %7707
        %7709 = vset.pattern.permute.xlu0 0
        %7710 = vperm.xlu0 %7709, %v7689
        %v7711 = vpop.permute.xlu0 %7710
        %7712 = vset.pattern.permute.xlu0 0
        %7713 = vperm.xlu0 %7712, %v7690
        %v7714 = vpop.permute.xlu0 %7713
        %7715 = vset.pattern.permute.xlu0 0
        %7716 = vperm.xlu0 %7715, %v7691
        %v7717 = vpop.permute.xlu0 %7716
        %7718 = vset.pattern.permute.xlu0 0
        %7719 = vperm.xlu0 %7718, %v7692
        %v7720 = vpop.permute.xlu0 %7719
        %7721 = vset.pattern.permute.xlu0 0
        %7722 = vperm.xlu0 %7721, %v7693
        %v7723 = vpop.permute.xlu0 %7722
        %7724 = vset.pattern.permute.xlu0 0
        %7725 = vperm.xlu0 %7724, %v7694
        %v7726 = vpop.permute.xlu0 %7725
        %7727 = vset.pattern.permute.xlu0 0
        %7728 = vperm.xlu0 %7727, %v7695
        %v7729 = vpop.permute.xlu0 %7728
        %7730 = vset.pattern.permute.xlu0 0
        %7731 = vperm.xlu0 %7730, %v7696
        %v7732 = vpop.permute.xlu0 %7731
        %7733 = vset.pattern.permute.xlu0 0
        %7734 = vperm.xlu0 %7733, %v7697
        %v7735 = vpop.permute.xlu0 %7734
        %7736 = vset.pattern.permute.xlu0 0
        %7737 = vperm.xlu0 %7736, %v7698
        %v7738 = vpop.permute.xlu0 %7737
        %7739 = vset.pattern.permute.xlu0 0
        %7740 = vperm.xlu0 %7739, %v7699
        %v7741 = vpop.permute.xlu0 %7740
        %7742 = vset.pattern.permute.xlu0 0
        %7743 = vperm.xlu0 %7742, %v7700
        %v7744 = vpop.permute.xlu0 %7743
        %7745 = vset.pattern.permute.xlu0 0
        %7746 = vperm.xlu0 %7745, %v7701
        %v7747 = vpop.permute.xlu0 %7746
        %7748 = vset.pattern.permute.xlu0 0
        %7749 = vperm.xlu0 %7748, %v7702
        %v7750 = vpop.permute.xlu0 %7749
        %vm7751 = vcmp.eq.s32.totalorder %v7705, 1
        %vm7752 = vcmp.eq.s32.totalorder %v7708, 1
        %vm7753 = vcmp.eq.s32.totalorder %v7711, 1
        %vm7754 = vcmp.eq.s32.totalorder %v7714, 1
        %vm7755 = vcmp.eq.s32.totalorder %v7717, 1
        %vm7756 = vcmp.eq.s32.totalorder %v7720, 1
        %vm7757 = vcmp.eq.s32.totalorder %v7723, 1
        %vm7758 = vcmp.eq.s32.totalorder %v7726, 1
        %vm7759 = vcmp.eq.s32.totalorder %v7729, 1
        %vm7760 = vcmp.eq.s32.totalorder %v7732, 1
        %vm7761 = vcmp.eq.s32.totalorder %v7735, 1
        %vm7762 = vcmp.eq.s32.totalorder %v7738, 1
        %vm7763 = vcmp.eq.s32.totalorder %v7741, 1
        %vm7764 = vcmp.eq.s32.totalorder %v7744, 1
        %vm7765 = vcmp.eq.s32.totalorder %v7747, 1
        %vm7766 = vcmp.eq.s32.totalorder %v7750, 1
        %v7767 = vsel %vm7751, %v7668, 0.0
        %v7768 = vsel %vm7752, %v7667, 0.0
        %v7769 = vsel %vm7753, %v7666, 0.0
        %v7770 = vsel %vm7754, %v7665, 0.0
        %v7771 = vsel %vm7755, %v7664, 0.0
        %v7772 = vsel %vm7756, %v7663, 0.0
        %v7773 = vsel %vm7757, %v7662, 0.0
        %v7774 = vsel %vm7758, %v7661, 0.0
        %v7775 = vsel %vm7759, %v7660, 0.0
        %v7776 = vsel %vm7760, %v7659, 0.0
        %v7777 = vsel %vm7761, %v7658, 0.0
        %v7778 = vsel %vm7762, %v7657, 0.0
        %v7779 = vsel %vm7763, %v7656, 0.0
        %v7780 = vsel %vm7764, %v7655, 0.0
        %v7781 = vsel %vm7765, %v7670, 0.0
        %v7782 = vsel %vm7766, %v7669, 0.0
        %v7783 = vadd.f32 %v7623, %v7767
        %v7784 = vadd.f32 %v7624, %v7768
        %v7785 = vadd.f32 %v7625, %v7769
        %v7786 = vadd.f32 %v7626, %v7770
        %v7787 = vadd.f32 %v7627, %v7771
        %v7788 = vadd.f32 %v7628, %v7772
        %v7789 = vadd.f32 %v7629, %v7773
        %v7790 = vadd.f32 %v7630, %v7774
        %v7791 = vadd.f32 %v7631, %v7775
        %v7792 = vadd.f32 %v7632, %v7776
        %v7793 = vadd.f32 %v7633, %v7777
        %v7794 = vadd.f32 %v7634, %v7778
        %v7795 = vadd.f32 %v7635, %v7779
        %v7796 = vadd.f32 %v7636, %v7780
        %v7797 = vadd.f32 %v7637, %v7781
        %v7798 = vadd.f32 %v7638, %v7782
        %v7799 = vld [vmem:[#allocation5] sm:$0x1]
        %v7801 = vlaneseq
        %v7802 = vshrl.u32 %v7801, 7
        %v7803 = vsub.s32 0, %v7802
        %v7804 = vrot.slane %v7799, %v7803
        %v7806 = vadd.f32 %v7783, %v7804
        %v7807 = vadd.f32 %v7784, %v7804
        %v7808 = vadd.f32 %v7785, %v7804
        %v7809 = vadd.f32 %v7786, %v7804
        %v7810 = vadd.f32 %v7787, %v7804
        %v7811 = vadd.f32 %v7788, %v7804
        %v7812 = vadd.f32 %v7789, %v7804
        %v7813 = vadd.f32 %v7790, %v7804
        %v7814 = vadd.f32 %v7791, %v7804
        %v7815 = vadd.f32 %v7792, %v7804
        %v7816 = vadd.f32 %v7793, %v7804
        %v7817 = vadd.f32 %v7794, %v7804
        %v7818 = vadd.f32 %v7795, %v7804
        %v7819 = vadd.f32 %v7796, %v7804
        %v7820 = vadd.f32 %v7797, %v7804
        %v7821 = vadd.f32 %v7798, %v7804
        %v7822 = vmax.f32 %v7806, 0.0
        %v7823 = vmax.f32 %v7807, 0.0
        %v7824 = vmax.f32 %v7808, 0.0
        %v7825 = vmax.f32 %v7809, 0.0
        %v7826 = vmax.f32 %v7810, 0.0
        %v7827 = vmax.f32 %v7811, 0.0
        %v7828 = vmax.f32 %v7812, 0.0
        %v7829 = vmax.f32 %v7813, 0.0
        %v7830 = vmax.f32 %v7814, 0.0
        %v7831 = vmax.f32 %v7815, 0.0
        %v7832 = vmax.f32 %v7816, 0.0
        %v7833 = vmax.f32 %v7817, 0.0
        %v7834 = vmax.f32 %v7818, 0.0
        %v7835 = vmax.f32 %v7819, 0.0
        %v7836 = vmax.f32 %v7820, 0.0
        %v7837 = vmax.f32 %v7821, 0.0
        %v7838 = vpack.c.bf16 %v7823, %v7822
        %v7839 = vpack.c.bf16 %v7825, %v7824
        %v7840 = vpack.c.bf16 %v7827, %v7826
        %v7841 = vpack.c.bf16 %v7829, %v7828
        %v7842 = vpack.c.bf16 %v7831, %v7830
        %v7843 = vpack.c.bf16 %v7833, %v7832
        %v7844 = vpack.c.bf16 %v7835, %v7834
        %v7845 = vpack.c.bf16 %v7837, %v7836
        %v7846 = vld [vmem:[#allocation7] sm:$0xff]
        %v7847 = vld [vmem:[#allocation7 + $0x8] sm:$0xff]
        %v7848 = vld [vmem:[#allocation7 + $0x10] sm:$0xff]
        %v7849 = vld [vmem:[#allocation7 + $0x18] sm:$0xff]
        %v7850 = vld [vmem:[#allocation7 + $0x20] sm:$0xf]
        %v7851 = vld [vmem:[#allocation7 + $0x24] sm:$0xff]
        %v7852 = vld [vmem:[#allocation7 + $0x2c] sm:$0xff]
        %v7853 = vld [vmem:[#allocation7 + $0x34] sm:$0xff]
        %v7854 = vld [vmem:[#allocation7 + $0x3c] sm:$0xff]
        %v7855 = vld [vmem:[#allocation7 + $0x44] sm:$0xf]
        %v7856 = vld [vmem:[#allocation7 + $0x48] sm:$0xff]
        %v7857 = vld [vmem:[#allocation7 + $0x50] sm:$0xff]
        %v7858 = vld [vmem:[#allocation7 + $0x58] sm:$0xff]
        %v7859 = vld [vmem:[#allocation7 + $0x60] sm:$0xff]
        %v7860 = vld [vmem:[#allocation7 + $0x68] sm:$0xf]
        %v7861 = vld [vmem:[#allocation7 + $0x6c] sm:$0xff]
        %v7862 = vld [vmem:[#allocation7 + $0x74] sm:$0xff]
        %v7863 = vld [vmem:[#allocation7 + $0x7c] sm:$0xff]
        %v7864 = vld [vmem:[#allocation7 + $0x84] sm:$0xff]
        %v7865 = vld [vmem:[#allocation7 + $0x8c] sm:$0xf]
        %v7866 = vld [vmem:[#allocation7 + $0x90] sm:$0xff]
        %v7867 = vld [vmem:[#allocation7 + $0x98] sm:$0xff]
        %v7868 = vld [vmem:[#allocation7 + $0xa0] sm:$0xff]
        %v7869 = vld [vmem:[#allocation7 + $0xa8] sm:$0xff]
        %v7870 = vld [vmem:[#allocation7 + $0xb0] sm:$0xf]
        %v7871 = vld [vmem:[#allocation7 + $0xb4] sm:$0xff]
        %v7872 = vld [vmem:[#allocation7 + $0xbc] sm:$0xff]
        %v7873 = vld [vmem:[#allocation7 + $0xc4] sm:$0xff]
        %v7874 = vld [vmem:[#allocation7 + $0xcc] sm:$0xff]
        %v7875 = vld [vmem:[#allocation7 + $0xd4] sm:$0xf]
        %v7876 = vld [vmem:[#allocation7 + $0xd8] sm:$0xff]
        %v7877 = vld [vmem:[#allocation7 + $0xe0] sm:$0xff]
        %v7878 = vld [vmem:[#allocation7 + $0xe8] sm:$0xff]
        %v7879 = vld [vmem:[#allocation7 + $0xf0] sm:$0xff]
        %v7880 = vld [vmem:[#allocation7 + $0xf8] sm:$0xf]
        %v7881 = vld [vmem:[#allocation7 + $0xfc] sm:$0xff]
        %v7882 = vld [vmem:[#allocation7 + $0x104] sm:$0xff]
        %v7883 = vld [vmem:[#allocation7 + $0x10c] sm:$0xff]
        %v7884 = vld [vmem:[#allocation7 + $0x114] sm:$0xff]
        %v7885 = vld [vmem:[#allocation7 + $0x11c] sm:$0xf]
        %v7886 = vld [vmem:[#allocation7 + $0x120] sm:$0xff]
        %v7887 = vld [vmem:[#allocation7 + $0x128] sm:$0xff]
        %v7888 = vld [vmem:[#allocation7 + $0x130] sm:$0xff]
        %v7889 = vld [vmem:[#allocation7 + $0x138] sm:$0xff]
        %v7890 = vld [vmem:[#allocation7 + $0x140] sm:$0xf]
        %v7891 = vld [vmem:[#allocation7 + $0x144] sm:$0xff]
        %v7892 = vld [vmem:[#allocation7 + $0x14c] sm:$0xff]
        %v7893 = vld [vmem:[#allocation7 + $0x154] sm:$0xff]
        %v7894 = vld [vmem:[#allocation7 + $0x15c] sm:$0xff]
        %v7895 = vld [vmem:[#allocation7 + $0x164] sm:$0xf]
        %v7896 = vld [vmem:[#allocation7 + $0x168] sm:$0xff]
        %v7897 = vld [vmem:[#allocation7 + $0x170] sm:$0xff]
        %v7898 = vld [vmem:[#allocation7 + $0x178] sm:$0xff]
        %v7899 = vld [vmem:[#allocation7 + $0x180] sm:$0xff]
        %v7900 = vld [vmem:[#allocation7 + $0x188] sm:$0xf]
        %v7901 = vld [vmem:[#allocation7 + $0x18c] sm:$0xff]
        %v7902 = vld [vmem:[#allocation7 + $0x194] sm:$0xff]
        %v7903 = vld [vmem:[#allocation7 + $0x19c] sm:$0xff]
        %v7904 = vld [vmem:[#allocation7 + $0x1a4] sm:$0xff]
        %v7905 = vld [vmem:[#allocation7 + $0x1ac] sm:$0xf]
        %v7906 = vld [vmem:[#allocation7 + $0x1b0] sm:$0xff]
        %v7907 = vld [vmem:[#allocation7 + $0x1b8] sm:$0xff]
        %v7908 = vld [vmem:[#allocation7 + $0x1c0] sm:$0xff]
        %v7909 = vld [vmem:[#allocation7 + $0x1c8] sm:$0xff]
        %v7910 = vld [vmem:[#allocation7 + $0x1d0] sm:$0xf]
        %v7911 = vld [vmem:[#allocation7 + $0x1d4] sm:$0xff]
        %v7912 = vld [vmem:[#allocation7 + $0x1dc] sm:$0xff]
        %v7913 = vld [vmem:[#allocation7 + $0x1e4] sm:$0xff]
        %v7914 = vld [vmem:[#allocation7 + $0x1ec] sm:$0xff]
        %v7915 = vld [vmem:[#allocation7 + $0x1f4] sm:$0xf]
        %v7916 = vld [vmem:[#allocation7 + $0x1f8] sm:$0xff]
        %v7917 = vld [vmem:[#allocation7 + $0x200] sm:$0xff]
        %v7918 = vld [vmem:[#allocation7 + $0x208] sm:$0xff]
        %v7919 = vld [vmem:[#allocation7 + $0x210] sm:$0xff]
        %v7920 = vld [vmem:[#allocation7 + $0x218] sm:$0xf]
        %v7921 = vld [vmem:[#allocation7 + $0x21c] sm:$0xff]
        %v7922 = vld [vmem:[#allocation7 + $0x224] sm:$0xff]
        %v7923 = vld [vmem:[#allocation7 + $0x22c] sm:$0xff]
        %v7924 = vld [vmem:[#allocation7 + $0x234] sm:$0xff]
        %v7925 = vld [vmem:[#allocation7 + $0x23c] sm:$0xf]
        %v8006 = vunpack.c.l.b16 %v7846
        %v8007 = vunpack.c.h.b16 %v7846
        %v8008 = vunpack.c.l.b16 %v7847
        %v8009 = vunpack.c.h.b16 %v7847
        %v8010 = vunpack.c.l.b16 %v7848
        %v8011 = vunpack.c.h.b16 %v7848
        %v8012 = vunpack.c.l.b16 %v7849
        %v8013 = vunpack.c.h.b16 %v7849
        %v8014 = vunpack.c.l.b16 %v7850
        %v8015 = vunpack.c.l.b16 %v7851
        %v8016 = vunpack.c.h.b16 %v7851
        %v8017 = vunpack.c.l.b16 %v7852
        %v8018 = vunpack.c.h.b16 %v7852
        %v8019 = vunpack.c.l.b16 %v7853
        %v8020 = vunpack.c.h.b16 %v7853
        %v8021 = vunpack.c.l.b16 %v7854
        %v8022 = vunpack.c.h.b16 %v7854
        %v8023 = vunpack.c.l.b16 %v7855
        %v8024 = vunpack.c.l.b16 %v7856
        %v8025 = vunpack.c.h.b16 %v7856
        %v8026 = vunpack.c.l.b16 %v7857
        %v8027 = vunpack.c.h.b16 %v7857
        %v8028 = vunpack.c.l.b16 %v7858
        %v8029 = vunpack.c.h.b16 %v7858
        %v8030 = vunpack.c.l.b16 %v7859
        %v8031 = vunpack.c.h.b16 %v7859
        %v8032 = vunpack.c.l.b16 %v7860
        %v8033 = vunpack.c.l.b16 %v7861
        %v8034 = vunpack.c.h.b16 %v7861
        %v8035 = vunpack.c.l.b16 %v7862
        %v8036 = vunpack.c.h.b16 %v7862
        %v8037 = vunpack.c.l.b16 %v7863
        %v8038 = vunpack.c.h.b16 %v7863
        %v8039 = vunpack.c.l.b16 %v7864
        %v8040 = vunpack.c.h.b16 %v7864
        %v8041 = vunpack.c.l.b16 %v7865
        %v8042 = vunpack.c.l.b16 %v7866
        %v8043 = vunpack.c.h.b16 %v7866
        %v8044 = vunpack.c.l.b16 %v7867
        %v8045 = vunpack.c.h.b16 %v7867
        %v8046 = vunpack.c.l.b16 %v7868
        %v8047 = vunpack.c.h.b16 %v7868
        %v8048 = vunpack.c.l.b16 %v7869
        %v8049 = vunpack.c.h.b16 %v7869
        %v8050 = vunpack.c.l.b16 %v7870
        %v8051 = vunpack.c.l.b16 %v7871
        %v8052 = vunpack.c.h.b16 %v7871
        %v8053 = vunpack.c.l.b16 %v7872
        %v8054 = vunpack.c.h.b16 %v7872
        %v8055 = vunpack.c.l.b16 %v7873
        %v8056 = vunpack.c.h.b16 %v7873
        %v8057 = vunpack.c.l.b16 %v7874
        %v8058 = vunpack.c.h.b16 %v7874
        %v8059 = vunpack.c.l.b16 %v7875
        %v8060 = vunpack.c.l.b16 %v7876
        %v8061 = vunpack.c.h.b16 %v7876
        %v8062 = vunpack.c.l.b16 %v7877
        %v8063 = vunpack.c.h.b16 %v7877
        %v8064 = vunpack.c.l.b16 %v7878
        %v8065 = vunpack.c.h.b16 %v7878
        %v8066 = vunpack.c.l.b16 %v7879
        %v8067 = vunpack.c.h.b16 %v7879
        %v8068 = vunpack.c.l.b16 %v7880
        %v8069 = vunpack.c.l.b16 %v7881
        %v8070 = vunpack.c.h.b16 %v7881
        %v8071 = vunpack.c.l.b16 %v7882
        %v8072 = vunpack.c.h.b16 %v7882
        %v8073 = vunpack.c.l.b16 %v7883
        %v8074 = vunpack.c.h.b16 %v7883
        %v8075 = vunpack.c.l.b16 %v7884
        %v8076 = vunpack.c.h.b16 %v7884
        %v8077 = vunpack.c.l.b16 %v7885
        %v8078 = vunpack.c.l.b16 %v7886
        %v8079 = vunpack.c.h.b16 %v7886
        %v8080 = vunpack.c.l.b16 %v7887
        %v8081 = vunpack.c.h.b16 %v7887
        %v8082 = vunpack.c.l.b16 %v7888
        %v8083 = vunpack.c.h.b16 %v7888
        %v8084 = vunpack.c.l.b16 %v7889
        %v8085 = vunpack.c.h.b16 %v7889
        %v8086 = vunpack.c.l.b16 %v7890
        %v8087 = vunpack.c.l.b16 %v7891
        %v8088 = vunpack.c.h.b16 %v7891
        %v8089 = vunpack.c.l.b16 %v7892
        %v8090 = vunpack.c.h.b16 %v7892
        %v8091 = vunpack.c.l.b16 %v7893
        %v8092 = vunpack.c.h.b16 %v7893
        %v8093 = vunpack.c.l.b16 %v7894
        %v8094 = vunpack.c.h.b16 %v7894
        %v8095 = vunpack.c.l.b16 %v7895
        %v8096 = vunpack.c.l.b16 %v7896
        %v8097 = vunpack.c.h.b16 %v7896
        %v8098 = vunpack.c.l.b16 %v7897
        %v8099 = vunpack.c.h.b16 %v7897
        %v8100 = vunpack.c.l.b16 %v7898
        %v8101 = vunpack.c.h.b16 %v7898
        %v8102 = vunpack.c.l.b16 %v7899
        %v8103 = vunpack.c.h.b16 %v7899
        %v8104 = vunpack.c.l.b16 %v7900
        %v8105 = vunpack.c.l.b16 %v7901
        %v8106 = vunpack.c.h.b16 %v7901
        %v8107 = vunpack.c.l.b16 %v7902
        %v8108 = vunpack.c.h.b16 %v7902
        %v8109 = vunpack.c.l.b16 %v7903
        %v8110 = vunpack.c.h.b16 %v7903
        %v8111 = vunpack.c.l.b16 %v7904
        %v8112 = vunpack.c.h.b16 %v7904
        %v8113 = vunpack.c.l.b16 %v7905
        %v8114 = vunpack.c.l.b16 %v7906
        %v8115 = vunpack.c.h.b16 %v7906
        %v8116 = vunpack.c.l.b16 %v7907
        %v8117 = vunpack.c.h.b16 %v7907
        %v8118 = vunpack.c.l.b16 %v7908
        %v8119 = vunpack.c.h.b16 %v7908
        %v8120 = vunpack.c.l.b16 %v7909
        %v8121 = vunpack.c.h.b16 %v7909
        %v8122 = vunpack.c.l.b16 %v7910
        %v8123 = vunpack.c.l.b16 %v7911
        %v8124 = vunpack.c.h.b16 %v7911
        %v8125 = vunpack.c.l.b16 %v7912
        %v8126 = vunpack.c.h.b16 %v7912
        %v8127 = vunpack.c.l.b16 %v7913
        %v8128 = vunpack.c.h.b16 %v7913
        %v8129 = vunpack.c.l.b16 %v7914
        %v8130 = vunpack.c.h.b16 %v7914
        %v8131 = vunpack.c.l.b16 %v7915
        %v8132 = vunpack.c.l.b16 %v7916
        %v8133 = vunpack.c.h.b16 %v7916
        %v8134 = vunpack.c.l.b16 %v7917
        %v8135 = vunpack.c.h.b16 %v7917
        %v8136 = vunpack.c.l.b16 %v7918
        %v8137 = vunpack.c.h.b16 %v7918
        %v8138 = vunpack.c.l.b16 %v7919
        %v8139 = vunpack.c.h.b16 %v7919
        %v8140 = vunpack.c.l.b16 %v7920
        %v8141 = vunpack.c.l.b16 %v7921
        %v8142 = vunpack.c.h.b16 %v7921
        %v8143 = vunpack.c.l.b16 %v7922
        %v8144 = vunpack.c.h.b16 %v7922
        %v8145 = vunpack.c.l.b16 %v7923
        %v8146 = vunpack.c.h.b16 %v7923
        %v8147 = vunpack.c.l.b16 %v7924
        %v8148 = vunpack.c.h.b16 %v7924
        %v8149 = vunpack.c.l.b16 %v7925
        %v8150 = vpack.c.b16 %v8015, %v8006
        %v8151 = vpack.c.b16 %v8016, %v8007
        %v8152 = vpack.c.b16 %v8017, %v8008
        %v8153 = vpack.c.b16 %v8018, %v8009
        %v8154 = vpack.c.b16 %v8019, %v8010
        %v8155 = vpack.c.b16 %v8020, %v8011
        %v8156 = vpack.c.b16 %v8021, %v8012
        %v8157 = vpack.c.b16 %v8022, %v8013
        %v8158 = vpack.c.b16 %v8023, %v8014
        %v8159 = vpack.c.b16 %v8033, %v8024
        %v8160 = vpack.c.b16 %v8034, %v8025
        %v8161 = vpack.c.b16 %v8035, %v8026
        %v8162 = vpack.c.b16 %v8036, %v8027
        %v8163 = vpack.c.b16 %v8037, %v8028
        %v8164 = vpack.c.b16 %v8038, %v8029
        %v8165 = vpack.c.b16 %v8039, %v8030
        %v8166 = vpack.c.b16 %v8040, %v8031
        %v8167 = vpack.c.b16 %v8041, %v8032
        %v8168 = vpack.c.b16 %v8051, %v8042
        %v8169 = vpack.c.b16 %v8052, %v8043
        %v8170 = vpack.c.b16 %v8053, %v8044
        %v8171 = vpack.c.b16 %v8054, %v8045
        %v8172 = vpack.c.b16 %v8055, %v8046
        %v8173 = vpack.c.b16 %v8056, %v8047
        %v8174 = vpack.c.b16 %v8057, %v8048
        %v8175 = vpack.c.b16 %v8058, %v8049
        %v8176 = vpack.c.b16 %v8059, %v8050
        %v8177 = vpack.c.b16 %v8069, %v8060
        %v8178 = vpack.c.b16 %v8070, %v8061
        %v8179 = vpack.c.b16 %v8071, %v8062
        %v8180 = vpack.c.b16 %v8072, %v8063
        %v8181 = vpack.c.b16 %v8073, %v8064
        %v8182 = vpack.c.b16 %v8074, %v8065
        %v8183 = vpack.c.b16 %v8075, %v8066
        %v8184 = vpack.c.b16 %v8076, %v8067
        %v8185 = vpack.c.b16 %v8077, %v8068
        %v8186 = vpack.c.b16 %v8087, %v8078
        %v8187 = vpack.c.b16 %v8088, %v8079
        %v8188 = vpack.c.b16 %v8089, %v8080
        %v8189 = vpack.c.b16 %v8090, %v8081
        %v8190 = vpack.c.b16 %v8091, %v8082
        %v8191 = vpack.c.b16 %v8092, %v8083
        %v8192 = vpack.c.b16 %v8093, %v8084
        %v8193 = vpack.c.b16 %v8094, %v8085
        %v8194 = vpack.c.b16 %v8095, %v8086
        %v8195 = vpack.c.b16 %v8105, %v8096
        %v8196 = vpack.c.b16 %v8106, %v8097
        %v8197 = vpack.c.b16 %v8107, %v8098
        %v8198 = vpack.c.b16 %v8108, %v8099
        %v8199 = vpack.c.b16 %v8109, %v8100
        %v8200 = vpack.c.b16 %v8110, %v8101
        %v8201 = vpack.c.b16 %v8111, %v8102
        %v8202 = vpack.c.b16 %v8112, %v8103
        %v8203 = vpack.c.b16 %v8113, %v8104
        %v8204 = vpack.c.b16 %v8123, %v8114
        %v8205 = vpack.c.b16 %v8124, %v8115
        %v8206 = vpack.c.b16 %v8125, %v8116
        %v8207 = vpack.c.b16 %v8126, %v8117
        %v8208 = vpack.c.b16 %v8127, %v8118
        %v8209 = vpack.c.b16 %v8128, %v8119
        %v8210 = vpack.c.b16 %v8129, %v8120
        %v8211 = vpack.c.b16 %v8130, %v8121
        %v8212 = vpack.c.b16 %v8131, %v8122
        %v8213 = vpack.c.b16 %v8141, %v8132
        %v8214 = vpack.c.b16 %v8142, %v8133
        %v8215 = vpack.c.b16 %v8143, %v8134
        %v8216 = vpack.c.b16 %v8144, %v8135
        %v8217 = vpack.c.b16 %v8145, %v8136
        %v8218 = vpack.c.b16 %v8146, %v8137
        %v8219 = vpack.c.b16 %v8147, %v8138
        %v8220 = vpack.c.b16 %v8148, %v8139
        %v8221 = vpack.c.b16 %v8149, %v8140
        %8294 = vmatprep.subr.bf16.mxu0 %v8151
        %8295 = vmatpush1.bf16.msra.mxu0 %v8150
        %8296 = vmatprep.subr.bf16.mxu0 %v8160
        %8297 = vmatpush1.bf16.msra.mxu0 %v8159
        %8298 = vmatprep.subr.bf16.mxu0 %v8169
        %8299 = vmatpush1.bf16.msra.mxu0 %v8168
        %8300 = vmatprep.subr.bf16.mxu0 %v8178
        %8301 = vmatpush1.bf16.msra.mxu0 %v8177
        %8302 = vmatprep.subr.bf16.mxu0 %v8187
        %8303 = vmatpush1.bf16.msra.mxu0 %v8186
        %8304 = vmatprep.subr.bf16.mxu0 %v8196
        %8305 = vmatpush1.bf16.msra.mxu0 %v8195
        %8306 = vmatprep.subr.bf16.mxu0 %v8205
        %8307 = vmatpush1.bf16.msra.mxu0 %v8204
        %8308 = vmatprep.subr.bf16.mxu0 %v8214
        %8309 = vmatpush1.bf16.msra.mxu0 %v8213
        %8310 = vmatprep.subr.bf16.mxu0 0
        %8311 = vmatpush1.bf16.msra.mxu0 0
        %8312 = vmatprep.subr.bf16.mxu0 0
        %8313 = vmatpush1.bf16.msra.mxu0 0
        %8314 = vmatprep.subr.bf16.mxu0 0
        %8315 = vmatpush1.bf16.msra.mxu0 0
        %8316 = vmatprep.subr.bf16.mxu0 0
        %8317 = vmatpush1.bf16.msra.mxu0 0
        %8318 = vmatprep.subr.bf16.mxu0 0
        %8319 = vmatpush1.bf16.msra.mxu0 0
        %8320 = vmatprep.subr.bf16.mxu0 0
        %8321 = vmatpush1.bf16.msra.mxu0 0
        %8322 = vmatprep.subr.bf16.mxu0 0
        %8323 = vmatpush1.bf16.msra.mxu0 0
        %8324 = vmatprep.subr.bf16.mxu0 0
        %8325 = vmatpush1.bf16.msra.mxu0 0
        %8326 = vmatprep.mubr.bf16.mxu0 0
        %8327 = vmatmul.mubr.bf16.gmra.mrb[0].mxu0 %v7838
        %v8328 = vpop.f32.mrb[0].mxu0
        %v8329 = vadd.f32 0.0, %v8328
        %v8330 = vpop.f32.mrb[0].mxu0
        %v8331 = vadd.f32 0.0, %v8330
        %v8332 = vpop.f32.mrb[0].mxu0
        %v8333 = vadd.f32 0.0, %v8332
        %v8334 = vpop.f32.mrb[0].mxu0
        %v8335 = vadd.f32 0.0, %v8334
        %8336 = vmatprep.mubr.bf16.mxu0 0
        %8337 = vmatmul.mubr.bf16.gmra.mrb[0].mxu0 %v7839
        %v8338 = vpop.f32.mrb[0].mxu0
        %v8339 = vadd.f32 0.0, %v8338
        %v8340 = vpop.f32.mrb[0].mxu0
        %v8341 = vadd.f32 0.0, %v8340
        %v8342 = vpop.f32.mrb[0].mxu0
        %v8343 = vadd.f32 0.0, %v8342
        %v8344 = vpop.f32.mrb[0].mxu0
        %v8345 = vadd.f32 0.0, %v8344
        %8346 = vmatprep.mubr.bf16.mxu0 0
        %8347 = vmatmul.mubr.bf16.gmra.mrb[0].mxu0 %v7840
        %v8348 = vpop.f32.mrb[0].mxu0
        %v8349 = vadd.f32 0.0, %v8348
        %v8350 = vpop.f32.mrb[0].mxu0
        %v8351 = vadd.f32 0.0, %v8350
        %v8352 = vpop.f32.mrb[0].mxu0
        %v8353 = vadd.f32 0.0, %v8352
        %v8354 = vpop.f32.mrb[0].mxu0
        %v8355 = vadd.f32 0.0, %v8354
        %8356 = vmatprep.mubr.bf16.mxu0 0
        %8357 = vmatmul.mubr.bf16.gmra.mrb[0].mxu0 %v7841
        %v8358 = vpop.f32.mrb[0].mxu0
        %v8359 = vadd.f32 0.0, %v8358
        %v8360 = vpop.f32.mrb[0].mxu0
        %v8361 = vadd.f32 0.0, %v8360
        %v8362 = vpop.f32.mrb[0].mxu0
        %v8363 = vadd.f32 0.0, %v8362
        %v8364 = vpop.f32.mrb[0].mxu0
        %v8365 = vadd.f32 0.0, %v8364
        %8366 = vmatprep.mubr.bf16.mxu0 0
        %8367 = vmatmul.mubr.bf16.gmra.mrb[0].mxu0 %v7842
        %v8368 = vpop.f32.mrb[0].mxu0
        %v8369 = vadd.f32 0.0, %v8368
        %v8370 = vpop.f32.mrb[0].mxu0
        %v8371 = vadd.f32 0.0, %v8370
        %v8372 = vpop.f32.mrb[0].mxu0
        %v8373 = vadd.f32 0.0, %v8372
        %v8374 = vpop.f32.mrb[0].mxu0
        %v8375 = vadd.f32 0.0, %v8374
        %8376 = vmatprep.mubr.bf16.mxu0 0
        %8377 = vmatmul.mubr.bf16.gmra.mrb[0].mxu0 %v7843
        %v8378 = vpop.f32.mrb[0].mxu0
        %v8379 = vadd.f32 0.0, %v8378
        %v8380 = vpop.f32.mrb[0].mxu0
        %v8381 = vadd.f32 0.0, %v8380
        %v8382 = vpop.f32.mrb[0].mxu0
        %v8383 = vadd.f32 0.0, %v8382
        %v8384 = vpop.f32.mrb[0].mxu0
        %v8385 = vadd.f32 0.0, %v8384
        %8386 = vmatprep.mubr.bf16.mxu0 0
        %8387 = vmatmul.mubr.bf16.gmra.mrb[0].mxu0 %v7844
        %v8388 = vpop.f32.mrb[0].mxu0
        %v8389 = vadd.f32 0.0, %v8388
        %v8390 = vpop.f32.mrb[0].mxu0
        %v8391 = vadd.f32 0.0, %v8390
        %v8392 = vpop.f32.mrb[0].mxu0
        %v8393 = vadd.f32 0.0, %v8392
        %v8394 = vpop.f32.mrb[0].mxu0
        %v8395 = vadd.f32 0.0, %v8394
        %8396 = vmatprep.mubr.bf16.mxu0 0
        %8397 = vmatmul.mubr.bf16.gmra.mrb[0].mxu0 %v7845
        %v8398 = vpop.f32.mrb[0].mxu0
        %v8399 = vadd.f32 0.0, %v8398
        %v8400 = vpop.f32.mrb[0].mxu0
        %v8401 = vadd.f32 0.0, %v8400
        %v8402 = vpop.f32.mrb[0].mxu0
        %v8403 = vadd.f32 0.0, %v8402
        %v8404 = vpop.f32.mrb[0].mxu0
        %v8405 = vadd.f32 0.0, %v8404
        %8406 = vdwg.mxu0
        %8407 = vmatprep.subr.bf16.mxu0 %v8153
        %8408 = vmatpush1.bf16.msra.mxu0 %v8152
        %8409 = vmatprep.subr.bf16.mxu0 %v8162
        %8410 = vmatpush1.bf16.msra.mxu0 %v8161
        %8411 = vmatprep.subr.bf16.mxu0 %v8171
        %8412 = vmatpush1.bf16.msra.mxu0 %v8170
        %8413 = vmatprep.subr.bf16.mxu0 %v8180
        %8414 = vmatpush1.bf16.msra.mxu0 %v8179
        %8415 = vmatprep.subr.bf16.mxu0 %v8189
        %8416 = vmatpush1.bf16.msra.mxu0 %v8188
        %8417 = vmatprep.subr.bf16.mxu0 %v8198
        %8418 = vmatpush1.bf16.msra.mxu0 %v8197
        %8419 = vmatprep.subr.bf16.mxu0 %v8207
        %8420 = vmatpush1.bf16.msra.mxu0 %v8206
        %8421 = vmatprep.subr.bf16.mxu0 %v8216
        %8422 = vmatpush1.bf16.msra.mxu0 %v8215
        %8423 = vmatprep.subr.bf16.mxu0 0
        %8424 = vmatpush1.bf16.msra.mxu0 0
        %8425 = vmatprep.subr.bf16.mxu0 0
        %8426 = vmatpush1.bf16.msra.mxu0 0
        %8427 = vmatprep.subr.bf16.mxu0 0
        %8428 = vmatpush1.bf16.msra.mxu0 0
        %8429 = vmatprep.subr.bf16.mxu0 0
        %8430 = vmatpush1.bf16.msra.mxu0 0
        %8431 = vmatprep.subr.bf16.mxu0 0
        %8432 = vmatpush1.bf16.msra.mxu0 0
        %8433 = vmatprep.subr.bf16.mxu0 0
        %8434 = vmatpush1.bf16.msra.mxu0 0
        %8435 = vmatprep.subr.bf16.mxu0 0
        %8436 = vmatpush1.bf16.msra.mxu0 0
        %8437 = vmatprep.subr.bf16.mxu0 0
        %8438 = vmatpush1.bf16.msra.mxu0 0
        %8439 = vmatprep.mubr.bf16.mxu0 0
        %8440 = vmatmul.mubr.bf16.gmra.mrb[0].mxu0 %v7838
        %v8441 = vpop.f32.mrb[0].mxu0
        %v8442 = vadd.f32 0.0, %v8441
        %v8443 = vpop.f32.mrb[0].mxu0
        %v8444 = vadd.f32 0.0, %v8443
        %v8445 = vpop.f32.mrb[0].mxu0
        %v8446 = vadd.f32 0.0, %v8445
        %v8447 = vpop.f32.mrb[0].mxu0
        %v8448 = vadd.f32 0.0, %v8447
        %8449 = vmatprep.mubr.bf16.mxu0 0
        %8450 = vmatmul.mubr.bf16.gmra.mrb[0].mxu0 %v7839
        %v8451 = vpop.f32.mrb[0].mxu0
        %v8452 = vadd.f32 0.0, %v8451
        %v8453 = vpop.f32.mrb[0].mxu0
        %v8454 = vadd.f32 0.0, %v8453
        %v8455 = vpop.f32.mrb[0].mxu0
        %v8456 = vadd.f32 0.0, %v8455
        %v8457 = vpop.f32.mrb[0].mxu0
        %v8458 = vadd.f32 0.0, %v8457
        %8459 = vmatprep.mubr.bf16.mxu0 0
        %8460 = vmatmul.mubr.bf16.gmra.mrb[0].mxu0 %v7840
        %v8461 = vpop.f32.mrb[0].mxu0
        %v8462 = vadd.f32 0.0, %v8461
        %v8463 = vpop.f32.mrb[0].mxu0
        %v8464 = vadd.f32 0.0, %v8463
        %v8465 = vpop.f32.mrb[0].mxu0
        %v8466 = vadd.f32 0.0, %v8465
        %v8467 = vpop.f32.mrb[0].mxu0
        %v8468 = vadd.f32 0.0, %v8467
        %8469 = vmatprep.mubr.bf16.mxu0 0
        %8470 = vmatmul.mubr.bf16.gmra.mrb[0].mxu0 %v7841
        %v8471 = vpop.f32.mrb[0].mxu0
        %v8472 = vadd.f32 0.0, %v8471
        %v8473 = vpop.f32.mrb[0].mxu0
        %v8474 = vadd.f32 0.0, %v8473
        %v8475 = vpop.f32.mrb[0].mxu0
        %v8476 = vadd.f32 0.0, %v8475
        %v8477 = vpop.f32.mrb[0].mxu0
        %v8478 = vadd.f32 0.0, %v8477
        %8479 = vmatprep.mubr.bf16.mxu0 0
        %8480 = vmatmul.mubr.bf16.gmra.mrb[0].mxu0 %v7842
        %v8481 = vpop.f32.mrb[0].mxu0
        %v8482 = vadd.f32 0.0, %v8481
        %v8483 = vpop.f32.mrb[0].mxu0
        %v8484 = vadd.f32 0.0, %v8483
        %v8485 = vpop.f32.mrb[0].mxu0
        %v8486 = vadd.f32 0.0, %v8485
        %v8487 = vpop.f32.mrb[0].mxu0
        %v8488 = vadd.f32 0.0, %v8487
        %8489 = vmatprep.mubr.bf16.mxu0 0
        %8490 = vmatmul.mubr.bf16.gmra.mrb[0].mxu0 %v7843
        %v8491 = vpop.f32.mrb[0].mxu0
        %v8492 = vadd.f32 0.0, %v8491
        %v8493 = vpop.f32.mrb[0].mxu0
        %v8494 = vadd.f32 0.0, %v8493
        %v8495 = vpop.f32.mrb[0].mxu0
        %v8496 = vadd.f32 0.0, %v8495
        %v8497 = vpop.f32.mrb[0].mxu0
        %v8498 = vadd.f32 0.0, %v8497
        %8499 = vmatprep.mubr.bf16.mxu0 0
        %8500 = vmatmul.mubr.bf16.gmra.mrb[0].mxu0 %v7844
        %v8501 = vpop.f32.mrb[0].mxu0
        %v8502 = vadd.f32 0.0, %v8501
        %v8503 = vpop.f32.mrb[0].mxu0
        %v8504 = vadd.f32 0.0, %v8503
        %v8505 = vpop.f32.mrb[0].mxu0
        %v8506 = vadd.f32 0.0, %v8505
        %v8507 = vpop.f32.mrb[0].mxu0
        %v8508 = vadd.f32 0.0, %v8507
        %8509 = vmatprep.mubr.bf16.mxu0 0
        %8510 = vmatmul.mubr.bf16.gmra.mrb[0].mxu0 %v7845
        %v8511 = vpop.f32.mrb[0].mxu0
        %v8512 = vadd.f32 0.0, %v8511
        %v8513 = vpop.f32.mrb[0].mxu0
        %v8514 = vadd.f32 0.0, %v8513
        %v8515 = vpop.f32.mrb[0].mxu0
        %v8516 = vadd.f32 0.0, %v8515
        %v8517 = vpop.f32.mrb[0].mxu0
        %v8518 = vadd.f32 0.0, %v8517
        %8519 = vdwg.mxu0
        %8520 = vmatprep.subr.bf16.mxu0 %v8155
        %8521 = vmatpush1.bf16.msra.mxu0 %v8154
        %8522 = vmatprep.subr.bf16.mxu0 %v8164
        %8523 = vmatpush1.bf16.msra.mxu0 %v8163
        %8524 = vmatprep.subr.bf16.mxu0 %v8173
        %8525 = vmatpush1.bf16.msra.mxu0 %v8172
        %8526 = vmatprep.subr.bf16.mxu0 %v8182
        %8527 = vmatpush1.bf16.msra.mxu0 %v8181
        %8528 = vmatprep.subr.bf16.mxu0 %v8191
        %8529 = vmatpush1.bf16.msra.mxu0 %v8190
        %8530 = vmatprep.subr.bf16.mxu0 %v8200
        %8531 = vmatpush1.bf16.msra.mxu0 %v8199
        %8532 = vmatprep.subr.bf16.mxu0 %v8209
        %8533 = vmatpush1.bf16.msra.mxu0 %v8208
        %8534 = vmatprep.subr.bf16.mxu0 %v8218
        %8535 = vmatpush1.bf16.msra.mxu0 %v8217
        %8536 = vmatprep.subr.bf16.mxu0 0
        %8537 = vmatpush1.bf16.msra.mxu0 0
        %8538 = vmatprep.subr.bf16.mxu0 0
        %8539 = vmatpush1.bf16.msra.mxu0 0
        %8540 = vmatprep.subr.bf16.mxu0 0
        %8541 = vmatpush1.bf16.msra.mxu0 0
        %8542 = vmatprep.subr.bf16.mxu0 0
        %8543 = vmatpush1.bf16.msra.mxu0 0
        %8544 = vmatprep.subr.bf16.mxu0 0
        %8545 = vmatpush1.bf16.msra.mxu0 0
        %8546 = vmatprep.subr.bf16.mxu0 0
        %8547 = vmatpush1.bf16.msra.mxu0 0
        %8548 = vmatprep.subr.bf16.mxu0 0
        %8549 = vmatpush1.bf16.msra.mxu0 0
        %8550 = vmatprep.subr.bf16.mxu0 0
        %8551 = vmatpush1.bf16.msra.mxu0 0
        %8552 = vmatprep.mubr.bf16.mxu0 0
        %8553 = vmatmul.mubr.bf16.gmra.mrb[0].mxu0 %v7838
        %v8554 = vpop.f32.mrb[0].mxu0
        %v8555 = vadd.f32 0.0, %v8554
        %v8556 = vpop.f32.mrb[0].mxu0
        %v8557 = vadd.f32 0.0, %v8556
        %v8558 = vpop.f32.mrb[0].mxu0
        %v8559 = vadd.f32 0.0, %v8558
        %v8560 = vpop.f32.mrb[0].mxu0
        %v8561 = vadd.f32 0.0, %v8560
        %8562 = vmatprep.mubr.bf16.mxu0 0
        %8563 = vmatmul.mubr.bf16.gmra.mrb[0].mxu0 %v7839
        %v8564 = vpop.f32.mrb[0].mxu0
        %v8565 = vadd.f32 0.0, %v8564
        %v8566 = vpop.f32.mrb[0].mxu0
        %v8567 = vadd.f32 0.0, %v8566
        %v8568 = vpop.f32.mrb[0].mxu0
        %v8569 = vadd.f32 0.0, %v8568
        %v8570 = vpop.f32.mrb[0].mxu0
        %v8571 = vadd.f32 0.0, %v8570
        %8572 = vmatprep.mubr.bf16.mxu0 0
        %8573 = vmatmul.mubr.bf16.gmra.mrb[0].mxu0 %v7840
        %v8574 = vpop.f32.mrb[0].mxu0
        %v8575 = vadd.f32 0.0, %v8574
        %v8576 = vpop.f32.mrb[0].mxu0
        %v8577 = vadd.f32 0.0, %v8576
        %v8578 = vpop.f32.mrb[0].mxu0
        %v8579 = vadd.f32 0.0, %v8578
        %v8580 = vpop.f32.mrb[0].mxu0
        %v8581 = vadd.f32 0.0, %v8580
        %8582 = vmatprep.mubr.bf16.mxu0 0
        %8583 = vmatmul.mubr.bf16.gmra.mrb[0].mxu0 %v7841
        %v8584 = vpop.f32.mrb[0].mxu0
        %v8585 = vadd.f32 0.0, %v8584
        %v8586 = vpop.f32.mrb[0].mxu0
        %v8587 = vadd.f32 0.0, %v8586
        %v8588 = vpop.f32.mrb[0].mxu0
        %v8589 = vadd.f32 0.0, %v8588
        %v8590 = vpop.f32.mrb[0].mxu0
        %v8591 = vadd.f32 0.0, %v8590
        %8592 = vmatprep.mubr.bf16.mxu0 0
        %8593 = vmatmul.mubr.bf16.gmra.mrb[0].mxu0 %v7842
        %v8594 = vpop.f32.mrb[0].mxu0
        %v8595 = vadd.f32 0.0, %v8594
        %v8596 = vpop.f32.mrb[0].mxu0
        %v8597 = vadd.f32 0.0, %v8596
        %v8598 = vpop.f32.mrb[0].mxu0
        %v8599 = vadd.f32 0.0, %v8598
        %v8600 = vpop.f32.mrb[0].mxu0
        %v8601 = vadd.f32 0.0, %v8600
        %8602 = vmatprep.mubr.bf16.mxu0 0
        %8603 = vmatmul.mubr.bf16.gmra.mrb[0].mxu0 %v7843
        %v8604 = vpop.f32.mrb[0].mxu0
        %v8605 = vadd.f32 0.0, %v8604
        %v8606 = vpop.f32.mrb[0].mxu0
        %v8607 = vadd.f32 0.0, %v8606
        %v8608 = vpop.f32.mrb[0].mxu0
        %v8609 = vadd.f32 0.0, %v8608
        %v8610 = vpop.f32.mrb[0].mxu0
        %v8611 = vadd.f32 0.0, %v8610
        %8612 = vmatprep.mubr.bf16.mxu0 0
        %8613 = vmatmul.mubr.bf16.gmra.mrb[0].mxu0 %v7844
        %v8614 = vpop.f32.mrb[0].mxu0
        %v8615 = vadd.f32 0.0, %v8614
        %v8616 = vpop.f32.mrb[0].mxu0
        %v8617 = vadd.f32 0.0, %v8616
        %v8618 = vpop.f32.mrb[0].mxu0
        %v8619 = vadd.f32 0.0, %v8618
        %v8620 = vpop.f32.mrb[0].mxu0
        %v8621 = vadd.f32 0.0, %v8620
        %8622 = vmatprep.mubr.bf16.mxu0 0
        %8623 = vmatmul.mubr.bf16.gmra.mrb[0].mxu0 %v7845
        %v8624 = vpop.f32.mrb[0].mxu0
        %v8625 = vadd.f32 0.0, %v8624
        %v8626 = vpop.f32.mrb[0].mxu0
        %v8627 = vadd.f32 0.0, %v8626
        %v8628 = vpop.f32.mrb[0].mxu0
        %v8629 = vadd.f32 0.0, %v8628
        %v8630 = vpop.f32.mrb[0].mxu0
        %v8631 = vadd.f32 0.0, %v8630
        %8632 = vdwg.mxu0
        %8633 = vmatprep.subr.bf16.mxu0 %v8157
        %8634 = vmatpush1.bf16.msra.mxu0 %v8156
        %8635 = vmatprep.subr.bf16.mxu0 %v8166
        %8636 = vmatpush1.bf16.msra.mxu0 %v8165
        %8637 = vmatprep.subr.bf16.mxu0 %v8175
        %8638 = vmatpush1.bf16.msra.mxu0 %v8174
        %8639 = vmatprep.subr.bf16.mxu0 %v8184
        %8640 = vmatpush1.bf16.msra.mxu0 %v8183
        %8641 = vmatprep.subr.bf16.mxu0 %v8193
        %8642 = vmatpush1.bf16.msra.mxu0 %v8192
        %8643 = vmatprep.subr.bf16.mxu0 %v8202
        %8644 = vmatpush1.bf16.msra.mxu0 %v8201
        %8645 = vmatprep.subr.bf16.mxu0 %v8211
        %8646 = vmatpush1.bf16.msra.mxu0 %v8210
        %8647 = vmatprep.subr.bf16.mxu0 %v8220
        %8648 = vmatpush1.bf16.msra.mxu0 %v8219
        %8649 = vmatprep.subr.bf16.mxu0 0
        %8650 = vmatpush1.bf16.msra.mxu0 0
        %8651 = vmatprep.subr.bf16.mxu0 0
        %8652 = vmatpush1.bf16.msra.mxu0 0
        %8653 = vmatprep.subr.bf16.mxu0 0
        %8654 = vmatpush1.bf16.msra.mxu0 0
        %8655 = vmatprep.subr.bf16.mxu0 0
        %8656 = vmatpush1.bf16.msra.mxu0 0
        %8657 = vmatprep.subr.bf16.mxu0 0
        %8658 = vmatpush1.bf16.msra.mxu0 0
        %8659 = vmatprep.subr.bf16.mxu0 0
        %8660 = vmatpush1.bf16.msra.mxu0 0
        %8661 = vmatprep.subr.bf16.mxu0 0
        %8662 = vmatpush1.bf16.msra.mxu0 0
        %8663 = vmatprep.subr.bf16.mxu0 0
        %8664 = vmatpush1.bf16.msra.mxu0 0
        %8665 = vmatprep.mubr.bf16.mxu0 0
        %8666 = vmatmul.mubr.bf16.gmra.mrb[0].mxu0 %v7838
        %v8667 = vpop.f32.mrb[0].mxu0
        %v8668 = vadd.f32 0.0, %v8667
        %v8669 = vpop.f32.mrb[0].mxu0
        %v8670 = vadd.f32 0.0, %v8669
        %v8671 = vpop.f32.mrb[0].mxu0
        %v8672 = vadd.f32 0.0, %v8671
        %v8673 = vpop.f32.mrb[0].mxu0
        %v8674 = vadd.f32 0.0, %v8673
        %8675 = vmatprep.mubr.bf16.mxu0 0
        %8676 = vmatmul.mubr.bf16.gmra.mrb[0].mxu0 %v7839
        %v8677 = vpop.f32.mrb[0].mxu0
        %v8678 = vadd.f32 0.0, %v8677
        %v8679 = vpop.f32.mrb[0].mxu0
        %v8680 = vadd.f32 0.0, %v8679
        %v8681 = vpop.f32.mrb[0].mxu0
        %v8682 = vadd.f32 0.0, %v8681
        %v8683 = vpop.f32.mrb[0].mxu0
        %v8684 = vadd.f32 0.0, %v8683
        %8685 = vmatprep.mubr.bf16.mxu0 0
        %8686 = vmatmul.mubr.bf16.gmra.mrb[0].mxu0 %v7840
        %v8687 = vpop.f32.mrb[0].mxu0
        %v8688 = vadd.f32 0.0, %v8687
        %v8689 = vpop.f32.mrb[0].mxu0
        %v8690 = vadd.f32 0.0, %v8689
        %v8691 = vpop.f32.mrb[0].mxu0
        %v8692 = vadd.f32 0.0, %v8691
        %v8693 = vpop.f32.mrb[0].mxu0
        %v8694 = vadd.f32 0.0, %v8693
        %8695 = vmatprep.mubr.bf16.mxu0 0
        %8696 = vmatmul.mubr.bf16.gmra.mrb[0].mxu0 %v7841
        %v8697 = vpop.f32.mrb[0].mxu0
        %v8698 = vadd.f32 0.0, %v8697
        %v8699 = vpop.f32.mrb[0].mxu0
        %v8700 = vadd.f32 0.0, %v8699
        %v8701 = vpop.f32.mrb[0].mxu0
        %v8702 = vadd.f32 0.0, %v8701
        %v8703 = vpop.f32.mrb[0].mxu0
        %v8704 = vadd.f32 0.0, %v8703
        %8705 = vmatprep.mubr.bf16.mxu0 0
        %8706 = vmatmul.mubr.bf16.gmra.mrb[0].mxu0 %v7842
        %v8707 = vpop.f32.mrb[0].mxu0
        %v8708 = vadd.f32 0.0, %v8707
        %v8709 = vpop.f32.mrb[0].mxu0
        %v8710 = vadd.f32 0.0, %v8709
        %v8711 = vpop.f32.mrb[0].mxu0
        %v8712 = vadd.f32 0.0, %v8711
        %v8713 = vpop.f32.mrb[0].mxu0
        %v8714 = vadd.f32 0.0, %v8713
        %8715 = vmatprep.mubr.bf16.mxu0 0
        %8716 = vmatmul.mubr.bf16.gmra.mrb[0].mxu0 %v7843
        %v8717 = vpop.f32.mrb[0].mxu0
        %v8718 = vadd.f32 0.0, %v8717
        %v8719 = vpop.f32.mrb[0].mxu0
        %v8720 = vadd.f32 0.0, %v8719
        %v8721 = vpop.f32.mrb[0].mxu0
        %v8722 = vadd.f32 0.0, %v8721
        %v8723 = vpop.f32.mrb[0].mxu0
        %v8724 = vadd.f32 0.0, %v8723
        %8725 = vmatprep.mubr.bf16.mxu0 0
        %8726 = vmatmul.mubr.bf16.gmra.mrb[0].mxu0 %v7844
        %v8727 = vpop.f32.mrb[0].mxu0
        %v8728 = vadd.f32 0.0, %v8727
        %v8729 = vpop.f32.mrb[0].mxu0
        %v8730 = vadd.f32 0.0, %v8729
        %v8731 = vpop.f32.mrb[0].mxu0
        %v8732 = vadd.f32 0.0, %v8731
        %v8733 = vpop.f32.mrb[0].mxu0
        %v8734 = vadd.f32 0.0, %v8733
        %8735 = vmatprep.mubr.bf16.mxu0 0
        %8736 = vmatmul.mubr.bf16.gmra.mrb[0].mxu0 %v7845
        %v8737 = vpop.f32.mrb[0].mxu0
        %v8738 = vadd.f32 0.0, %v8737
        %v8739 = vpop.f32.mrb[0].mxu0
        %v8740 = vadd.f32 0.0, %v8739
        %v8741 = vpop.f32.mrb[0].mxu0
        %v8742 = vadd.f32 0.0, %v8741
        %v8743 = vpop.f32.mrb[0].mxu0
        %v8744 = vadd.f32 0.0, %v8743
        %8745 = vdwg.mxu0
        %8746 = vmatprep.subr.bf16.mxu0 0
        %8747 = vmatpush1.bf16.msra.mxu0 %v8158
        %8748 = vmatprep.subr.bf16.mxu0 0
        %8749 = vmatpush1.bf16.msra.mxu0 %v8167
        %8750 = vmatprep.subr.bf16.mxu0 0
        %8751 = vmatpush1.bf16.msra.mxu0 %v8176
        %8752 = vmatprep.subr.bf16.mxu0 0
        %8753 = vmatpush1.bf16.msra.mxu0 %v8185
        %8754 = vmatprep.subr.bf16.mxu0 0
        %8755 = vmatpush1.bf16.msra.mxu0 %v8194
        %8756 = vmatprep.subr.bf16.mxu0 0
        %8757 = vmatpush1.bf16.msra.mxu0 %v8203
        %8758 = vmatprep.subr.bf16.mxu0 0
        %8759 = vmatpush1.bf16.msra.mxu0 %v8212
        %8760 = vmatprep.subr.bf16.mxu0 0
        %8761 = vmatpush1.bf16.msra.mxu0 %v8221
        %8762 = vmatprep.subr.bf16.mxu0 0
        %8763 = vmatpush1.bf16.msra.mxu0 0
        %8764 = vmatprep.subr.bf16.mxu0 0
        %8765 = vmatpush1.bf16.msra.mxu0 0
        %8766 = vmatprep.subr.bf16.mxu0 0
        %8767 = vmatpush1.bf16.msra.mxu0 0
        %8768 = vmatprep.subr.bf16.mxu0 0
        %8769 = vmatpush1.bf16.msra.mxu0 0
        %8770 = vmatprep.subr.bf16.mxu0 0
        %8771 = vmatpush1.bf16.msra.mxu0 0
        %8772 = vmatprep.subr.bf16.mxu0 0
        %8773 = vmatpush1.bf16.msra.mxu0 0
        %8774 = vmatprep.subr.bf16.mxu0 0
        %8775 = vmatpush1.bf16.msra.mxu0 0
        %8776 = vmatprep.subr.bf16.mxu0 0
        %8777 = vmatpush1.bf16.msra.mxu0 0
        %8778 = vmatprep.mubr.bf16.mxu0 0
        %8779 = vmatmul.mubr.bf16.gmra.mrb[0].mxu0 %v7838
        %v8780 = vpop.f32.mrb[0].mxu0
        %v8781 = vadd.f32 0.0, %v8780
        %v8782 = vpop.f32.mrb[0].mxu0
        %v8783 = vpop.f32.mrb[0].mxu0
        %v8784 = vadd.f32 0.0, %v8783
        %v8785 = vpop.f32.mrb[0].mxu0
        %8786 = vmatprep.mubr.bf16.mxu0 0
        %8787 = vmatmul.mubr.bf16.gmra.mrb[0].mxu0 %v7839
        %v8788 = vpop.f32.mrb[0].mxu0
        %v8789 = vadd.f32 0.0, %v8788
        %v8790 = vpop.f32.mrb[0].mxu0
        %v8791 = vpop.f32.mrb[0].mxu0
        %v8792 = vadd.f32 0.0, %v8791
        %v8793 = vpop.f32.mrb[0].mxu0
        %8794 = vmatprep.mubr.bf16.mxu0 0
        %8795 = vmatmul.mubr.bf16.gmra.mrb[0].mxu0 %v7840
        %v8796 = vpop.f32.mrb[0].mxu0
        %v8797 = vadd.f32 0.0, %v8796
        %v8798 = vpop.f32.mrb[0].mxu0
        %v8799 = vpop.f32.mrb[0].mxu0
        %v8800 = vadd.f32 0.0, %v8799
        %v8801 = vpop.f32.mrb[0].mxu0
        %8802 = vmatprep.mubr.bf16.mxu0 0
        %8803 = vmatmul.mubr.bf16.gmra.mrb[0].mxu0 %v7841
        %v8804 = vpop.f32.mrb[0].mxu0
        %v8805 = vadd.f32 0.0, %v8804
        %v8806 = vpop.f32.mrb[0].mxu0
        %v8807 = vpop.f32.mrb[0].mxu0
        %v8808 = vadd.f32 0.0, %v8807
        %v8809 = vpop.f32.mrb[0].mxu0
        %8810 = vmatprep.mubr.bf16.mxu0 0
        %8811 = vmatmul.mubr.bf16.gmra.mrb[0].mxu0 %v7842
        %v8812 = vpop.f32.mrb[0].mxu0
        %v8813 = vadd.f32 0.0, %v8812
        %v8814 = vpop.f32.mrb[0].mxu0
        %v8815 = vpop.f32.mrb[0].mxu0
        %v8816 = vadd.f32 0.0, %v8815
        %v8817 = vpop.f32.mrb[0].mxu0
        %8818 = vmatprep.mubr.bf16.mxu0 0
        %8819 = vmatmul.mubr.bf16.gmra.mrb[0].mxu0 %v7843
        %v8820 = vpop.f32.mrb[0].mxu0
        %v8821 = vadd.f32 0.0, %v8820
        %v8822 = vpop.f32.mrb[0].mxu0
        %v8823 = vpop.f32.mrb[0].mxu0
        %v8824 = vadd.f32 0.0, %v8823
        %v8825 = vpop.f32.mrb[0].mxu0
        %8826 = vmatprep.mubr.bf16.mxu0 0
        %8827 = vmatmul.mubr.bf16.gmra.mrb[0].mxu0 %v7844
        %v8828 = vpop.f32.mrb[0].mxu0
        %v8829 = vadd.f32 0.0, %v8828
        %v8830 = vpop.f32.mrb[0].mxu0
        %v8831 = vpop.f32.mrb[0].mxu0
        %v8832 = vadd.f32 0.0, %v8831
        %v8833 = vpop.f32.mrb[0].mxu0
        %8834 = vmatprep.mubr.bf16.mxu0 0
        %8835 = vmatmul.mubr.bf16.gmra.mrb[0].mxu0 %v7845
        %v8836 = vpop.f32.mrb[0].mxu0
        %v8837 = vadd.f32 0.0, %v8836
        %v8838 = vpop.f32.mrb[0].mxu0
        %v8839 = vpop.f32.mrb[0].mxu0
        %v8840 = vadd.f32 0.0, %v8839
        %v8841 = vpop.f32.mrb[0].mxu0
        %8842 = vdwg.mxu0
        %v8843 = vrot.slane %v8329, 7
        %v8844 = vrot.slane %v8333, 7
        %v8845 = vrot.slane %v8339, 7
        %v8846 = vrot.slane %v8343, 7
        %v8847 = vrot.slane %v8349, 7
        %v8848 = vrot.slane %v8353, 7
        %v8849 = vrot.slane %v8359, 7
        %v8850 = vrot.slane %v8363, 7
        %v8851 = vrot.slane %v8369, 7
        %v8852 = vrot.slane %v8373, 7
        %v8853 = vrot.slane %v8379, 7
        %v8854 = vrot.slane %v8383, 7
        %v8855 = vrot.slane %v8389, 7
        %v8856 = vrot.slane %v8393, 7
        %v8857 = vrot.slane %v8399, 7
        %v8858 = vrot.slane %v8403, 7
        %v8859 = vsel %vm6597, %v8857, %v8858
        %v8860 = vsel %vm6597, %v8856, %v8857
        %v8861 = vsel %vm6597, %v8855, %v8856
        %v8862 = vsel %vm6597, %v8854, %v8855
        %v8863 = vsel %vm6597, %v8853, %v8854
        %v8864 = vsel %vm6597, %v8852, %v8853
        %v8865 = vsel %vm6597, %v8851, %v8852
        %v8866 = vsel %vm6597, %v8850, %v8851
        %v8867 = vsel %vm6597, %v8849, %v8850
        %v8868 = vsel %vm6597, %v8848, %v8849
        %v8869 = vsel %vm6597, %v8847, %v8848
        %v8870 = vsel %vm6597, %v8846, %v8847
        %v8871 = vsel %vm6597, %v8845, %v8846
        %v8872 = vsel %vm6597, %v8844, %v8845
        %v8873 = vsel %vm6597, %v8843, %v8844
        %v8874 = vsel %vm6597, %v8858, %v8843
        %v8875 = vsel %vm6726, %v8859, 0.0
        %v8876 = vsel %vm6727, %v8874, 0.0
        %v8877 = vsel %vm6728, %v8873, 0.0
        %v8878 = vsel %vm6729, %v8872, 0.0
        %v8879 = vsel %vm6730, %v8871, 0.0
        %v8880 = vsel %vm6731, %v8870, 0.0
        %v8881 = vsel %vm6732, %v8869, 0.0
        %v8882 = vsel %vm6733, %v8868, 0.0
        %v8883 = vsel %vm6734, %v8867, 0.0
        %v8884 = vsel %vm6735, %v8866, 0.0
        %v8885 = vsel %vm6736, %v8865, 0.0
        %v8886 = vsel %vm6737, %v8864, 0.0
        %v8887 = vsel %vm6738, %v8863, 0.0
        %v8888 = vsel %vm6739, %v8862, 0.0
        %v8889 = vsel %vm6740, %v8861, 0.0
        %v8890 = vsel %vm6741, %v8860, 0.0
        %v8891 = vadd.f32 %v8555, %v8875
        %v8892 = vadd.f32 %v8559, %v8876
        %v8893 = vadd.f32 %v8565, %v8877
        %v8894 = vadd.f32 %v8569, %v8878
        %v8895 = vadd.f32 %v8575, %v8879
        %v8896 = vadd.f32 %v8579, %v8880
        %v8897 = vadd.f32 %v8585, %v8881
        %v8898 = vadd.f32 %v8589, %v8882
        %v8899 = vadd.f32 %v8595, %v8883
        %v8900 = vadd.f32 %v8599, %v8884
        %v8901 = vadd.f32 %v8605, %v8885
        %v8902 = vadd.f32 %v8609, %v8886
        %v8903 = vadd.f32 %v8615, %v8887
        %v8904 = vadd.f32 %v8619, %v8888
        %v8905 = vadd.f32 %v8625, %v8889
        %v8906 = vadd.f32 %v8629, %v8890
        %v8907 = vsel %vm6838, %v8405, 0.0
        %v8908 = vsel %vm6839, %v8331, 0.0
        %v8909 = vsel %vm6840, %v8335, 0.0
        %v8910 = vsel %vm6841, %v8341, 0.0
        %v8911 = vsel %vm6842, %v8345, 0.0
        %v8912 = vsel %vm6843, %v8351, 0.0
        %v8913 = vsel %vm6844, %v8355, 0.0
        %v8914 = vsel %vm6845, %v8361, 0.0
        %v8915 = vsel %vm6846, %v8365, 0.0
        %v8916 = vsel %vm6847, %v8371, 0.0
        %v8917 = vsel %vm6848, %v8375, 0.0
        %v8918 = vsel %vm6849, %v8381, 0.0
        %v8919 = vsel %vm6850, %v8385, 0.0
        %v8920 = vsel %vm6851, %v8391, 0.0
        %v8921 = vsel %vm6852, %v8395, 0.0
        %v8922 = vsel %vm6853, %v8401, 0.0
        %v8923 = vadd.f32 %v8891, %v8907
        %v8924 = vadd.f32 %v8892, %v8908
        %v8925 = vadd.f32 %v8893, %v8909
        %v8926 = vadd.f32 %v8894, %v8910
        %v8927 = vadd.f32 %v8895, %v8911
        %v8928 = vadd.f32 %v8896, %v8912
        %v8929 = vadd.f32 %v8897, %v8913
        %v8930 = vadd.f32 %v8898, %v8914
        %v8931 = vadd.f32 %v8899, %v8915
        %v8932 = vadd.f32 %v8900, %v8916
        %v8933 = vadd.f32 %v8901, %v8917
        %v8934 = vadd.f32 %v8902, %v8918
        %v8935 = vadd.f32 %v8903, %v8919
        %v8936 = vadd.f32 %v8904, %v8920
        %v8937 = vadd.f32 %v8905, %v8921
        %v8938 = vadd.f32 %v8906, %v8922
        %v8939 = vrot.slane %v8442, 1
        %v8940 = vrot.slane %v8446, 1
        %v8941 = vrot.slane %v8452, 1
        %v8942 = vrot.slane %v8456, 1
        %v8943 = vrot.slane %v8462, 1
        %v8944 = vrot.slane %v8466, 1
        %v8945 = vrot.slane %v8472, 1
        %v8946 = vrot.slane %v8476, 1
        %v8947 = vrot.slane %v8482, 1
        %v8948 = vrot.slane %v8486, 1
        %v8949 = vrot.slane %v8492, 1
        %v8950 = vrot.slane %v8496, 1
        %v8951 = vrot.slane %v8502, 1
        %v8952 = vrot.slane %v8506, 1
        %v8953 = vrot.slane %v8512, 1
        %v8954 = vrot.slane %v8516, 1
        %v8955 = vsel %vm6902, %v8953, %v8954
        %v8956 = vsel %vm6902, %v8952, %v8953
        %v8957 = vsel %vm6902, %v8951, %v8952
        %v8958 = vsel %vm6902, %v8950, %v8951
        %v8959 = vsel %vm6902, %v8949, %v8950
        %v8960 = vsel %vm6902, %v8948, %v8949
        %v8961 = vsel %vm6902, %v8947, %v8948
        %v8962 = vsel %vm6902, %v8946, %v8947
        %v8963 = vsel %vm6902, %v8945, %v8946
        %v8964 = vsel %vm6902, %v8944, %v8945
        %v8965 = vsel %vm6902, %v8943, %v8944
        %v8966 = vsel %vm6902, %v8942, %v8943
        %v8967 = vsel %vm6902, %v8941, %v8942
        %v8968 = vsel %vm6902, %v8940, %v8941
        %v8969 = vsel %vm6902, %v8939, %v8940
        %v8970 = vsel %vm6902, %v8954, %v8939
        %v8971 = vsel %vm7015, %v8970, 0.0
        %v8972 = vsel %vm7016, %v8969, 0.0
        %v8973 = vsel %vm7017, %v8968, 0.0
        %v8974 = vsel %vm7018, %v8967, 0.0
        %v8975 = vsel %vm7019, %v8966, 0.0
        %v8976 = vsel %vm7020, %v8965, 0.0
        %v8977 = vsel %vm7021, %v8964, 0.0
        %v8978 = vsel %vm7022, %v8963, 0.0
        %v8979 = vsel %vm7023, %v8962, 0.0
        %v8980 = vsel %vm7024, %v8961, 0.0
        %v8981 = vsel %vm7025, %v8960, 0.0
        %v8982 = vsel %vm7026, %v8959, 0.0
        %v8983 = vsel %vm7027, %v8958, 0.0
        %v8984 = vsel %vm7028, %v8957, 0.0
        %v8985 = vsel %vm7029, %v8956, 0.0
        %v8986 = vsel %vm7030, %v8955, 0.0
        %v8987 = vadd.f32 %v8923, %v8971
        %v8988 = vadd.f32 %v8924, %v8972
        %v8989 = vadd.f32 %v8925, %v8973
        %v8990 = vadd.f32 %v8926, %v8974
        %v8991 = vadd.f32 %v8927, %v8975
        %v8992 = vadd.f32 %v8928, %v8976
        %v8993 = vadd.f32 %v8929, %v8977
        %v8994 = vadd.f32 %v8930, %v8978
        %v8995 = vadd.f32 %v8931, %v8979
        %v8996 = vadd.f32 %v8932, %v8980
        %v8997 = vadd.f32 %v8933, %v8981
        %v8998 = vadd.f32 %v8934, %v8982
        %v8999 = vadd.f32 %v8935, %v8983
        %v9000 = vadd.f32 %v8936, %v8984
        %v9001 = vadd.f32 %v8937, %v8985
        %v9002 = vadd.f32 %v8938, %v8986
        %v9003 = vrot.slane %v8444, 7
        %v9004 = vrot.slane %v8448, 7
        %v9005 = vrot.slane %v8454, 7
        %v9006 = vrot.slane %v8458, 7
        %v9007 = vrot.slane %v8464, 7
        %v9008 = vrot.slane %v8468, 7
        %v9009 = vrot.slane %v8474, 7
        %v9010 = vrot.slane %v8478, 7
        %v9011 = vrot.slane %v8484, 7
        %v9012 = vrot.slane %v8488, 7
        %v9013 = vrot.slane %v8494, 7
        %v9014 = vrot.slane %v8498, 7
        %v9015 = vrot.slane %v8504, 7
        %v9016 = vrot.slane %v8508, 7
        %v9017 = vrot.slane %v8514, 7
        %v9018 = vrot.slane %v8518, 7
        %v9019 = vsel %vm6597, %v9017, %v9018
        %v9020 = vsel %vm6597, %v9016, %v9017
        %v9021 = vsel %vm6597, %v9015, %v9016
        %v9022 = vsel %vm6597, %v9014, %v9015
        %v9023 = vsel %vm6597, %v9013, %v9014
        %v9024 = vsel %vm6597, %v9012, %v9013
        %v9025 = vsel %vm6597, %v9011, %v9012
        %v9026 = vsel %vm6597, %v9010, %v9011
        %v9027 = vsel %vm6597, %v9009, %v9010
        %v9028 = vsel %vm6597, %v9008, %v9009
        %v9029 = vsel %vm6597, %v9007, %v9008
        %v9030 = vsel %vm6597, %v9006, %v9007
        %v9031 = vsel %vm6597, %v9005, %v9006
        %v9032 = vsel %vm6597, %v9004, %v9005
        %v9033 = vsel %vm6597, %v9003, %v9004
        %v9034 = vsel %vm6597, %v9018, %v9003
        %v9035 = vsel %vm7159, %v9034, 0.0
        %v9036 = vsel %vm7160, %v9033, 0.0
        %v9037 = vsel %vm7161, %v9032, 0.0
        %v9038 = vsel %vm7162, %v9031, 0.0
        %v9039 = vsel %vm7163, %v9030, 0.0
        %v9040 = vsel %vm7164, %v9029, 0.0
        %v9041 = vsel %vm7165, %v9028, 0.0
        %v9042 = vsel %vm7166, %v9027, 0.0
        %v9043 = vsel %vm7167, %v9026, 0.0
        %v9044 = vsel %vm7168, %v9025, 0.0
        %v9045 = vsel %vm7169, %v9024, 0.0
        %v9046 = vsel %vm7170, %v9023, 0.0
        %v9047 = vsel %vm7171, %v9022, 0.0
        %v9048 = vsel %vm7172, %v9021, 0.0
        %v9049 = vsel %vm7173, %v9020, 0.0
        %v9050 = vsel %vm7174, %v9019, 0.0
        %v9051 = vadd.f32 %v8987, %v9035
        %v9052 = vadd.f32 %v8988, %v9036
        %v9053 = vadd.f32 %v8989, %v9037
        %v9054 = vadd.f32 %v8990, %v9038
        %v9055 = vadd.f32 %v8991, %v9039
        %v9056 = vadd.f32 %v8992, %v9040
        %v9057 = vadd.f32 %v8993, %v9041
        %v9058 = vadd.f32 %v8994, %v9042
        %v9059 = vadd.f32 %v8995, %v9043
        %v9060 = vadd.f32 %v8996, %v9044
        %v9061 = vadd.f32 %v8997, %v9045
        %v9062 = vadd.f32 %v8998, %v9046
        %v9063 = vadd.f32 %v8999, %v9047
        %v9064 = vadd.f32 %v9000, %v9048
        %v9065 = vadd.f32 %v9001, %v9049
        %v9066 = vadd.f32 %v9002, %v9050
        %v9067 = vrot.slane %v8557, 1
        %v9068 = vrot.slane %v8561, 1
        %v9069 = vrot.slane %v8567, 1
        %v9070 = vrot.slane %v8571, 1
        %v9071 = vrot.slane %v8577, 1
        %v9072 = vrot.slane %v8581, 1
        %v9073 = vrot.slane %v8587, 1
        %v9074 = vrot.slane %v8591, 1
        %v9075 = vrot.slane %v8597, 1
        %v9076 = vrot.slane %v8601, 1
        %v9077 = vrot.slane %v8607, 1
        %v9078 = vrot.slane %v8611, 1
        %v9079 = vrot.slane %v8617, 1
        %v9080 = vrot.slane %v8621, 1
        %v9081 = vrot.slane %v8627, 1
        %v9082 = vrot.slane %v8631, 1
        %v9083 = vsel %vm6902, %v9081, %v9082
        %v9084 = vsel %vm6902, %v9080, %v9081
        %v9085 = vsel %vm6902, %v9079, %v9080
        %v9086 = vsel %vm6902, %v9078, %v9079
        %v9087 = vsel %vm6902, %v9077, %v9078
        %v9088 = vsel %vm6902, %v9076, %v9077
        %v9089 = vsel %vm6902, %v9075, %v9076
        %v9090 = vsel %vm6902, %v9074, %v9075
        %v9091 = vsel %vm6902, %v9073, %v9074
        %v9092 = vsel %vm6902, %v9072, %v9073
        %v9093 = vsel %vm6902, %v9071, %v9072
        %v9094 = vsel %vm6902, %v9070, %v9071
        %v9095 = vsel %vm6902, %v9069, %v9070
        %v9096 = vsel %vm6902, %v9068, %v9069
        %v9097 = vsel %vm6902, %v9067, %v9068
        %v9098 = vsel %vm6902, %v9082, %v9067
        %v9099 = vsel %vm7303, %v9097, 0.0
        %v9100 = vsel %vm7304, %v9096, 0.0
        %v9101 = vsel %vm7305, %v9095, 0.0
        %v9102 = vsel %vm7306, %v9094, 0.0
        %v9103 = vsel %vm7307, %v9093, 0.0
        %v9104 = vsel %vm7308, %v9092, 0.0
        %v9105 = vsel %vm7309, %v9091, 0.0
        %v9106 = vsel %vm7310, %v9090, 0.0
        %v9107 = vsel %vm7311, %v9089, 0.0
        %v9108 = vsel %vm7312, %v9088, 0.0
        %v9109 = vsel %vm7313, %v9087, 0.0
        %v9110 = vsel %vm7314, %v9086, 0.0
        %v9111 = vsel %vm7315, %v9085, 0.0
        %v9112 = vsel %vm7316, %v9084, 0.0
        %v9113 = vsel %vm7317, %v9083, 0.0
        %v9114 = vsel %vm7318, %v9098, 0.0
        %v9115 = vadd.f32 %v9051, %v9099
        %v9116 = vadd.f32 %v9052, %v9100
        %v9117 = vadd.f32 %v9053, %v9101
        %v9118 = vadd.f32 %v9054, %v9102
        %v9119 = vadd.f32 %v9055, %v9103
        %v9120 = vadd.f32 %v9056, %v9104
        %v9121 = vadd.f32 %v9057, %v9105
        %v9122 = vadd.f32 %v9058, %v9106
        %v9123 = vadd.f32 %v9059, %v9107
        %v9124 = vadd.f32 %v9060, %v9108
        %v9125 = vadd.f32 %v9061, %v9109
        %v9126 = vadd.f32 %v9062, %v9110
        %v9127 = vadd.f32 %v9063, %v9111
        %v9128 = vadd.f32 %v9064, %v9112
        %v9129 = vadd.f32 %v9065, %v9113
        %v9130 = vadd.f32 %v9066, %v9114
        %v9131 = vrot.slane %v8668, 7
        %v9132 = vrot.slane %v8672, 7
        %v9133 = vrot.slane %v8678, 7
        %v9134 = vrot.slane %v8682, 7
        %v9135 = vrot.slane %v8688, 7
        %v9136 = vrot.slane %v8692, 7
        %v9137 = vrot.slane %v8698, 7
        %v9138 = vrot.slane %v8702, 7
        %v9139 = vrot.slane %v8708, 7
        %v9140 = vrot.slane %v8712, 7
        %v9141 = vrot.slane %v8718, 7
        %v9142 = vrot.slane %v8722, 7
        %v9143 = vrot.slane %v8728, 7
        %v9144 = vrot.slane %v8732, 7
        %v9145 = vrot.slane %v8738, 7
        %v9146 = vrot.slane %v8742, 7
        %v9147 = vsel %vm6597, %v9145, %v9146
        %v9148 = vsel %vm6597, %v9144, %v9145
        %v9149 = vsel %vm6597, %v9143, %v9144
        %v9150 = vsel %vm6597, %v9142, %v9143
        %v9151 = vsel %vm6597, %v9141, %v9142
        %v9152 = vsel %vm6597, %v9140, %v9141
        %v9153 = vsel %vm6597, %v9139, %v9140
        %v9154 = vsel %vm6597, %v9138, %v9139
        %v9155 = vsel %vm6597, %v9137, %v9138
        %v9156 = vsel %vm6597, %v9136, %v9137
        %v9157 = vsel %vm6597, %v9135, %v9136
        %v9158 = vsel %vm6597, %v9134, %v9135
        %v9159 = vsel %vm6597, %v9133, %v9134
        %v9160 = vsel %vm6597, %v9132, %v9133
        %v9161 = vsel %vm6597, %v9131, %v9132
        %v9162 = vsel %vm6597, %v9146, %v9131
        %v9163 = vsel %vm7479, %v9161, 0.0
        %v9164 = vsel %vm7480, %v9160, 0.0
        %v9165 = vsel %vm7481, %v9159, 0.0
        %v9166 = vsel %vm7482, %v9158, 0.0
        %v9167 = vsel %vm7483, %v9157, 0.0
        %v9168 = vsel %vm7484, %v9156, 0.0
        %v9169 = vsel %vm7485, %v9155, 0.0
        %v9170 = vsel %vm7486, %v9154, 0.0
        %v9171 = vsel %vm7487, %v9153, 0.0
        %v9172 = vsel %vm7488, %v9152, 0.0
        %v9173 = vsel %vm7489, %v9151, 0.0
        %v9174 = vsel %vm7490, %v9150, 0.0
        %v9175 = vsel %vm7491, %v9149, 0.0
        %v9176 = vsel %vm7492, %v9148, 0.0
        %v9177 = vsel %vm7493, %v9147, 0.0
        %v9178 = vsel %vm7494, %v9162, 0.0
        %v9179 = vadd.f32 %v9115, %v9163
        %v9180 = vadd.f32 %v9116, %v9164
        %v9181 = vadd.f32 %v9117, %v9165
        %v9182 = vadd.f32 %v9118, %v9166
        %v9183 = vadd.f32 %v9119, %v9167
        %v9184 = vadd.f32 %v9120, %v9168
        %v9185 = vadd.f32 %v9121, %v9169
        %v9186 = vadd.f32 %v9122, %v9170
        %v9187 = vadd.f32 %v9123, %v9171
        %v9188 = vadd.f32 %v9124, %v9172
        %v9189 = vadd.f32 %v9125, %v9173
        %v9190 = vadd.f32 %v9126, %v9174
        %v9191 = vadd.f32 %v9127, %v9175
        %v9192 = vadd.f32 %v9128, %v9176
        %v9193 = vadd.f32 %v9129, %v9177
        %v9194 = vadd.f32 %v9130, %v9178
        %v9195 = vsel %vm7591, %v8674, 0.0
        %v9196 = vsel %vm7592, %v8680, 0.0
        %v9197 = vsel %vm7593, %v8684, 0.0
        %v9198 = vsel %vm7594, %v8690, 0.0
        %v9199 = vsel %vm7595, %v8694, 0.0
        %v9200 = vsel %vm7596, %v8700, 0.0
        %v9201 = vsel %vm7597, %v8704, 0.0
        %v9202 = vsel %vm7598, %v8710, 0.0
        %v9203 = vsel %vm7599, %v8714, 0.0
        %v9204 = vsel %vm7600, %v8720, 0.0
        %v9205 = vsel %vm7601, %v8724, 0.0
        %v9206 = vsel %vm7602, %v8730, 0.0
        %v9207 = vsel %vm7603, %v8734, 0.0
        %v9208 = vsel %vm7604, %v8740, 0.0
        %v9209 = vsel %vm7605, %v8744, 0.0
        %v9210 = vsel %vm7606, %v8670, 0.0
        %v9211 = vadd.f32 %v9179, %v9195
        %v9212 = vadd.f32 %v9180, %v9196
        %v9213 = vadd.f32 %v9181, %v9197
        %v9214 = vadd.f32 %v9182, %v9198
        %v9215 = vadd.f32 %v9183, %v9199
        %v9216 = vadd.f32 %v9184, %v9200
        %v9217 = vadd.f32 %v9185, %v9201
        %v9218 = vadd.f32 %v9186, %v9202
        %v9219 = vadd.f32 %v9187, %v9203
        %v9220 = vadd.f32 %v9188, %v9204
        %v9221 = vadd.f32 %v9189, %v9205
        %v9222 = vadd.f32 %v9190, %v9206
        %v9223 = vadd.f32 %v9191, %v9207
        %v9224 = vadd.f32 %v9192, %v9208
        %v9225 = vadd.f32 %v9193, %v9209
        %v9226 = vadd.f32 %v9194, %v9210
        %v9227 = vrot.slane %v8781, 1
        %v9228 = vrot.slane %v8784, 1
        %v9229 = vrot.slane %v8789, 1
        %v9230 = vrot.slane %v8792, 1
        %v9231 = vrot.slane %v8797, 1
        %v9232 = vrot.slane %v8800, 1
        %v9233 = vrot.slane %v8805, 1
        %v9234 = vrot.slane %v8808, 1
        %v9235 = vrot.slane %v8813, 1
        %v9236 = vrot.slane %v8816, 1
        %v9237 = vrot.slane %v8821, 1
        %v9238 = vrot.slane %v8824, 1
        %v9239 = vrot.slane %v8829, 1
        %v9240 = vrot.slane %v8832, 1
        %v9241 = vrot.slane %v8837, 1
        %v9242 = vrot.slane %v8840, 1
        %v9243 = vsel %vm6902, %v9241, %v9242
        %v9244 = vsel %vm6902, %v9240, %v9241
        %v9245 = vsel %vm6902, %v9239, %v9240
        %v9246 = vsel %vm6902, %v9238, %v9239
        %v9247 = vsel %vm6902, %v9237, %v9238
        %v9248 = vsel %vm6902, %v9236, %v9237
        %v9249 = vsel %vm6902, %v9235, %v9236
        %v9250 = vsel %vm6902, %v9234, %v9235
        %v9251 = vsel %vm6902, %v9233, %v9234
        %v9252 = vsel %vm6902, %v9232, %v9233
        %v9253 = vsel %vm6902, %v9231, %v9232
        %v9254 = vsel %vm6902, %v9230, %v9231
        %v9255 = vsel %vm6902, %v9229, %v9230
        %v9256 = vsel %vm6902, %v9228, %v9229
        %v9257 = vsel %vm6902, %v9227, %v9228
        %v9258 = vsel %vm6902, %v9242, %v9227
        %v9259 = vsel %vm7751, %v9256, 0.0
        %v9260 = vsel %vm7752, %v9255, 0.0
        %v9261 = vsel %vm7753, %v9254, 0.0
        %v9262 = vsel %vm7754, %v9253, 0.0
        %v9263 = vsel %vm7755, %v9252, 0.0
        %v9264 = vsel %vm7756, %v9251, 0.0
        %v9265 = vsel %vm7757, %v9250, 0.0
        %v9266 = vsel %vm7758, %v9249, 0.0
        %v9267 = vsel %vm7759, %v9248, 0.0
        %v9268 = vsel %vm7760, %v9247, 0.0
        %v9269 = vsel %vm7761, %v9246, 0.0
        %v9270 = vsel %vm7762, %v9245, 0.0
        %v9271 = vsel %vm7763, %v9244, 0.0
        %v9272 = vsel %vm7764, %v9243, 0.0
        %v9273 = vsel %vm7765, %v9258, 0.0
        %v9274 = vsel %vm7766, %v9257, 0.0
        %v9275 = vadd.f32 %v9211, %v9259
        %v9276 = vadd.f32 %v9212, %v9260
        %v9277 = vadd.f32 %v9213, %v9261
        %v9278 = vadd.f32 %v9214, %v9262
        %v9279 = vadd.f32 %v9215, %v9263
        %v9280 = vadd.f32 %v9216, %v9264
        %v9281 = vadd.f32 %v9217, %v9265
        %v9282 = vadd.f32 %v9218, %v9266
        %v9283 = vadd.f32 %v9219, %v9267
        %v9284 = vadd.f32 %v9220, %v9268
        %v9285 = vadd.f32 %v9221, %v9269
        %v9286 = vadd.f32 %v9222, %v9270
        %v9287 = vadd.f32 %v9223, %v9271
        %v9288 = vadd.f32 %v9224, %v9272
        %v9289 = vadd.f32 %v9225, %v9273
        %v9290 = vadd.f32 %v9226, %v9274
        %v9291 = vld [vmem:[#allocation8] sm:$0x1]
        %v9293 = vlaneseq
        %v9294 = vshrl.u32 %v9293, 7
        %v9295 = vsub.s32 0, %v9294
        %v9296 = vrot.slane %v9291, %v9295
        %v9298 = vadd.f32 %v9275, %v9296
        %v9299 = vadd.f32 %v9276, %v9296
        %v9300 = vadd.f32 %v9277, %v9296
        %v9301 = vadd.f32 %v9278, %v9296
        %v9302 = vadd.f32 %v9279, %v9296
        %v9303 = vadd.f32 %v9280, %v9296
        %v9304 = vadd.f32 %v9281, %v9296
        %v9305 = vadd.f32 %v9282, %v9296
        %v9306 = vadd.f32 %v9283, %v9296
        %v9307 = vadd.f32 %v9284, %v9296
        %v9308 = vadd.f32 %v9285, %v9296
        %v9309 = vadd.f32 %v9286, %v9296
        %v9310 = vadd.f32 %v9287, %v9296
        %v9311 = vadd.f32 %v9288, %v9296
        %v9312 = vadd.f32 %v9289, %v9296
        %v9313 = vadd.f32 %v9290, %v9296
        %v9314 = vmax.f32 %v9298, 0.0
        %v9315 = vmax.f32 %v9299, 0.0
        %v9316 = vmax.f32 %v9300, 0.0
        %v9317 = vmax.f32 %v9301, 0.0
        %v9318 = vmax.f32 %v9302, 0.0
        %v9319 = vmax.f32 %v9303, 0.0
        %v9320 = vmax.f32 %v9304, 0.0
        %v9321 = vmax.f32 %v9305, 0.0
        %v9322 = vmax.f32 %v9306, 0.0
        %v9323 = vmax.f32 %v9307, 0.0
        %v9324 = vmax.f32 %v9308, 0.0
        %v9325 = vmax.f32 %v9309, 0.0
        %v9326 = vmax.f32 %v9310, 0.0
        %v9327 = vmax.f32 %v9311, 0.0
        %v9328 = vmax.f32 %v9312, 0.0
        %v9329 = vmax.f32 %v9313, 0.0
        %9330 = vst [vmem:[%s361] sm:$0xff] %v9314
        %9331 = vst [vmem:[%s361 + $0x8] sm:$0xff] %v9315
        %9332 = vst [vmem:[%s361 + $0x10] sm:$0xff] %v9316
        %9333 = vst [vmem:[%s361 + $0x18] sm:$0xff] %v9317
        %9334 = vst [vmem:[%s361 + $0x20] sm:$0xff] %v9318
        %9335 = vst [vmem:[%s361 + $0x28] sm:$0xff] %v9319
        %9336 = vst [vmem:[%s361 + $0x30] sm:$0xff] %v9320
        %9337 = vst [vmem:[%s361 + $0x38] sm:$0xff] %v9321
        %9338 = vst [vmem:[%s361 + $0x40] sm:$0xff] %v9322
        %9339 = vst [vmem:[%s361 + $0x48] sm:$0xff] %v9323
        %9340 = vst [vmem:[%s361 + $0x50] sm:$0xff] %v9324
        %9341 = vst [vmem:[%s361 + $0x58] sm:$0xff] %v9325
        %9342 = vst [vmem:[%s361 + $0x60] sm:$0xff] %v9326
        %9343 = vst [vmem:[%s361 + $0x68] sm:$0xff] %v9327
        %9344 = vst [vmem:[%s361 + $0x70] sm:$0xff] %v9328
        %9345 = vst [vmem:[%s361 + $0x78] sm:$0xff] %v9329
        %s9346 = sand.u32 %s194, 1
        %s9347 = scalar_lea.sflag [#allocation4], %s9346
        %s9348 = sand.u32 %s194, 1
        %s9349 = smul.addr %s9348, 128
        %s9350 = scalar_lea.vmem [#allocation10], %s9349
        // Predicated region
        $region65: #{cnn_forward.1} parent=47 // pred_check
          %p9351 = pneg %p204
        $region66: #{cnn_forward.1} parent=47 // pred_check_branch
          %9353 = sbr.rel (%p9351) target = $region68
        $region67: #{cnn_forward.1} parent=47 // pred_region
          %s9354 = smul.u32 16, %s24
          %s9356 = ssub.s32 2048, 2048
          %9357 = vsyncadd %s9347, %s9356
          %s9358 = smul.addr %s9354, 128
          %s9359 = scalar_lea.hbm %s7, %s9358
          %s9360 = sshll.u32 %s9350, 4
          %s9361 = int_to_ptr.vmem [resolvable:$true] %s9360
          %9366 = dma.vmem_to_hbm [thread:$0]  %s9361, 2048, %s9359, %s9347, 128, 128, 8
        $region68: #{cnn_forward.1} parent=47 // pred_fallthru
          _
      $region48: #{cnn_forward.1} parent=5 // pred_fallthru
        _
      %p9367 = scmp.le.s32.totalorder 2, %s19
      // Predicated region
      $region69: #{cnn_forward.1} parent=5 // pred_check
        %p9368 = pneg %p9367
      $region70: #{cnn_forward.1} parent=5 // pred_check_branch
        %9370 = sbr.rel (%p9368) target = $region72
      $region71: #{cnn_forward.1} parent=5 // pred_region
        %s9371 = ssub.s32 %s19, 2
        // Predicated region
        $region73: #{cnn_forward.1} parent=71 // pred_check
          %p9372 = pneg %p210
        $region74: #{cnn_forward.1} parent=71 // pred_check_branch
          %9374 = sbr.rel (%p9372) target = $region76
        $region75: #{cnn_forward.1} parent=71 // pred_region
          %s9375 = sand.u32 %s195, 1
          %s9376 = scalar_lea.sflag [#allocation4], %s9375
          %s9377 = sand.u32 %s195, 1
          %s9378 = smul.addr %s9377, 128
          %s9379 = scalar_lea.vmem [#allocation10], %s9378
          %9380 = dma.done %s9376, 2048
        $region76: #{cnn_forward.1} parent=71 // pred_fallthru
          _
      $region72: #{cnn_forward.1} parent=5 // pred_fallthru
        _
    $region6: #{cnn_forward.1} parent=1 // loop_footer
      %s23 = sadd.s32 1, %s19
    $region7: #{cnn_forward.1} parent=1 // loop_footer_branch
      %18 = sbr.rel target = $region3
    $region8: #{cnn_forward.1} parent=1 // loop_exit
      _
    %9381 = vsyncpa [#allocation3], 1
    %s9382 = scalar_lea.sflag [#allocation3], 1
    %9383 = vsyncpa %s9382, 1
    %9384 = vsyncpa [#allocation6], 1
    %9385 = vsyncpa [#allocation9], 1
    %9386 = vsyncpa [#allocation4], 1
    %s9387 = scalar_lea.sflag [#allocation4], 1
    %9388 = vsyncpa %s9387, 1

</llo_original>
